<compile_context>
chip_gen: v6e
topology: v6e:2x2x1
jax: 0.10.0
libtpu: 0.0.40
codegen_flags: <defaults>
</compile_context>

<pallas_src>
import functools

import numpy as np

import jax
import jax.numpy as jnp
from jax.experimental import pallas as pl
from jax.experimental.pallas import tpu as pltpu


# ----------------------------------------------------------------------------
# One-time construction of gather / scatter (0/1) matrices and packed weights
# ----------------------------------------------------------------------------
# Valid (output-phase a,b ; input-tap di,dj) combos of the stride-2 k=3 deconv:
# kernel element (1+a-2*di, 1+b-2*dj) must be inside the 3x3 kernel.
_DECONV_COMBOS = tuple(
    (a, b, di, dj)
    for a in range(2) for b in range(2) for di in range(2) for dj in range(2)
    if 0 <= 1 + a - 2 * di < 3 and 0 <= 1 + b - 2 * dj < 3)  # 9 combos


def _conv_selection_mats(H, W, k=3, stride=2, pad=1):
    """S[t] (H*W, Ho*Wo): column (ho,wo) selects input pixel (2ho-1+kh, 2wo-1+kw)."""
    Ho = (H + 2 * pad - k) // stride + 1
    Wo = (W + 2 * pad - k) // stride + 1
    S = np.zeros((k * k, H * W, Ho * Wo), np.float32)
    for kh in range(k):
        for kw in range(k):
            t = kh * k + kw
            for ho in range(Ho):
                hi = stride * ho - pad + kh
                if hi < 0 or hi >= H:
                    continue
                for wo in range(Wo):
                    wi = stride * wo - pad + kw
                    if wi < 0 or wi >= W:
                        continue
                    S[t, hi * W + wi, ho * Wo + wo] = 1.0
    return S, Ho, Wo


def _deconv_gather_mats(H, W):
    """R[di*2+dj] (H*W, H*W): column (m,q) selects input pixel (m+di, q+dj) (0 at edge)."""
    R = np.zeros((4, H * W, H * W), np.float32)
    for di in range(2):
        for dj in range(2):
            d = di * 2 + dj
            for m in range(H - di):
                for q in range(W - dj):
                    R[d, (m + di) * W + (q + dj), m * W + q] = 1.0
    return R


def _deconv_scatter_mats(H, W):
    """E[a*2+b] (H*W, 4*H*W): places phase pixel (m,q) at output (2m+a, 2q+b)."""
    Wo = 2 * W
    E = np.zeros((4, H * W, 4 * H * W), np.float32)
    for a in range(2):
        for b in range(2):
            ph = a * 2 + b
            for m in range(H):
                for q in range(W):
                    E[ph, m * W + q, (2 * m + a) * Wo + (2 * q + b)] = 1.0
    return E


# ----------------------------------------------------------------------------
# Parameter construction (deterministic, synthetic, PyTorch-layout weights)
# ----------------------------------------------------------------------------
def init_params(key):
    def conv_w(key, oc, ic, k=3):
        fan_in = ic * k * k
        bound = 1.0 / jnp.sqrt(fan_in)
        kw, kb = jax.random.split(key)
        w = jax.random.uniform(kw, (oc, ic, k, k), jnp.float32, -bound, bound)
        b = jax.random.uniform(kb, (oc,), jnp.float32, -bound, bound)
        return w, b

    def deconv_w(key, ic, oc, k=3):
        fan_in = ic * k * k
        bound = 1.0 / jnp.sqrt(fan_in)
        kw, kb = jax.random.split(key)
        w = jax.random.uniform(kw, (ic, oc, k, k), jnp.float32, -bound, bound)
        b = jax.random.uniform(kb, (oc,), jnp.float32, -bound, bound)
        return w, b

    keys = jax.random.split(key, 6)
    encoder = [conv_w(keys[0], 16, 3), conv_w(keys[1], 32, 16), conv_w(keys[2], 64, 32)]
    decoder = [deconv_w(keys[3], 64, 32), deconv_w(keys[4], 32, 16), deconv_w(keys[5], 16, 3)]
    return {"encoder": encoder, "decoder": decoder}


def prepare_params(params, image_hw=(16, 16)):
    """One-time packing: per-tap weight stacks (bf16), gather/scatter matrices (f32),
    biases as (OC,1) f32.  Nothing here runs inside the jitted forward."""
    H, W = image_hw
    enc = []
    h, w = H, W
    for wt, bvec in params["encoder"]:                 # wt: (OC, IC, 3, 3)
        oc = wt.shape[0]
        S, ho, wo = _conv_selection_mats(h, w)
        w9 = jnp.stack([wt[:, :, kh, kw] for kh in range(3) for kw in range(3)])
        enc.append((w9.astype(jnp.bfloat16),
                    jnp.asarray(S),
                    bvec.reshape(oc, 1).astype(jnp.float32)))
        h, w = ho, wo
    dec = []
    for wt, bvec in params["decoder"]:                 # wt: (IC, OC, 3, 3)
        oc = wt.shape[1]
        R = _deconv_gather_mats(h, w)
        E = _deconv_scatter_mats(h, w)
        wd = jnp.stack([wt[:, :, 1 + a - 2 * di, 1 + b - 2 * dj].T
                        for (a, b, di, dj) in _DECONV_COMBOS])   # (9, OC, IC)
        dec.append((wd.astype(jnp.bfloat16),
                    jnp.asarray(R),
                    jnp.asarray(E),
                    bvec.reshape(oc, 1).astype(jnp.float32)))
        h, w = 2 * h, 2 * w
    return {"enc": enc, "dec": dec}


# ----------------------------------------------------------------------------
# Fused whole-network Pallas kernel (one image per grid step)
# ----------------------------------------------------------------------------
def _autoencoder_kernel(*refs, n_enc, n_dec):
    x_ref = refs[0]
    o_ref = refs[-1]
    p = refs[1:-1]

    h = x_ref[0]                                   # (C, H*W) f32 activation
    idx = 0

    # ---- encoder: Conv2d(k3,s2,p1) + ReLU, as 9 x (gather matmul + weight matmul)
    for _ in range(n_enc):
        w9, s9, bias = p[idx], p[idx + 1], p[idx + 2]
        idx += 3
        acc = None
        for t in range(9):
            tap = jnp.dot(h, s9[t], preferred_element_type=jnp.float32)        # exact gather
            c = jnp.dot(w9[t], tap.astype(jnp.bfloat16),
                        preferred_element_type=jnp.float32)                    # bf16 MXU
            acc = c if acc is None else acc + c
        h = jnp.maximum(acc + bias[...], 0.0)                                   # f32 epilogue

    # ---- decoder: ConvTranspose2d(k3,s2,p1,op1), phase-decomposed
    for li in range(n_dec):
        wd, r4, e4, bias = p[idx], p[idx + 1], p[idx + 2], p[idx + 3]
        idx += 4
        # 2x2 neighbour taps of the input (bottom/right boundary handled by zeros in R)
        taps = [jnp.dot(h, r4[d], preferred_element_type=jnp.float32).astype(jnp.bfloat16)
                for d in range(4)]
        zph = [None, None, None, None]
        for widx, (a, b, di, dj) in enumerate(_DECONV_COMBOS):
            c = jnp.dot(wd[widx], taps[di * 2 + dj], preferred_element_type=jnp.float32)
            ph = a * 2 + b
            zph[ph] = c if zph[ph] is None else zph[ph] + c
        # interleave the 4 output phases into the (Cout, 4*H*W) full-resolution map
        z = None
        for ph in range(4):
            zi = jnp.dot(zph[ph], e4[ph], preferred_element_type=jnp.float32)   # exact scatter
            z = zi if z is None else z + zi
        z = z + bias[...]
        if li == n_dec - 1:
            h = 1.0 / (1.0 + jnp.exp(-z))          # exact sigmoid, f32
        else:
            h = jnp.maximum(z, 0.0)

    o_ref[0] = h.astype(o_ref.dtype)


def _build_cost(x2, enc_layers, dec_layers, out_elems):
    n = x2.shape[0]
    flops = 0
    for w9, s9, _ in enc_layers:
        n_taps, hw_in, hw_out = s9.shape
        _, oc, ic = w9.shape
        flops += n * n_taps * 2 * (ic * hw_in * hw_out + oc * ic * hw_out)
    for wd, r, e, _ in dec_layers:
        n_w, oc, ic = wd.shape
        _, hw, _ = r.shape
        _, _, hw_up = e.shape
        flops += n * (4 * 2 * ic * hw * hw + n_w * 2 * oc * ic * hw + 4 * 2 * oc * hw * hw_up)
    flat = [a for layer in enc_layers for a in layer] + [a for layer in dec_layers for a in layer]
    bytes_accessed = (x2.size * x2.dtype.itemsize + out_elems * 4
                      + sum(int(a.size) * a.dtype.itemsize for a in flat))
    return pl.CostEstimate(flops=int(flops), transcendentals=int(out_elems),
                           bytes_accessed=int(bytes_accessed))


def autoencoder_forward(x, prepared):
    """x: (N, 3, H, W) f32 -> (N, 3, H, W) f32, single fused pallas_call."""
    N, C, H, W = x.shape
    enc_layers = prepared["enc"]
    dec_layers = prepared["dec"]

    flat = []
    for layer in enc_layers:
        flat.extend(layer)
    for layer in dec_layers:
        flat.extend(layer)

    hw_in = H * W
    hw_out = dec_layers[-1][2].shape[2]            # final E: (4, hw, hw_out)
    out_ch = dec_layers[-1][0].shape[1]            # final WD: (9, Cout, Cin)
    x2 = x.reshape(N, C, hw_in)                    # boundary reshape only (no transposes)

    def const_spec(a):
        zeros = (0,) * a.ndim
        return pl.BlockSpec(a.shape, lambda n, _z=zeros: _z)   # resident full block

    in_specs = [pl.BlockSpec((1, C, hw_in), lambda n: (n, 0, 0))]
    in_specs += [const_spec(a) for a in flat]
    out_spec = pl.BlockSpec((1, out_ch, hw_out), lambda n: (n, 0, 0))

    cost = _build_cost(x2, enc_layers, dec_layers, N * out_ch * hw_out)
    kernel = functools.partial(_autoencoder_kernel,
                               n_enc=len(enc_layers), n_dec=len(dec_layers))

    out = pl.pallas_call(
        kernel,
        out_shape=jax.ShapeDtypeStruct((N, out_ch, hw_out), jnp.float32),
        grid=(N,),                                  # batch -> "parallel" (v7x dual-TC)
        in_specs=in_specs,
        out_specs=out_spec,
        compiler_params=pltpu.CompilerParams(
            dimension_semantics=("parallel",),
            vmem_limit_bytes=32 * 1024 * 1024),
        cost_estimate=cost,
    )(x2, *flat)
    return out.reshape(N, out_ch, H, W)


# ----------------------------------------------------------------------------
# Pure-JAX reference (f32, lax convolutions) for a runtime sanity check
# ----------------------------------------------------------------------------
def reference_forward(params, x):
    h = x
    for w, b in params["encoder"]:
        h = jax.lax.conv_general_dilated(
            h, w, window_strides=(2, 2), padding=((1, 1), (1, 1)),
            dimension_numbers=("NCHW", "OIHW", "NCHW"))
        h = jax.nn.relu(h + b.reshape(1, -1, 1, 1))
    dec = params["decoder"]
    for i, (w, b) in enumerate(dec):
        w_flip = jnp.flip(w, (2, 3)).transpose(1, 0, 2, 3)       # (Cout, Cin, 3, 3)
        h = jax.lax.conv_general_dilated(
            h, w_flip, window_strides=(1, 1), padding=((1, 2), (1, 2)),
            lhs_dilation=(2, 2), dimension_numbers=("NCHW", "OIHW", "NCHW"))
        h = h + b.reshape(1, -1, 1, 1)
        h = jax.nn.sigmoid(h) if i == len(dec) - 1 else jax.nn.relu(h)
    return h


if __name__ == "__main__":
    key = jax.random.PRNGKey(0)
    kx, kp = jax.random.split(key)
    x = jax.random.normal(kx, (2, 3, 16, 16), dtype=jnp.float32)   # NCHW
    params = init_params(kp)
    prepared = prepare_params(params, image_hw=(16, 16))           # one-time packing

    fwd = jax.jit(autoencoder_forward)
    out = jax.block_until_ready(fwd(x, prepared))

    assert out.shape == (2, 3, 16, 16), out.shape
    assert out.dtype == jnp.float32
    assert bool(jnp.all(out >= 0.0)) and bool(jnp.all(out <= 1.0))

    ref = jax.block_until_ready(jax.jit(reference_forward)(params, x))
    np.testing.assert_allclose(np.asarray(out), np.asarray(ref), rtol=5e-2, atol=5e-2)

    print("KERNEL_OK")
</pallas_src>

<mosaic_0001>
module attributes {stable_mosaic.version = 11 : i64} {
  func.func @_autoencoder_kernel(%arg0: i32, %arg1: memref<1x3x256xf32, #tpu.memory_space<vmem>>, %arg2: memref<9x16x3xbf16, #tpu.memory_space<vmem>>, %arg3: memref<9x256x64xf32, #tpu.memory_space<vmem>>, %arg4: memref<16x1xf32, #tpu.memory_space<vmem>>, %arg5: memref<9x32x16xbf16, #tpu.memory_space<vmem>>, %arg6: memref<9x64x16xf32, #tpu.memory_space<vmem>>, %arg7: memref<32x1xf32, #tpu.memory_space<vmem>>, %arg8: memref<9x64x32xbf16, #tpu.memory_space<vmem>>, %arg9: memref<9x16x4xf32, #tpu.memory_space<vmem>>, %arg10: memref<64x1xf32, #tpu.memory_space<vmem>>, %arg11: memref<9x32x64xbf16, #tpu.memory_space<vmem>>, %arg12: memref<4x4x4xf32, #tpu.memory_space<vmem>>, %arg13: memref<4x4x16xf32, #tpu.memory_space<vmem>>, %arg14: memref<32x1xf32, #tpu.memory_space<vmem>>, %arg15: memref<9x16x32xbf16, #tpu.memory_space<vmem>>, %arg16: memref<4x16x16xf32, #tpu.memory_space<vmem>>, %arg17: memref<4x16x64xf32, #tpu.memory_space<vmem>>, %arg18: memref<16x1xf32, #tpu.memory_space<vmem>>, %arg19: memref<9x3x16xbf16, #tpu.memory_space<vmem>>, %arg20: memref<4x64x64xf32, #tpu.memory_space<vmem>>, %arg21: memref<4x64x256xf32, #tpu.memory_space<vmem>>, %arg22: memref<3x1xf32, #tpu.memory_space<vmem>>, %arg23: memref<1x3x256xf32, #tpu.memory_space<vmem>>) attributes {dimension_semantics = [#tpu.dimension_semantics<parallel>], iteration_bounds = array<i64: 2>, scalar_prefetch = 0 : i64, scratch_operands = 0 : i64, tpu.core_type = #tpu.core_type<tc>, window_params = [{transform_indices = @transform_0, window_bounds = array<i64: 1, 3, 256>}, {pipeline_mode = #tpu.pipeline_mode<synchronous>, transform_indices = @transform_1, window_bounds = array<i64: 9, 16, 3>}, {pipeline_mode = #tpu.pipeline_mode<synchronous>, transform_indices = @transform_2, window_bounds = array<i64: 9, 256, 64>}, {pipeline_mode = #tpu.pipeline_mode<synchronous>, transform_indices = @transform_3, window_bounds = array<i64: 16, 1>}, {pipeline_mode = #tpu.pipeline_mode<synchronous>, transform_indices = @transform_4, window_bounds = array<i64: 9, 32, 16>}, {pipeline_mode = #tpu.pipeline_mode<synchronous>, transform_indices = @transform_5, window_bounds = array<i64: 9, 64, 16>}, {pipeline_mode = #tpu.pipeline_mode<synchronous>, transform_indices = @transform_6, window_bounds = array<i64: 32, 1>}, {pipeline_mode = #tpu.pipeline_mode<synchronous>, transform_indices = @transform_7, window_bounds = array<i64: 9, 64, 32>}, {pipeline_mode = #tpu.pipeline_mode<synchronous>, transform_indices = @transform_8, window_bounds = array<i64: 9, 16, 4>}, {pipeline_mode = #tpu.pipeline_mode<synchronous>, transform_indices = @transform_9, window_bounds = array<i64: 64, 1>}, {pipeline_mode = #tpu.pipeline_mode<synchronous>, transform_indices = @transform_10, window_bounds = array<i64: 9, 32, 64>}, {pipeline_mode = #tpu.pipeline_mode<synchronous>, transform_indices = @transform_11, window_bounds = array<i64: 4, 4, 4>}, {pipeline_mode = #tpu.pipeline_mode<synchronous>, transform_indices = @transform_12, window_bounds = array<i64: 4, 4, 16>}, {pipeline_mode = #tpu.pipeline_mode<synchronous>, transform_indices = @transform_13, window_bounds = array<i64: 32, 1>}, {pipeline_mode = #tpu.pipeline_mode<synchronous>, transform_indices = @transform_14, window_bounds = array<i64: 9, 16, 32>}, {pipeline_mode = #tpu.pipeline_mode<synchronous>, transform_indices = @transform_15, window_bounds = array<i64: 4, 16, 16>}, {pipeline_mode = #tpu.pipeline_mode<synchronous>, transform_indices = @transform_16, window_bounds = array<i64: 4, 16, 64>}, {pipeline_mode = #tpu.pipeline_mode<synchronous>, transform_indices = @transform_17, window_bounds = array<i64: 16, 1>}, {pipeline_mode = #tpu.pipeline_mode<synchronous>, transform_indices = @transform_18, window_bounds = array<i64: 9, 3, 16>}, {pipeline_mode = #tpu.pipeline_mode<synchronous>, transform_indices = @transform_19, window_bounds = array<i64: 4, 64, 64>}, {pipeline_mode = #tpu.pipeline_mode<synchronous>, transform_indices = @transform_20, window_bounds = array<i64: 4, 64, 256>}, {pipeline_mode = #tpu.pipeline_mode<synchronous>, transform_indices = @transform_21, window_bounds = array<i64: 3, 1>}, {transform_indices = @transform_22, window_bounds = array<i64: 1, 3, 256>}]} {
    %c0 = arith.constant 0 : index
    %c0_0 = arith.constant 0 : index
    %c0_1 = arith.constant 0 : index
    %0 = vector.load %arg1[%c0, %c0_0, %c0_1] : memref<1x3x256xf32, #tpu.memory_space<vmem>>, vector<1x3x256xf32>
    %1 = vector.shape_cast %0 : vector<1x3x256xf32> to vector<3x256xf32>
    %c0_2 = arith.constant 0 : index
    %c0_3 = arith.constant 0 : index
    %c0_4 = arith.constant 0 : index
    %2 = vector.load %arg3[%c0_2, %c0_3, %c0_4] : memref<9x256x64xf32, #tpu.memory_space<vmem>>, vector<1x256x64xf32>
    %3 = vector.shape_cast %2 : vector<1x256x64xf32> to vector<256x64xf32>
    %cst = arith.constant dense<0.000000e+00> : vector<3x64xf32>
    %4 = tpu.matmul %1, %3, %cst {dimension_numbers = #tpu.dot_dimension_numbers<[1], [0], [0], [1], [0, 0, 1, 1], [], []>} : vector<3x256xf32>, vector<256x64xf32>, vector<3x64xf32> -> vector<3x64xf32>
    %c0_5 = arith.constant 0 : index
    %c0_6 = arith.constant 0 : index
    %c0_7 = arith.constant 0 : index
    %5 = vector.load %arg2[%c0_5, %c0_6, %c0_7] : memref<9x16x3xbf16, #tpu.memory_space<vmem>>, vector<1x16x3xbf16>
    %6 = vector.shape_cast %5 : vector<1x16x3xbf16> to vector<16x3xbf16>
    %7 = arith.truncf %4 : vector<3x64xf32> to vector<3x64xbf16>
    %cst_8 = arith.constant dense<0.000000e+00> : vector<16x64xf32>
    %8 = tpu.matmul %6, %7, %cst_8 {dimension_numbers = #tpu.dot_dimension_numbers<[1], [0], [0], [1], [0, 0, 1, 1], [], []>} : vector<16x3xbf16>, vector<3x64xbf16>, vector<16x64xf32> -> vector<16x64xf32>
    %c1 = arith.constant 1 : index
    %c0_9 = arith.constant 0 : index
    %c0_10 = arith.constant 0 : index
    %9 = vector.load %arg3[%c1, %c0_9, %c0_10] : memref<9x256x64xf32, #tpu.memory_space<vmem>>, vector<1x256x64xf32>
    %10 = vector.shape_cast %9 : vector<1x256x64xf32> to vector<256x64xf32>
    %cst_11 = arith.constant dense<0.000000e+00> : vector<3x64xf32>
    %11 = tpu.matmul %1, %10, %cst_11 {dimension_numbers = #tpu.dot_dimension_numbers<[1], [0], [0], [1], [0, 0, 1, 1], [], []>} : vector<3x256xf32>, vector<256x64xf32>, vector<3x64xf32> -> vector<3x64xf32>
    %c1_12 = arith.constant 1 : index
    %c0_13 = arith.constant 0 : index
    %c0_14 = arith.constant 0 : index
    %12 = vector.load %arg2[%c1_12, %c0_13, %c0_14] : memref<9x16x3xbf16, #tpu.memory_space<vmem>>, vector<1x16x3xbf16>
    %13 = vector.shape_cast %12 : vector<1x16x3xbf16> to vector<16x3xbf16>
    %14 = arith.truncf %11 : vector<3x64xf32> to vector<3x64xbf16>
    %cst_15 = arith.constant dense<0.000000e+00> : vector<16x64xf32>
    %15 = tpu.matmul %13, %14, %cst_15 {dimension_numbers = #tpu.dot_dimension_numbers<[1], [0], [0], [1], [0, 0, 1, 1], [], []>} : vector<16x3xbf16>, vector<3x64xbf16>, vector<16x64xf32> -> vector<16x64xf32>
    %16 = arith.addf %8, %15 : vector<16x64xf32>
    %c2 = arith.constant 2 : index
    %c0_16 = arith.constant 0 : index
    %c0_17 = arith.constant 0 : index
    %17 = vector.load %arg3[%c2, %c0_16, %c0_17] : memref<9x256x64xf32, #tpu.memory_space<vmem>>, vector<1x256x64xf32>
    %18 = vector.shape_cast %17 : vector<1x256x64xf32> to vector<256x64xf32>
    %cst_18 = arith.constant dense<0.000000e+00> : vector<3x64xf32>
    %19 = tpu.matmul %1, %18, %cst_18 {dimension_numbers = #tpu.dot_dimension_numbers<[1], [0], [0], [1], [0, 0, 1, 1], [], []>} : vector<3x256xf32>, vector<256x64xf32>, vector<3x64xf32> -> vector<3x64xf32>
    %c2_19 = arith.constant 2 : index
    %c0_20 = arith.constant 0 : index
    %c0_21 = arith.constant 0 : index
    %20 = vector.load %arg2[%c2_19, %c0_20, %c0_21] : memref<9x16x3xbf16, #tpu.memory_space<vmem>>, vector<1x16x3xbf16>
    %21 = vector.shape_cast %20 : vector<1x16x3xbf16> to vector<16x3xbf16>
    %22 = arith.truncf %19 : vector<3x64xf32> to vector<3x64xbf16>
    %cst_22 = arith.constant dense<0.000000e+00> : vector<16x64xf32>
    %23 = tpu.matmul %21, %22, %cst_22 {dimension_numbers = #tpu.dot_dimension_numbers<[1], [0], [0], [1], [0, 0, 1, 1], [], []>} : vector<16x3xbf16>, vector<3x64xbf16>, vector<16x64xf32> -> vector<16x64xf32>
    %24 = arith.addf %16, %23 : vector<16x64xf32>
    %c3 = arith.constant 3 : index
    %c0_23 = arith.constant 0 : index
    %c0_24 = arith.constant 0 : index
    %25 = vector.load %arg3[%c3, %c0_23, %c0_24] : memref<9x256x64xf32, #tpu.memory_space<vmem>>, vector<1x256x64xf32>
    %26 = vector.shape_cast %25 : vector<1x256x64xf32> to vector<256x64xf32>
    %cst_25 = arith.constant dense<0.000000e+00> : vector<3x64xf32>
    %27 = tpu.matmul %1, %26, %cst_25 {dimension_numbers = #tpu.dot_dimension_numbers<[1], [0], [0], [1], [0, 0, 1, 1], [], []>} : vector<3x256xf32>, vector<256x64xf32>, vector<3x64xf32> -> vector<3x64xf32>
    %c3_26 = arith.constant 3 : index
    %c0_27 = arith.constant 0 : index
    %c0_28 = arith.constant 0 : index
    %28 = vector.load %arg2[%c3_26, %c0_27, %c0_28] : memref<9x16x3xbf16, #tpu.memory_space<vmem>>, vector<1x16x3xbf16>
    %29 = vector.shape_cast %28 : vector<1x16x3xbf16> to vector<16x3xbf16>
    %30 = arith.truncf %27 : vector<3x64xf32> to vector<3x64xbf16>
    %cst_29 = arith.constant dense<0.000000e+00> : vector<16x64xf32>
    %31 = tpu.matmul %29, %30, %cst_29 {dimension_numbers = #tpu.dot_dimension_numbers<[1], [0], [0], [1], [0, 0, 1, 1], [], []>} : vector<16x3xbf16>, vector<3x64xbf16>, vector<16x64xf32> -> vector<16x64xf32>
    %32 = arith.addf %24, %31 : vector<16x64xf32>
    %c4 = arith.constant 4 : index
    %c0_30 = arith.constant 0 : index
    %c0_31 = arith.constant 0 : index
    %33 = vector.load %arg3[%c4, %c0_30, %c0_31] : memref<9x256x64xf32, #tpu.memory_space<vmem>>, vector<1x256x64xf32>
    %34 = vector.shape_cast %33 : vector<1x256x64xf32> to vector<256x64xf32>
    %cst_32 = arith.constant dense<0.000000e+00> : vector<3x64xf32>
    %35 = tpu.matmul %1, %34, %cst_32 {dimension_numbers = #tpu.dot_dimension_numbers<[1], [0], [0], [1], [0, 0, 1, 1], [], []>} : vector<3x256xf32>, vector<256x64xf32>, vector<3x64xf32> -> vector<3x64xf32>
    %c4_33 = arith.constant 4 : index
    %c0_34 = arith.constant 0 : index
    %c0_35 = arith.constant 0 : index
    %36 = vector.load %arg2[%c4_33, %c0_34, %c0_35] : memref<9x16x3xbf16, #tpu.memory_space<vmem>>, vector<1x16x3xbf16>
    %37 = vector.shape_cast %36 : vector<1x16x3xbf16> to vector<16x3xbf16>
    %38 = arith.truncf %35 : vector<3x64xf32> to vector<3x64xbf16>
    %cst_36 = arith.constant dense<0.000000e+00> : vector<16x64xf32>
    %39 = tpu.matmul %37, %38, %cst_36 {dimension_numbers = #tpu.dot_dimension_numbers<[1], [0], [0], [1], [0, 0, 1, 1], [], []>} : vector<16x3xbf16>, vector<3x64xbf16>, vector<16x64xf32> -> vector<16x64xf32>
    %40 = arith.addf %32, %39 : vector<16x64xf32>
    %c5 = arith.constant 5 : index
    %c0_37 = arith.constant 0 : index
    %c0_38 = arith.constant 0 : index
    %41 = vector.load %arg3[%c5, %c0_37, %c0_38] : memref<9x256x64xf32, #tpu.memory_space<vmem>>, vector<1x256x64xf32>
    %42 = vector.shape_cast %41 : vector<1x256x64xf32> to vector<256x64xf32>
    %cst_39 = arith.constant dense<0.000000e+00> : vector<3x64xf32>
    %43 = tpu.matmul %1, %42, %cst_39 {dimension_numbers = #tpu.dot_dimension_numbers<[1], [0], [0], [1], [0, 0, 1, 1], [], []>} : vector<3x256xf32>, vector<256x64xf32>, vector<3x64xf32> -> vector<3x64xf32>
    %c5_40 = arith.constant 5 : index
    %c0_41 = arith.constant 0 : index
    %c0_42 = arith.constant 0 : index
    %44 = vector.load %arg2[%c5_40, %c0_41, %c0_42] : memref<9x16x3xbf16, #tpu.memory_space<vmem>>, vector<1x16x3xbf16>
    %45 = vector.shape_cast %44 : vector<1x16x3xbf16> to vector<16x3xbf16>
    %46 = arith.truncf %43 : vector<3x64xf32> to vector<3x64xbf16>
    %cst_43 = arith.constant dense<0.000000e+00> : vector<16x64xf32>
    %47 = tpu.matmul %45, %46, %cst_43 {dimension_numbers = #tpu.dot_dimension_numbers<[1], [0], [0], [1], [0, 0, 1, 1], [], []>} : vector<16x3xbf16>, vector<3x64xbf16>, vector<16x64xf32> -> vector<16x64xf32>
    %48 = arith.addf %40, %47 : vector<16x64xf32>
    %c6 = arith.constant 6 : index
    %c0_44 = arith.constant 0 : index
    %c0_45 = arith.constant 0 : index
    %49 = vector.load %arg3[%c6, %c0_44, %c0_45] : memref<9x256x64xf32, #tpu.memory_space<vmem>>, vector<1x256x64xf32>
    %50 = vector.shape_cast %49 : vector<1x256x64xf32> to vector<256x64xf32>
    %cst_46 = arith.constant dense<0.000000e+00> : vector<3x64xf32>
    %51 = tpu.matmul %1, %50, %cst_46 {dimension_numbers = #tpu.dot_dimension_numbers<[1], [0], [0], [1], [0, 0, 1, 1], [], []>} : vector<3x256xf32>, vector<256x64xf32>, vector<3x64xf32> -> vector<3x64xf32>
    %c6_47 = arith.constant 6 : index
    %c0_48 = arith.constant 0 : index
    %c0_49 = arith.constant 0 : index
    %52 = vector.load %arg2[%c6_47, %c0_48, %c0_49] : memref<9x16x3xbf16, #tpu.memory_space<vmem>>, vector<1x16x3xbf16>
    %53 = vector.shape_cast %52 : vector<1x16x3xbf16> to vector<16x3xbf16>
    %54 = arith.truncf %51 : vector<3x64xf32> to vector<3x64xbf16>
    %cst_50 = arith.constant dense<0.000000e+00> : vector<16x64xf32>
    %55 = tpu.matmul %53, %54, %cst_50 {dimension_numbers = #tpu.dot_dimension_numbers<[1], [0], [0], [1], [0, 0, 1, 1], [], []>} : vector<16x3xbf16>, vector<3x64xbf16>, vector<16x64xf32> -> vector<16x64xf32>
    %56 = arith.addf %48, %55 : vector<16x64xf32>
    %c7 = arith.constant 7 : index
    %c0_51 = arith.constant 0 : index
    %c0_52 = arith.constant 0 : index
    %57 = vector.load %arg3[%c7, %c0_51, %c0_52] : memref<9x256x64xf32, #tpu.memory_space<vmem>>, vector<1x256x64xf32>
    %58 = vector.shape_cast %57 : vector<1x256x64xf32> to vector<256x64xf32>
    %cst_53 = arith.constant dense<0.000000e+00> : vector<3x64xf32>
    %59 = tpu.matmul %1, %58, %cst_53 {dimension_numbers = #tpu.dot_dimension_numbers<[1], [0], [0], [1], [0, 0, 1, 1], [], []>} : vector<3x256xf32>, vector<256x64xf32>, vector<3x64xf32> -> vector<3x64xf32>
    %c7_54 = arith.constant 7 : index
    %c0_55 = arith.constant 0 : index
    %c0_56 = arith.constant 0 : index
    %60 = vector.load %arg2[%c7_54, %c0_55, %c0_56] : memref<9x16x3xbf16, #tpu.memory_space<vmem>>, vector<1x16x3xbf16>
    %61 = vector.shape_cast %60 : vector<1x16x3xbf16> to vector<16x3xbf16>
    %62 = arith.truncf %59 : vector<3x64xf32> to vector<3x64xbf16>
    %cst_57 = arith.constant dense<0.000000e+00> : vector<16x64xf32>
    %63 = tpu.matmul %61, %62, %cst_57 {dimension_numbers = #tpu.dot_dimension_numbers<[1], [0], [0], [1], [0, 0, 1, 1], [], []>} : vector<16x3xbf16>, vector<3x64xbf16>, vector<16x64xf32> -> vector<16x64xf32>
    %64 = arith.addf %56, %63 : vector<16x64xf32>
    %c8 = arith.constant 8 : index
    %c0_58 = arith.constant 0 : index
    %c0_59 = arith.constant 0 : index
    %65 = vector.load %arg3[%c8, %c0_58, %c0_59] : memref<9x256x64xf32, #tpu.memory_space<vmem>>, vector<1x256x64xf32>
    %66 = vector.shape_cast %65 : vector<1x256x64xf32> to vector<256x64xf32>
    %cst_60 = arith.constant dense<0.000000e+00> : vector<3x64xf32>
    %67 = tpu.matmul %1, %66, %cst_60 {dimension_numbers = #tpu.dot_dimension_numbers<[1], [0], [0], [1], [0, 0, 1, 1], [], []>} : vector<3x256xf32>, vector<256x64xf32>, vector<3x64xf32> -> vector<3x64xf32>
    %c8_61 = arith.constant 8 : index
    %c0_62 = arith.constant 0 : index
    %c0_63 = arith.constant 0 : index
    %68 = vector.load %arg2[%c8_61, %c0_62, %c0_63] : memref<9x16x3xbf16, #tpu.memory_space<vmem>>, vector<1x16x3xbf16>
    %69 = vector.shape_cast %68 : vector<1x16x3xbf16> to vector<16x3xbf16>
    %70 = arith.truncf %67 : vector<3x64xf32> to vector<3x64xbf16>
    %cst_64 = arith.constant dense<0.000000e+00> : vector<16x64xf32>
    %71 = tpu.matmul %69, %70, %cst_64 {dimension_numbers = #tpu.dot_dimension_numbers<[1], [0], [0], [1], [0, 0, 1, 1], [], []>} : vector<16x3xbf16>, vector<3x64xbf16>, vector<16x64xf32> -> vector<16x64xf32>
    %72 = arith.addf %64, %71 : vector<16x64xf32>
    %c0_65 = arith.constant 0 : index
    %c0_66 = arith.constant 0 : index
    %73 = vector.load %arg4[%c0_65, %c0_66] : memref<16x1xf32, #tpu.memory_space<vmem>>, vector<16x1xf32>
    %74 = vector.broadcast %73 : vector<16x1xf32> to vector<16x64xf32>
    %75 = arith.addf %72, %74 : vector<16x64xf32>
    %cst_67 = arith.constant 0.000000e+00 : f32
    %76 = vector.broadcast %cst_67 : f32 to vector<16x64xf32>
    %77 = arith.maximumf %75, %76 : vector<16x64xf32>
    %c0_68 = arith.constant 0 : index
    %c0_69 = arith.constant 0 : index
    %c0_70 = arith.constant 0 : index
    %78 = vector.load %arg6[%c0_68, %c0_69, %c0_70] : memref<9x64x16xf32, #tpu.memory_space<vmem>>, vector<1x64x16xf32>
    %79 = vector.shape_cast %78 : vector<1x64x16xf32> to vector<64x16xf32>
    %cst_71 = arith.constant dense<0.000000e+00> : vector<16x16xf32>
    %80 = tpu.matmul %77, %79, %cst_71 {dimension_numbers = #tpu.dot_dimension_numbers<[1], [0], [0], [1], [0, 0, 1, 1], [], []>} : vector<16x64xf32>, vector<64x16xf32>, vector<16x16xf32> -> vector<16x16xf32>
    %c0_72 = arith.constant 0 : index
    %c0_73 = arith.constant 0 : index
    %c0_74 = arith.constant 0 : index
    %81 = vector.load %arg5[%c0_72, %c0_73, %c0_74] : memref<9x32x16xbf16, #tpu.memory_space<vmem>>, vector<1x32x16xbf16>
    %82 = vector.shape_cast %81 : vector<1x32x16xbf16> to vector<32x16xbf16>
    %83 = arith.truncf %80 : vector<16x16xf32> to vector<16x16xbf16>
    %cst_75 = arith.constant dense<0.000000e+00> : vector<32x16xf32>
    %84 = tpu.matmul %82, %83, %cst_75 {dimension_numbers = #tpu.dot_dimension_numbers<[1], [0], [0], [1], [0, 0, 1, 1], [], []>} : vector<32x16xbf16>, vector<16x16xbf16>, vector<32x16xf32> -> vector<32x16xf32>
    %c1_76 = arith.constant 1 : index
    %c0_77 = arith.constant 0 : index
    %c0_78 = arith.constant 0 : index
    %85 = vector.load %arg6[%c1_76, %c0_77, %c0_78] : memref<9x64x16xf32, #tpu.memory_space<vmem>>, vector<1x64x16xf32>
    %86 = vector.shape_cast %85 : vector<1x64x16xf32> to vector<64x16xf32>
    %cst_79 = arith.constant dense<0.000000e+00> : vector<16x16xf32>
    %87 = tpu.matmul %77, %86, %cst_79 {dimension_numbers = #tpu.dot_dimension_numbers<[1], [0], [0], [1], [0, 0, 1, 1], [], []>} : vector<16x64xf32>, vector<64x16xf32>, vector<16x16xf32> -> vector<16x16xf32>
    %c1_80 = arith.constant 1 : index
    %c0_81 = arith.constant 0 : index
    %c0_82 = arith.constant 0 : index
    %88 = vector.load %arg5[%c1_80, %c0_81, %c0_82] : memref<9x32x16xbf16, #tpu.memory_space<vmem>>, vector<1x32x16xbf16>
    %89 = vector.shape_cast %88 : vector<1x32x16xbf16> to vector<32x16xbf16>
    %90 = arith.truncf %87 : vector<16x16xf32> to vector<16x16xbf16>
    %cst_83 = arith.constant dense<0.000000e+00> : vector<32x16xf32>
    %91 = tpu.matmul %89, %90, %cst_83 {dimension_numbers = #tpu.dot_dimension_numbers<[1], [0], [0], [1], [0, 0, 1, 1], [], []>} : vector<32x16xbf16>, vector<16x16xbf16>, vector<32x16xf32> -> vector<32x16xf32>
    %92 = arith.addf %84, %91 : vector<32x16xf32>
    %c2_84 = arith.constant 2 : index
    %c0_85 = arith.constant 0 : index
    %c0_86 = arith.constant 0 : index
    %93 = vector.load %arg6[%c2_84, %c0_85, %c0_86] : memref<9x64x16xf32, #tpu.memory_space<vmem>>, vector<1x64x16xf32>
    %94 = vector.shape_cast %93 : vector<1x64x16xf32> to vector<64x16xf32>
    %cst_87 = arith.constant dense<0.000000e+00> : vector<16x16xf32>
    %95 = tpu.matmul %77, %94, %cst_87 {dimension_numbers = #tpu.dot_dimension_numbers<[1], [0], [0], [1], [0, 0, 1, 1], [], []>} : vector<16x64xf32>, vector<64x16xf32>, vector<16x16xf32> -> vector<16x16xf32>
    %c2_88 = arith.constant 2 : index
    %c0_89 = arith.constant 0 : index
    %c0_90 = arith.constant 0 : index
    %96 = vector.load %arg5[%c2_88, %c0_89, %c0_90] : memref<9x32x16xbf16, #tpu.memory_space<vmem>>, vector<1x32x16xbf16>
    %97 = vector.shape_cast %96 : vector<1x32x16xbf16> to vector<32x16xbf16>
    %98 = arith.truncf %95 : vector<16x16xf32> to vector<16x16xbf16>
    %cst_91 = arith.constant dense<0.000000e+00> : vector<32x16xf32>
    %99 = tpu.matmul %97, %98, %cst_91 {dimension_numbers = #tpu.dot_dimension_numbers<[1], [0], [0], [1], [0, 0, 1, 1], [], []>} : vector<32x16xbf16>, vector<16x16xbf16>, vector<32x16xf32> -> vector<32x16xf32>
    %100 = arith.addf %92, %99 : vector<32x16xf32>
    %c3_92 = arith.constant 3 : index
    %c0_93 = arith.constant 0 : index
    %c0_94 = arith.constant 0 : index
    %101 = vector.load %arg6[%c3_92, %c0_93, %c0_94] : memref<9x64x16xf32, #tpu.memory_space<vmem>>, vector<1x64x16xf32>
    %102 = vector.shape_cast %101 : vector<1x64x16xf32> to vector<64x16xf32>
    %cst_95 = arith.constant dense<0.000000e+00> : vector<16x16xf32>
    %103 = tpu.matmul %77, %102, %cst_95 {dimension_numbers = #tpu.dot_dimension_numbers<[1], [0], [0], [1], [0, 0, 1, 1], [], []>} : vector<16x64xf32>, vector<64x16xf32>, vector<16x16xf32> -> vector<16x16xf32>
    %c3_96 = arith.constant 3 : index
    %c0_97 = arith.constant 0 : index
    %c0_98 = arith.constant 0 : index
    %104 = vector.load %arg5[%c3_96, %c0_97, %c0_98] : memref<9x32x16xbf16, #tpu.memory_space<vmem>>, vector<1x32x16xbf16>
    %105 = vector.shape_cast %104 : vector<1x32x16xbf16> to vector<32x16xbf16>
    %106 = arith.truncf %103 : vector<16x16xf32> to vector<16x16xbf16>
    %cst_99 = arith.constant dense<0.000000e+00> : vector<32x16xf32>
    %107 = tpu.matmul %105, %106, %cst_99 {dimension_numbers = #tpu.dot_dimension_numbers<[1], [0], [0], [1], [0, 0, 1, 1], [], []>} : vector<32x16xbf16>, vector<16x16xbf16>, vector<32x16xf32> -> vector<32x16xf32>
    %108 = arith.addf %100, %107 : vector<32x16xf32>
    %c4_100 = arith.constant 4 : index
    %c0_101 = arith.constant 0 : index
    %c0_102 = arith.constant 0 : index
    %109 = vector.load %arg6[%c4_100, %c0_101, %c0_102] : memref<9x64x16xf32, #tpu.memory_space<vmem>>, vector<1x64x16xf32>
    %110 = vector.shape_cast %109 : vector<1x64x16xf32> to vector<64x16xf32>
    %cst_103 = arith.constant dense<0.000000e+00> : vector<16x16xf32>
    %111 = tpu.matmul %77, %110, %cst_103 {dimension_numbers = #tpu.dot_dimension_numbers<[1], [0], [0], [1], [0, 0, 1, 1], [], []>} : vector<16x64xf32>, vector<64x16xf32>, vector<16x16xf32> -> vector<16x16xf32>
    %c4_104 = arith.constant 4 : index
    %c0_105 = arith.constant 0 : index
    %c0_106 = arith.constant 0 : index
    %112 = vector.load %arg5[%c4_104, %c0_105, %c0_106] : memref<9x32x16xbf16, #tpu.memory_space<vmem>>, vector<1x32x16xbf16>
    %113 = vector.shape_cast %112 : vector<1x32x16xbf16> to vector<32x16xbf16>
    %114 = arith.truncf %111 : vector<16x16xf32> to vector<16x16xbf16>
    %cst_107 = arith.constant dense<0.000000e+00> : vector<32x16xf32>
    %115 = tpu.matmul %113, %114, %cst_107 {dimension_numbers = #tpu.dot_dimension_numbers<[1], [0], [0], [1], [0, 0, 1, 1], [], []>} : vector<32x16xbf16>, vector<16x16xbf16>, vector<32x16xf32> -> vector<32x16xf32>
    %116 = arith.addf %108, %115 : vector<32x16xf32>
    %c5_108 = arith.constant 5 : index
    %c0_109 = arith.constant 0 : index
    %c0_110 = arith.constant 0 : index
    %117 = vector.load %arg6[%c5_108, %c0_109, %c0_110] : memref<9x64x16xf32, #tpu.memory_space<vmem>>, vector<1x64x16xf32>
    %118 = vector.shape_cast %117 : vector<1x64x16xf32> to vector<64x16xf32>
    %cst_111 = arith.constant dense<0.000000e+00> : vector<16x16xf32>
    %119 = tpu.matmul %77, %118, %cst_111 {dimension_numbers = #tpu.dot_dimension_numbers<[1], [0], [0], [1], [0, 0, 1, 1], [], []>} : vector<16x64xf32>, vector<64x16xf32>, vector<16x16xf32> -> vector<16x16xf32>
    %c5_112 = arith.constant 5 : index
    %c0_113 = arith.constant 0 : index
    %c0_114 = arith.constant 0 : index
    %120 = vector.load %arg5[%c5_112, %c0_113, %c0_114] : memref<9x32x16xbf16, #tpu.memory_space<vmem>>, vector<1x32x16xbf16>
    %121 = vector.shape_cast %120 : vector<1x32x16xbf16> to vector<32x16xbf16>
    %122 = arith.truncf %119 : vector<16x16xf32> to vector<16x16xbf16>
    %cst_115 = arith.constant dense<0.000000e+00> : vector<32x16xf32>
    %123 = tpu.matmul %121, %122, %cst_115 {dimension_numbers = #tpu.dot_dimension_numbers<[1], [0], [0], [1], [0, 0, 1, 1], [], []>} : vector<32x16xbf16>, vector<16x16xbf16>, vector<32x16xf32> -> vector<32x16xf32>
    %124 = arith.addf %116, %123 : vector<32x16xf32>
    %c6_116 = arith.constant 6 : index
    %c0_117 = arith.constant 0 : index
    %c0_118 = arith.constant 0 : index
    %125 = vector.load %arg6[%c6_116, %c0_117, %c0_118] : memref<9x64x16xf32, #tpu.memory_space<vmem>>, vector<1x64x16xf32>
    %126 = vector.shape_cast %125 : vector<1x64x16xf32> to vector<64x16xf32>
    %cst_119 = arith.constant dense<0.000000e+00> : vector<16x16xf32>
    %127 = tpu.matmul %77, %126, %cst_119 {dimension_numbers = #tpu.dot_dimension_numbers<[1], [0], [0], [1], [0, 0, 1, 1], [], []>} : vector<16x64xf32>, vector<64x16xf32>, vector<16x16xf32> -> vector<16x16xf32>
    %c6_120 = arith.constant 6 : index
    %c0_121 = arith.constant 0 : index
    %c0_122 = arith.constant 0 : index
    %128 = vector.load %arg5[%c6_120, %c0_121, %c0_122] : memref<9x32x16xbf16, #tpu.memory_space<vmem>>, vector<1x32x16xbf16>
    %129 = vector.shape_cast %128 : vector<1x32x16xbf16> to vector<32x16xbf16>
    %130 = arith.truncf %127 : vector<16x16xf32> to vector<16x16xbf16>
    %cst_123 = arith.constant dense<0.000000e+00> : vector<32x16xf32>
    %131 = tpu.matmul %129, %130, %cst_123 {dimension_numbers = #tpu.dot_dimension_numbers<[1], [0], [0], [1], [0, 0, 1, 1], [], []>} : vector<32x16xbf16>, vector<16x16xbf16>, vector<32x16xf32> -> vector<32x16xf32>
    %132 = arith.addf %124, %131 : vector<32x16xf32>
    %c7_124 = arith.constant 7 : index
    %c0_125 = arith.constant 0 : index
    %c0_126 = arith.constant 0 : index
    %133 = vector.load %arg6[%c7_124, %c0_125, %c0_126] : memref<9x64x16xf32, #tpu.memory_space<vmem>>, vector<1x64x16xf32>
    %134 = vector.shape_cast %133 : vector<1x64x16xf32> to vector<64x16xf32>
    %cst_127 = arith.constant dense<0.000000e+00> : vector<16x16xf32>
    %135 = tpu.matmul %77, %134, %cst_127 {dimension_numbers = #tpu.dot_dimension_numbers<[1], [0], [0], [1], [0, 0, 1, 1], [], []>} : vector<16x64xf32>, vector<64x16xf32>, vector<16x16xf32> -> vector<16x16xf32>
    %c7_128 = arith.constant 7 : index
    %c0_129 = arith.constant 0 : index
    %c0_130 = arith.constant 0 : index
    %136 = vector.load %arg5[%c7_128, %c0_129, %c0_130] : memref<9x32x16xbf16, #tpu.memory_space<vmem>>, vector<1x32x16xbf16>
    %137 = vector.shape_cast %136 : vector<1x32x16xbf16> to vector<32x16xbf16>
    %138 = arith.truncf %135 : vector<16x16xf32> to vector<16x16xbf16>
    %cst_131 = arith.constant dense<0.000000e+00> : vector<32x16xf32>
    %139 = tpu.matmul %137, %138, %cst_131 {dimension_numbers = #tpu.dot_dimension_numbers<[1], [0], [0], [1], [0, 0, 1, 1], [], []>} : vector<32x16xbf16>, vector<16x16xbf16>, vector<32x16xf32> -> vector<32x16xf32>
    %140 = arith.addf %132, %139 : vector<32x16xf32>
    %c8_132 = arith.constant 8 : index
    %c0_133 = arith.constant 0 : index
    %c0_134 = arith.constant 0 : index
    %141 = vector.load %arg6[%c8_132, %c0_133, %c0_134] : memref<9x64x16xf32, #tpu.memory_space<vmem>>, vector<1x64x16xf32>
    %142 = vector.shape_cast %141 : vector<1x64x16xf32> to vector<64x16xf32>
    %cst_135 = arith.constant dense<0.000000e+00> : vector<16x16xf32>
    %143 = tpu.matmul %77, %142, %cst_135 {dimension_numbers = #tpu.dot_dimension_numbers<[1], [0], [0], [1], [0, 0, 1, 1], [], []>} : vector<16x64xf32>, vector<64x16xf32>, vector<16x16xf32> -> vector<16x16xf32>
    %c8_136 = arith.constant 8 : index
    %c0_137 = arith.constant 0 : index
    %c0_138 = arith.constant 0 : index
    %144 = vector.load %arg5[%c8_136, %c0_137, %c0_138] : memref<9x32x16xbf16, #tpu.memory_space<vmem>>, vector<1x32x16xbf16>
    %145 = vector.shape_cast %144 : vector<1x32x16xbf16> to vector<32x16xbf16>
    %146 = arith.truncf %143 : vector<16x16xf32> to vector<16x16xbf16>
    %cst_139 = arith.constant dense<0.000000e+00> : vector<32x16xf32>
    %147 = tpu.matmul %145, %146, %cst_139 {dimension_numbers = #tpu.dot_dimension_numbers<[1], [0], [0], [1], [0, 0, 1, 1], [], []>} : vector<32x16xbf16>, vector<16x16xbf16>, vector<32x16xf32> -> vector<32x16xf32>
    %148 = arith.addf %140, %147 : vector<32x16xf32>
    %c0_140 = arith.constant 0 : index
    %c0_141 = arith.constant 0 : index
    %149 = vector.load %arg7[%c0_140, %c0_141] : memref<32x1xf32, #tpu.memory_space<vmem>>, vector<32x1xf32>
    %150 = vector.broadcast %149 : vector<32x1xf32> to vector<32x16xf32>
    %151 = arith.addf %148, %150 : vector<32x16xf32>
    %cst_142 = arith.constant 0.000000e+00 : f32
    %152 = vector.broadcast %cst_142 : f32 to vector<32x16xf32>
    %153 = arith.maximumf %151, %152 : vector<32x16xf32>
    %c0_143 = arith.constant 0 : index
    %c0_144 = arith.constant 0 : index
    %c0_145 = arith.constant 0 : index
    %154 = vector.load %arg9[%c0_143, %c0_144, %c0_145] : memref<9x16x4xf32, #tpu.memory_space<vmem>>, vector<1x16x4xf32>
    %155 = vector.shape_cast %154 : vector<1x16x4xf32> to vector<16x4xf32>
    %cst_146 = arith.constant dense<0.000000e+00> : vector<32x4xf32>
    %156 = tpu.matmul %153, %155, %cst_146 {dimension_numbers = #tpu.dot_dimension_numbers<[1], [0], [0], [1], [0, 0, 1, 1], [], []>} : vector<32x16xf32>, vector<16x4xf32>, vector<32x4xf32> -> vector<32x4xf32>
    %c0_147 = arith.constant 0 : index
    %c0_148 = arith.constant 0 : index
    %c0_149 = arith.constant 0 : index
    %157 = vector.load %arg8[%c0_147, %c0_148, %c0_149] : memref<9x64x32xbf16, #tpu.memory_space<vmem>>, vector<1x64x32xbf16>
    %158 = vector.shape_cast %157 : vector<1x64x32xbf16> to vector<64x32xbf16>
    %159 = arith.truncf %156 : vector<32x4xf32> to vector<32x4xbf16>
    %cst_150 = arith.constant dense<0.000000e+00> : vector<64x4xf32>
    %160 = tpu.matmul %158, %159, %cst_150 {dimension_numbers = #tpu.dot_dimension_numbers<[1], [0], [0], [1], [0, 0, 1, 1], [], []>} : vector<64x32xbf16>, vector<32x4xbf16>, vector<64x4xf32> -> vector<64x4xf32>
    %c1_151 = arith.constant 1 : index
    %c0_152 = arith.constant 0 : index
    %c0_153 = arith.constant 0 : index
    %161 = vector.load %arg9[%c1_151, %c0_152, %c0_153] : memref<9x16x4xf32, #tpu.memory_space<vmem>>, vector<1x16x4xf32>
    %162 = vector.shape_cast %161 : vector<1x16x4xf32> to vector<16x4xf32>
    %cst_154 = arith.constant dense<0.000000e+00> : vector<32x4xf32>
    %163 = tpu.matmul %153, %162, %cst_154 {dimension_numbers = #tpu.dot_dimension_numbers<[1], [0], [0], [1], [0, 0, 1, 1], [], []>} : vector<32x16xf32>, vector<16x4xf32>, vector<32x4xf32> -> vector<32x4xf32>
    %c1_155 = arith.constant 1 : index
    %c0_156 = arith.constant 0 : index
    %c0_157 = arith.constant 0 : index
    %164 = vector.load %arg8[%c1_155, %c0_156, %c0_157] : memref<9x64x32xbf16, #tpu.memory_space<vmem>>, vector<1x64x32xbf16>
    %165 = vector.shape_cast %164 : vector<1x64x32xbf16> to vector<64x32xbf16>
    %166 = arith.truncf %163 : vector<32x4xf32> to vector<32x4xbf16>
    %cst_158 = arith.constant dense<0.000000e+00> : vector<64x4xf32>
    %167 = tpu.matmul %165, %166, %cst_158 {dimension_numbers = #tpu.dot_dimension_numbers<[1], [0], [0], [1], [0, 0, 1, 1], [], []>} : vector<64x32xbf16>, vector<32x4xbf16>, vector<64x4xf32> -> vector<64x4xf32>
    %168 = arith.addf %160, %167 : vector<64x4xf32>
    %c2_159 = arith.constant 2 : index
    %c0_160 = arith.constant 0 : index
    %c0_161 = arith.constant 0 : index
    %169 = vector.load %arg9[%c2_159, %c0_160, %c0_161] : memref<9x16x4xf32, #tpu.memory_space<vmem>>, vector<1x16x4xf32>
    %170 = vector.shape_cast %169 : vector<1x16x4xf32> to vector<16x4xf32>
    %cst_162 = arith.constant dense<0.000000e+00> : vector<32x4xf32>
    %171 = tpu.matmul %153, %170, %cst_162 {dimension_numbers = #tpu.dot_dimension_numbers<[1], [0], [0], [1], [0, 0, 1, 1], [], []>} : vector<32x16xf32>, vector<16x4xf32>, vector<32x4xf32> -> vector<32x4xf32>
    %c2_163 = arith.constant 2 : index
    %c0_164 = arith.constant 0 : index
    %c0_165 = arith.constant 0 : index
    %172 = vector.load %arg8[%c2_163, %c0_164, %c0_165] : memref<9x64x32xbf16, #tpu.memory_space<vmem>>, vector<1x64x32xbf16>
    %173 = vector.shape_cast %172 : vector<1x64x32xbf16> to vector<64x32xbf16>
    %174 = arith.truncf %171 : vector<32x4xf32> to vector<32x4xbf16>
    %cst_166 = arith.constant dense<0.000000e+00> : vector<64x4xf32>
    %175 = tpu.matmul %173, %174, %cst_166 {dimension_numbers = #tpu.dot_dimension_numbers<[1], [0], [0], [1], [0, 0, 1, 1], [], []>} : vector<64x32xbf16>, vector<32x4xbf16>, vector<64x4xf32> -> vector<64x4xf32>
    %176 = arith.addf %168, %175 : vector<64x4xf32>
    %c3_167 = arith.constant 3 : index
    %c0_168 = arith.constant 0 : index
    %c0_169 = arith.constant 0 : index
    %177 = vector.load %arg9[%c3_167, %c0_168, %c0_169] : memref<9x16x4xf32, #tpu.memory_space<vmem>>, vector<1x16x4xf32>
    %178 = vector.shape_cast %177 : vector<1x16x4xf32> to vector<16x4xf32>
    %cst_170 = arith.constant dense<0.000000e+00> : vector<32x4xf32>
    %179 = tpu.matmul %153, %178, %cst_170 {dimension_numbers = #tpu.dot_dimension_numbers<[1], [0], [0], [1], [0, 0, 1, 1], [], []>} : vector<32x16xf32>, vector<16x4xf32>, vector<32x4xf32> -> vector<32x4xf32>
    %c3_171 = arith.constant 3 : index
    %c0_172 = arith.constant 0 : index
    %c0_173 = arith.constant 0 : index
    %180 = vector.load %arg8[%c3_171, %c0_172, %c0_173] : memref<9x64x32xbf16, #tpu.memory_space<vmem>>, vector<1x64x32xbf16>
    %181 = vector.shape_cast %180 : vector<1x64x32xbf16> to vector<64x32xbf16>
    %182 = arith.truncf %179 : vector<32x4xf32> to vector<32x4xbf16>
    %cst_174 = arith.constant dense<0.000000e+00> : vector<64x4xf32>
    %183 = tpu.matmul %181, %182, %cst_174 {dimension_numbers = #tpu.dot_dimension_numbers<[1], [0], [0], [1], [0, 0, 1, 1], [], []>} : vector<64x32xbf16>, vector<32x4xbf16>, vector<64x4xf32> -> vector<64x4xf32>
    %184 = arith.addf %176, %183 : vector<64x4xf32>
    %c4_175 = arith.constant 4 : index
    %c0_176 = arith.constant 0 : index
    %c0_177 = arith.constant 0 : index
    %185 = vector.load %arg9[%c4_175, %c0_176, %c0_177] : memref<9x16x4xf32, #tpu.memory_space<vmem>>, vector<1x16x4xf32>
    %186 = vector.shape_cast %185 : vector<1x16x4xf32> to vector<16x4xf32>
    %cst_178 = arith.constant dense<0.000000e+00> : vector<32x4xf32>
    %187 = tpu.matmul %153, %186, %cst_178 {dimension_numbers = #tpu.dot_dimension_numbers<[1], [0], [0], [1], [0, 0, 1, 1], [], []>} : vector<32x16xf32>, vector<16x4xf32>, vector<32x4xf32> -> vector<32x4xf32>
    %c4_179 = arith.constant 4 : index
    %c0_180 = arith.constant 0 : index
    %c0_181 = arith.constant 0 : index
    %188 = vector.load %arg8[%c4_179, %c0_180, %c0_181] : memref<9x64x32xbf16, #tpu.memory_space<vmem>>, vector<1x64x32xbf16>
    %189 = vector.shape_cast %188 : vector<1x64x32xbf16> to vector<64x32xbf16>
    %190 = arith.truncf %187 : vector<32x4xf32> to vector<32x4xbf16>
    %cst_182 = arith.constant dense<0.000000e+00> : vector<64x4xf32>
    %191 = tpu.matmul %189, %190, %cst_182 {dimension_numbers = #tpu.dot_dimension_numbers<[1], [0], [0], [1], [0, 0, 1, 1], [], []>} : vector<64x32xbf16>, vector<32x4xbf16>, vector<64x4xf32> -> vector<64x4xf32>
    %192 = arith.addf %184, %191 : vector<64x4xf32>
    %c5_183 = arith.constant 5 : index
    %c0_184 = arith.constant 0 : index
    %c0_185 = arith.constant 0 : index
    %193 = vector.load %arg9[%c5_183, %c0_184, %c0_185] : memref<9x16x4xf32, #tpu.memory_space<vmem>>, vector<1x16x4xf32>
    %194 = vector.shape_cast %193 : vector<1x16x4xf32> to vector<16x4xf32>
    %cst_186 = arith.constant dense<0.000000e+00> : vector<32x4xf32>
    %195 = tpu.matmul %153, %194, %cst_186 {dimension_numbers = #tpu.dot_dimension_numbers<[1], [0], [0], [1], [0, 0, 1, 1], [], []>} : vector<32x16xf32>, vector<16x4xf32>, vector<32x4xf32> -> vector<32x4xf32>
    %c5_187 = arith.constant 5 : index
    %c0_188 = arith.constant 0 : index
    %c0_189 = arith.constant 0 : index
    %196 = vector.load %arg8[%c5_187, %c0_188, %c0_189] : memref<9x64x32xbf16, #tpu.memory_space<vmem>>, vector<1x64x32xbf16>
    %197 = vector.shape_cast %196 : vector<1x64x32xbf16> to vector<64x32xbf16>
    %198 = arith.truncf %195 : vector<32x4xf32> to vector<32x4xbf16>
    %cst_190 = arith.constant dense<0.000000e+00> : vector<64x4xf32>
    %199 = tpu.matmul %197, %198, %cst_190 {dimension_numbers = #tpu.dot_dimension_numbers<[1], [0], [0], [1], [0, 0, 1, 1], [], []>} : vector<64x32xbf16>, vector<32x4xbf16>, vector<64x4xf32> -> vector<64x4xf32>
    %200 = arith.addf %192, %199 : vector<64x4xf32>
    %c6_191 = arith.constant 6 : index
    %c0_192 = arith.constant 0 : index
    %c0_193 = arith.constant 0 : index
    %201 = vector.load %arg9[%c6_191, %c0_192, %c0_193] : memref<9x16x4xf32, #tpu.memory_space<vmem>>, vector<1x16x4xf32>
    %202 = vector.shape_cast %201 : vector<1x16x4xf32> to vector<16x4xf32>
    %cst_194 = arith.constant dense<0.000000e+00> : vector<32x4xf32>
    %203 = tpu.matmul %153, %202, %cst_194 {dimension_numbers = #tpu.dot_dimension_numbers<[1], [0], [0], [1], [0, 0, 1, 1], [], []>} : vector<32x16xf32>, vector<16x4xf32>, vector<32x4xf32> -> vector<32x4xf32>
    %c6_195 = arith.constant 6 : index
    %c0_196 = arith.constant 0 : index
    %c0_197 = arith.constant 0 : index
    %204 = vector.load %arg8[%c6_195, %c0_196, %c0_197] : memref<9x64x32xbf16, #tpu.memory_space<vmem>>, vector<1x64x32xbf16>
    %205 = vector.shape_cast %204 : vector<1x64x32xbf16> to vector<64x32xbf16>
    %206 = arith.truncf %203 : vector<32x4xf32> to vector<32x4xbf16>
    %cst_198 = arith.constant dense<0.000000e+00> : vector<64x4xf32>
    %207 = tpu.matmul %205, %206, %cst_198 {dimension_numbers = #tpu.dot_dimension_numbers<[1], [0], [0], [1], [0, 0, 1, 1], [], []>} : vector<64x32xbf16>, vector<32x4xbf16>, vector<64x4xf32> -> vector<64x4xf32>
    %208 = arith.addf %200, %207 : vector<64x4xf32>
    %c7_199 = arith.constant 7 : index
    %c0_200 = arith.constant 0 : index
    %c0_201 = arith.constant 0 : index
    %209 = vector.load %arg9[%c7_199, %c0_200, %c0_201] : memref<9x16x4xf32, #tpu.memory_space<vmem>>, vector<1x16x4xf32>
    %210 = vector.shape_cast %209 : vector<1x16x4xf32> to vector<16x4xf32>
    %cst_202 = arith.constant dense<0.000000e+00> : vector<32x4xf32>
    %211 = tpu.matmul %153, %210, %cst_202 {dimension_numbers = #tpu.dot_dimension_numbers<[1], [0], [0], [1], [0, 0, 1, 1], [], []>} : vector<32x16xf32>, vector<16x4xf32>, vector<32x4xf32> -> vector<32x4xf32>
    %c7_203 = arith.constant 7 : index
    %c0_204 = arith.constant 0 : index
    %c0_205 = arith.constant 0 : index
    %212 = vector.load %arg8[%c7_203, %c0_204, %c0_205] : memref<9x64x32xbf16, #tpu.memory_space<vmem>>, vector<1x64x32xbf16>
    %213 = vector.shape_cast %212 : vector<1x64x32xbf16> to vector<64x32xbf16>
    %214 = arith.truncf %211 : vector<32x4xf32> to vector<32x4xbf16>
    %cst_206 = arith.constant dense<0.000000e+00> : vector<64x4xf32>
    %215 = tpu.matmul %213, %214, %cst_206 {dimension_numbers = #tpu.dot_dimension_numbers<[1], [0], [0], [1], [0, 0, 1, 1], [], []>} : vector<64x32xbf16>, vector<32x4xbf16>, vector<64x4xf32> -> vector<64x4xf32>
    %216 = arith.addf %208, %215 : vector<64x4xf32>
    %c8_207 = arith.constant 8 : index
    %c0_208 = arith.constant 0 : index
    %c0_209 = arith.constant 0 : index
    %217 = vector.load %arg9[%c8_207, %c0_208, %c0_209] : memref<9x16x4xf32, #tpu.memory_space<vmem>>, vector<1x16x4xf32>
    %218 = vector.shape_cast %217 : vector<1x16x4xf32> to vector<16x4xf32>
    %cst_210 = arith.constant dense<0.000000e+00> : vector<32x4xf32>
    %219 = tpu.matmul %153, %218, %cst_210 {dimension_numbers = #tpu.dot_dimension_numbers<[1], [0], [0], [1], [0, 0, 1, 1], [], []>} : vector<32x16xf32>, vector<16x4xf32>, vector<32x4xf32> -> vector<32x4xf32>
    %c8_211 = arith.constant 8 : index
    %c0_212 = arith.constant 0 : index
    %c0_213 = arith.constant 0 : index
    %220 = vector.load %arg8[%c8_211, %c0_212, %c0_213] : memref<9x64x32xbf16, #tpu.memory_space<vmem>>, vector<1x64x32xbf16>
    %221 = vector.shape_cast %220 : vector<1x64x32xbf16> to vector<64x32xbf16>
    %222 = arith.truncf %219 : vector<32x4xf32> to vector<32x4xbf16>
    %cst_214 = arith.constant dense<0.000000e+00> : vector<64x4xf32>
    %223 = tpu.matmul %221, %222, %cst_214 {dimension_numbers = #tpu.dot_dimension_numbers<[1], [0], [0], [1], [0, 0, 1, 1], [], []>} : vector<64x32xbf16>, vector<32x4xbf16>, vector<64x4xf32> -> vector<64x4xf32>
    %224 = arith.addf %216, %223 : vector<64x4xf32>
    %c0_215 = arith.constant 0 : index
    %c0_216 = arith.constant 0 : index
    %225 = vector.load %arg10[%c0_215, %c0_216] : memref<64x1xf32, #tpu.memory_space<vmem>>, vector<64x1xf32>
    %226 = vector.broadcast %225 : vector<64x1xf32> to vector<64x4xf32>
    %227 = arith.addf %224, %226 : vector<64x4xf32>
    %cst_217 = arith.constant 0.000000e+00 : f32
    %228 = vector.broadcast %cst_217 : f32 to vector<64x4xf32>
    %229 = arith.maximumf %227, %228 : vector<64x4xf32>
    %c0_218 = arith.constant 0 : index
    %c0_219 = arith.constant 0 : index
    %c0_220 = arith.constant 0 : index
    %230 = vector.load %arg12[%c0_218, %c0_219, %c0_220] : memref<4x4x4xf32, #tpu.memory_space<vmem>>, vector<1x4x4xf32>
    %231 = vector.shape_cast %230 : vector<1x4x4xf32> to vector<4x4xf32>
    %cst_221 = arith.constant dense<0.000000e+00> : vector<64x4xf32>
    %232 = tpu.matmul %229, %231, %cst_221 {dimension_numbers = #tpu.dot_dimension_numbers<[1], [0], [0], [1], [0, 0, 1, 1], [], []>} : vector<64x4xf32>, vector<4x4xf32>, vector<64x4xf32> -> vector<64x4xf32>
    %233 = arith.truncf %232 : vector<64x4xf32> to vector<64x4xbf16>
    %c1_222 = arith.constant 1 : index
    %c0_223 = arith.constant 0 : index
    %c0_224 = arith.constant 0 : index
    %234 = vector.load %arg12[%c1_222, %c0_223, %c0_224] : memref<4x4x4xf32, #tpu.memory_space<vmem>>, vector<1x4x4xf32>
    %235 = vector.shape_cast %234 : vector<1x4x4xf32> to vector<4x4xf32>
    %cst_225 = arith.constant dense<0.000000e+00> : vector<64x4xf32>
    %236 = tpu.matmul %229, %235, %cst_225 {dimension_numbers = #tpu.dot_dimension_numbers<[1], [0], [0], [1], [0, 0, 1, 1], [], []>} : vector<64x4xf32>, vector<4x4xf32>, vector<64x4xf32> -> vector<64x4xf32>
    %237 = arith.truncf %236 : vector<64x4xf32> to vector<64x4xbf16>
    %c2_226 = arith.constant 2 : index
    %c0_227 = arith.constant 0 : index
    %c0_228 = arith.constant 0 : index
    %238 = vector.load %arg12[%c2_226, %c0_227, %c0_228] : memref<4x4x4xf32, #tpu.memory_space<vmem>>, vector<1x4x4xf32>
    %239 = vector.shape_cast %238 : vector<1x4x4xf32> to vector<4x4xf32>
    %cst_229 = arith.constant dense<0.000000e+00> : vector<64x4xf32>
    %240 = tpu.matmul %229, %239, %cst_229 {dimension_numbers = #tpu.dot_dimension_numbers<[1], [0], [0], [1], [0, 0, 1, 1], [], []>} : vector<64x4xf32>, vector<4x4xf32>, vector<64x4xf32> -> vector<64x4xf32>
    %241 = arith.truncf %240 : vector<64x4xf32> to vector<64x4xbf16>
    %c3_230 = arith.constant 3 : index
    %c0_231 = arith.constant 0 : index
    %c0_232 = arith.constant 0 : index
    %242 = vector.load %arg12[%c3_230, %c0_231, %c0_232] : memref<4x4x4xf32, #tpu.memory_space<vmem>>, vector<1x4x4xf32>
    %243 = vector.shape_cast %242 : vector<1x4x4xf32> to vector<4x4xf32>
    %cst_233 = arith.constant dense<0.000000e+00> : vector<64x4xf32>
    %244 = tpu.matmul %229, %243, %cst_233 {dimension_numbers = #tpu.dot_dimension_numbers<[1], [0], [0], [1], [0, 0, 1, 1], [], []>} : vector<64x4xf32>, vector<4x4xf32>, vector<64x4xf32> -> vector<64x4xf32>
    %245 = arith.truncf %244 : vector<64x4xf32> to vector<64x4xbf16>
    %c0_234 = arith.constant 0 : index
    %c0_235 = arith.constant 0 : index
    %c0_236 = arith.constant 0 : index
    %246 = vector.load %arg11[%c0_234, %c0_235, %c0_236] : memref<9x32x64xbf16, #tpu.memory_space<vmem>>, vector<1x32x64xbf16>
    %247 = vector.shape_cast %246 : vector<1x32x64xbf16> to vector<32x64xbf16>
    %cst_237 = arith.constant dense<0.000000e+00> : vector<32x4xf32>
    %248 = tpu.matmul %247, %233, %cst_237 {dimension_numbers = #tpu.dot_dimension_numbers<[1], [0], [0], [1], [0, 0, 1, 1], [], []>} : vector<32x64xbf16>, vector<64x4xbf16>, vector<32x4xf32> -> vector<32x4xf32>
    %c1_238 = arith.constant 1 : index
    %c0_239 = arith.constant 0 : index
    %c0_240 = arith.constant 0 : index
    %249 = vector.load %arg11[%c1_238, %c0_239, %c0_240] : memref<9x32x64xbf16, #tpu.memory_space<vmem>>, vector<1x32x64xbf16>
    %250 = vector.shape_cast %249 : vector<1x32x64xbf16> to vector<32x64xbf16>
    %cst_241 = arith.constant dense<0.000000e+00> : vector<32x4xf32>
    %251 = tpu.matmul %250, %233, %cst_241 {dimension_numbers = #tpu.dot_dimension_numbers<[1], [0], [0], [1], [0, 0, 1, 1], [], []>} : vector<32x64xbf16>, vector<64x4xbf16>, vector<32x4xf32> -> vector<32x4xf32>
    %c2_242 = arith.constant 2 : index
    %c0_243 = arith.constant 0 : index
    %c0_244 = arith.constant 0 : index
    %252 = vector.load %arg11[%c2_242, %c0_243, %c0_244] : memref<9x32x64xbf16, #tpu.memory_space<vmem>>, vector<1x32x64xbf16>
    %253 = vector.shape_cast %252 : vector<1x32x64xbf16> to vector<32x64xbf16>
    %cst_245 = arith.constant dense<0.000000e+00> : vector<32x4xf32>
    %254 = tpu.matmul %253, %237, %cst_245 {dimension_numbers = #tpu.dot_dimension_numbers<[1], [0], [0], [1], [0, 0, 1, 1], [], []>} : vector<32x64xbf16>, vector<64x4xbf16>, vector<32x4xf32> -> vector<32x4xf32>
    %255 = arith.addf %251, %254 : vector<32x4xf32>
    %c3_246 = arith.constant 3 : index
    %c0_247 = arith.constant 0 : index
    %c0_248 = arith.constant 0 : index
    %256 = vector.load %arg11[%c3_246, %c0_247, %c0_248] : memref<9x32x64xbf16, #tpu.memory_space<vmem>>, vector<1x32x64xbf16>
    %257 = vector.shape_cast %256 : vector<1x32x64xbf16> to vector<32x64xbf16>
    %cst_249 = arith.constant dense<0.000000e+00> : vector<32x4xf32>
    %258 = tpu.matmul %257, %233, %cst_249 {dimension_numbers = #tpu.dot_dimension_numbers<[1], [0], [0], [1], [0, 0, 1, 1], [], []>} : vector<32x64xbf16>, vector<64x4xbf16>, vector<32x4xf32> -> vector<32x4xf32>
    %c4_250 = arith.constant 4 : index
    %c0_251 = arith.constant 0 : index
    %c0_252 = arith.constant 0 : index
    %259 = vector.load %arg11[%c4_250, %c0_251, %c0_252] : memref<9x32x64xbf16, #tpu.memory_space<vmem>>, vector<1x32x64xbf16>
    %260 = vector.shape_cast %259 : vector<1x32x64xbf16> to vector<32x64xbf16>
    %cst_253 = arith.constant dense<0.000000e+00> : vector<32x4xf32>
    %261 = tpu.matmul %260, %241, %cst_253 {dimension_numbers = #tpu.dot_dimension_numbers<[1], [0], [0], [1], [0, 0, 1, 1], [], []>} : vector<32x64xbf16>, vector<64x4xbf16>, vector<32x4xf32> -> vector<32x4xf32>
    %262 = arith.addf %258, %261 : vector<32x4xf32>
    %c5_254 = arith.constant 5 : index
    %c0_255 = arith.constant 0 : index
    %c0_256 = arith.constant 0 : index
    %263 = vector.load %arg11[%c5_254, %c0_255, %c0_256] : memref<9x32x64xbf16, #tpu.memory_space<vmem>>, vector<1x32x64xbf16>
    %264 = vector.shape_cast %263 : vector<1x32x64xbf16> to vector<32x64xbf16>
    %cst_257 = arith.constant dense<0.000000e+00> : vector<32x4xf32>
    %265 = tpu.matmul %264, %233, %cst_257 {dimension_numbers = #tpu.dot_dimension_numbers<[1], [0], [0], [1], [0, 0, 1, 1], [], []>} : vector<32x64xbf16>, vector<64x4xbf16>, vector<32x4xf32> -> vector<32x4xf32>
    %c6_258 = arith.constant 6 : index
    %c0_259 = arith.constant 0 : index
    %c0_260 = arith.constant 0 : index
    %266 = vector.load %arg11[%c6_258, %c0_259, %c0_260] : memref<9x32x64xbf16, #tpu.memory_space<vmem>>, vector<1x32x64xbf16>
    %267 = vector.shape_cast %266 : vector<1x32x64xbf16> to vector<32x64xbf16>
    %cst_261 = arith.constant dense<0.000000e+00> : vector<32x4xf32>
    %268 = tpu.matmul %267, %237, %cst_261 {dimension_numbers = #tpu.dot_dimension_numbers<[1], [0], [0], [1], [0, 0, 1, 1], [], []>} : vector<32x64xbf16>, vector<64x4xbf16>, vector<32x4xf32> -> vector<32x4xf32>
    %269 = arith.addf %265, %268 : vector<32x4xf32>
    %c7_262 = arith.constant 7 : index
    %c0_263 = arith.constant 0 : index
    %c0_264 = arith.constant 0 : index
    %270 = vector.load %arg11[%c7_262, %c0_263, %c0_264] : memref<9x32x64xbf16, #tpu.memory_space<vmem>>, vector<1x32x64xbf16>
    %271 = vector.shape_cast %270 : vector<1x32x64xbf16> to vector<32x64xbf16>
    %cst_265 = arith.constant dense<0.000000e+00> : vector<32x4xf32>
    %272 = tpu.matmul %271, %241, %cst_265 {dimension_numbers = #tpu.dot_dimension_numbers<[1], [0], [0], [1], [0, 0, 1, 1], [], []>} : vector<32x64xbf16>, vector<64x4xbf16>, vector<32x4xf32> -> vector<32x4xf32>
    %273 = arith.addf %269, %272 : vector<32x4xf32>
    %c8_266 = arith.constant 8 : index
    %c0_267 = arith.constant 0 : index
    %c0_268 = arith.constant 0 : index
    %274 = vector.load %arg11[%c8_266, %c0_267, %c0_268] : memref<9x32x64xbf16, #tpu.memory_space<vmem>>, vector<1x32x64xbf16>
    %275 = vector.shape_cast %274 : vector<1x32x64xbf16> to vector<32x64xbf16>
    %cst_269 = arith.constant dense<0.000000e+00> : vector<32x4xf32>
    %276 = tpu.matmul %275, %245, %cst_269 {dimension_numbers = #tpu.dot_dimension_numbers<[1], [0], [0], [1], [0, 0, 1, 1], [], []>} : vector<32x64xbf16>, vector<64x4xbf16>, vector<32x4xf32> -> vector<32x4xf32>
    %277 = arith.addf %273, %276 : vector<32x4xf32>
    %c0_270 = arith.constant 0 : index
    %c0_271 = arith.constant 0 : index
    %c0_272 = arith.constant 0 : index
    %278 = vector.load %arg13[%c0_270, %c0_271, %c0_272] : memref<4x4x16xf32, #tpu.memory_space<vmem>>, vector<1x4x16xf32>
    %279 = vector.shape_cast %278 : vector<1x4x16xf32> to vector<4x16xf32>
    %cst_273 = arith.constant dense<0.000000e+00> : vector<32x16xf32>
    %280 = tpu.matmul %248, %279, %cst_273 {dimension_numbers = #tpu.dot_dimension_numbers<[1], [0], [0], [1], [0, 0, 1, 1], [], []>} : vector<32x4xf32>, vector<4x16xf32>, vector<32x16xf32> -> vector<32x16xf32>
    %c1_274 = arith.constant 1 : index
    %c0_275 = arith.constant 0 : index
    %c0_276 = arith.constant 0 : index
    %281 = vector.load %arg13[%c1_274, %c0_275, %c0_276] : memref<4x4x16xf32, #tpu.memory_space<vmem>>, vector<1x4x16xf32>
    %282 = vector.shape_cast %281 : vector<1x4x16xf32> to vector<4x16xf32>
    %cst_277 = arith.constant dense<0.000000e+00> : vector<32x16xf32>
    %283 = tpu.matmul %255, %282, %cst_277 {dimension_numbers = #tpu.dot_dimension_numbers<[1], [0], [0], [1], [0, 0, 1, 1], [], []>} : vector<32x4xf32>, vector<4x16xf32>, vector<32x16xf32> -> vector<32x16xf32>
    %284 = arith.addf %280, %283 : vector<32x16xf32>
    %c2_278 = arith.constant 2 : index
    %c0_279 = arith.constant 0 : index
    %c0_280 = arith.constant 0 : index
    %285 = vector.load %arg13[%c2_278, %c0_279, %c0_280] : memref<4x4x16xf32, #tpu.memory_space<vmem>>, vector<1x4x16xf32>
    %286 = vector.shape_cast %285 : vector<1x4x16xf32> to vector<4x16xf32>
    %cst_281 = arith.constant dense<0.000000e+00> : vector<32x16xf32>
    %287 = tpu.matmul %262, %286, %cst_281 {dimension_numbers = #tpu.dot_dimension_numbers<[1], [0], [0], [1], [0, 0, 1, 1], [], []>} : vector<32x4xf32>, vector<4x16xf32>, vector<32x16xf32> -> vector<32x16xf32>
    %288 = arith.addf %284, %287 : vector<32x16xf32>
    %c3_282 = arith.constant 3 : index
    %c0_283 = arith.constant 0 : index
    %c0_284 = arith.constant 0 : index
    %289 = vector.load %arg13[%c3_282, %c0_283, %c0_284] : memref<4x4x16xf32, #tpu.memory_space<vmem>>, vector<1x4x16xf32>
    %290 = vector.shape_cast %289 : vector<1x4x16xf32> to vector<4x16xf32>
    %cst_285 = arith.constant dense<0.000000e+00> : vector<32x16xf32>
    %291 = tpu.matmul %277, %290, %cst_285 {dimension_numbers = #tpu.dot_dimension_numbers<[1], [0], [0], [1], [0, 0, 1, 1], [], []>} : vector<32x4xf32>, vector<4x16xf32>, vector<32x16xf32> -> vector<32x16xf32>
    %292 = arith.addf %288, %291 : vector<32x16xf32>
    %c0_286 = arith.constant 0 : index
    %c0_287 = arith.constant 0 : index
    %293 = vector.load %arg14[%c0_286, %c0_287] : memref<32x1xf32, #tpu.memory_space<vmem>>, vector<32x1xf32>
    %294 = vector.broadcast %293 : vector<32x1xf32> to vector<32x16xf32>
    %295 = arith.addf %292, %294 : vector<32x16xf32>
    %cst_288 = arith.constant 0.000000e+00 : f32
    %296 = vector.broadcast %cst_288 : f32 to vector<32x16xf32>
    %297 = arith.maximumf %295, %296 : vector<32x16xf32>
    %c0_289 = arith.constant 0 : index
    %c0_290 = arith.constant 0 : index
    %c0_291 = arith.constant 0 : index
    %298 = vector.load %arg16[%c0_289, %c0_290, %c0_291] : memref<4x16x16xf32, #tpu.memory_space<vmem>>, vector<1x16x16xf32>
    %299 = vector.shape_cast %298 : vector<1x16x16xf32> to vector<16x16xf32>
    %cst_292 = arith.constant dense<0.000000e+00> : vector<32x16xf32>
    %300 = tpu.matmul %297, %299, %cst_292 {dimension_numbers = #tpu.dot_dimension_numbers<[1], [0], [0], [1], [0, 0, 1, 1], [], []>} : vector<32x16xf32>, vector<16x16xf32>, vector<32x16xf32> -> vector<32x16xf32>
    %301 = arith.truncf %300 : vector<32x16xf32> to vector<32x16xbf16>
    %c1_293 = arith.constant 1 : index
    %c0_294 = arith.constant 0 : index
    %c0_295 = arith.constant 0 : index
    %302 = vector.load %arg16[%c1_293, %c0_294, %c0_295] : memref<4x16x16xf32, #tpu.memory_space<vmem>>, vector<1x16x16xf32>
    %303 = vector.shape_cast %302 : vector<1x16x16xf32> to vector<16x16xf32>
    %cst_296 = arith.constant dense<0.000000e+00> : vector<32x16xf32>
    %304 = tpu.matmul %297, %303, %cst_296 {dimension_numbers = #tpu.dot_dimension_numbers<[1], [0], [0], [1], [0, 0, 1, 1], [], []>} : vector<32x16xf32>, vector<16x16xf32>, vector<32x16xf32> -> vector<32x16xf32>
    %305 = arith.truncf %304 : vector<32x16xf32> to vector<32x16xbf16>
    %c2_297 = arith.constant 2 : index
    %c0_298 = arith.constant 0 : index
    %c0_299 = arith.constant 0 : index
    %306 = vector.load %arg16[%c2_297, %c0_298, %c0_299] : memref<4x16x16xf32, #tpu.memory_space<vmem>>, vector<1x16x16xf32>
    %307 = vector.shape_cast %306 : vector<1x16x16xf32> to vector<16x16xf32>
    %cst_300 = arith.constant dense<0.000000e+00> : vector<32x16xf32>
    %308 = tpu.matmul %297, %307, %cst_300 {dimension_numbers = #tpu.dot_dimension_numbers<[1], [0], [0], [1], [0, 0, 1, 1], [], []>} : vector<32x16xf32>, vector<16x16xf32>, vector<32x16xf32> -> vector<32x16xf32>
    %309 = arith.truncf %308 : vector<32x16xf32> to vector<32x16xbf16>
    %c3_301 = arith.constant 3 : index
    %c0_302 = arith.constant 0 : index
    %c0_303 = arith.constant 0 : index
    %310 = vector.load %arg16[%c3_301, %c0_302, %c0_303] : memref<4x16x16xf32, #tpu.memory_space<vmem>>, vector<1x16x16xf32>
    %311 = vector.shape_cast %310 : vector<1x16x16xf32> to vector<16x16xf32>
    %cst_304 = arith.constant dense<0.000000e+00> : vector<32x16xf32>
    %312 = tpu.matmul %297, %311, %cst_304 {dimension_numbers = #tpu.dot_dimension_numbers<[1], [0], [0], [1], [0, 0, 1, 1], [], []>} : vector<32x16xf32>, vector<16x16xf32>, vector<32x16xf32> -> vector<32x16xf32>
    %313 = arith.truncf %312 : vector<32x16xf32> to vector<32x16xbf16>
    %c0_305 = arith.constant 0 : index
    %c0_306 = arith.constant 0 : index
    %c0_307 = arith.constant 0 : index
    %314 = vector.load %arg15[%c0_305, %c0_306, %c0_307] : memref<9x16x32xbf16, #tpu.memory_space<vmem>>, vector<1x16x32xbf16>
    %315 = vector.shape_cast %314 : vector<1x16x32xbf16> to vector<16x32xbf16>
    %cst_308 = arith.constant dense<0.000000e+00> : vector<16x16xf32>
    %316 = tpu.matmul %315, %301, %cst_308 {dimension_numbers = #tpu.dot_dimension_numbers<[1], [0], [0], [1], [0, 0, 1, 1], [], []>} : vector<16x32xbf16>, vector<32x16xbf16>, vector<16x16xf32> -> vector<16x16xf32>
    %c1_309 = arith.constant 1 : index
    %c0_310 = arith.constant 0 : index
    %c0_311 = arith.constant 0 : index
    %317 = vector.load %arg15[%c1_309, %c0_310, %c0_311] : memref<9x16x32xbf16, #tpu.memory_space<vmem>>, vector<1x16x32xbf16>
    %318 = vector.shape_cast %317 : vector<1x16x32xbf16> to vector<16x32xbf16>
    %cst_312 = arith.constant dense<0.000000e+00> : vector<16x16xf32>
    %319 = tpu.matmul %318, %301, %cst_312 {dimension_numbers = #tpu.dot_dimension_numbers<[1], [0], [0], [1], [0, 0, 1, 1], [], []>} : vector<16x32xbf16>, vector<32x16xbf16>, vector<16x16xf32> -> vector<16x16xf32>
    %c2_313 = arith.constant 2 : index
    %c0_314 = arith.constant 0 : index
    %c0_315 = arith.constant 0 : index
    %320 = vector.load %arg15[%c2_313, %c0_314, %c0_315] : memref<9x16x32xbf16, #tpu.memory_space<vmem>>, vector<1x16x32xbf16>
    %321 = vector.shape_cast %320 : vector<1x16x32xbf16> to vector<16x32xbf16>
    %cst_316 = arith.constant dense<0.000000e+00> : vector<16x16xf32>
    %322 = tpu.matmul %321, %305, %cst_316 {dimension_numbers = #tpu.dot_dimension_numbers<[1], [0], [0], [1], [0, 0, 1, 1], [], []>} : vector<16x32xbf16>, vector<32x16xbf16>, vector<16x16xf32> -> vector<16x16xf32>
    %323 = arith.addf %319, %322 : vector<16x16xf32>
    %c3_317 = arith.constant 3 : index
    %c0_318 = arith.constant 0 : index
    %c0_319 = arith.constant 0 : index
    %324 = vector.load %arg15[%c3_317, %c0_318, %c0_319] : memref<9x16x32xbf16, #tpu.memory_space<vmem>>, vector<1x16x32xbf16>
    %325 = vector.shape_cast %324 : vector<1x16x32xbf16> to vector<16x32xbf16>
    %cst_320 = arith.constant dense<0.000000e+00> : vector<16x16xf32>
    %326 = tpu.matmul %325, %301, %cst_320 {dimension_numbers = #tpu.dot_dimension_numbers<[1], [0], [0], [1], [0, 0, 1, 1], [], []>} : vector<16x32xbf16>, vector<32x16xbf16>, vector<16x16xf32> -> vector<16x16xf32>
    %c4_321 = arith.constant 4 : index
    %c0_322 = arith.constant 0 : index
    %c0_323 = arith.constant 0 : index
    %327 = vector.load %arg15[%c4_321, %c0_322, %c0_323] : memref<9x16x32xbf16, #tpu.memory_space<vmem>>, vector<1x16x32xbf16>
    %328 = vector.shape_cast %327 : vector<1x16x32xbf16> to vector<16x32xbf16>
    %cst_324 = arith.constant dense<0.000000e+00> : vector<16x16xf32>
    %329 = tpu.matmul %328, %309, %cst_324 {dimension_numbers = #tpu.dot_dimension_numbers<[1], [0], [0], [1], [0, 0, 1, 1], [], []>} : vector<16x32xbf16>, vector<32x16xbf16>, vector<16x16xf32> -> vector<16x16xf32>
    %330 = arith.addf %326, %329 : vector<16x16xf32>
    %c5_325 = arith.constant 5 : index
    %c0_326 = arith.constant 0 : index
    %c0_327 = arith.constant 0 : index
    %331 = vector.load %arg15[%c5_325, %c0_326, %c0_327] : memref<9x16x32xbf16, #tpu.memory_space<vmem>>, vector<1x16x32xbf16>
    %332 = vector.shape_cast %331 : vector<1x16x32xbf16> to vector<16x32xbf16>
    %cst_328 = arith.constant dense<0.000000e+00> : vector<16x16xf32>
    %333 = tpu.matmul %332, %301, %cst_328 {dimension_numbers = #tpu.dot_dimension_numbers<[1], [0], [0], [1], [0, 0, 1, 1], [], []>} : vector<16x32xbf16>, vector<32x16xbf16>, vector<16x16xf32> -> vector<16x16xf32>
    %c6_329 = arith.constant 6 : index
    %c0_330 = arith.constant 0 : index
    %c0_331 = arith.constant 0 : index
    %334 = vector.load %arg15[%c6_329, %c0_330, %c0_331] : memref<9x16x32xbf16, #tpu.memory_space<vmem>>, vector<1x16x32xbf16>
    %335 = vector.shape_cast %334 : vector<1x16x32xbf16> to vector<16x32xbf16>
    %cst_332 = arith.constant dense<0.000000e+00> : vector<16x16xf32>
    %336 = tpu.matmul %335, %305, %cst_332 {dimension_numbers = #tpu.dot_dimension_numbers<[1], [0], [0], [1], [0, 0, 1, 1], [], []>} : vector<16x32xbf16>, vector<32x16xbf16>, vector<16x16xf32> -> vector<16x16xf32>
    %337 = arith.addf %333, %336 : vector<16x16xf32>
    %c7_333 = arith.constant 7 : index
    %c0_334 = arith.constant 0 : index
    %c0_335 = arith.constant 0 : index
    %338 = vector.load %arg15[%c7_333, %c0_334, %c0_335] : memref<9x16x32xbf16, #tpu.memory_space<vmem>>, vector<1x16x32xbf16>
    %339 = vector.shape_cast %338 : vector<1x16x32xbf16> to vector<16x32xbf16>
    %cst_336 = arith.constant dense<0.000000e+00> : vector<16x16xf32>
    %340 = tpu.matmul %339, %309, %cst_336 {dimension_numbers = #tpu.dot_dimension_numbers<[1], [0], [0], [1], [0, 0, 1, 1], [], []>} : vector<16x32xbf16>, vector<32x16xbf16>, vector<16x16xf32> -> vector<16x16xf32>
    %341 = arith.addf %337, %340 : vector<16x16xf32>
    %c8_337 = arith.constant 8 : index
    %c0_338 = arith.constant 0 : index
    %c0_339 = arith.constant 0 : index
    %342 = vector.load %arg15[%c8_337, %c0_338, %c0_339] : memref<9x16x32xbf16, #tpu.memory_space<vmem>>, vector<1x16x32xbf16>
    %343 = vector.shape_cast %342 : vector<1x16x32xbf16> to vector<16x32xbf16>
    %cst_340 = arith.constant dense<0.000000e+00> : vector<16x16xf32>
    %344 = tpu.matmul %343, %313, %cst_340 {dimension_numbers = #tpu.dot_dimension_numbers<[1], [0], [0], [1], [0, 0, 1, 1], [], []>} : vector<16x32xbf16>, vector<32x16xbf16>, vector<16x16xf32> -> vector<16x16xf32>
    %345 = arith.addf %341, %344 : vector<16x16xf32>
    %c0_341 = arith.constant 0 : index
    %c0_342 = arith.constant 0 : index
    %c0_343 = arith.constant 0 : index
    %346 = vector.load %arg17[%c0_341, %c0_342, %c0_343] : memref<4x16x64xf32, #tpu.memory_space<vmem>>, vector<1x16x64xf32>
    %347 = vector.shape_cast %346 : vector<1x16x64xf32> to vector<16x64xf32>
    %cst_344 = arith.constant dense<0.000000e+00> : vector<16x64xf32>
    %348 = tpu.matmul %316, %347, %cst_344 {dimension_numbers = #tpu.dot_dimension_numbers<[1], [0], [0], [1], [0, 0, 1, 1], [], []>} : vector<16x16xf32>, vector<16x64xf32>, vector<16x64xf32> -> vector<16x64xf32>
    %c1_345 = arith.constant 1 : index
    %c0_346 = arith.constant 0 : index
    %c0_347 = arith.constant 0 : index
    %349 = vector.load %arg17[%c1_345, %c0_346, %c0_347] : memref<4x16x64xf32, #tpu.memory_space<vmem>>, vector<1x16x64xf32>
    %350 = vector.shape_cast %349 : vector<1x16x64xf32> to vector<16x64xf32>
    %cst_348 = arith.constant dense<0.000000e+00> : vector<16x64xf32>
    %351 = tpu.matmul %323, %350, %cst_348 {dimension_numbers = #tpu.dot_dimension_numbers<[1], [0], [0], [1], [0, 0, 1, 1], [], []>} : vector<16x16xf32>, vector<16x64xf32>, vector<16x64xf32> -> vector<16x64xf32>
    %352 = arith.addf %348, %351 : vector<16x64xf32>
    %c2_349 = arith.constant 2 : index
    %c0_350 = arith.constant 0 : index
    %c0_351 = arith.constant 0 : index
    %353 = vector.load %arg17[%c2_349, %c0_350, %c0_351] : memref<4x16x64xf32, #tpu.memory_space<vmem>>, vector<1x16x64xf32>
    %354 = vector.shape_cast %353 : vector<1x16x64xf32> to vector<16x64xf32>
    %cst_352 = arith.constant dense<0.000000e+00> : vector<16x64xf32>
    %355 = tpu.matmul %330, %354, %cst_352 {dimension_numbers = #tpu.dot_dimension_numbers<[1], [0], [0], [1], [0, 0, 1, 1], [], []>} : vector<16x16xf32>, vector<16x64xf32>, vector<16x64xf32> -> vector<16x64xf32>
    %356 = arith.addf %352, %355 : vector<16x64xf32>
    %c3_353 = arith.constant 3 : index
    %c0_354 = arith.constant 0 : index
    %c0_355 = arith.constant 0 : index
    %357 = vector.load %arg17[%c3_353, %c0_354, %c0_355] : memref<4x16x64xf32, #tpu.memory_space<vmem>>, vector<1x16x64xf32>
    %358 = vector.shape_cast %357 : vector<1x16x64xf32> to vector<16x64xf32>
    %cst_356 = arith.constant dense<0.000000e+00> : vector<16x64xf32>
    %359 = tpu.matmul %345, %358, %cst_356 {dimension_numbers = #tpu.dot_dimension_numbers<[1], [0], [0], [1], [0, 0, 1, 1], [], []>} : vector<16x16xf32>, vector<16x64xf32>, vector<16x64xf32> -> vector<16x64xf32>
    %360 = arith.addf %356, %359 : vector<16x64xf32>
    %c0_357 = arith.constant 0 : index
    %c0_358 = arith.constant 0 : index
    %361 = vector.load %arg18[%c0_357, %c0_358] : memref<16x1xf32, #tpu.memory_space<vmem>>, vector<16x1xf32>
    %362 = vector.broadcast %361 : vector<16x1xf32> to vector<16x64xf32>
    %363 = arith.addf %360, %362 : vector<16x64xf32>
    %cst_359 = arith.constant 0.000000e+00 : f32
    %364 = vector.broadcast %cst_359 : f32 to vector<16x64xf32>
    %365 = arith.maximumf %363, %364 : vector<16x64xf32>
    %c0_360 = arith.constant 0 : index
    %c0_361 = arith.constant 0 : index
    %c0_362 = arith.constant 0 : index
    %366 = vector.load %arg20[%c0_360, %c0_361, %c0_362] : memref<4x64x64xf32, #tpu.memory_space<vmem>>, vector<1x64x64xf32>
    %367 = vector.shape_cast %366 : vector<1x64x64xf32> to vector<64x64xf32>
    %cst_363 = arith.constant dense<0.000000e+00> : vector<16x64xf32>
    %368 = tpu.matmul %365, %367, %cst_363 {dimension_numbers = #tpu.dot_dimension_numbers<[1], [0], [0], [1], [0, 0, 1, 1], [], []>} : vector<16x64xf32>, vector<64x64xf32>, vector<16x64xf32> -> vector<16x64xf32>
    %369 = arith.truncf %368 : vector<16x64xf32> to vector<16x64xbf16>
    %c1_364 = arith.constant 1 : index
    %c0_365 = arith.constant 0 : index
    %c0_366 = arith.constant 0 : index
    %370 = vector.load %arg20[%c1_364, %c0_365, %c0_366] : memref<4x64x64xf32, #tpu.memory_space<vmem>>, vector<1x64x64xf32>
    %371 = vector.shape_cast %370 : vector<1x64x64xf32> to vector<64x64xf32>
    %cst_367 = arith.constant dense<0.000000e+00> : vector<16x64xf32>
    %372 = tpu.matmul %365, %371, %cst_367 {dimension_numbers = #tpu.dot_dimension_numbers<[1], [0], [0], [1], [0, 0, 1, 1], [], []>} : vector<16x64xf32>, vector<64x64xf32>, vector<16x64xf32> -> vector<16x64xf32>
    %373 = arith.truncf %372 : vector<16x64xf32> to vector<16x64xbf16>
    %c2_368 = arith.constant 2 : index
    %c0_369 = arith.constant 0 : index
    %c0_370 = arith.constant 0 : index
    %374 = vector.load %arg20[%c2_368, %c0_369, %c0_370] : memref<4x64x64xf32, #tpu.memory_space<vmem>>, vector<1x64x64xf32>
    %375 = vector.shape_cast %374 : vector<1x64x64xf32> to vector<64x64xf32>
    %cst_371 = arith.constant dense<0.000000e+00> : vector<16x64xf32>
    %376 = tpu.matmul %365, %375, %cst_371 {dimension_numbers = #tpu.dot_dimension_numbers<[1], [0], [0], [1], [0, 0, 1, 1], [], []>} : vector<16x64xf32>, vector<64x64xf32>, vector<16x64xf32> -> vector<16x64xf32>
    %377 = arith.truncf %376 : vector<16x64xf32> to vector<16x64xbf16>
    %c3_372 = arith.constant 3 : index
    %c0_373 = arith.constant 0 : index
    %c0_374 = arith.constant 0 : index
    %378 = vector.load %arg20[%c3_372, %c0_373, %c0_374] : memref<4x64x64xf32, #tpu.memory_space<vmem>>, vector<1x64x64xf32>
    %379 = vector.shape_cast %378 : vector<1x64x64xf32> to vector<64x64xf32>
    %cst_375 = arith.constant dense<0.000000e+00> : vector<16x64xf32>
    %380 = tpu.matmul %365, %379, %cst_375 {dimension_numbers = #tpu.dot_dimension_numbers<[1], [0], [0], [1], [0, 0, 1, 1], [], []>} : vector<16x64xf32>, vector<64x64xf32>, vector<16x64xf32> -> vector<16x64xf32>
    %381 = arith.truncf %380 : vector<16x64xf32> to vector<16x64xbf16>
    %c0_376 = arith.constant 0 : index
    %c0_377 = arith.constant 0 : index
    %c0_378 = arith.constant 0 : index
    %382 = vector.load %arg19[%c0_376, %c0_377, %c0_378] : memref<9x3x16xbf16, #tpu.memory_space<vmem>>, vector<1x3x16xbf16>
    %383 = vector.shape_cast %382 : vector<1x3x16xbf16> to vector<3x16xbf16>
    %cst_379 = arith.constant dense<0.000000e+00> : vector<3x64xf32>
    %384 = tpu.matmul %383, %369, %cst_379 {dimension_numbers = #tpu.dot_dimension_numbers<[1], [0], [0], [1], [0, 0, 1, 1], [], []>} : vector<3x16xbf16>, vector<16x64xbf16>, vector<3x64xf32> -> vector<3x64xf32>
    %c1_380 = arith.constant 1 : index
    %c0_381 = arith.constant 0 : index
    %c0_382 = arith.constant 0 : index
    %385 = vector.load %arg19[%c1_380, %c0_381, %c0_382] : memref<9x3x16xbf16, #tpu.memory_space<vmem>>, vector<1x3x16xbf16>
    %386 = vector.shape_cast %385 : vector<1x3x16xbf16> to vector<3x16xbf16>
    %cst_383 = arith.constant dense<0.000000e+00> : vector<3x64xf32>
    %387 = tpu.matmul %386, %369, %cst_383 {dimension_numbers = #tpu.dot_dimension_numbers<[1], [0], [0], [1], [0, 0, 1, 1], [], []>} : vector<3x16xbf16>, vector<16x64xbf16>, vector<3x64xf32> -> vector<3x64xf32>
    %c2_384 = arith.constant 2 : index
    %c0_385 = arith.constant 0 : index
    %c0_386 = arith.constant 0 : index
    %388 = vector.load %arg19[%c2_384, %c0_385, %c0_386] : memref<9x3x16xbf16, #tpu.memory_space<vmem>>, vector<1x3x16xbf16>
    %389 = vector.shape_cast %388 : vector<1x3x16xbf16> to vector<3x16xbf16>
    %cst_387 = arith.constant dense<0.000000e+00> : vector<3x64xf32>
    %390 = tpu.matmul %389, %373, %cst_387 {dimension_numbers = #tpu.dot_dimension_numbers<[1], [0], [0], [1], [0, 0, 1, 1], [], []>} : vector<3x16xbf16>, vector<16x64xbf16>, vector<3x64xf32> -> vector<3x64xf32>
    %391 = arith.addf %387, %390 : vector<3x64xf32>
    %c3_388 = arith.constant 3 : index
    %c0_389 = arith.constant 0 : index
    %c0_390 = arith.constant 0 : index
    %392 = vector.load %arg19[%c3_388, %c0_389, %c0_390] : memref<9x3x16xbf16, #tpu.memory_space<vmem>>, vector<1x3x16xbf16>
    %393 = vector.shape_cast %392 : vector<1x3x16xbf16> to vector<3x16xbf16>
    %cst_391 = arith.constant dense<0.000000e+00> : vector<3x64xf32>
    %394 = tpu.matmul %393, %369, %cst_391 {dimension_numbers = #tpu.dot_dimension_numbers<[1], [0], [0], [1], [0, 0, 1, 1], [], []>} : vector<3x16xbf16>, vector<16x64xbf16>, vector<3x64xf32> -> vector<3x64xf32>
    %c4_392 = arith.constant 4 : index
    %c0_393 = arith.constant 0 : index
    %c0_394 = arith.constant 0 : index
    %395 = vector.load %arg19[%c4_392, %c0_393, %c0_394] : memref<9x3x16xbf16, #tpu.memory_space<vmem>>, vector<1x3x16xbf16>
    %396 = vector.shape_cast %395 : vector<1x3x16xbf16> to vector<3x16xbf16>
    %cst_395 = arith.constant dense<0.000000e+00> : vector<3x64xf32>
    %397 = tpu.matmul %396, %377, %cst_395 {dimension_numbers = #tpu.dot_dimension_numbers<[1], [0], [0], [1], [0, 0, 1, 1], [], []>} : vector<3x16xbf16>, vector<16x64xbf16>, vector<3x64xf32> -> vector<3x64xf32>
    %398 = arith.addf %394, %397 : vector<3x64xf32>
    %c5_396 = arith.constant 5 : index
    %c0_397 = arith.constant 0 : index
    %c0_398 = arith.constant 0 : index
    %399 = vector.load %arg19[%c5_396, %c0_397, %c0_398] : memref<9x3x16xbf16, #tpu.memory_space<vmem>>, vector<1x3x16xbf16>
    %400 = vector.shape_cast %399 : vector<1x3x16xbf16> to vector<3x16xbf16>
    %cst_399 = arith.constant dense<0.000000e+00> : vector<3x64xf32>
    %401 = tpu.matmul %400, %369, %cst_399 {dimension_numbers = #tpu.dot_dimension_numbers<[1], [0], [0], [1], [0, 0, 1, 1], [], []>} : vector<3x16xbf16>, vector<16x64xbf16>, vector<3x64xf32> -> vector<3x64xf32>
    %c6_400 = arith.constant 6 : index
    %c0_401 = arith.constant 0 : index
    %c0_402 = arith.constant 0 : index
    %402 = vector.load %arg19[%c6_400, %c0_401, %c0_402] : memref<9x3x16xbf16, #tpu.memory_space<vmem>>, vector<1x3x16xbf16>
    %403 = vector.shape_cast %402 : vector<1x3x16xbf16> to vector<3x16xbf16>
    %cst_403 = arith.constant dense<0.000000e+00> : vector<3x64xf32>
    %404 = tpu.matmul %403, %373, %cst_403 {dimension_numbers = #tpu.dot_dimension_numbers<[1], [0], [0], [1], [0, 0, 1, 1], [], []>} : vector<3x16xbf16>, vector<16x64xbf16>, vector<3x64xf32> -> vector<3x64xf32>
    %405 = arith.addf %401, %404 : vector<3x64xf32>
    %c7_404 = arith.constant 7 : index
    %c0_405 = arith.constant 0 : index
    %c0_406 = arith.constant 0 : index
    %406 = vector.load %arg19[%c7_404, %c0_405, %c0_406] : memref<9x3x16xbf16, #tpu.memory_space<vmem>>, vector<1x3x16xbf16>
    %407 = vector.shape_cast %406 : vector<1x3x16xbf16> to vector<3x16xbf16>
    %cst_407 = arith.constant dense<0.000000e+00> : vector<3x64xf32>
    %408 = tpu.matmul %407, %377, %cst_407 {dimension_numbers = #tpu.dot_dimension_numbers<[1], [0], [0], [1], [0, 0, 1, 1], [], []>} : vector<3x16xbf16>, vector<16x64xbf16>, vector<3x64xf32> -> vector<3x64xf32>
    %409 = arith.addf %405, %408 : vector<3x64xf32>
    %c8_408 = arith.constant 8 : index
    %c0_409 = arith.constant 0 : index
    %c0_410 = arith.constant 0 : index
    %410 = vector.load %arg19[%c8_408, %c0_409, %c0_410] : memref<9x3x16xbf16, #tpu.memory_space<vmem>>, vector<1x3x16xbf16>
    %411 = vector.shape_cast %410 : vector<1x3x16xbf16> to vector<3x16xbf16>
    %cst_411 = arith.constant dense<0.000000e+00> : vector<3x64xf32>
    %412 = tpu.matmul %411, %381, %cst_411 {dimension_numbers = #tpu.dot_dimension_numbers<[1], [0], [0], [1], [0, 0, 1, 1], [], []>} : vector<3x16xbf16>, vector<16x64xbf16>, vector<3x64xf32> -> vector<3x64xf32>
    %413 = arith.addf %409, %412 : vector<3x64xf32>
    %c0_412 = arith.constant 0 : index
    %c0_413 = arith.constant 0 : index
    %c0_414 = arith.constant 0 : index
    %414 = vector.load %arg21[%c0_412, %c0_413, %c0_414] : memref<4x64x256xf32, #tpu.memory_space<vmem>>, vector<1x64x256xf32>
    %415 = vector.shape_cast %414 : vector<1x64x256xf32> to vector<64x256xf32>
    %cst_415 = arith.constant dense<0.000000e+00> : vector<3x256xf32>
    %416 = tpu.matmul %384, %415, %cst_415 {dimension_numbers = #tpu.dot_dimension_numbers<[1], [0], [0], [1], [0, 0, 1, 1], [], []>} : vector<3x64xf32>, vector<64x256xf32>, vector<3x256xf32> -> vector<3x256xf32>
    %c1_416 = arith.constant 1 : index
    %c0_417 = arith.constant 0 : index
    %c0_418 = arith.constant 0 : index
    %417 = vector.load %arg21[%c1_416, %c0_417, %c0_418] : memref<4x64x256xf32, #tpu.memory_space<vmem>>, vector<1x64x256xf32>
    %418 = vector.shape_cast %417 : vector<1x64x256xf32> to vector<64x256xf32>
    %cst_419 = arith.constant dense<0.000000e+00> : vector<3x256xf32>
    %419 = tpu.matmul %391, %418, %cst_419 {dimension_numbers = #tpu.dot_dimension_numbers<[1], [0], [0], [1], [0, 0, 1, 1], [], []>} : vector<3x64xf32>, vector<64x256xf32>, vector<3x256xf32> -> vector<3x256xf32>
    %420 = arith.addf %416, %419 : vector<3x256xf32>
    %c2_420 = arith.constant 2 : index
    %c0_421 = arith.constant 0 : index
    %c0_422 = arith.constant 0 : index
    %421 = vector.load %arg21[%c2_420, %c0_421, %c0_422] : memref<4x64x256xf32, #tpu.memory_space<vmem>>, vector<1x64x256xf32>
    %422 = vector.shape_cast %421 : vector<1x64x256xf32> to vector<64x256xf32>
    %cst_423 = arith.constant dense<0.000000e+00> : vector<3x256xf32>
    %423 = tpu.matmul %398, %422, %cst_423 {dimension_numbers = #tpu.dot_dimension_numbers<[1], [0], [0], [1], [0, 0, 1, 1], [], []>} : vector<3x64xf32>, vector<64x256xf32>, vector<3x256xf32> -> vector<3x256xf32>
    %424 = arith.addf %420, %423 : vector<3x256xf32>
    %c3_424 = arith.constant 3 : index
    %c0_425 = arith.constant 0 : index
    %c0_426 = arith.constant 0 : index
    %425 = vector.load %arg21[%c3_424, %c0_425, %c0_426] : memref<4x64x256xf32, #tpu.memory_space<vmem>>, vector<1x64x256xf32>
    %426 = vector.shape_cast %425 : vector<1x64x256xf32> to vector<64x256xf32>
    %cst_427 = arith.constant dense<0.000000e+00> : vector<3x256xf32>
    %427 = tpu.matmul %413, %426, %cst_427 {dimension_numbers = #tpu.dot_dimension_numbers<[1], [0], [0], [1], [0, 0, 1, 1], [], []>} : vector<3x64xf32>, vector<64x256xf32>, vector<3x256xf32> -> vector<3x256xf32>
    %428 = arith.addf %424, %427 : vector<3x256xf32>
    %c0_428 = arith.constant 0 : index
    %c0_429 = arith.constant 0 : index
    %429 = vector.load %arg22[%c0_428, %c0_429] : memref<3x1xf32, #tpu.memory_space<vmem>>, vector<3x1xf32>
    %430 = vector.broadcast %429 : vector<3x1xf32> to vector<3x256xf32>
    %431 = arith.addf %428, %430 : vector<3x256xf32>
    %cst_430 = arith.constant 0.000000e+00 : f32
    %432 = vector.broadcast %cst_430 : f32 to vector<3x256xf32>
    %433 = arith.subf %432, %431 : vector<3x256xf32>
    %434 = math.exp %433 : vector<3x256xf32>
    %cst_431 = arith.constant 1.000000e+00 : f32
    %435 = vector.broadcast %cst_431 : f32 to vector<3x256xf32>
    %436 = arith.addf %435, %434 : vector<3x256xf32>
    %cst_432 = arith.constant 1.000000e+00 : f32
    %437 = vector.broadcast %cst_432 : f32 to vector<3x256xf32>
    %438 = arith.divf %437, %436 : vector<3x256xf32>
    %c0_433 = arith.constant 0 : index
    %c0_434 = arith.constant 0 : index
    %c0_435 = arith.constant 0 : index
    %439 = vector.load %arg23[%c0_433, %c0_434, %c0_435] : memref<1x3x256xf32, #tpu.memory_space<vmem>>, vector<1x3x256xf32>
    %440 = vector.shape_cast %439 : vector<1x3x256xf32> to vector<3x256xf32>
    %441 = vector.shape_cast %438 : vector<3x256xf32> to vector<1x3x256xf32>
    tpu.vector_store %arg23[%c0_433, %c0_434, %c0_435], %441 {strides = array<i32>} : memref<1x3x256xf32, #tpu.memory_space<vmem>>, vector<1x3x256xf32>,
    return
  }
  func.func @transform_0(%arg0: i32) -> (i32, i32, i32) {
    %c0_i32 = arith.constant 0 : i32
    %c0_i32_0 = arith.constant 0 : i32
    %c0_i32_1 = arith.constant 0 : i32
    return %arg0, %c0_i32, %c0_i32_0 : i32, i32, i32
  }
  func.func @transform_1(%arg0: i32) -> (i32, i32, i32) {
    %c0_i32 = arith.constant 0 : i32
    %c0_i32_0 = arith.constant 0 : i32
    %c0_i32_1 = arith.constant 0 : i32
    %c0_i32_2 = arith.constant 0 : i32
    return %c0_i32, %c0_i32_0, %c0_i32_1 : i32, i32, i32
  }
  func.func @transform_2(%arg0: i32) -> (i32, i32, i32) {
    %c0_i32 = arith.constant 0 : i32
    %c0_i32_0 = arith.constant 0 : i32
    %c0_i32_1 = arith.constant 0 : i32
    %c0_i32_2 = arith.constant 0 : i32
    return %c0_i32, %c0_i32_0, %c0_i32_1 : i32, i32, i32
  }
  func.func @transform_3(%arg0: i32) -> (i32, i32) {
    %c0_i32 = arith.constant 0 : i32
    %c0_i32_0 = arith.constant 0 : i32
    %c0_i32_1 = arith.constant 0 : i32
    return %c0_i32, %c0_i32_0 : i32, i32
  }
  func.func @transform_4(%arg0: i32) -> (i32, i32, i32) {
    %c0_i32 = arith.constant 0 : i32
    %c0_i32_0 = arith.constant 0 : i32
    %c0_i32_1 = arith.constant 0 : i32
    %c0_i32_2 = arith.constant 0 : i32
    return %c0_i32, %c0_i32_0, %c0_i32_1 : i32, i32, i32
  }
  func.func @transform_5(%arg0: i32) -> (i32, i32, i32) {
    %c0_i32 = arith.constant 0 : i32
    %c0_i32_0 = arith.constant 0 : i32
    %c0_i32_1 = arith.constant 0 : i32
    %c0_i32_2 = arith.constant 0 : i32
    return %c0_i32, %c0_i32_0, %c0_i32_1 : i32, i32, i32
  }
  func.func @transform_6(%arg0: i32) -> (i32, i32) {
    %c0_i32 = arith.constant 0 : i32
    %c0_i32_0 = arith.constant 0 : i32
    %c0_i32_1 = arith.constant 0 : i32
    return %c0_i32, %c0_i32_0 : i32, i32
  }
  func.func @transform_7(%arg0: i32) -> (i32, i32, i32) {
    %c0_i32 = arith.constant 0 : i32
    %c0_i32_0 = arith.constant 0 : i32
    %c0_i32_1 = arith.constant 0 : i32
    %c0_i32_2 = arith.constant 0 : i32
    return %c0_i32, %c0_i32_0, %c0_i32_1 : i32, i32, i32
  }
  func.func @transform_8(%arg0: i32) -> (i32, i32, i32) {
    %c0_i32 = arith.constant 0 : i32
    %c0_i32_0 = arith.constant 0 : i32
    %c0_i32_1 = arith.constant 0 : i32
    %c0_i32_2 = arith.constant 0 : i32
    return %c0_i32, %c0_i32_0, %c0_i32_1 : i32, i32, i32
  }
  func.func @transform_9(%arg0: i32) -> (i32, i32) {
    %c0_i32 = arith.constant 0 : i32
    %c0_i32_0 = arith.constant 0 : i32
    %c0_i32_1 = arith.constant 0 : i32
    return %c0_i32, %c0_i32_0 : i32, i32
  }
  func.func @transform_10(%arg0: i32) -> (i32, i32, i32) {
    %c0_i32 = arith.constant 0 : i32
    %c0_i32_0 = arith.constant 0 : i32
    %c0_i32_1 = arith.constant 0 : i32
    %c0_i32_2 = arith.constant 0 : i32
    return %c0_i32, %c0_i32_0, %c0_i32_1 : i32, i32, i32
  }
  func.func @transform_11(%arg0: i32) -> (i32, i32, i32) {
    %c0_i32 = arith.constant 0 : i32
    %c0_i32_0 = arith.constant 0 : i32
    %c0_i32_1 = arith.constant 0 : i32
    %c0_i32_2 = arith.constant 0 : i32
    return %c0_i32, %c0_i32_0, %c0_i32_1 : i32, i32, i32
  }
  func.func @transform_12(%arg0: i32) -> (i32, i32, i32) {
    %c0_i32 = arith.constant 0 : i32
    %c0_i32_0 = arith.constant 0 : i32
    %c0_i32_1 = arith.constant 0 : i32
    %c0_i32_2 = arith.constant 0 : i32
    return %c0_i32, %c0_i32_0, %c0_i32_1 : i32, i32, i32
  }
  func.func @transform_13(%arg0: i32) -> (i32, i32) {
    %c0_i32 = arith.constant 0 : i32
    %c0_i32_0 = arith.constant 0 : i32
    %c0_i32_1 = arith.constant 0 : i32
    return %c0_i32, %c0_i32_0 : i32, i32
  }
  func.func @transform_14(%arg0: i32) -> (i32, i32, i32) {
    %c0_i32 = arith.constant 0 : i32
    %c0_i32_0 = arith.constant 0 : i32
    %c0_i32_1 = arith.constant 0 : i32
    %c0_i32_2 = arith.constant 0 : i32
    return %c0_i32, %c0_i32_0, %c0_i32_1 : i32, i32, i32
  }
  func.func @transform_15(%arg0: i32) -> (i32, i32, i32) {
    %c0_i32 = arith.constant 0 : i32
    %c0_i32_0 = arith.constant 0 : i32
    %c0_i32_1 = arith.constant 0 : i32
    %c0_i32_2 = arith.constant 0 : i32
    return %c0_i32, %c0_i32_0, %c0_i32_1 : i32, i32, i32
  }
  func.func @transform_16(%arg0: i32) -> (i32, i32, i32) {
    %c0_i32 = arith.constant 0 : i32
    %c0_i32_0 = arith.constant 0 : i32
    %c0_i32_1 = arith.constant 0 : i32
    %c0_i32_2 = arith.constant 0 : i32
    return %c0_i32, %c0_i32_0, %c0_i32_1 : i32, i32, i32
  }
  func.func @transform_17(%arg0: i32) -> (i32, i32) {
    %c0_i32 = arith.constant 0 : i32
    %c0_i32_0 = arith.constant 0 : i32
    %c0_i32_1 = arith.constant 0 : i32
    return %c0_i32, %c0_i32_0 : i32, i32
  }
  func.func @transform_18(%arg0: i32) -> (i32, i32, i32) {
    %c0_i32 = arith.constant 0 : i32
    %c0_i32_0 = arith.constant 0 : i32
    %c0_i32_1 = arith.constant 0 : i32
    %c0_i32_2 = arith.constant 0 : i32
    return %c0_i32, %c0_i32_0, %c0_i32_1 : i32, i32, i32
  }
  func.func @transform_19(%arg0: i32) -> (i32, i32, i32) {
    %c0_i32 = arith.constant 0 : i32
    %c0_i32_0 = arith.constant 0 : i32
    %c0_i32_1 = arith.constant 0 : i32
    %c0_i32_2 = arith.constant 0 : i32
    return %c0_i32, %c0_i32_0, %c0_i32_1 : i32, i32, i32
  }
  func.func @transform_20(%arg0: i32) -> (i32, i32, i32) {
    %c0_i32 = arith.constant 0 : i32
    %c0_i32_0 = arith.constant 0 : i32
    %c0_i32_1 = arith.constant 0 : i32
    %c0_i32_2 = arith.constant 0 : i32
    return %c0_i32, %c0_i32_0, %c0_i32_1 : i32, i32, i32
  }
  func.func @transform_21(%arg0: i32) -> (i32, i32) {
    %c0_i32 = arith.constant 0 : i32
    %c0_i32_0 = arith.constant 0 : i32
    %c0_i32_1 = arith.constant 0 : i32
    return %c0_i32, %c0_i32_0 : i32, i32
  }
  func.func @transform_22(%arg0: i32) -> (i32, i32, i32) {
    %c0_i32 = arith.constant 0 : i32
    %c0_i32_0 = arith.constant 0 : i32
    %c0_i32_1 = arith.constant 0 : i32
    return %arg0, %c0_i32, %c0_i32_0 : i32, i32, i32
  }
}

</mosaic_0001>

<llo_original>
// kernel: autoencoder_forward.1
$region0: #{autoencoder_forward.1}
  #allocation0 [shape = 'u32[]', space=smem, size = 0x4, offset = 0x4, fixed_abs, tag = 'smem constant byte address 0x4 - core index']
  #allocation1 [shape = 'u32[144,128]{1,0:T(1,128)}', space=vmem, size = 0x12000, scoped, tag = 'internal scratch']
  %s0 = inlined_call_operand.vmem [shape: f32[2,3,256], index: 0, kind: input, shape index: {}]
  %s1 = inlined_call_operand.vmem [shape: bf16[9,16,3], index: 1, kind: input, shape index: {}]
  %s2 = inlined_call_operand.vmem [shape: f32[9,256,64], index: 2, kind: input, shape index: {}]
  %s3 = inlined_call_operand.vmem [shape: f32[16,1], index: 3, kind: input, shape index: {}]
  %s4 = inlined_call_operand.vmem [shape: bf16[9,32,16], index: 4, kind: input, shape index: {}]
  %s5 = inlined_call_operand.vmem [shape: f32[9,64,16], index: 5, kind: input, shape index: {}]
  %s6 = inlined_call_operand.vmem [shape: f32[32,1], index: 6, kind: input, shape index: {}]
  %s7 = inlined_call_operand.vmem [shape: bf16[9,64,32], index: 7, kind: input, shape index: {}]
  %s8 = inlined_call_operand.vmem [shape: f32[9,16,4], index: 8, kind: input, shape index: {}]
  %s9 = inlined_call_operand.vmem [shape: f32[64,1], index: 9, kind: input, shape index: {}]
  %s10 = inlined_call_operand.vmem [shape: bf16[9,32,64], index: 10, kind: input, shape index: {}]
  %s11 = inlined_call_operand.vmem [shape: f32[4,4,4], index: 11, kind: input, shape index: {}]
  %s12 = inlined_call_operand.vmem [shape: f32[4,4,16], index: 12, kind: input, shape index: {}]
  %s13 = inlined_call_operand.vmem [shape: f32[32,1], index: 13, kind: input, shape index: {}]
  %s14 = inlined_call_operand.vmem [shape: bf16[9,16,32], index: 14, kind: input, shape index: {}]
  %s15 = inlined_call_operand.vmem [shape: f32[4,16,16], index: 15, kind: input, shape index: {}]
  %s16 = inlined_call_operand.vmem [shape: f32[4,16,64], index: 16, kind: input, shape index: {}]
  %s17 = inlined_call_operand.vmem [shape: f32[16,1], index: 17, kind: input, shape index: {}]
  %s18 = inlined_call_operand.vmem [shape: bf16[9,3,16], index: 18, kind: input, shape index: {}]
  %s19 = inlined_call_operand.vmem [shape: f32[4,64,64], index: 19, kind: input, shape index: {}]
  %s20 = inlined_call_operand.vmem [shape: f32[4,64,256], index: 20, kind: input, shape index: {}]
  %s21 = inlined_call_operand.vmem [shape: f32[3,1], index: 21, kind: input, shape index: {}]
  %s22 = inlined_call_operand.vmem [shape: f32[2,3,256], index: 22, kind: output, shape index: {}]
  %s23 = sld [smem:[#allocation0]]
  $region121: #{autoencoder_forward.1} parent=0
    _
  %s25 = ssub.s32 1, %s23
  %s26 = scalar_select 0, %s25, %s23
  loop: start=0, step=1, limit=4
  $region2: #{autoencoder_forward.1} parent=0 // loop_pre_header
    _
  $region3: #{autoencoder_forward.1} parent=0 // loop_header
    %s28 = sphi 0, %s32
    %p29 = scmp.ge.s32.totalorder %s28, 4
    %s38 = sphi 0, %s40
    %s41 = sphi 0, %s38
    %s42 = sphi 0, %s41
    %s58 = sphi 0, %s42
    %s62 = sphi 0, %s62
    %s64 = sphi 0, %s62
    %s65 = sphi 0, %s64
    %s79 = sphi 0, %s65
    %s83 = sphi 0, %s83
    %s85 = sphi 0, %s83
    %s86 = sphi 0, %s85
    %s100 = sphi 0, %s86
    %s104 = sphi 0, %s104
    %s106 = sphi 0, %s104
    %s107 = sphi 0, %s106
    %s121 = sphi 0, %s107
    %s125 = sphi 0, %s125
    %s127 = sphi 0, %s125
    %s128 = sphi 0, %s127
    %s142 = sphi 0, %s128
    %s146 = sphi 0, %s146
    %s148 = sphi 0, %s146
    %s149 = sphi 0, %s148
    %s163 = sphi 0, %s149
    %s167 = sphi 0, %s167
    %s169 = sphi 0, %s167
    %s170 = sphi 0, %s169
    %s184 = sphi 0, %s170
    %s188 = sphi 0, %s188
    %s190 = sphi 0, %s188
    %s191 = sphi 0, %s190
    %s205 = sphi 0, %s191
    %s209 = sphi 0, %s209
    %s211 = sphi 0, %s209
    %s212 = sphi 0, %s211
    %s226 = sphi 0, %s212
    %s230 = sphi 0, %s230
    %s232 = sphi 0, %s230
    %s233 = sphi 0, %s232
    %s247 = sphi 0, %s233
    %s251 = sphi 0, %s251
    %s253 = sphi 0, %s251
    %s254 = sphi 0, %s253
    %s268 = sphi 0, %s254
    %s272 = sphi 0, %s272
    %s274 = sphi 0, %s272
    %s275 = sphi 0, %s274
    %s289 = sphi 0, %s275
    %s293 = sphi 0, %s293
    %s295 = sphi 0, %s293
    %s296 = sphi 0, %s295
    %s310 = sphi 0, %s296
    %s314 = sphi 0, %s314
    %s316 = sphi 0, %s314
    %s317 = sphi 0, %s316
    %s331 = sphi 0, %s317
    %s335 = sphi 0, %s335
    %s337 = sphi 0, %s335
    %s338 = sphi 0, %s337
    %s352 = sphi 0, %s338
    %s356 = sphi 0, %s356
    %s358 = sphi 0, %s356
    %s359 = sphi 0, %s358
    %s373 = sphi 0, %s359
    %s377 = sphi 0, %s377
    %s379 = sphi 0, %s377
    %s380 = sphi 0, %s379
    %s394 = sphi 0, %s380
    %s398 = sphi 0, %s398
    %s400 = sphi 0, %s398
    %s401 = sphi 0, %s400
    %s415 = sphi 0, %s401
    %s419 = sphi 0, %s419
    %s421 = sphi 0, %s419
    %s422 = sphi 0, %s421
    %s436 = sphi 0, %s422
    %s440 = sphi 0, %s440
    %s442 = sphi 0, %s440
    %s443 = sphi 0, %s442
    %s457 = sphi 0, %s443
    %s461 = sphi 0, %s461
    %s463 = sphi 0, %s461
    %s464 = sphi 0, %s463
    %s478 = sphi 0, %s464
    %s482 = sphi 0, %s482
    %s484 = sphi 0, %s482
    %s485 = sphi 0, %s484
    %s499 = sphi 0, %s485
    %s505 = sphi 0, %s507
    %s508 = sphi 0, %s505
    %s509 = sphi 0, %s508
    %s525 = sphi 0, %s509
  $region4: #{autoencoder_forward.1} parent=0 // loop_header_branch
    %31 = sbr.rel (%p29) target = $region8
  $region5: #{autoencoder_forward.1} parent=0 // loop_body
    %s33 = ssub.s32 %s28, 1
    %s34 = ssub.s32 %s28, 2
    %s35 = sadd.s32 %s28, 1
    %s36 = ssub.s32 %s28, %s35
    %p37 = scmp.eq.s32.totalorder %s36, 0
    %s39 = sadd.s32 %s38, 1
    %s40 = scalar_select %p37, %s38, %s39
    %p43 = pneg %p37
    %p44 = scmp.eq.s32.totalorder %s28, 1
    %p45 = por %p43, %p44
    %p46 = scmp.ne.s32.totalorder %s38, %s41
    %p47 = scmp.eq.s32.totalorder %s28, 0
    %p48 = por %p46, %p47
    %p49 = scmp.ne.s32.totalorder %s38, %s41
    %p50 = scmp.eq.s32.totalorder %s33, 1
    %p51 = por %p49, %p50
    %p52 = scmp.ne.s32.totalorder %s41, %s42
    %p53 = scmp.eq.s32.totalorder %s33, 0
    %p54 = por %p52, %p53
    %p55 = scmp.ne.s32.totalorder %s41, %s42
    %p56 = scmp.eq.s32.totalorder %s34, 1
    %p57 = por %p55, %p56
    %p59 = scmp.ne.s32.totalorder %s42, %s58
    %p60 = scmp.eq.s32.totalorder %s34, 0
    %p61 = por %p59, %p60
    %s63 = sadd.s32 %s62, 1
    %p66 = scmp.eq.s32.totalorder %s28, 1
    %p67 = scmp.ne.s32.totalorder %s62, %s64
    %p68 = scmp.eq.s32.totalorder %s28, 0
    %p69 = por %p67, %p68
    %p70 = scmp.ne.s32.totalorder %s62, %s64
    %p71 = scmp.eq.s32.totalorder %s33, 1
    %p72 = por %p70, %p71
    %p73 = scmp.ne.s32.totalorder %s64, %s65
    %p74 = scmp.eq.s32.totalorder %s33, 0
    %p75 = por %p73, %p74
    %p76 = scmp.ne.s32.totalorder %s64, %s65
    %p77 = scmp.eq.s32.totalorder %s34, 1
    %p78 = por %p76, %p77
    %p80 = scmp.ne.s32.totalorder %s65, %s79
    %p81 = scmp.eq.s32.totalorder %s34, 0
    %p82 = por %p80, %p81
    %s84 = sadd.s32 %s83, 1
    %p87 = scmp.eq.s32.totalorder %s28, 1
    %p88 = scmp.ne.s32.totalorder %s83, %s85
    %p89 = scmp.eq.s32.totalorder %s28, 0
    %p90 = por %p88, %p89
    %p91 = scmp.ne.s32.totalorder %s83, %s85
    %p92 = scmp.eq.s32.totalorder %s33, 1
    %p93 = por %p91, %p92
    %p94 = scmp.ne.s32.totalorder %s85, %s86
    %p95 = scmp.eq.s32.totalorder %s33, 0
    %p96 = por %p94, %p95
    %p97 = scmp.ne.s32.totalorder %s85, %s86
    %p98 = scmp.eq.s32.totalorder %s34, 1
    %p99 = por %p97, %p98
    %p101 = scmp.ne.s32.totalorder %s86, %s100
    %p102 = scmp.eq.s32.totalorder %s34, 0
    %p103 = por %p101, %p102
    %s105 = sadd.s32 %s104, 1
    %p108 = scmp.eq.s32.totalorder %s28, 1
    %p109 = scmp.ne.s32.totalorder %s104, %s106
    %p110 = scmp.eq.s32.totalorder %s28, 0
    %p111 = por %p109, %p110
    %p112 = scmp.ne.s32.totalorder %s104, %s106
    %p113 = scmp.eq.s32.totalorder %s33, 1
    %p114 = por %p112, %p113
    %p115 = scmp.ne.s32.totalorder %s106, %s107
    %p116 = scmp.eq.s32.totalorder %s33, 0
    %p117 = por %p115, %p116
    %p118 = scmp.ne.s32.totalorder %s106, %s107
    %p119 = scmp.eq.s32.totalorder %s34, 1
    %p120 = por %p118, %p119
    %p122 = scmp.ne.s32.totalorder %s107, %s121
    %p123 = scmp.eq.s32.totalorder %s34, 0
    %p124 = por %p122, %p123
    %s126 = sadd.s32 %s125, 1
    %p129 = scmp.eq.s32.totalorder %s28, 1
    %p130 = scmp.ne.s32.totalorder %s125, %s127
    %p131 = scmp.eq.s32.totalorder %s28, 0
    %p132 = por %p130, %p131
    %p133 = scmp.ne.s32.totalorder %s125, %s127
    %p134 = scmp.eq.s32.totalorder %s33, 1
    %p135 = por %p133, %p134
    %p136 = scmp.ne.s32.totalorder %s127, %s128
    %p137 = scmp.eq.s32.totalorder %s33, 0
    %p138 = por %p136, %p137
    %p139 = scmp.ne.s32.totalorder %s127, %s128
    %p140 = scmp.eq.s32.totalorder %s34, 1
    %p141 = por %p139, %p140
    %p143 = scmp.ne.s32.totalorder %s128, %s142
    %p144 = scmp.eq.s32.totalorder %s34, 0
    %p145 = por %p143, %p144
    %s147 = sadd.s32 %s146, 1
    %p150 = scmp.eq.s32.totalorder %s28, 1
    %p151 = scmp.ne.s32.totalorder %s146, %s148
    %p152 = scmp.eq.s32.totalorder %s28, 0
    %p153 = por %p151, %p152
    %p154 = scmp.ne.s32.totalorder %s146, %s148
    %p155 = scmp.eq.s32.totalorder %s33, 1
    %p156 = por %p154, %p155
    %p157 = scmp.ne.s32.totalorder %s148, %s149
    %p158 = scmp.eq.s32.totalorder %s33, 0
    %p159 = por %p157, %p158
    %p160 = scmp.ne.s32.totalorder %s148, %s149
    %p161 = scmp.eq.s32.totalorder %s34, 1
    %p162 = por %p160, %p161
    %p164 = scmp.ne.s32.totalorder %s149, %s163
    %p165 = scmp.eq.s32.totalorder %s34, 0
    %p166 = por %p164, %p165
    %s168 = sadd.s32 %s167, 1
    %p171 = scmp.eq.s32.totalorder %s28, 1
    %p172 = scmp.ne.s32.totalorder %s167, %s169
    %p173 = scmp.eq.s32.totalorder %s28, 0
    %p174 = por %p172, %p173
    %p175 = scmp.ne.s32.totalorder %s167, %s169
    %p176 = scmp.eq.s32.totalorder %s33, 1
    %p177 = por %p175, %p176
    %p178 = scmp.ne.s32.totalorder %s169, %s170
    %p179 = scmp.eq.s32.totalorder %s33, 0
    %p180 = por %p178, %p179
    %p181 = scmp.ne.s32.totalorder %s169, %s170
    %p182 = scmp.eq.s32.totalorder %s34, 1
    %p183 = por %p181, %p182
    %p185 = scmp.ne.s32.totalorder %s170, %s184
    %p186 = scmp.eq.s32.totalorder %s34, 0
    %p187 = por %p185, %p186
    %s189 = sadd.s32 %s188, 1
    %p192 = scmp.eq.s32.totalorder %s28, 1
    %p193 = scmp.ne.s32.totalorder %s188, %s190
    %p194 = scmp.eq.s32.totalorder %s28, 0
    %p195 = por %p193, %p194
    %p196 = scmp.ne.s32.totalorder %s188, %s190
    %p197 = scmp.eq.s32.totalorder %s33, 1
    %p198 = por %p196, %p197
    %p199 = scmp.ne.s32.totalorder %s190, %s191
    %p200 = scmp.eq.s32.totalorder %s33, 0
    %p201 = por %p199, %p200
    %p202 = scmp.ne.s32.totalorder %s190, %s191
    %p203 = scmp.eq.s32.totalorder %s34, 1
    %p204 = por %p202, %p203
    %p206 = scmp.ne.s32.totalorder %s191, %s205
    %p207 = scmp.eq.s32.totalorder %s34, 0
    %p208 = por %p206, %p207
    %s210 = sadd.s32 %s209, 1
    %p213 = scmp.eq.s32.totalorder %s28, 1
    %p214 = scmp.ne.s32.totalorder %s209, %s211
    %p215 = scmp.eq.s32.totalorder %s28, 0
    %p216 = por %p214, %p215
    %p217 = scmp.ne.s32.totalorder %s209, %s211
    %p218 = scmp.eq.s32.totalorder %s33, 1
    %p219 = por %p217, %p218
    %p220 = scmp.ne.s32.totalorder %s211, %s212
    %p221 = scmp.eq.s32.totalorder %s33, 0
    %p222 = por %p220, %p221
    %p223 = scmp.ne.s32.totalorder %s211, %s212
    %p224 = scmp.eq.s32.totalorder %s34, 1
    %p225 = por %p223, %p224
    %p227 = scmp.ne.s32.totalorder %s212, %s226
    %p228 = scmp.eq.s32.totalorder %s34, 0
    %p229 = por %p227, %p228
    %s231 = sadd.s32 %s230, 1
    %p234 = scmp.eq.s32.totalorder %s28, 1
    %p235 = scmp.ne.s32.totalorder %s230, %s232
    %p236 = scmp.eq.s32.totalorder %s28, 0
    %p237 = por %p235, %p236
    %p238 = scmp.ne.s32.totalorder %s230, %s232
    %p239 = scmp.eq.s32.totalorder %s33, 1
    %p240 = por %p238, %p239
    %p241 = scmp.ne.s32.totalorder %s232, %s233
    %p242 = scmp.eq.s32.totalorder %s33, 0
    %p243 = por %p241, %p242
    %p244 = scmp.ne.s32.totalorder %s232, %s233
    %p245 = scmp.eq.s32.totalorder %s34, 1
    %p246 = por %p244, %p245
    %p248 = scmp.ne.s32.totalorder %s233, %s247
    %p249 = scmp.eq.s32.totalorder %s34, 0
    %p250 = por %p248, %p249
    %s252 = sadd.s32 %s251, 1
    %p255 = scmp.eq.s32.totalorder %s28, 1
    %p256 = scmp.ne.s32.totalorder %s251, %s253
    %p257 = scmp.eq.s32.totalorder %s28, 0
    %p258 = por %p256, %p257
    %p259 = scmp.ne.s32.totalorder %s251, %s253
    %p260 = scmp.eq.s32.totalorder %s33, 1
    %p261 = por %p259, %p260
    %p262 = scmp.ne.s32.totalorder %s253, %s254
    %p263 = scmp.eq.s32.totalorder %s33, 0
    %p264 = por %p262, %p263
    %p265 = scmp.ne.s32.totalorder %s253, %s254
    %p266 = scmp.eq.s32.totalorder %s34, 1
    %p267 = por %p265, %p266
    %p269 = scmp.ne.s32.totalorder %s254, %s268
    %p270 = scmp.eq.s32.totalorder %s34, 0
    %p271 = por %p269, %p270
    %s273 = sadd.s32 %s272, 1
    %p276 = scmp.eq.s32.totalorder %s28, 1
    %p277 = scmp.ne.s32.totalorder %s272, %s274
    %p278 = scmp.eq.s32.totalorder %s28, 0
    %p279 = por %p277, %p278
    %p280 = scmp.ne.s32.totalorder %s272, %s274
    %p281 = scmp.eq.s32.totalorder %s33, 1
    %p282 = por %p280, %p281
    %p283 = scmp.ne.s32.totalorder %s274, %s275
    %p284 = scmp.eq.s32.totalorder %s33, 0
    %p285 = por %p283, %p284
    %p286 = scmp.ne.s32.totalorder %s274, %s275
    %p287 = scmp.eq.s32.totalorder %s34, 1
    %p288 = por %p286, %p287
    %p290 = scmp.ne.s32.totalorder %s275, %s289
    %p291 = scmp.eq.s32.totalorder %s34, 0
    %p292 = por %p290, %p291
    %s294 = sadd.s32 %s293, 1
    %p297 = scmp.eq.s32.totalorder %s28, 1
    %p298 = scmp.ne.s32.totalorder %s293, %s295
    %p299 = scmp.eq.s32.totalorder %s28, 0
    %p300 = por %p298, %p299
    %p301 = scmp.ne.s32.totalorder %s293, %s295
    %p302 = scmp.eq.s32.totalorder %s33, 1
    %p303 = por %p301, %p302
    %p304 = scmp.ne.s32.totalorder %s295, %s296
    %p305 = scmp.eq.s32.totalorder %s33, 0
    %p306 = por %p304, %p305
    %p307 = scmp.ne.s32.totalorder %s295, %s296
    %p308 = scmp.eq.s32.totalorder %s34, 1
    %p309 = por %p307, %p308
    %p311 = scmp.ne.s32.totalorder %s296, %s310
    %p312 = scmp.eq.s32.totalorder %s34, 0
    %p313 = por %p311, %p312
    %s315 = sadd.s32 %s314, 1
    %p318 = scmp.eq.s32.totalorder %s28, 1
    %p319 = scmp.ne.s32.totalorder %s314, %s316
    %p320 = scmp.eq.s32.totalorder %s28, 0
    %p321 = por %p319, %p320
    %p322 = scmp.ne.s32.totalorder %s314, %s316
    %p323 = scmp.eq.s32.totalorder %s33, 1
    %p324 = por %p322, %p323
    %p325 = scmp.ne.s32.totalorder %s316, %s317
    %p326 = scmp.eq.s32.totalorder %s33, 0
    %p327 = por %p325, %p326
    %p328 = scmp.ne.s32.totalorder %s316, %s317
    %p329 = scmp.eq.s32.totalorder %s34, 1
    %p330 = por %p328, %p329
    %p332 = scmp.ne.s32.totalorder %s317, %s331
    %p333 = scmp.eq.s32.totalorder %s34, 0
    %p334 = por %p332, %p333
    %s336 = sadd.s32 %s335, 1
    %p339 = scmp.eq.s32.totalorder %s28, 1
    %p340 = scmp.ne.s32.totalorder %s335, %s337
    %p341 = scmp.eq.s32.totalorder %s28, 0
    %p342 = por %p340, %p341
    %p343 = scmp.ne.s32.totalorder %s335, %s337
    %p344 = scmp.eq.s32.totalorder %s33, 1
    %p345 = por %p343, %p344
    %p346 = scmp.ne.s32.totalorder %s337, %s338
    %p347 = scmp.eq.s32.totalorder %s33, 0
    %p348 = por %p346, %p347
    %p349 = scmp.ne.s32.totalorder %s337, %s338
    %p350 = scmp.eq.s32.totalorder %s34, 1
    %p351 = por %p349, %p350
    %p353 = scmp.ne.s32.totalorder %s338, %s352
    %p354 = scmp.eq.s32.totalorder %s34, 0
    %p355 = por %p353, %p354
    %s357 = sadd.s32 %s356, 1
    %p360 = scmp.eq.s32.totalorder %s28, 1
    %p361 = scmp.ne.s32.totalorder %s356, %s358
    %p362 = scmp.eq.s32.totalorder %s28, 0
    %p363 = por %p361, %p362
    %p364 = scmp.ne.s32.totalorder %s356, %s358
    %p365 = scmp.eq.s32.totalorder %s33, 1
    %p366 = por %p364, %p365
    %p367 = scmp.ne.s32.totalorder %s358, %s359
    %p368 = scmp.eq.s32.totalorder %s33, 0
    %p369 = por %p367, %p368
    %p370 = scmp.ne.s32.totalorder %s358, %s359
    %p371 = scmp.eq.s32.totalorder %s34, 1
    %p372 = por %p370, %p371
    %p374 = scmp.ne.s32.totalorder %s359, %s373
    %p375 = scmp.eq.s32.totalorder %s34, 0
    %p376 = por %p374, %p375
    %s378 = sadd.s32 %s377, 1
    %p381 = scmp.eq.s32.totalorder %s28, 1
    %p382 = scmp.ne.s32.totalorder %s377, %s379
    %p383 = scmp.eq.s32.totalorder %s28, 0
    %p384 = por %p382, %p383
    %p385 = scmp.ne.s32.totalorder %s377, %s379
    %p386 = scmp.eq.s32.totalorder %s33, 1
    %p387 = por %p385, %p386
    %p388 = scmp.ne.s32.totalorder %s379, %s380
    %p389 = scmp.eq.s32.totalorder %s33, 0
    %p390 = por %p388, %p389
    %p391 = scmp.ne.s32.totalorder %s379, %s380
    %p392 = scmp.eq.s32.totalorder %s34, 1
    %p393 = por %p391, %p392
    %p395 = scmp.ne.s32.totalorder %s380, %s394
    %p396 = scmp.eq.s32.totalorder %s34, 0
    %p397 = por %p395, %p396
    %s399 = sadd.s32 %s398, 1
    %p402 = scmp.eq.s32.totalorder %s28, 1
    %p403 = scmp.ne.s32.totalorder %s398, %s400
    %p404 = scmp.eq.s32.totalorder %s28, 0
    %p405 = por %p403, %p404
    %p406 = scmp.ne.s32.totalorder %s398, %s400
    %p407 = scmp.eq.s32.totalorder %s33, 1
    %p408 = por %p406, %p407
    %p409 = scmp.ne.s32.totalorder %s400, %s401
    %p410 = scmp.eq.s32.totalorder %s33, 0
    %p411 = por %p409, %p410
    %p412 = scmp.ne.s32.totalorder %s400, %s401
    %p413 = scmp.eq.s32.totalorder %s34, 1
    %p414 = por %p412, %p413
    %p416 = scmp.ne.s32.totalorder %s401, %s415
    %p417 = scmp.eq.s32.totalorder %s34, 0
    %p418 = por %p416, %p417
    %s420 = sadd.s32 %s419, 1
    %p423 = scmp.eq.s32.totalorder %s28, 1
    %p424 = scmp.ne.s32.totalorder %s419, %s421
    %p425 = scmp.eq.s32.totalorder %s28, 0
    %p426 = por %p424, %p425
    %p427 = scmp.ne.s32.totalorder %s419, %s421
    %p428 = scmp.eq.s32.totalorder %s33, 1
    %p429 = por %p427, %p428
    %p430 = scmp.ne.s32.totalorder %s421, %s422
    %p431 = scmp.eq.s32.totalorder %s33, 0
    %p432 = por %p430, %p431
    %p433 = scmp.ne.s32.totalorder %s421, %s422
    %p434 = scmp.eq.s32.totalorder %s34, 1
    %p435 = por %p433, %p434
    %p437 = scmp.ne.s32.totalorder %s422, %s436
    %p438 = scmp.eq.s32.totalorder %s34, 0
    %p439 = por %p437, %p438
    %s441 = sadd.s32 %s440, 1
    %p444 = scmp.eq.s32.totalorder %s28, 1
    %p445 = scmp.ne.s32.totalorder %s440, %s442
    %p446 = scmp.eq.s32.totalorder %s28, 0
    %p447 = por %p445, %p446
    %p448 = scmp.ne.s32.totalorder %s440, %s442
    %p449 = scmp.eq.s32.totalorder %s33, 1
    %p450 = por %p448, %p449
    %p451 = scmp.ne.s32.totalorder %s442, %s443
    %p452 = scmp.eq.s32.totalorder %s33, 0
    %p453 = por %p451, %p452
    %p454 = scmp.ne.s32.totalorder %s442, %s443
    %p455 = scmp.eq.s32.totalorder %s34, 1
    %p456 = por %p454, %p455
    %p458 = scmp.ne.s32.totalorder %s443, %s457
    %p459 = scmp.eq.s32.totalorder %s34, 0
    %p460 = por %p458, %p459
    %s462 = sadd.s32 %s461, 1
    %p465 = scmp.eq.s32.totalorder %s28, 1
    %p466 = scmp.ne.s32.totalorder %s461, %s463
    %p467 = scmp.eq.s32.totalorder %s28, 0
    %p468 = por %p466, %p467
    %p469 = scmp.ne.s32.totalorder %s461, %s463
    %p470 = scmp.eq.s32.totalorder %s33, 1
    %p471 = por %p469, %p470
    %p472 = scmp.ne.s32.totalorder %s463, %s464
    %p473 = scmp.eq.s32.totalorder %s33, 0
    %p474 = por %p472, %p473
    %p475 = scmp.ne.s32.totalorder %s463, %s464
    %p476 = scmp.eq.s32.totalorder %s34, 1
    %p477 = por %p475, %p476
    %p479 = scmp.ne.s32.totalorder %s464, %s478
    %p480 = scmp.eq.s32.totalorder %s34, 0
    %p481 = por %p479, %p480
    %s483 = sadd.s32 %s482, 1
    %p486 = scmp.eq.s32.totalorder %s28, 1
    %p487 = scmp.ne.s32.totalorder %s482, %s484
    %p488 = scmp.eq.s32.totalorder %s28, 0
    %p489 = por %p487, %p488
    %p490 = scmp.ne.s32.totalorder %s482, %s484
    %p491 = scmp.eq.s32.totalorder %s33, 1
    %p492 = por %p490, %p491
    %p493 = scmp.ne.s32.totalorder %s484, %s485
    %p494 = scmp.eq.s32.totalorder %s33, 0
    %p495 = por %p493, %p494
    %p496 = scmp.ne.s32.totalorder %s484, %s485
    %p497 = scmp.eq.s32.totalorder %s34, 1
    %p498 = por %p496, %p497
    %p500 = scmp.ne.s32.totalorder %s485, %s499
    %p501 = scmp.eq.s32.totalorder %s34, 0
    %p502 = por %p500, %p501
    %s503 = ssub.s32 %s28, %s35
    %p504 = scmp.eq.s32.totalorder %s503, 0
    %s506 = sadd.s32 %s505, 1
    %s507 = scalar_select %p504, %s505, %s506
    %p510 = pneg %p504
    %p511 = scmp.eq.s32.totalorder %s28, 1
    %p512 = por %p510, %p511
    %p513 = scmp.ne.s32.totalorder %s505, %s508
    %p514 = scmp.eq.s32.totalorder %s28, 0
    %p515 = por %p513, %p514
    %p516 = scmp.ne.s32.totalorder %s505, %s508
    %p517 = scmp.eq.s32.totalorder %s33, 1
    %p518 = por %p516, %p517
    %p519 = scmp.ne.s32.totalorder %s508, %s509
    %p520 = scmp.eq.s32.totalorder %s33, 0
    %p521 = por %p519, %p520
    %p522 = scmp.ne.s32.totalorder %s508, %s509
    %p523 = scmp.eq.s32.totalorder %s34, 1
    %p524 = por %p522, %p523
    %p526 = scmp.ne.s32.totalorder %s509, %s525
    %p527 = scmp.eq.s32.totalorder %s34, 0
    %p528 = por %p526, %p527
    %p529 = scmp.le.s32.totalorder 1, %s28
    %p530 = scmp.lt.s32.totalorder %s28, 3
    %p531 = pnand %p529, %p530
    %p532 = pneg %p531
    // Predicated region
    $region9: #{autoencoder_forward.1} parent=5 // pred_check
      _
    $region10: #{autoencoder_forward.1} parent=5 // pred_check_branch
      %534 = sbr.rel (%p531) target = $region12
    $region11: #{autoencoder_forward.1} parent=5 // pred_region
      %s535 = ssub.s32 %s28, 1
      // Predicated region
      $region13: #{autoencoder_forward.1} parent=11 // pred_check
        %p536 = pneg %p75
      $region14: #{autoencoder_forward.1} parent=11 // pred_check_branch
        %538 = sbr.rel (%p536) target = $region16
      $region15: #{autoencoder_forward.1} parent=11 // pred_region
        _
      $region16: #{autoencoder_forward.1} parent=11 // pred_fallthru
        _
      // Predicated region
      $region17: #{autoencoder_forward.1} parent=11 // pred_check
        %p539 = pneg %p96
      $region18: #{autoencoder_forward.1} parent=11 // pred_check_branch
        %541 = sbr.rel (%p539) target = $region20
      $region19: #{autoencoder_forward.1} parent=11 // pred_region
        _
      $region20: #{autoencoder_forward.1} parent=11 // pred_fallthru
        _
      // Predicated region
      $region21: #{autoencoder_forward.1} parent=11 // pred_check
        %p542 = pneg %p117
      $region22: #{autoencoder_forward.1} parent=11 // pred_check_branch
        %544 = sbr.rel (%p542) target = $region24
      $region23: #{autoencoder_forward.1} parent=11 // pred_region
        _
      $region24: #{autoencoder_forward.1} parent=11 // pred_fallthru
        _
      // Predicated region
      $region25: #{autoencoder_forward.1} parent=11 // pred_check
        %p545 = pneg %p138
      $region26: #{autoencoder_forward.1} parent=11 // pred_check_branch
        %547 = sbr.rel (%p545) target = $region28
      $region27: #{autoencoder_forward.1} parent=11 // pred_region
        _
      $region28: #{autoencoder_forward.1} parent=11 // pred_fallthru
        _
      // Predicated region
      $region29: #{autoencoder_forward.1} parent=11 // pred_check
        %p548 = pneg %p159
      $region30: #{autoencoder_forward.1} parent=11 // pred_check_branch
        %550 = sbr.rel (%p548) target = $region32
      $region31: #{autoencoder_forward.1} parent=11 // pred_region
        _
      $region32: #{autoencoder_forward.1} parent=11 // pred_fallthru
        _
      // Predicated region
      $region33: #{autoencoder_forward.1} parent=11 // pred_check
        %p551 = pneg %p180
      $region34: #{autoencoder_forward.1} parent=11 // pred_check_branch
        %553 = sbr.rel (%p551) target = $region36
      $region35: #{autoencoder_forward.1} parent=11 // pred_region
        _
      $region36: #{autoencoder_forward.1} parent=11 // pred_fallthru
        _
      // Predicated region
      $region37: #{autoencoder_forward.1} parent=11 // pred_check
        %p554 = pneg %p201
      $region38: #{autoencoder_forward.1} parent=11 // pred_check_branch
        %556 = sbr.rel (%p554) target = $region40
      $region39: #{autoencoder_forward.1} parent=11 // pred_region
        _
      $region40: #{autoencoder_forward.1} parent=11 // pred_fallthru
        _
      // Predicated region
      $region41: #{autoencoder_forward.1} parent=11 // pred_check
        %p557 = pneg %p222
      $region42: #{autoencoder_forward.1} parent=11 // pred_check_branch
        %559 = sbr.rel (%p557) target = $region44
      $region43: #{autoencoder_forward.1} parent=11 // pred_region
        _
      $region44: #{autoencoder_forward.1} parent=11 // pred_fallthru
        _
      // Predicated region
      $region45: #{autoencoder_forward.1} parent=11 // pred_check
        %p560 = pneg %p243
      $region46: #{autoencoder_forward.1} parent=11 // pred_check_branch
        %562 = sbr.rel (%p560) target = $region48
      $region47: #{autoencoder_forward.1} parent=11 // pred_region
        _
      $region48: #{autoencoder_forward.1} parent=11 // pred_fallthru
        _
      // Predicated region
      $region49: #{autoencoder_forward.1} parent=11 // pred_check
        %p563 = pneg %p264
      $region50: #{autoencoder_forward.1} parent=11 // pred_check_branch
        %565 = sbr.rel (%p563) target = $region52
      $region51: #{autoencoder_forward.1} parent=11 // pred_region
        _
      $region52: #{autoencoder_forward.1} parent=11 // pred_fallthru
        _
      // Predicated region
      $region53: #{autoencoder_forward.1} parent=11 // pred_check
        %p566 = pneg %p285
      $region54: #{autoencoder_forward.1} parent=11 // pred_check_branch
        %568 = sbr.rel (%p566) target = $region56
      $region55: #{autoencoder_forward.1} parent=11 // pred_region
        _
      $region56: #{autoencoder_forward.1} parent=11 // pred_fallthru
        _
      // Predicated region
      $region57: #{autoencoder_forward.1} parent=11 // pred_check
        %p569 = pneg %p306
      $region58: #{autoencoder_forward.1} parent=11 // pred_check_branch
        %571 = sbr.rel (%p569) target = $region60
      $region59: #{autoencoder_forward.1} parent=11 // pred_region
        _
      $region60: #{autoencoder_forward.1} parent=11 // pred_fallthru
        _
      // Predicated region
      $region61: #{autoencoder_forward.1} parent=11 // pred_check
        %p572 = pneg %p327
      $region62: #{autoencoder_forward.1} parent=11 // pred_check_branch
        %574 = sbr.rel (%p572) target = $region64
      $region63: #{autoencoder_forward.1} parent=11 // pred_region
        _
      $region64: #{autoencoder_forward.1} parent=11 // pred_fallthru
        _
      // Predicated region
      $region65: #{autoencoder_forward.1} parent=11 // pred_check
        %p575 = pneg %p348
      $region66: #{autoencoder_forward.1} parent=11 // pred_check_branch
        %577 = sbr.rel (%p575) target = $region68
      $region67: #{autoencoder_forward.1} parent=11 // pred_region
        _
      $region68: #{autoencoder_forward.1} parent=11 // pred_fallthru
        _
      // Predicated region
      $region69: #{autoencoder_forward.1} parent=11 // pred_check
        %p578 = pneg %p369
      $region70: #{autoencoder_forward.1} parent=11 // pred_check_branch
        %580 = sbr.rel (%p578) target = $region72
      $region71: #{autoencoder_forward.1} parent=11 // pred_region
        _
      $region72: #{autoencoder_forward.1} parent=11 // pred_fallthru
        _
      // Predicated region
      $region73: #{autoencoder_forward.1} parent=11 // pred_check
        %p581 = pneg %p390
      $region74: #{autoencoder_forward.1} parent=11 // pred_check_branch
        %583 = sbr.rel (%p581) target = $region76
      $region75: #{autoencoder_forward.1} parent=11 // pred_region
        _
      $region76: #{autoencoder_forward.1} parent=11 // pred_fallthru
        _
      // Predicated region
      $region77: #{autoencoder_forward.1} parent=11 // pred_check
        %p584 = pneg %p411
      $region78: #{autoencoder_forward.1} parent=11 // pred_check_branch
        %586 = sbr.rel (%p584) target = $region80
      $region79: #{autoencoder_forward.1} parent=11 // pred_region
        _
      $region80: #{autoencoder_forward.1} parent=11 // pred_fallthru
        _
      // Predicated region
      $region81: #{autoencoder_forward.1} parent=11 // pred_check
        %p587 = pneg %p432
      $region82: #{autoencoder_forward.1} parent=11 // pred_check_branch
        %589 = sbr.rel (%p587) target = $region84
      $region83: #{autoencoder_forward.1} parent=11 // pred_region
        _
      $region84: #{autoencoder_forward.1} parent=11 // pred_fallthru
        _
      // Predicated region
      $region85: #{autoencoder_forward.1} parent=11 // pred_check
        %p590 = pneg %p453
      $region86: #{autoencoder_forward.1} parent=11 // pred_check_branch
        %592 = sbr.rel (%p590) target = $region88
      $region87: #{autoencoder_forward.1} parent=11 // pred_region
        _
      $region88: #{autoencoder_forward.1} parent=11 // pred_fallthru
        _
      // Predicated region
      $region89: #{autoencoder_forward.1} parent=11 // pred_check
        %p593 = pneg %p474
      $region90: #{autoencoder_forward.1} parent=11 // pred_check_branch
        %595 = sbr.rel (%p593) target = $region92
      $region91: #{autoencoder_forward.1} parent=11 // pred_region
        _
      $region92: #{autoencoder_forward.1} parent=11 // pred_fallthru
        _
      // Predicated region
      $region93: #{autoencoder_forward.1} parent=11 // pred_check
        %p596 = pneg %p495
      $region94: #{autoencoder_forward.1} parent=11 // pred_check_branch
        %598 = sbr.rel (%p596) target = $region96
      $region95: #{autoencoder_forward.1} parent=11 // pred_region
        _
      $region96: #{autoencoder_forward.1} parent=11 // pred_fallthru
        _
    $region12: #{autoencoder_forward.1} parent=5 // pred_fallthru
      _
    %p599 = scmp.lt.s32.totalorder %s28, 2
    // Predicated region
    $region97: #{autoencoder_forward.1} parent=5 // pred_check
      %p600 = pneg %p599
    $region98: #{autoencoder_forward.1} parent=5 // pred_check_branch
      %602 = sbr.rel (%p600) target = $region100
    $region99: #{autoencoder_forward.1} parent=5 // pred_region
      // Predicated region
      $region101: #{autoencoder_forward.1} parent=99 // pred_check
        %p603 = pneg %p48
      $region102: #{autoencoder_forward.1} parent=99 // pred_check_branch
        %605 = sbr.rel (%p603) target = $region104
      $region103: #{autoencoder_forward.1} parent=99 // pred_region
        %p606 = scmp.lt.s32.totalorder %s28, 1
        %s607 = scalar_select %p606, %s28, 1
        %s608 = smul.addr %s607, 2
        %s609 = smul.addr %s608, 4
        %s610 = scalar_lea.vmem %s0, %s609
      $region104: #{autoencoder_forward.1} parent=99 // pred_fallthru
        _
    $region100: #{autoencoder_forward.1} parent=5 // pred_fallthru
      _
    %p611 = scmp.le.s32.totalorder 1, %s28
    %p612 = scmp.lt.s32.totalorder %s28, 3
    %p613 = pnand %p611, %p612
    %p614 = pneg %p613
    // Predicated region
    $region105: #{autoencoder_forward.1} parent=5 // pred_check
      _
    $region106: #{autoencoder_forward.1} parent=5 // pred_check_branch
      %616 = sbr.rel (%p613) target = $region108
    $region107: #{autoencoder_forward.1} parent=5 // pred_region
      %s617 = ssub.s32 %s28, 1
      %p618 = scmp.lt.s32.totalorder %s33, 1
      %s619 = scalar_select %p618, %s33, 1
      %s620 = smul.addr %s619, 2
      %s621 = smul.addr %s620, 4
      %s622 = scalar_lea.vmem %s0, %s621
      %p623 = pneg %p54
      %p624 = pneg %p51
      %p625 = pneg %p75
      %p626 = pneg %p72
      %p627 = pneg %p96
      %p628 = pneg %p93
      %p629 = pneg %p117
      %p630 = pneg %p114
      %p631 = pneg %p138
      %p632 = pneg %p135
      %p633 = pneg %p159
      %p634 = pneg %p156
      %p635 = pneg %p180
      %p636 = pneg %p177
      %p637 = pneg %p201
      %p638 = pneg %p198
      %p639 = pneg %p222
      %p640 = pneg %p219
      %p641 = pneg %p243
      %p642 = pneg %p240
      %p643 = pneg %p264
      %p644 = pneg %p261
      %p645 = pneg %p285
      %p646 = pneg %p282
      %p647 = pneg %p306
      %p648 = pneg %p303
      %p649 = pneg %p327
      %p650 = pneg %p324
      %p651 = pneg %p348
      %p652 = pneg %p345
      %p653 = pneg %p369
      %p654 = pneg %p366
      %p655 = pneg %p390
      %p656 = pneg %p387
      %p657 = pneg %p411
      %p658 = pneg %p408
      %p659 = pneg %p432
      %p660 = pneg %p429
      %p661 = pneg %p453
      %p662 = pneg %p450
      %p663 = pneg %p474
      %p664 = pneg %p471
      %p665 = pneg %p495
      %p666 = pneg %p492
      %p667 = pneg %p521
      %p668 = pneg %p518
      %p669 = scmp.lt.s32.totalorder %s33, 1
      %s670 = scalar_select %p669, %s33, 1
      %s671 = smul.addr %s670, 2
      %s672 = smul.addr %s671, 4
      %s673 = scalar_lea.vmem %s22, %s672
      %p674 = scmp.lt.s32.totalorder %s33, 1
      %s675 = scalar_select %p674, %s33, 1
      %s676 = smul.addr %s675, 2
      %s677 = smul.addr %s676, 4
      %s678 = scalar_lea.vmem %s0, %s677
      %p679 = scmp.lt.s32.totalorder %s33, 1
      %s680 = scalar_select %p679, %s33, 1
      %s681 = smul.addr %s680, 2
      %s682 = smul.addr %s681, 4
      %s683 = scalar_lea.vmem %s22, %s682
      %v685 = vld [vmem:[%s678] sm:$0x77]
      %v686 = vld [vmem:[%s2] sm:$0xff]
      %v687 = vld [vmem:[%s2 + $0x8] sm:$0xff]
      %v688 = vld [vmem:[%s2 + $0x10] sm:$0xff]
      %v689 = vld [vmem:[%s2 + $0x18] sm:$0xff]
      %v690 = vld [vmem:[%s2 + $0x20] sm:$0xff]
      %v691 = vld [vmem:[%s2 + $0x28] sm:$0xff]
      %v692 = vld [vmem:[%s2 + $0x30] sm:$0xff]
      %v693 = vld [vmem:[%s2 + $0x38] sm:$0xff]
      %v694 = vld [vmem:[%s2 + $0x40] sm:$0xff]
      %v695 = vld [vmem:[%s2 + $0x48] sm:$0xff]
      %v696 = vld [vmem:[%s2 + $0x50] sm:$0xff]
      %v697 = vld [vmem:[%s2 + $0x58] sm:$0xff]
      %v698 = vld [vmem:[%s2 + $0x60] sm:$0xff]
      %v699 = vld [vmem:[%s2 + $0x68] sm:$0xff]
      %v700 = vld [vmem:[%s2 + $0x70] sm:$0xff]
      %v701 = vld [vmem:[%s2 + $0x78] sm:$0xff]
      %v702 = vld [vmem:[%s2 + $0x80] sm:$0xff]
      %v703 = vld [vmem:[%s2 + $0x88] sm:$0xff]
      %v704 = vld [vmem:[%s2 + $0x90] sm:$0xff]
      %v705 = vld [vmem:[%s2 + $0x98] sm:$0xff]
      %v706 = vld [vmem:[%s2 + $0xa0] sm:$0xff]
      %v707 = vld [vmem:[%s2 + $0xa8] sm:$0xff]
      %v708 = vld [vmem:[%s2 + $0xb0] sm:$0xff]
      %v709 = vld [vmem:[%s2 + $0xb8] sm:$0xff]
      %v710 = vld [vmem:[%s2 + $0xc0] sm:$0xff]
      %v711 = vld [vmem:[%s2 + $0xc8] sm:$0xff]
      %v712 = vld [vmem:[%s2 + $0xd0] sm:$0xff]
      %v713 = vld [vmem:[%s2 + $0xd8] sm:$0xff]
      %v714 = vld [vmem:[%s2 + $0xe0] sm:$0xff]
      %v715 = vld [vmem:[%s2 + $0xe8] sm:$0xff]
      %v716 = vld [vmem:[%s2 + $0xf0] sm:$0xff]
      %v717 = vld [vmem:[%s2 + $0xf8] sm:$0xff]
      %v719 = vcombine.high %v685, %v685
      %721 = vmatprep.subr.mxu0 0.0
      %722 = vmatpush1.msra.mxu0 %v701
      %723 = vmatprep.subr.mxu0 0.0
      %724 = vmatpush1.msra.mxu0 %v700
      %725 = vmatprep.subr.mxu0 0.0
      %726 = vmatpush1.msra.mxu0 %v699
      %727 = vmatprep.subr.mxu0 0.0
      %728 = vmatpush1.msra.mxu0 %v698
      %729 = vmatprep.subr.mxu0 0.0
      %730 = vmatpush1.msra.mxu0 %v697
      %731 = vmatprep.subr.mxu0 0.0
      %732 = vmatpush1.msra.mxu0 %v696
      %733 = vmatprep.subr.mxu0 0.0
      %734 = vmatpush1.msra.mxu0 %v695
      %735 = vmatprep.subr.mxu0 0.0
      %736 = vmatpush1.msra.mxu0 %v694
      %737 = vmatprep.subr.mxu0 0.0
      %738 = vmatpush1.msra.mxu0 %v693
      %739 = vmatprep.subr.mxu0 0.0
      %740 = vmatpush1.msra.mxu0 %v692
      %741 = vmatprep.subr.mxu0 0.0
      %742 = vmatpush1.msra.mxu0 %v691
      %743 = vmatprep.subr.mxu0 0.0
      %744 = vmatpush1.msra.mxu0 %v690
      %745 = vmatprep.subr.mxu0 0.0
      %746 = vmatpush1.msra.mxu0 %v689
      %747 = vmatprep.subr.mxu0 0.0
      %748 = vmatpush1.msra.mxu0 %v688
      %749 = vmatprep.subr.mxu0 0.0
      %750 = vmatpush1.msra.mxu0 %v687
      %751 = vmatprep.subr.mxu0 0.0
      %752 = vmatpush1.msra.mxu0 %v686
      %753 = vmatprep.subr.mxu0 0.0
      %754 = vmatpush2.msra.mxu0 %v717
      %755 = vmatprep.subr.mxu0 0.0
      %756 = vmatpush2.msra.mxu0 %v716
      %757 = vmatprep.subr.mxu0 0.0
      %758 = vmatpush2.msra.mxu0 %v715
      %759 = vmatprep.subr.mxu0 0.0
      %760 = vmatpush2.msra.mxu0 %v714
      %761 = vmatprep.subr.mxu0 0.0
      %762 = vmatpush2.msra.mxu0 %v713
      %763 = vmatprep.subr.mxu0 0.0
      %764 = vmatpush2.msra.mxu0 %v712
      %765 = vmatprep.subr.mxu0 0.0
      %766 = vmatpush2.msra.mxu0 %v711
      %767 = vmatprep.subr.mxu0 0.0
      %768 = vmatpush2.msra.mxu0 %v710
      %769 = vmatprep.subr.mxu0 0.0
      %770 = vmatpush2.msra.mxu0 %v709
      %771 = vmatprep.subr.mxu0 0.0
      %772 = vmatpush2.msra.mxu0 %v708
      %773 = vmatprep.subr.mxu0 0.0
      %774 = vmatpush2.msra.mxu0 %v707
      %775 = vmatprep.subr.mxu0 0.0
      %776 = vmatpush2.msra.mxu0 %v706
      %777 = vmatprep.subr.mxu0 0.0
      %778 = vmatpush2.msra.mxu0 %v705
      %779 = vmatprep.subr.mxu0 0.0
      %780 = vmatpush2.msra.mxu0 %v704
      %781 = vmatprep.subr.mxu0 0.0
      %782 = vmatpush2.msra.mxu0 %v703
      %783 = vmatprep.subr.mxu0 0.0
      %784 = vmatpush2.msra.mxu0 %v702
      %785 = vmatprep.mubr.f32.mxu0 %v719
      %786 = vmatmul.mubr.f32.gmra.mxu0 %v685
      %v787 = vpop.f32.mrf.mxu0
      %v788 = vadd.f32 0.0, %v787
      %v789 = vpop.f32.mrf.mxu0
      %790 = vdwg.mxu0
      %v791 = vld [vmem:[%s1] sm:$0xf]
      %v792 = vld [vmem:[%s1 + $0x4] sm:$0xf]
      %v793 = vpack.c.bf16 %v788, %v788
      %s794 = scalar_lea.vmem %s2, 256
      %v795 = vld [vmem:[%s794] sm:$0xff]
      %v796 = vld [vmem:[%s794 + $0x8] sm:$0xff]
      %v797 = vld [vmem:[%s794 + $0x10] sm:$0xff]
      %v798 = vld [vmem:[%s794 + $0x18] sm:$0xff]
      %v799 = vld [vmem:[%s794 + $0x20] sm:$0xff]
      %v800 = vld [vmem:[%s794 + $0x28] sm:$0xff]
      %v801 = vld [vmem:[%s794 + $0x30] sm:$0xff]
      %v802 = vld [vmem:[%s794 + $0x38] sm:$0xff]
      %v803 = vld [vmem:[%s794 + $0x40] sm:$0xff]
      %v804 = vld [vmem:[%s794 + $0x48] sm:$0xff]
      %v805 = vld [vmem:[%s794 + $0x50] sm:$0xff]
      %v806 = vld [vmem:[%s794 + $0x58] sm:$0xff]
      %v807 = vld [vmem:[%s794 + $0x60] sm:$0xff]
      %v808 = vld [vmem:[%s794 + $0x68] sm:$0xff]
      %v809 = vld [vmem:[%s794 + $0x70] sm:$0xff]
      %v810 = vld [vmem:[%s794 + $0x78] sm:$0xff]
      %v811 = vld [vmem:[%s794 + $0x80] sm:$0xff]
      %v812 = vld [vmem:[%s794 + $0x88] sm:$0xff]
      %v813 = vld [vmem:[%s794 + $0x90] sm:$0xff]
      %v814 = vld [vmem:[%s794 + $0x98] sm:$0xff]
      %v815 = vld [vmem:[%s794 + $0xa0] sm:$0xff]
      %v816 = vld [vmem:[%s794 + $0xa8] sm:$0xff]
      %v817 = vld [vmem:[%s794 + $0xb0] sm:$0xff]
      %v818 = vld [vmem:[%s794 + $0xb8] sm:$0xff]
      %v819 = vld [vmem:[%s794 + $0xc0] sm:$0xff]
      %v820 = vld [vmem:[%s794 + $0xc8] sm:$0xff]
      %v821 = vld [vmem:[%s794 + $0xd0] sm:$0xff]
      %v822 = vld [vmem:[%s794 + $0xd8] sm:$0xff]
      %v823 = vld [vmem:[%s794 + $0xe0] sm:$0xff]
      %v824 = vld [vmem:[%s794 + $0xe8] sm:$0xff]
      %v825 = vld [vmem:[%s794 + $0xf0] sm:$0xff]
      %v826 = vld [vmem:[%s794 + $0xf8] sm:$0xff]
      %827 = vmatprep.subr.mxu0 0.0
      %828 = vmatpush1.msra.mxu0 %v810
      %829 = vmatprep.subr.mxu0 0.0
      %830 = vmatpush1.msra.mxu0 %v809
      %831 = vmatprep.subr.mxu0 0.0
      %832 = vmatpush1.msra.mxu0 %v808
      %833 = vmatprep.subr.mxu0 0.0
      %834 = vmatpush1.msra.mxu0 %v807
      %835 = vmatprep.subr.mxu0 0.0
      %836 = vmatpush1.msra.mxu0 %v806
      %837 = vmatprep.subr.mxu0 0.0
      %838 = vmatpush1.msra.mxu0 %v805
      %839 = vmatprep.subr.mxu0 0.0
      %840 = vmatpush1.msra.mxu0 %v804
      %841 = vmatprep.subr.mxu0 0.0
      %842 = vmatpush1.msra.mxu0 %v803
      %843 = vmatprep.subr.mxu0 0.0
      %844 = vmatpush1.msra.mxu0 %v802
      %845 = vmatprep.subr.mxu0 0.0
      %846 = vmatpush1.msra.mxu0 %v801
      %847 = vmatprep.subr.mxu0 0.0
      %848 = vmatpush1.msra.mxu0 %v800
      %849 = vmatprep.subr.mxu0 0.0
      %850 = vmatpush1.msra.mxu0 %v799
      %851 = vmatprep.subr.mxu0 0.0
      %852 = vmatpush1.msra.mxu0 %v798
      %853 = vmatprep.subr.mxu0 0.0
      %854 = vmatpush1.msra.mxu0 %v797
      %855 = vmatprep.subr.mxu0 0.0
      %856 = vmatpush1.msra.mxu0 %v796
      %857 = vmatprep.subr.mxu0 0.0
      %858 = vmatpush1.msra.mxu0 %v795
      %859 = vmatprep.subr.mxu0 0.0
      %860 = vmatpush2.msra.mxu0 %v826
      %861 = vmatprep.subr.mxu0 0.0
      %862 = vmatpush2.msra.mxu0 %v825
      %863 = vmatprep.subr.mxu0 0.0
      %864 = vmatpush2.msra.mxu0 %v824
      %865 = vmatprep.subr.mxu0 0.0
      %866 = vmatpush2.msra.mxu0 %v823
      %867 = vmatprep.subr.mxu0 0.0
      %868 = vmatpush2.msra.mxu0 %v822
      %869 = vmatprep.subr.mxu0 0.0
      %870 = vmatpush2.msra.mxu0 %v821
      %871 = vmatprep.subr.mxu0 0.0
      %872 = vmatpush2.msra.mxu0 %v820
      %873 = vmatprep.subr.mxu0 0.0
      %874 = vmatpush2.msra.mxu0 %v819
      %875 = vmatprep.subr.mxu0 0.0
      %876 = vmatpush2.msra.mxu0 %v818
      %877 = vmatprep.subr.mxu0 0.0
      %878 = vmatpush2.msra.mxu0 %v817
      %879 = vmatprep.subr.mxu0 0.0
      %880 = vmatpush2.msra.mxu0 %v816
      %881 = vmatprep.subr.mxu0 0.0
      %882 = vmatpush2.msra.mxu0 %v815
      %883 = vmatprep.subr.mxu0 0.0
      %884 = vmatpush2.msra.mxu0 %v814
      %885 = vmatprep.subr.mxu0 0.0
      %886 = vmatpush2.msra.mxu0 %v813
      %887 = vmatprep.subr.mxu0 0.0
      %888 = vmatpush2.msra.mxu0 %v812
      %889 = vmatprep.subr.mxu0 0.0
      %890 = vmatpush2.msra.mxu0 %v811
      %891 = vmatprep.mubr.f32.mxu0 %v719
      %892 = vmatmul.mubr.f32.gmra.mxu0 %v685
      %v893 = vpop.f32.mrf.mxu0
      %v894 = vadd.f32 0.0, %v893
      %v895 = vpop.f32.mrf.mxu0
      %896 = vdwg.mxu0
      %s897 = scalar_lea.vmem %s1, 8
      %v898 = vld [vmem:[%s897] sm:$0xf]
      %v899 = vld [vmem:[%s897 + $0x4] sm:$0xf]
      %v900 = vpack.c.bf16 %v894, %v894
      %v903 = vunpack.c.l.b16 %v898
      %v904 = vunpack.c.l.b16 %v899
      %v905 = vpack.c.b16 %v904, %v903
      %vm906 = vcmask 23552
      %v908 = vsel %vm906, %v905, 0
      %vm910 = vcmask 1040384
      %vm911 = vcmask 1041408
      %v912 = vsel %vm910, 4294967295, 65535
      %v913 = vsel %vm911, %v912, 0
      %v915 = vand.u32 %v900, %v913
      %917 = vmatprep.subr.bf16.mxu0 0
      %918 = vmatpush1.bf16.msra.mxu0 0
      %919 = vmatprep.subr.bf16.mxu0 0
      %920 = vmatpush1.bf16.msra.mxu0 0
      %921 = vmatprep.subr.bf16.mxu0 0
      %922 = vmatpush1.bf16.msra.mxu0 0
      %923 = vmatprep.subr.bf16.mxu0 0
      %924 = vmatpush1.bf16.msra.mxu0 0
      %925 = vmatprep.subr.bf16.mxu0 0
      %926 = vmatpush1.bf16.msra.mxu0 0
      %927 = vmatprep.subr.bf16.mxu0 0
      %928 = vmatpush1.bf16.msra.mxu0 0
      %929 = vmatprep.subr.bf16.mxu0 0
      %930 = vmatpush1.bf16.msra.mxu0 0
      %931 = vmatprep.subr.bf16.mxu0 0
      %932 = vmatpush1.bf16.msra.mxu0 %v915
      %933 = vmatprep.subr.bf16.mxu0 0
      %934 = vmatpush2.bf16.msra.mxu0 0
      %935 = vmatprep.subr.bf16.mxu0 0
      %936 = vmatpush2.bf16.msra.mxu0 0
      %937 = vmatprep.subr.bf16.mxu0 0
      %938 = vmatpush2.bf16.msra.mxu0 0
      %939 = vmatprep.subr.bf16.mxu0 0
      %940 = vmatpush2.bf16.msra.mxu0 0
      %941 = vmatprep.subr.bf16.mxu0 0
      %942 = vmatpush2.bf16.msra.mxu0 0
      %943 = vmatprep.subr.bf16.mxu0 0
      %944 = vmatpush2.bf16.msra.mxu0 0
      %945 = vmatprep.subr.bf16.mxu0 0
      %946 = vmatpush2.bf16.msra.mxu0 0
      %947 = vmatprep.subr.bf16.mxu0 0
      %948 = vmatpush2.bf16.msra.mxu0 0
      %949 = vmatprep.mubr.bf16.mxu0 0
      %950 = vmatmul.mubr.bf16.gmra.mxu0 %v908
      %v951 = vpop.f32.mrf.mxu0
      %v952 = vadd.f32 0.0, %v951
      %v953 = vpop.f32.mrf.mxu0
      %v954 = vpop.f32.mrf.mxu0
      %v955 = vadd.f32 0.0, %v954
      %v956 = vpop.f32.mrf.mxu0
      %957 = vdwg.mxu0
      %v960 = vunpack.c.l.b16 %v791
      %v961 = vunpack.c.l.b16 %v792
      %v962 = vpack.c.b16 %v961, %v960
      %v964 = vsel %vm906, %v962, 0
      %v967 = vand.u32 %v793, %v913
      %969 = vmatprep.subr.bf16.mxu0 0
      %970 = vmatpush1.bf16.msra.mxu0 0
      %971 = vmatprep.subr.bf16.mxu0 0
      %972 = vmatpush1.bf16.msra.mxu0 0
      %973 = vmatprep.subr.bf16.mxu0 0
      %974 = vmatpush1.bf16.msra.mxu0 0
      %975 = vmatprep.subr.bf16.mxu0 0
      %976 = vmatpush1.bf16.msra.mxu0 0
      %977 = vmatprep.subr.bf16.mxu0 0
      %978 = vmatpush1.bf16.msra.mxu0 0
      %979 = vmatprep.subr.bf16.mxu0 0
      %980 = vmatpush1.bf16.msra.mxu0 0
      %981 = vmatprep.subr.bf16.mxu0 0
      %982 = vmatpush1.bf16.msra.mxu0 0
      %983 = vmatprep.subr.bf16.mxu0 0
      %984 = vmatpush1.bf16.msra.mxu0 %v967
      %985 = vmatprep.subr.bf16.mxu0 0
      %986 = vmatpush2.bf16.msra.mxu0 0
      %987 = vmatprep.subr.bf16.mxu0 0
      %988 = vmatpush2.bf16.msra.mxu0 0
      %989 = vmatprep.subr.bf16.mxu0 0
      %990 = vmatpush2.bf16.msra.mxu0 0
      %991 = vmatprep.subr.bf16.mxu0 0
      %992 = vmatpush2.bf16.msra.mxu0 0
      %993 = vmatprep.subr.bf16.mxu0 0
      %994 = vmatpush2.bf16.msra.mxu0 0
      %995 = vmatprep.subr.bf16.mxu0 0
      %996 = vmatpush2.bf16.msra.mxu0 0
      %997 = vmatprep.subr.bf16.mxu0 0
      %998 = vmatpush2.bf16.msra.mxu0 0
      %999 = vmatprep.subr.bf16.mxu0 0
      %1000 = vmatpush2.bf16.msra.mxu0 0
      %1001 = vmatprep.mubr.bf16.mxu0 0
      %1002 = vmatmul.mubr.bf16.gmra.mxu0 %v964
      %v1003 = vpop.f32.mrf.mxu0
      %v1004 = vadd.f32 %v952, %v1003
      %v1005 = vpop.f32.mrf.mxu0
      %v1006 = vpop.f32.mrf.mxu0
      %v1007 = vadd.f32 %v955, %v1006
      %v1008 = vpop.f32.mrf.mxu0
      %1009 = vdwg.mxu0
      %s1010 = scalar_lea.vmem %s2, 512
      %v1011 = vld [vmem:[%s1010] sm:$0xff]
      %v1012 = vld [vmem:[%s1010 + $0x8] sm:$0xff]
      %v1013 = vld [vmem:[%s1010 + $0x10] sm:$0xff]
      %v1014 = vld [vmem:[%s1010 + $0x18] sm:$0xff]
      %v1015 = vld [vmem:[%s1010 + $0x20] sm:$0xff]
      %v1016 = vld [vmem:[%s1010 + $0x28] sm:$0xff]
      %v1017 = vld [vmem:[%s1010 + $0x30] sm:$0xff]
      %v1018 = vld [vmem:[%s1010 + $0x38] sm:$0xff]
      %v1019 = vld [vmem:[%s1010 + $0x40] sm:$0xff]
      %v1020 = vld [vmem:[%s1010 + $0x48] sm:$0xff]
      %v1021 = vld [vmem:[%s1010 + $0x50] sm:$0xff]
      %v1022 = vld [vmem:[%s1010 + $0x58] sm:$0xff]
      %v1023 = vld [vmem:[%s1010 + $0x60] sm:$0xff]
      %v1024 = vld [vmem:[%s1010 + $0x68] sm:$0xff]
      %v1025 = vld [vmem:[%s1010 + $0x70] sm:$0xff]
      %v1026 = vld [vmem:[%s1010 + $0x78] sm:$0xff]
      %v1027 = vld [vmem:[%s1010 + $0x80] sm:$0xff]
      %v1028 = vld [vmem:[%s1010 + $0x88] sm:$0xff]
      %v1029 = vld [vmem:[%s1010 + $0x90] sm:$0xff]
      %v1030 = vld [vmem:[%s1010 + $0x98] sm:$0xff]
      %v1031 = vld [vmem:[%s1010 + $0xa0] sm:$0xff]
      %v1032 = vld [vmem:[%s1010 + $0xa8] sm:$0xff]
      %v1033 = vld [vmem:[%s1010 + $0xb0] sm:$0xff]
      %v1034 = vld [vmem:[%s1010 + $0xb8] sm:$0xff]
      %v1035 = vld [vmem:[%s1010 + $0xc0] sm:$0xff]
      %v1036 = vld [vmem:[%s1010 + $0xc8] sm:$0xff]
      %v1037 = vld [vmem:[%s1010 + $0xd0] sm:$0xff]
      %v1038 = vld [vmem:[%s1010 + $0xd8] sm:$0xff]
      %v1039 = vld [vmem:[%s1010 + $0xe0] sm:$0xff]
      %v1040 = vld [vmem:[%s1010 + $0xe8] sm:$0xff]
      %v1041 = vld [vmem:[%s1010 + $0xf0] sm:$0xff]
      %v1042 = vld [vmem:[%s1010 + $0xf8] sm:$0xff]
      %1043 = vmatprep.subr.mxu0 0.0
      %1044 = vmatpush1.msra.mxu0 %v1026
      %1045 = vmatprep.subr.mxu0 0.0
      %1046 = vmatpush1.msra.mxu0 %v1025
      %1047 = vmatprep.subr.mxu0 0.0
      %1048 = vmatpush1.msra.mxu0 %v1024
      %1049 = vmatprep.subr.mxu0 0.0
      %1050 = vmatpush1.msra.mxu0 %v1023
      %1051 = vmatprep.subr.mxu0 0.0
      %1052 = vmatpush1.msra.mxu0 %v1022
      %1053 = vmatprep.subr.mxu0 0.0
      %1054 = vmatpush1.msra.mxu0 %v1021
      %1055 = vmatprep.subr.mxu0 0.0
      %1056 = vmatpush1.msra.mxu0 %v1020
      %1057 = vmatprep.subr.mxu0 0.0
      %1058 = vmatpush1.msra.mxu0 %v1019
      %1059 = vmatprep.subr.mxu0 0.0
      %1060 = vmatpush1.msra.mxu0 %v1018
      %1061 = vmatprep.subr.mxu0 0.0
      %1062 = vmatpush1.msra.mxu0 %v1017
      %1063 = vmatprep.subr.mxu0 0.0
      %1064 = vmatpush1.msra.mxu0 %v1016
      %1065 = vmatprep.subr.mxu0 0.0
      %1066 = vmatpush1.msra.mxu0 %v1015
      %1067 = vmatprep.subr.mxu0 0.0
      %1068 = vmatpush1.msra.mxu0 %v1014
      %1069 = vmatprep.subr.mxu0 0.0
      %1070 = vmatpush1.msra.mxu0 %v1013
      %1071 = vmatprep.subr.mxu0 0.0
      %1072 = vmatpush1.msra.mxu0 %v1012
      %1073 = vmatprep.subr.mxu0 0.0
      %1074 = vmatpush1.msra.mxu0 %v1011
      %1075 = vmatprep.subr.mxu0 0.0
      %1076 = vmatpush2.msra.mxu0 %v1042
      %1077 = vmatprep.subr.mxu0 0.0
      %1078 = vmatpush2.msra.mxu0 %v1041
      %1079 = vmatprep.subr.mxu0 0.0
      %1080 = vmatpush2.msra.mxu0 %v1040
      %1081 = vmatprep.subr.mxu0 0.0
      %1082 = vmatpush2.msra.mxu0 %v1039
      %1083 = vmatprep.subr.mxu0 0.0
      %1084 = vmatpush2.msra.mxu0 %v1038
      %1085 = vmatprep.subr.mxu0 0.0
      %1086 = vmatpush2.msra.mxu0 %v1037
      %1087 = vmatprep.subr.mxu0 0.0
      %1088 = vmatpush2.msra.mxu0 %v1036
      %1089 = vmatprep.subr.mxu0 0.0
      %1090 = vmatpush2.msra.mxu0 %v1035
      %1091 = vmatprep.subr.mxu0 0.0
      %1092 = vmatpush2.msra.mxu0 %v1034
      %1093 = vmatprep.subr.mxu0 0.0
      %1094 = vmatpush2.msra.mxu0 %v1033
      %1095 = vmatprep.subr.mxu0 0.0
      %1096 = vmatpush2.msra.mxu0 %v1032
      %1097 = vmatprep.subr.mxu0 0.0
      %1098 = vmatpush2.msra.mxu0 %v1031
      %1099 = vmatprep.subr.mxu0 0.0
      %1100 = vmatpush2.msra.mxu0 %v1030
      %1101 = vmatprep.subr.mxu0 0.0
      %1102 = vmatpush2.msra.mxu0 %v1029
      %1103 = vmatprep.subr.mxu0 0.0
      %1104 = vmatpush2.msra.mxu0 %v1028
      %1105 = vmatprep.subr.mxu0 0.0
      %1106 = vmatpush2.msra.mxu0 %v1027
      %1107 = vmatprep.mubr.f32.mxu0 %v719
      %1108 = vmatmul.mubr.f32.gmra.mxu0 %v685
      %v1109 = vpop.f32.mrf.mxu0
      %v1110 = vadd.f32 0.0, %v1109
      %v1111 = vpop.f32.mrf.mxu0
      %1112 = vdwg.mxu0
      %s1113 = scalar_lea.vmem %s1, 16
      %v1114 = vld [vmem:[%s1113] sm:$0xf]
      %v1115 = vld [vmem:[%s1113 + $0x4] sm:$0xf]
      %v1116 = vpack.c.bf16 %v1110, %v1110
      %v1119 = vunpack.c.l.b16 %v1114
      %v1120 = vunpack.c.l.b16 %v1115
      %v1121 = vpack.c.b16 %v1120, %v1119
      %v1123 = vsel %vm906, %v1121, 0
      %v1126 = vand.u32 %v1116, %v913
      %1128 = vmatprep.subr.bf16.mxu0 0
      %1129 = vmatpush1.bf16.msra.mxu0 0
      %1130 = vmatprep.subr.bf16.mxu0 0
      %1131 = vmatpush1.bf16.msra.mxu0 0
      %1132 = vmatprep.subr.bf16.mxu0 0
      %1133 = vmatpush1.bf16.msra.mxu0 0
      %1134 = vmatprep.subr.bf16.mxu0 0
      %1135 = vmatpush1.bf16.msra.mxu0 0
      %1136 = vmatprep.subr.bf16.mxu0 0
      %1137 = vmatpush1.bf16.msra.mxu0 0
      %1138 = vmatprep.subr.bf16.mxu0 0
      %1139 = vmatpush1.bf16.msra.mxu0 0
      %1140 = vmatprep.subr.bf16.mxu0 0
      %1141 = vmatpush1.bf16.msra.mxu0 0
      %1142 = vmatprep.subr.bf16.mxu0 0
      %1143 = vmatpush1.bf16.msra.mxu0 %v1126
      %1144 = vmatprep.subr.bf16.mxu0 0
      %1145 = vmatpush2.bf16.msra.mxu0 0
      %1146 = vmatprep.subr.bf16.mxu0 0
      %1147 = vmatpush2.bf16.msra.mxu0 0
      %1148 = vmatprep.subr.bf16.mxu0 0
      %1149 = vmatpush2.bf16.msra.mxu0 0
      %1150 = vmatprep.subr.bf16.mxu0 0
      %1151 = vmatpush2.bf16.msra.mxu0 0
      %1152 = vmatprep.subr.bf16.mxu0 0
      %1153 = vmatpush2.bf16.msra.mxu0 0
      %1154 = vmatprep.subr.bf16.mxu0 0
      %1155 = vmatpush2.bf16.msra.mxu0 0
      %1156 = vmatprep.subr.bf16.mxu0 0
      %1157 = vmatpush2.bf16.msra.mxu0 0
      %1158 = vmatprep.subr.bf16.mxu0 0
      %1159 = vmatpush2.bf16.msra.mxu0 0
      %1160 = vmatprep.mubr.bf16.mxu0 0
      %1161 = vmatmul.mubr.bf16.gmra.mxu0 %v1123
      %v1162 = vpop.f32.mrf.mxu0
      %v1163 = vadd.f32 0.0, %v1162
      %v1164 = vpop.f32.mrf.mxu0
      %v1165 = vpop.f32.mrf.mxu0
      %v1166 = vadd.f32 0.0, %v1165
      %v1167 = vpop.f32.mrf.mxu0
      %1168 = vdwg.mxu0
      %v1169 = vadd.f32 %v1004, %v1163
      %v1170 = vadd.f32 %v1007, %v1166
      %s1171 = scalar_lea.vmem %s2, 768
      %v1172 = vld [vmem:[%s1171] sm:$0xff]
      %v1173 = vld [vmem:[%s1171 + $0x8] sm:$0xff]
      %v1174 = vld [vmem:[%s1171 + $0x10] sm:$0xff]
      %v1175 = vld [vmem:[%s1171 + $0x18] sm:$0xff]
      %v1176 = vld [vmem:[%s1171 + $0x20] sm:$0xff]
      %v1177 = vld [vmem:[%s1171 + $0x28] sm:$0xff]
      %v1178 = vld [vmem:[%s1171 + $0x30] sm:$0xff]
      %v1179 = vld [vmem:[%s1171 + $0x38] sm:$0xff]
      %v1180 = vld [vmem:[%s1171 + $0x40] sm:$0xff]
      %v1181 = vld [vmem:[%s1171 + $0x48] sm:$0xff]
      %v1182 = vld [vmem:[%s1171 + $0x50] sm:$0xff]
      %v1183 = vld [vmem:[%s1171 + $0x58] sm:$0xff]
      %v1184 = vld [vmem:[%s1171 + $0x60] sm:$0xff]
      %v1185 = vld [vmem:[%s1171 + $0x68] sm:$0xff]
      %v1186 = vld [vmem:[%s1171 + $0x70] sm:$0xff]
      %v1187 = vld [vmem:[%s1171 + $0x78] sm:$0xff]
      %v1188 = vld [vmem:[%s1171 + $0x80] sm:$0xff]
      %v1189 = vld [vmem:[%s1171 + $0x88] sm:$0xff]
      %v1190 = vld [vmem:[%s1171 + $0x90] sm:$0xff]
      %v1191 = vld [vmem:[%s1171 + $0x98] sm:$0xff]
      %v1192 = vld [vmem:[%s1171 + $0xa0] sm:$0xff]
      %v1193 = vld [vmem:[%s1171 + $0xa8] sm:$0xff]
      %v1194 = vld [vmem:[%s1171 + $0xb0] sm:$0xff]
      %v1195 = vld [vmem:[%s1171 + $0xb8] sm:$0xff]
      %v1196 = vld [vmem:[%s1171 + $0xc0] sm:$0xff]
      %v1197 = vld [vmem:[%s1171 + $0xc8] sm:$0xff]
      %v1198 = vld [vmem:[%s1171 + $0xd0] sm:$0xff]
      %v1199 = vld [vmem:[%s1171 + $0xd8] sm:$0xff]
      %v1200 = vld [vmem:[%s1171 + $0xe0] sm:$0xff]
      %v1201 = vld [vmem:[%s1171 + $0xe8] sm:$0xff]
      %v1202 = vld [vmem:[%s1171 + $0xf0] sm:$0xff]
      %v1203 = vld [vmem:[%s1171 + $0xf8] sm:$0xff]
      %1204 = vmatprep.subr.mxu0 0.0
      %1205 = vmatpush1.msra.mxu0 %v1187
      %1206 = vmatprep.subr.mxu0 0.0
      %1207 = vmatpush1.msra.mxu0 %v1186
      %1208 = vmatprep.subr.mxu0 0.0
      %1209 = vmatpush1.msra.mxu0 %v1185
      %1210 = vmatprep.subr.mxu0 0.0
      %1211 = vmatpush1.msra.mxu0 %v1184
      %1212 = vmatprep.subr.mxu0 0.0
      %1213 = vmatpush1.msra.mxu0 %v1183
      %1214 = vmatprep.subr.mxu0 0.0
      %1215 = vmatpush1.msra.mxu0 %v1182
      %1216 = vmatprep.subr.mxu0 0.0
      %1217 = vmatpush1.msra.mxu0 %v1181
      %1218 = vmatprep.subr.mxu0 0.0
      %1219 = vmatpush1.msra.mxu0 %v1180
      %1220 = vmatprep.subr.mxu0 0.0
      %1221 = vmatpush1.msra.mxu0 %v1179
      %1222 = vmatprep.subr.mxu0 0.0
      %1223 = vmatpush1.msra.mxu0 %v1178
      %1224 = vmatprep.subr.mxu0 0.0
      %1225 = vmatpush1.msra.mxu0 %v1177
      %1226 = vmatprep.subr.mxu0 0.0
      %1227 = vmatpush1.msra.mxu0 %v1176
      %1228 = vmatprep.subr.mxu0 0.0
      %1229 = vmatpush1.msra.mxu0 %v1175
      %1230 = vmatprep.subr.mxu0 0.0
      %1231 = vmatpush1.msra.mxu0 %v1174
      %1232 = vmatprep.subr.mxu0 0.0
      %1233 = vmatpush1.msra.mxu0 %v1173
      %1234 = vmatprep.subr.mxu0 0.0
      %1235 = vmatpush1.msra.mxu0 %v1172
      %1236 = vmatprep.subr.mxu0 0.0
      %1237 = vmatpush2.msra.mxu0 %v1203
      %1238 = vmatprep.subr.mxu0 0.0
      %1239 = vmatpush2.msra.mxu0 %v1202
      %1240 = vmatprep.subr.mxu0 0.0
      %1241 = vmatpush2.msra.mxu0 %v1201
      %1242 = vmatprep.subr.mxu0 0.0
      %1243 = vmatpush2.msra.mxu0 %v1200
      %1244 = vmatprep.subr.mxu0 0.0
      %1245 = vmatpush2.msra.mxu0 %v1199
      %1246 = vmatprep.subr.mxu0 0.0
      %1247 = vmatpush2.msra.mxu0 %v1198
      %1248 = vmatprep.subr.mxu0 0.0
      %1249 = vmatpush2.msra.mxu0 %v1197
      %1250 = vmatprep.subr.mxu0 0.0
      %1251 = vmatpush2.msra.mxu0 %v1196
      %1252 = vmatprep.subr.mxu0 0.0
      %1253 = vmatpush2.msra.mxu0 %v1195
      %1254 = vmatprep.subr.mxu0 0.0
      %1255 = vmatpush2.msra.mxu0 %v1194
      %1256 = vmatprep.subr.mxu0 0.0
      %1257 = vmatpush2.msra.mxu0 %v1193
      %1258 = vmatprep.subr.mxu0 0.0
      %1259 = vmatpush2.msra.mxu0 %v1192
      %1260 = vmatprep.subr.mxu0 0.0
      %1261 = vmatpush2.msra.mxu0 %v1191
      %1262 = vmatprep.subr.mxu0 0.0
      %1263 = vmatpush2.msra.mxu0 %v1190
      %1264 = vmatprep.subr.mxu0 0.0
      %1265 = vmatpush2.msra.mxu0 %v1189
      %1266 = vmatprep.subr.mxu0 0.0
      %1267 = vmatpush2.msra.mxu0 %v1188
      %1268 = vmatprep.mubr.f32.mxu0 %v719
      %1269 = vmatmul.mubr.f32.gmra.mxu0 %v685
      %v1270 = vpop.f32.mrf.mxu0
      %v1271 = vadd.f32 0.0, %v1270
      %v1272 = vpop.f32.mrf.mxu0
      %1273 = vdwg.mxu0
      %s1274 = scalar_lea.vmem %s1, 24
      %v1275 = vld [vmem:[%s1274] sm:$0xf]
      %v1276 = vld [vmem:[%s1274 + $0x4] sm:$0xf]
      %v1277 = vpack.c.bf16 %v1271, %v1271
      %v1280 = vunpack.c.l.b16 %v1275
      %v1281 = vunpack.c.l.b16 %v1276
      %v1282 = vpack.c.b16 %v1281, %v1280
      %v1284 = vsel %vm906, %v1282, 0
      %v1287 = vand.u32 %v1277, %v913
      %1289 = vmatprep.subr.bf16.mxu0 0
      %1290 = vmatpush1.bf16.msra.mxu0 0
      %1291 = vmatprep.subr.bf16.mxu0 0
      %1292 = vmatpush1.bf16.msra.mxu0 0
      %1293 = vmatprep.subr.bf16.mxu0 0
      %1294 = vmatpush1.bf16.msra.mxu0 0
      %1295 = vmatprep.subr.bf16.mxu0 0
      %1296 = vmatpush1.bf16.msra.mxu0 0
      %1297 = vmatprep.subr.bf16.mxu0 0
      %1298 = vmatpush1.bf16.msra.mxu0 0
      %1299 = vmatprep.subr.bf16.mxu0 0
      %1300 = vmatpush1.bf16.msra.mxu0 0
      %1301 = vmatprep.subr.bf16.mxu0 0
      %1302 = vmatpush1.bf16.msra.mxu0 0
      %1303 = vmatprep.subr.bf16.mxu0 0
      %1304 = vmatpush1.bf16.msra.mxu0 %v1287
      %1305 = vmatprep.subr.bf16.mxu0 0
      %1306 = vmatpush2.bf16.msra.mxu0 0
      %1307 = vmatprep.subr.bf16.mxu0 0
      %1308 = vmatpush2.bf16.msra.mxu0 0
      %1309 = vmatprep.subr.bf16.mxu0 0
      %1310 = vmatpush2.bf16.msra.mxu0 0
      %1311 = vmatprep.subr.bf16.mxu0 0
      %1312 = vmatpush2.bf16.msra.mxu0 0
      %1313 = vmatprep.subr.bf16.mxu0 0
      %1314 = vmatpush2.bf16.msra.mxu0 0
      %1315 = vmatprep.subr.bf16.mxu0 0
      %1316 = vmatpush2.bf16.msra.mxu0 0
      %1317 = vmatprep.subr.bf16.mxu0 0
      %1318 = vmatpush2.bf16.msra.mxu0 0
      %1319 = vmatprep.subr.bf16.mxu0 0
      %1320 = vmatpush2.bf16.msra.mxu0 0
      %1321 = vmatprep.mubr.bf16.mxu0 0
      %1322 = vmatmul.mubr.bf16.gmra.mxu0 %v1284
      %v1323 = vpop.f32.mrf.mxu0
      %v1324 = vadd.f32 0.0, %v1323
      %v1325 = vpop.f32.mrf.mxu0
      %v1326 = vpop.f32.mrf.mxu0
      %v1327 = vadd.f32 0.0, %v1326
      %v1328 = vpop.f32.mrf.mxu0
      %1329 = vdwg.mxu0
      %v1330 = vadd.f32 %v1169, %v1324
      %v1331 = vadd.f32 %v1170, %v1327
      %s1332 = scalar_lea.vmem %s2, 1024
      %v1333 = vld [vmem:[%s1332] sm:$0xff]
      %v1334 = vld [vmem:[%s1332 + $0x8] sm:$0xff]
      %v1335 = vld [vmem:[%s1332 + $0x10] sm:$0xff]
      %v1336 = vld [vmem:[%s1332 + $0x18] sm:$0xff]
      %v1337 = vld [vmem:[%s1332 + $0x20] sm:$0xff]
      %v1338 = vld [vmem:[%s1332 + $0x28] sm:$0xff]
      %v1339 = vld [vmem:[%s1332 + $0x30] sm:$0xff]
      %v1340 = vld [vmem:[%s1332 + $0x38] sm:$0xff]
      %v1341 = vld [vmem:[%s1332 + $0x40] sm:$0xff]
      %v1342 = vld [vmem:[%s1332 + $0x48] sm:$0xff]
      %v1343 = vld [vmem:[%s1332 + $0x50] sm:$0xff]
      %v1344 = vld [vmem:[%s1332 + $0x58] sm:$0xff]
      %v1345 = vld [vmem:[%s1332 + $0x60] sm:$0xff]
      %v1346 = vld [vmem:[%s1332 + $0x68] sm:$0xff]
      %v1347 = vld [vmem:[%s1332 + $0x70] sm:$0xff]
      %v1348 = vld [vmem:[%s1332 + $0x78] sm:$0xff]
      %v1349 = vld [vmem:[%s1332 + $0x80] sm:$0xff]
      %v1350 = vld [vmem:[%s1332 + $0x88] sm:$0xff]
      %v1351 = vld [vmem:[%s1332 + $0x90] sm:$0xff]
      %v1352 = vld [vmem:[%s1332 + $0x98] sm:$0xff]
      %v1353 = vld [vmem:[%s1332 + $0xa0] sm:$0xff]
      %v1354 = vld [vmem:[%s1332 + $0xa8] sm:$0xff]
      %v1355 = vld [vmem:[%s1332 + $0xb0] sm:$0xff]
      %v1356 = vld [vmem:[%s1332 + $0xb8] sm:$0xff]
      %v1357 = vld [vmem:[%s1332 + $0xc0] sm:$0xff]
      %v1358 = vld [vmem:[%s1332 + $0xc8] sm:$0xff]
      %v1359 = vld [vmem:[%s1332 + $0xd0] sm:$0xff]
      %v1360 = vld [vmem:[%s1332 + $0xd8] sm:$0xff]
      %v1361 = vld [vmem:[%s1332 + $0xe0] sm:$0xff]
      %v1362 = vld [vmem:[%s1332 + $0xe8] sm:$0xff]
      %v1363 = vld [vmem:[%s1332 + $0xf0] sm:$0xff]
      %v1364 = vld [vmem:[%s1332 + $0xf8] sm:$0xff]
      %1365 = vmatprep.subr.mxu0 0.0
      %1366 = vmatpush1.msra.mxu0 %v1348
      %1367 = vmatprep.subr.mxu0 0.0
      %1368 = vmatpush1.msra.mxu0 %v1347
      %1369 = vmatprep.subr.mxu0 0.0
      %1370 = vmatpush1.msra.mxu0 %v1346
      %1371 = vmatprep.subr.mxu0 0.0
      %1372 = vmatpush1.msra.mxu0 %v1345
      %1373 = vmatprep.subr.mxu0 0.0
      %1374 = vmatpush1.msra.mxu0 %v1344
      %1375 = vmatprep.subr.mxu0 0.0
      %1376 = vmatpush1.msra.mxu0 %v1343
      %1377 = vmatprep.subr.mxu0 0.0
      %1378 = vmatpush1.msra.mxu0 %v1342
      %1379 = vmatprep.subr.mxu0 0.0
      %1380 = vmatpush1.msra.mxu0 %v1341
      %1381 = vmatprep.subr.mxu0 0.0
      %1382 = vmatpush1.msra.mxu0 %v1340
      %1383 = vmatprep.subr.mxu0 0.0
      %1384 = vmatpush1.msra.mxu0 %v1339
      %1385 = vmatprep.subr.mxu0 0.0
      %1386 = vmatpush1.msra.mxu0 %v1338
      %1387 = vmatprep.subr.mxu0 0.0
      %1388 = vmatpush1.msra.mxu0 %v1337
      %1389 = vmatprep.subr.mxu0 0.0
      %1390 = vmatpush1.msra.mxu0 %v1336
      %1391 = vmatprep.subr.mxu0 0.0
      %1392 = vmatpush1.msra.mxu0 %v1335
      %1393 = vmatprep.subr.mxu0 0.0
      %1394 = vmatpush1.msra.mxu0 %v1334
      %1395 = vmatprep.subr.mxu0 0.0
      %1396 = vmatpush1.msra.mxu0 %v1333
      %1397 = vmatprep.subr.mxu0 0.0
      %1398 = vmatpush2.msra.mxu0 %v1364
      %1399 = vmatprep.subr.mxu0 0.0
      %1400 = vmatpush2.msra.mxu0 %v1363
      %1401 = vmatprep.subr.mxu0 0.0
      %1402 = vmatpush2.msra.mxu0 %v1362
      %1403 = vmatprep.subr.mxu0 0.0
      %1404 = vmatpush2.msra.mxu0 %v1361
      %1405 = vmatprep.subr.mxu0 0.0
      %1406 = vmatpush2.msra.mxu0 %v1360
      %1407 = vmatprep.subr.mxu0 0.0
      %1408 = vmatpush2.msra.mxu0 %v1359
      %1409 = vmatprep.subr.mxu0 0.0
      %1410 = vmatpush2.msra.mxu0 %v1358
      %1411 = vmatprep.subr.mxu0 0.0
      %1412 = vmatpush2.msra.mxu0 %v1357
      %1413 = vmatprep.subr.mxu0 0.0
      %1414 = vmatpush2.msra.mxu0 %v1356
      %1415 = vmatprep.subr.mxu0 0.0
      %1416 = vmatpush2.msra.mxu0 %v1355
      %1417 = vmatprep.subr.mxu0 0.0
      %1418 = vmatpush2.msra.mxu0 %v1354
      %1419 = vmatprep.subr.mxu0 0.0
      %1420 = vmatpush2.msra.mxu0 %v1353
      %1421 = vmatprep.subr.mxu0 0.0
      %1422 = vmatpush2.msra.mxu0 %v1352
      %1423 = vmatprep.subr.mxu0 0.0
      %1424 = vmatpush2.msra.mxu0 %v1351
      %1425 = vmatprep.subr.mxu0 0.0
      %1426 = vmatpush2.msra.mxu0 %v1350
      %1427 = vmatprep.subr.mxu0 0.0
      %1428 = vmatpush2.msra.mxu0 %v1349
      %1429 = vmatprep.mubr.f32.mxu0 %v719
      %1430 = vmatmul.mubr.f32.gmra.mxu0 %v685
      %v1431 = vpop.f32.mrf.mxu0
      %v1432 = vadd.f32 0.0, %v1431
      %v1433 = vpop.f32.mrf.mxu0
      %1434 = vdwg.mxu0
      %s1435 = scalar_lea.vmem %s1, 32
      %v1436 = vld [vmem:[%s1435] sm:$0xf]
      %v1437 = vld [vmem:[%s1435 + $0x4] sm:$0xf]
      %v1438 = vpack.c.bf16 %v1432, %v1432
      %v1441 = vunpack.c.l.b16 %v1436
      %v1442 = vunpack.c.l.b16 %v1437
      %v1443 = vpack.c.b16 %v1442, %v1441
      %v1445 = vsel %vm906, %v1443, 0
      %v1448 = vand.u32 %v1438, %v913
      %1450 = vmatprep.subr.bf16.mxu0 0
      %1451 = vmatpush1.bf16.msra.mxu0 0
      %1452 = vmatprep.subr.bf16.mxu0 0
      %1453 = vmatpush1.bf16.msra.mxu0 0
      %1454 = vmatprep.subr.bf16.mxu0 0
      %1455 = vmatpush1.bf16.msra.mxu0 0
      %1456 = vmatprep.subr.bf16.mxu0 0
      %1457 = vmatpush1.bf16.msra.mxu0 0
      %1458 = vmatprep.subr.bf16.mxu0 0
      %1459 = vmatpush1.bf16.msra.mxu0 0
      %1460 = vmatprep.subr.bf16.mxu0 0
      %1461 = vmatpush1.bf16.msra.mxu0 0
      %1462 = vmatprep.subr.bf16.mxu0 0
      %1463 = vmatpush1.bf16.msra.mxu0 0
      %1464 = vmatprep.subr.bf16.mxu0 0
      %1465 = vmatpush1.bf16.msra.mxu0 %v1448
      %1466 = vmatprep.subr.bf16.mxu0 0
      %1467 = vmatpush2.bf16.msra.mxu0 0
      %1468 = vmatprep.subr.bf16.mxu0 0
      %1469 = vmatpush2.bf16.msra.mxu0 0
      %1470 = vmatprep.subr.bf16.mxu0 0
      %1471 = vmatpush2.bf16.msra.mxu0 0
      %1472 = vmatprep.subr.bf16.mxu0 0
      %1473 = vmatpush2.bf16.msra.mxu0 0
      %1474 = vmatprep.subr.bf16.mxu0 0
      %1475 = vmatpush2.bf16.msra.mxu0 0
      %1476 = vmatprep.subr.bf16.mxu0 0
      %1477 = vmatpush2.bf16.msra.mxu0 0
      %1478 = vmatprep.subr.bf16.mxu0 0
      %1479 = vmatpush2.bf16.msra.mxu0 0
      %1480 = vmatprep.subr.bf16.mxu0 0
      %1481 = vmatpush2.bf16.msra.mxu0 0
      %1482 = vmatprep.mubr.bf16.mxu0 0
      %1483 = vmatmul.mubr.bf16.gmra.mxu0 %v1445
      %v1484 = vpop.f32.mrf.mxu0
      %v1485 = vadd.f32 0.0, %v1484
      %v1486 = vpop.f32.mrf.mxu0
      %v1487 = vpop.f32.mrf.mxu0
      %v1488 = vadd.f32 0.0, %v1487
      %v1489 = vpop.f32.mrf.mxu0
      %1490 = vdwg.mxu0
      %v1491 = vadd.f32 %v1330, %v1485
      %v1492 = vadd.f32 %v1331, %v1488
      %s1493 = scalar_lea.vmem %s2, 1280
      %v1494 = vld [vmem:[%s1493] sm:$0xff]
      %v1495 = vld [vmem:[%s1493 + $0x8] sm:$0xff]
      %v1496 = vld [vmem:[%s1493 + $0x10] sm:$0xff]
      %v1497 = vld [vmem:[%s1493 + $0x18] sm:$0xff]
      %v1498 = vld [vmem:[%s1493 + $0x20] sm:$0xff]
      %v1499 = vld [vmem:[%s1493 + $0x28] sm:$0xff]
      %v1500 = vld [vmem:[%s1493 + $0x30] sm:$0xff]
      %v1501 = vld [vmem:[%s1493 + $0x38] sm:$0xff]
      %v1502 = vld [vmem:[%s1493 + $0x40] sm:$0xff]
      %v1503 = vld [vmem:[%s1493 + $0x48] sm:$0xff]
      %v1504 = vld [vmem:[%s1493 + $0x50] sm:$0xff]
      %v1505 = vld [vmem:[%s1493 + $0x58] sm:$0xff]
      %v1506 = vld [vmem:[%s1493 + $0x60] sm:$0xff]
      %v1507 = vld [vmem:[%s1493 + $0x68] sm:$0xff]
      %v1508 = vld [vmem:[%s1493 + $0x70] sm:$0xff]
      %v1509 = vld [vmem:[%s1493 + $0x78] sm:$0xff]
      %v1510 = vld [vmem:[%s1493 + $0x80] sm:$0xff]
      %v1511 = vld [vmem:[%s1493 + $0x88] sm:$0xff]
      %v1512 = vld [vmem:[%s1493 + $0x90] sm:$0xff]
      %v1513 = vld [vmem:[%s1493 + $0x98] sm:$0xff]
      %v1514 = vld [vmem:[%s1493 + $0xa0] sm:$0xff]
      %v1515 = vld [vmem:[%s1493 + $0xa8] sm:$0xff]
      %v1516 = vld [vmem:[%s1493 + $0xb0] sm:$0xff]
      %v1517 = vld [vmem:[%s1493 + $0xb8] sm:$0xff]
      %v1518 = vld [vmem:[%s1493 + $0xc0] sm:$0xff]
      %v1519 = vld [vmem:[%s1493 + $0xc8] sm:$0xff]
      %v1520 = vld [vmem:[%s1493 + $0xd0] sm:$0xff]
      %v1521 = vld [vmem:[%s1493 + $0xd8] sm:$0xff]
      %v1522 = vld [vmem:[%s1493 + $0xe0] sm:$0xff]
      %v1523 = vld [vmem:[%s1493 + $0xe8] sm:$0xff]
      %v1524 = vld [vmem:[%s1493 + $0xf0] sm:$0xff]
      %v1525 = vld [vmem:[%s1493 + $0xf8] sm:$0xff]
      %1526 = vmatprep.subr.mxu0 0.0
      %1527 = vmatpush1.msra.mxu0 %v1509
      %1528 = vmatprep.subr.mxu0 0.0
      %1529 = vmatpush1.msra.mxu0 %v1508
      %1530 = vmatprep.subr.mxu0 0.0
      %1531 = vmatpush1.msra.mxu0 %v1507
      %1532 = vmatprep.subr.mxu0 0.0
      %1533 = vmatpush1.msra.mxu0 %v1506
      %1534 = vmatprep.subr.mxu0 0.0
      %1535 = vmatpush1.msra.mxu0 %v1505
      %1536 = vmatprep.subr.mxu0 0.0
      %1537 = vmatpush1.msra.mxu0 %v1504
      %1538 = vmatprep.subr.mxu0 0.0
      %1539 = vmatpush1.msra.mxu0 %v1503
      %1540 = vmatprep.subr.mxu0 0.0
      %1541 = vmatpush1.msra.mxu0 %v1502
      %1542 = vmatprep.subr.mxu0 0.0
      %1543 = vmatpush1.msra.mxu0 %v1501
      %1544 = vmatprep.subr.mxu0 0.0
      %1545 = vmatpush1.msra.mxu0 %v1500
      %1546 = vmatprep.subr.mxu0 0.0
      %1547 = vmatpush1.msra.mxu0 %v1499
      %1548 = vmatprep.subr.mxu0 0.0
      %1549 = vmatpush1.msra.mxu0 %v1498
      %1550 = vmatprep.subr.mxu0 0.0
      %1551 = vmatpush1.msra.mxu0 %v1497
      %1552 = vmatprep.subr.mxu0 0.0
      %1553 = vmatpush1.msra.mxu0 %v1496
      %1554 = vmatprep.subr.mxu0 0.0
      %1555 = vmatpush1.msra.mxu0 %v1495
      %1556 = vmatprep.subr.mxu0 0.0
      %1557 = vmatpush1.msra.mxu0 %v1494
      %1558 = vmatprep.subr.mxu0 0.0
      %1559 = vmatpush2.msra.mxu0 %v1525
      %1560 = vmatprep.subr.mxu0 0.0
      %1561 = vmatpush2.msra.mxu0 %v1524
      %1562 = vmatprep.subr.mxu0 0.0
      %1563 = vmatpush2.msra.mxu0 %v1523
      %1564 = vmatprep.subr.mxu0 0.0
      %1565 = vmatpush2.msra.mxu0 %v1522
      %1566 = vmatprep.subr.mxu0 0.0
      %1567 = vmatpush2.msra.mxu0 %v1521
      %1568 = vmatprep.subr.mxu0 0.0
      %1569 = vmatpush2.msra.mxu0 %v1520
      %1570 = vmatprep.subr.mxu0 0.0
      %1571 = vmatpush2.msra.mxu0 %v1519
      %1572 = vmatprep.subr.mxu0 0.0
      %1573 = vmatpush2.msra.mxu0 %v1518
      %1574 = vmatprep.subr.mxu0 0.0
      %1575 = vmatpush2.msra.mxu0 %v1517
      %1576 = vmatprep.subr.mxu0 0.0
      %1577 = vmatpush2.msra.mxu0 %v1516
      %1578 = vmatprep.subr.mxu0 0.0
      %1579 = vmatpush2.msra.mxu0 %v1515
      %1580 = vmatprep.subr.mxu0 0.0
      %1581 = vmatpush2.msra.mxu0 %v1514
      %1582 = vmatprep.subr.mxu0 0.0
      %1583 = vmatpush2.msra.mxu0 %v1513
      %1584 = vmatprep.subr.mxu0 0.0
      %1585 = vmatpush2.msra.mxu0 %v1512
      %1586 = vmatprep.subr.mxu0 0.0
      %1587 = vmatpush2.msra.mxu0 %v1511
      %1588 = vmatprep.subr.mxu0 0.0
      %1589 = vmatpush2.msra.mxu0 %v1510
      %1590 = vmatprep.mubr.f32.mxu0 %v719
      %1591 = vmatmul.mubr.f32.gmra.mxu0 %v685
      %v1592 = vpop.f32.mrf.mxu0
      %v1593 = vadd.f32 0.0, %v1592
      %v1594 = vpop.f32.mrf.mxu0
      %1595 = vdwg.mxu0
      %s1596 = scalar_lea.vmem %s1, 40
      %v1597 = vld [vmem:[%s1596] sm:$0xf]
      %v1598 = vld [vmem:[%s1596 + $0x4] sm:$0xf]
      %v1599 = vpack.c.bf16 %v1593, %v1593
      %v1602 = vunpack.c.l.b16 %v1597
      %v1603 = vunpack.c.l.b16 %v1598
      %v1604 = vpack.c.b16 %v1603, %v1602
      %v1606 = vsel %vm906, %v1604, 0
      %v1609 = vand.u32 %v1599, %v913
      %1611 = vmatprep.subr.bf16.mxu0 0
      %1612 = vmatpush1.bf16.msra.mxu0 0
      %1613 = vmatprep.subr.bf16.mxu0 0
      %1614 = vmatpush1.bf16.msra.mxu0 0
      %1615 = vmatprep.subr.bf16.mxu0 0
      %1616 = vmatpush1.bf16.msra.mxu0 0
      %1617 = vmatprep.subr.bf16.mxu0 0
      %1618 = vmatpush1.bf16.msra.mxu0 0
      %1619 = vmatprep.subr.bf16.mxu0 0
      %1620 = vmatpush1.bf16.msra.mxu0 0
      %1621 = vmatprep.subr.bf16.mxu0 0
      %1622 = vmatpush1.bf16.msra.mxu0 0
      %1623 = vmatprep.subr.bf16.mxu0 0
      %1624 = vmatpush1.bf16.msra.mxu0 0
      %1625 = vmatprep.subr.bf16.mxu0 0
      %1626 = vmatpush1.bf16.msra.mxu0 %v1609
      %1627 = vmatprep.subr.bf16.mxu0 0
      %1628 = vmatpush2.bf16.msra.mxu0 0
      %1629 = vmatprep.subr.bf16.mxu0 0
      %1630 = vmatpush2.bf16.msra.mxu0 0
      %1631 = vmatprep.subr.bf16.mxu0 0
      %1632 = vmatpush2.bf16.msra.mxu0 0
      %1633 = vmatprep.subr.bf16.mxu0 0
      %1634 = vmatpush2.bf16.msra.mxu0 0
      %1635 = vmatprep.subr.bf16.mxu0 0
      %1636 = vmatpush2.bf16.msra.mxu0 0
      %1637 = vmatprep.subr.bf16.mxu0 0
      %1638 = vmatpush2.bf16.msra.mxu0 0
      %1639 = vmatprep.subr.bf16.mxu0 0
      %1640 = vmatpush2.bf16.msra.mxu0 0
      %1641 = vmatprep.subr.bf16.mxu0 0
      %1642 = vmatpush2.bf16.msra.mxu0 0
      %1643 = vmatprep.mubr.bf16.mxu0 0
      %1644 = vmatmul.mubr.bf16.gmra.mxu0 %v1606
      %v1645 = vpop.f32.mrf.mxu0
      %v1646 = vadd.f32 0.0, %v1645
      %v1647 = vpop.f32.mrf.mxu0
      %v1648 = vpop.f32.mrf.mxu0
      %v1649 = vadd.f32 0.0, %v1648
      %v1650 = vpop.f32.mrf.mxu0
      %1651 = vdwg.mxu0
      %v1652 = vadd.f32 %v1491, %v1646
      %v1653 = vadd.f32 %v1492, %v1649
      %s1654 = scalar_lea.vmem %s2, 1536
      %v1655 = vld [vmem:[%s1654] sm:$0xff]
      %v1656 = vld [vmem:[%s1654 + $0x8] sm:$0xff]
      %v1657 = vld [vmem:[%s1654 + $0x10] sm:$0xff]
      %v1658 = vld [vmem:[%s1654 + $0x18] sm:$0xff]
      %v1659 = vld [vmem:[%s1654 + $0x20] sm:$0xff]
      %v1660 = vld [vmem:[%s1654 + $0x28] sm:$0xff]
      %v1661 = vld [vmem:[%s1654 + $0x30] sm:$0xff]
      %v1662 = vld [vmem:[%s1654 + $0x38] sm:$0xff]
      %v1663 = vld [vmem:[%s1654 + $0x40] sm:$0xff]
      %v1664 = vld [vmem:[%s1654 + $0x48] sm:$0xff]
      %v1665 = vld [vmem:[%s1654 + $0x50] sm:$0xff]
      %v1666 = vld [vmem:[%s1654 + $0x58] sm:$0xff]
      %v1667 = vld [vmem:[%s1654 + $0x60] sm:$0xff]
      %v1668 = vld [vmem:[%s1654 + $0x68] sm:$0xff]
      %v1669 = vld [vmem:[%s1654 + $0x70] sm:$0xff]
      %v1670 = vld [vmem:[%s1654 + $0x78] sm:$0xff]
      %v1671 = vld [vmem:[%s1654 + $0x80] sm:$0xff]
      %v1672 = vld [vmem:[%s1654 + $0x88] sm:$0xff]
      %v1673 = vld [vmem:[%s1654 + $0x90] sm:$0xff]
      %v1674 = vld [vmem:[%s1654 + $0x98] sm:$0xff]
      %v1675 = vld [vmem:[%s1654 + $0xa0] sm:$0xff]
      %v1676 = vld [vmem:[%s1654 + $0xa8] sm:$0xff]
      %v1677 = vld [vmem:[%s1654 + $0xb0] sm:$0xff]
      %v1678 = vld [vmem:[%s1654 + $0xb8] sm:$0xff]
      %v1679 = vld [vmem:[%s1654 + $0xc0] sm:$0xff]
      %v1680 = vld [vmem:[%s1654 + $0xc8] sm:$0xff]
      %v1681 = vld [vmem:[%s1654 + $0xd0] sm:$0xff]
      %v1682 = vld [vmem:[%s1654 + $0xd8] sm:$0xff]
      %v1683 = vld [vmem:[%s1654 + $0xe0] sm:$0xff]
      %v1684 = vld [vmem:[%s1654 + $0xe8] sm:$0xff]
      %v1685 = vld [vmem:[%s1654 + $0xf0] sm:$0xff]
      %v1686 = vld [vmem:[%s1654 + $0xf8] sm:$0xff]
      %1687 = vmatprep.subr.mxu0 0.0
      %1688 = vmatpush1.msra.mxu0 %v1670
      %1689 = vmatprep.subr.mxu0 0.0
      %1690 = vmatpush1.msra.mxu0 %v1669
      %1691 = vmatprep.subr.mxu0 0.0
      %1692 = vmatpush1.msra.mxu0 %v1668
      %1693 = vmatprep.subr.mxu0 0.0
      %1694 = vmatpush1.msra.mxu0 %v1667
      %1695 = vmatprep.subr.mxu0 0.0
      %1696 = vmatpush1.msra.mxu0 %v1666
      %1697 = vmatprep.subr.mxu0 0.0
      %1698 = vmatpush1.msra.mxu0 %v1665
      %1699 = vmatprep.subr.mxu0 0.0
      %1700 = vmatpush1.msra.mxu0 %v1664
      %1701 = vmatprep.subr.mxu0 0.0
      %1702 = vmatpush1.msra.mxu0 %v1663
      %1703 = vmatprep.subr.mxu0 0.0
      %1704 = vmatpush1.msra.mxu0 %v1662
      %1705 = vmatprep.subr.mxu0 0.0
      %1706 = vmatpush1.msra.mxu0 %v1661
      %1707 = vmatprep.subr.mxu0 0.0
      %1708 = vmatpush1.msra.mxu0 %v1660
      %1709 = vmatprep.subr.mxu0 0.0
      %1710 = vmatpush1.msra.mxu0 %v1659
      %1711 = vmatprep.subr.mxu0 0.0
      %1712 = vmatpush1.msra.mxu0 %v1658
      %1713 = vmatprep.subr.mxu0 0.0
      %1714 = vmatpush1.msra.mxu0 %v1657
      %1715 = vmatprep.subr.mxu0 0.0
      %1716 = vmatpush1.msra.mxu0 %v1656
      %1717 = vmatprep.subr.mxu0 0.0
      %1718 = vmatpush1.msra.mxu0 %v1655
      %1719 = vmatprep.subr.mxu0 0.0
      %1720 = vmatpush2.msra.mxu0 %v1686
      %1721 = vmatprep.subr.mxu0 0.0
      %1722 = vmatpush2.msra.mxu0 %v1685
      %1723 = vmatprep.subr.mxu0 0.0
      %1724 = vmatpush2.msra.mxu0 %v1684
      %1725 = vmatprep.subr.mxu0 0.0
      %1726 = vmatpush2.msra.mxu0 %v1683
      %1727 = vmatprep.subr.mxu0 0.0
      %1728 = vmatpush2.msra.mxu0 %v1682
      %1729 = vmatprep.subr.mxu0 0.0
      %1730 = vmatpush2.msra.mxu0 %v1681
      %1731 = vmatprep.subr.mxu0 0.0
      %1732 = vmatpush2.msra.mxu0 %v1680
      %1733 = vmatprep.subr.mxu0 0.0
      %1734 = vmatpush2.msra.mxu0 %v1679
      %1735 = vmatprep.subr.mxu0 0.0
      %1736 = vmatpush2.msra.mxu0 %v1678
      %1737 = vmatprep.subr.mxu0 0.0
      %1738 = vmatpush2.msra.mxu0 %v1677
      %1739 = vmatprep.subr.mxu0 0.0
      %1740 = vmatpush2.msra.mxu0 %v1676
      %1741 = vmatprep.subr.mxu0 0.0
      %1742 = vmatpush2.msra.mxu0 %v1675
      %1743 = vmatprep.subr.mxu0 0.0
      %1744 = vmatpush2.msra.mxu0 %v1674
      %1745 = vmatprep.subr.mxu0 0.0
      %1746 = vmatpush2.msra.mxu0 %v1673
      %1747 = vmatprep.subr.mxu0 0.0
      %1748 = vmatpush2.msra.mxu0 %v1672
      %1749 = vmatprep.subr.mxu0 0.0
      %1750 = vmatpush2.msra.mxu0 %v1671
      %1751 = vmatprep.mubr.f32.mxu0 %v719
      %1752 = vmatmul.mubr.f32.gmra.mxu0 %v685
      %v1753 = vpop.f32.mrf.mxu0
      %v1754 = vadd.f32 0.0, %v1753
      %v1755 = vpop.f32.mrf.mxu0
      %1756 = vdwg.mxu0
      %s1757 = scalar_lea.vmem %s1, 48
      %v1758 = vld [vmem:[%s1757] sm:$0xf]
      %v1759 = vld [vmem:[%s1757 + $0x4] sm:$0xf]
      %v1760 = vpack.c.bf16 %v1754, %v1754
      %v1763 = vunpack.c.l.b16 %v1758
      %v1764 = vunpack.c.l.b16 %v1759
      %v1765 = vpack.c.b16 %v1764, %v1763
      %v1767 = vsel %vm906, %v1765, 0
      %v1770 = vand.u32 %v1760, %v913
      %1772 = vmatprep.subr.bf16.mxu0 0
      %1773 = vmatpush1.bf16.msra.mxu0 0
      %1774 = vmatprep.subr.bf16.mxu0 0
      %1775 = vmatpush1.bf16.msra.mxu0 0
      %1776 = vmatprep.subr.bf16.mxu0 0
      %1777 = vmatpush1.bf16.msra.mxu0 0
      %1778 = vmatprep.subr.bf16.mxu0 0
      %1779 = vmatpush1.bf16.msra.mxu0 0
      %1780 = vmatprep.subr.bf16.mxu0 0
      %1781 = vmatpush1.bf16.msra.mxu0 0
      %1782 = vmatprep.subr.bf16.mxu0 0
      %1783 = vmatpush1.bf16.msra.mxu0 0
      %1784 = vmatprep.subr.bf16.mxu0 0
      %1785 = vmatpush1.bf16.msra.mxu0 0
      %1786 = vmatprep.subr.bf16.mxu0 0
      %1787 = vmatpush1.bf16.msra.mxu0 %v1770
      %1788 = vmatprep.subr.bf16.mxu0 0
      %1789 = vmatpush2.bf16.msra.mxu0 0
      %1790 = vmatprep.subr.bf16.mxu0 0
      %1791 = vmatpush2.bf16.msra.mxu0 0
      %1792 = vmatprep.subr.bf16.mxu0 0
      %1793 = vmatpush2.bf16.msra.mxu0 0
      %1794 = vmatprep.subr.bf16.mxu0 0
      %1795 = vmatpush2.bf16.msra.mxu0 0
      %1796 = vmatprep.subr.bf16.mxu0 0
      %1797 = vmatpush2.bf16.msra.mxu0 0
      %1798 = vmatprep.subr.bf16.mxu0 0
      %1799 = vmatpush2.bf16.msra.mxu0 0
      %1800 = vmatprep.subr.bf16.mxu0 0
      %1801 = vmatpush2.bf16.msra.mxu0 0
      %1802 = vmatprep.subr.bf16.mxu0 0
      %1803 = vmatpush2.bf16.msra.mxu0 0
      %1804 = vmatprep.mubr.bf16.mxu0 0
      %1805 = vmatmul.mubr.bf16.gmra.mxu0 %v1767
      %v1806 = vpop.f32.mrf.mxu0
      %v1807 = vadd.f32 0.0, %v1806
      %v1808 = vpop.f32.mrf.mxu0
      %v1809 = vpop.f32.mrf.mxu0
      %v1810 = vadd.f32 0.0, %v1809
      %v1811 = vpop.f32.mrf.mxu0
      %1812 = vdwg.mxu0
      %v1813 = vadd.f32 %v1652, %v1807
      %v1814 = vadd.f32 %v1653, %v1810
      %s1815 = scalar_lea.vmem %s2, 1792
      %v1816 = vld [vmem:[%s1815] sm:$0xff]
      %v1817 = vld [vmem:[%s1815 + $0x8] sm:$0xff]
      %v1818 = vld [vmem:[%s1815 + $0x10] sm:$0xff]
      %v1819 = vld [vmem:[%s1815 + $0x18] sm:$0xff]
      %v1820 = vld [vmem:[%s1815 + $0x20] sm:$0xff]
      %v1821 = vld [vmem:[%s1815 + $0x28] sm:$0xff]
      %v1822 = vld [vmem:[%s1815 + $0x30] sm:$0xff]
      %v1823 = vld [vmem:[%s1815 + $0x38] sm:$0xff]
      %v1824 = vld [vmem:[%s1815 + $0x40] sm:$0xff]
      %v1825 = vld [vmem:[%s1815 + $0x48] sm:$0xff]
      %v1826 = vld [vmem:[%s1815 + $0x50] sm:$0xff]
      %v1827 = vld [vmem:[%s1815 + $0x58] sm:$0xff]
      %v1828 = vld [vmem:[%s1815 + $0x60] sm:$0xff]
      %v1829 = vld [vmem:[%s1815 + $0x68] sm:$0xff]
      %v1830 = vld [vmem:[%s1815 + $0x70] sm:$0xff]
      %v1831 = vld [vmem:[%s1815 + $0x78] sm:$0xff]
      %v1832 = vld [vmem:[%s1815 + $0x80] sm:$0xff]
      %v1833 = vld [vmem:[%s1815 + $0x88] sm:$0xff]
      %v1834 = vld [vmem:[%s1815 + $0x90] sm:$0xff]
      %v1835 = vld [vmem:[%s1815 + $0x98] sm:$0xff]
      %v1836 = vld [vmem:[%s1815 + $0xa0] sm:$0xff]
      %v1837 = vld [vmem:[%s1815 + $0xa8] sm:$0xff]
      %v1838 = vld [vmem:[%s1815 + $0xb0] sm:$0xff]
      %v1839 = vld [vmem:[%s1815 + $0xb8] sm:$0xff]
      %v1840 = vld [vmem:[%s1815 + $0xc0] sm:$0xff]
      %v1841 = vld [vmem:[%s1815 + $0xc8] sm:$0xff]
      %v1842 = vld [vmem:[%s1815 + $0xd0] sm:$0xff]
      %v1843 = vld [vmem:[%s1815 + $0xd8] sm:$0xff]
      %v1844 = vld [vmem:[%s1815 + $0xe0] sm:$0xff]
      %v1845 = vld [vmem:[%s1815 + $0xe8] sm:$0xff]
      %v1846 = vld [vmem:[%s1815 + $0xf0] sm:$0xff]
      %v1847 = vld [vmem:[%s1815 + $0xf8] sm:$0xff]
      %1848 = vmatprep.subr.mxu0 0.0
      %1849 = vmatpush1.msra.mxu0 %v1831
      %1850 = vmatprep.subr.mxu0 0.0
      %1851 = vmatpush1.msra.mxu0 %v1830
      %1852 = vmatprep.subr.mxu0 0.0
      %1853 = vmatpush1.msra.mxu0 %v1829
      %1854 = vmatprep.subr.mxu0 0.0
      %1855 = vmatpush1.msra.mxu0 %v1828
      %1856 = vmatprep.subr.mxu0 0.0
      %1857 = vmatpush1.msra.mxu0 %v1827
      %1858 = vmatprep.subr.mxu0 0.0
      %1859 = vmatpush1.msra.mxu0 %v1826
      %1860 = vmatprep.subr.mxu0 0.0
      %1861 = vmatpush1.msra.mxu0 %v1825
      %1862 = vmatprep.subr.mxu0 0.0
      %1863 = vmatpush1.msra.mxu0 %v1824
      %1864 = vmatprep.subr.mxu0 0.0
      %1865 = vmatpush1.msra.mxu0 %v1823
      %1866 = vmatprep.subr.mxu0 0.0
      %1867 = vmatpush1.msra.mxu0 %v1822
      %1868 = vmatprep.subr.mxu0 0.0
      %1869 = vmatpush1.msra.mxu0 %v1821
      %1870 = vmatprep.subr.mxu0 0.0
      %1871 = vmatpush1.msra.mxu0 %v1820
      %1872 = vmatprep.subr.mxu0 0.0
      %1873 = vmatpush1.msra.mxu0 %v1819
      %1874 = vmatprep.subr.mxu0 0.0
      %1875 = vmatpush1.msra.mxu0 %v1818
      %1876 = vmatprep.subr.mxu0 0.0
      %1877 = vmatpush1.msra.mxu0 %v1817
      %1878 = vmatprep.subr.mxu0 0.0
      %1879 = vmatpush1.msra.mxu0 %v1816
      %1880 = vmatprep.subr.mxu0 0.0
      %1881 = vmatpush2.msra.mxu0 %v1847
      %1882 = vmatprep.subr.mxu0 0.0
      %1883 = vmatpush2.msra.mxu0 %v1846
      %1884 = vmatprep.subr.mxu0 0.0
      %1885 = vmatpush2.msra.mxu0 %v1845
      %1886 = vmatprep.subr.mxu0 0.0
      %1887 = vmatpush2.msra.mxu0 %v1844
      %1888 = vmatprep.subr.mxu0 0.0
      %1889 = vmatpush2.msra.mxu0 %v1843
      %1890 = vmatprep.subr.mxu0 0.0
      %1891 = vmatpush2.msra.mxu0 %v1842
      %1892 = vmatprep.subr.mxu0 0.0
      %1893 = vmatpush2.msra.mxu0 %v1841
      %1894 = vmatprep.subr.mxu0 0.0
      %1895 = vmatpush2.msra.mxu0 %v1840
      %1896 = vmatprep.subr.mxu0 0.0
      %1897 = vmatpush2.msra.mxu0 %v1839
      %1898 = vmatprep.subr.mxu0 0.0
      %1899 = vmatpush2.msra.mxu0 %v1838
      %1900 = vmatprep.subr.mxu0 0.0
      %1901 = vmatpush2.msra.mxu0 %v1837
      %1902 = vmatprep.subr.mxu0 0.0
      %1903 = vmatpush2.msra.mxu0 %v1836
      %1904 = vmatprep.subr.mxu0 0.0
      %1905 = vmatpush2.msra.mxu0 %v1835
      %1906 = vmatprep.subr.mxu0 0.0
      %1907 = vmatpush2.msra.mxu0 %v1834
      %1908 = vmatprep.subr.mxu0 0.0
      %1909 = vmatpush2.msra.mxu0 %v1833
      %1910 = vmatprep.subr.mxu0 0.0
      %1911 = vmatpush2.msra.mxu0 %v1832
      %1912 = vmatprep.mubr.f32.mxu0 %v719
      %1913 = vmatmul.mubr.f32.gmra.mxu0 %v685
      %v1914 = vpop.f32.mrf.mxu0
      %v1915 = vadd.f32 0.0, %v1914
      %v1916 = vpop.f32.mrf.mxu0
      %1917 = vdwg.mxu0
      %s1918 = scalar_lea.vmem %s1, 56
      %v1919 = vld [vmem:[%s1918] sm:$0xf]
      %v1920 = vld [vmem:[%s1918 + $0x4] sm:$0xf]
      %v1921 = vpack.c.bf16 %v1915, %v1915
      %v1924 = vunpack.c.l.b16 %v1919
      %v1925 = vunpack.c.l.b16 %v1920
      %v1926 = vpack.c.b16 %v1925, %v1924
      %v1928 = vsel %vm906, %v1926, 0
      %v1931 = vand.u32 %v1921, %v913
      %1933 = vmatprep.subr.bf16.mxu0 0
      %1934 = vmatpush1.bf16.msra.mxu0 0
      %1935 = vmatprep.subr.bf16.mxu0 0
      %1936 = vmatpush1.bf16.msra.mxu0 0
      %1937 = vmatprep.subr.bf16.mxu0 0
      %1938 = vmatpush1.bf16.msra.mxu0 0
      %1939 = vmatprep.subr.bf16.mxu0 0
      %1940 = vmatpush1.bf16.msra.mxu0 0
      %1941 = vmatprep.subr.bf16.mxu0 0
      %1942 = vmatpush1.bf16.msra.mxu0 0
      %1943 = vmatprep.subr.bf16.mxu0 0
      %1944 = vmatpush1.bf16.msra.mxu0 0
      %1945 = vmatprep.subr.bf16.mxu0 0
      %1946 = vmatpush1.bf16.msra.mxu0 0
      %1947 = vmatprep.subr.bf16.mxu0 0
      %1948 = vmatpush1.bf16.msra.mxu0 %v1931
      %1949 = vmatprep.subr.bf16.mxu0 0
      %1950 = vmatpush2.bf16.msra.mxu0 0
      %1951 = vmatprep.subr.bf16.mxu0 0
      %1952 = vmatpush2.bf16.msra.mxu0 0
      %1953 = vmatprep.subr.bf16.mxu0 0
      %1954 = vmatpush2.bf16.msra.mxu0 0
      %1955 = vmatprep.subr.bf16.mxu0 0
      %1956 = vmatpush2.bf16.msra.mxu0 0
      %1957 = vmatprep.subr.bf16.mxu0 0
      %1958 = vmatpush2.bf16.msra.mxu0 0
      %1959 = vmatprep.subr.bf16.mxu0 0
      %1960 = vmatpush2.bf16.msra.mxu0 0
      %1961 = vmatprep.subr.bf16.mxu0 0
      %1962 = vmatpush2.bf16.msra.mxu0 0
      %1963 = vmatprep.subr.bf16.mxu0 0
      %1964 = vmatpush2.bf16.msra.mxu0 0
      %1965 = vmatprep.mubr.bf16.mxu0 0
      %1966 = vmatmul.mubr.bf16.gmra.mxu0 %v1928
      %v1967 = vpop.f32.mrf.mxu0
      %v1968 = vadd.f32 0.0, %v1967
      %v1969 = vpop.f32.mrf.mxu0
      %v1970 = vpop.f32.mrf.mxu0
      %v1971 = vadd.f32 0.0, %v1970
      %v1972 = vpop.f32.mrf.mxu0
      %1973 = vdwg.mxu0
      %v1974 = vadd.f32 %v1813, %v1968
      %v1975 = vadd.f32 %v1814, %v1971
      %s1976 = scalar_lea.vmem %s2, 2048
      %v1977 = vld [vmem:[%s1976] sm:$0xff]
      %v1978 = vld [vmem:[%s1976 + $0x8] sm:$0xff]
      %v1979 = vld [vmem:[%s1976 + $0x10] sm:$0xff]
      %v1980 = vld [vmem:[%s1976 + $0x18] sm:$0xff]
      %v1981 = vld [vmem:[%s1976 + $0x20] sm:$0xff]
      %v1982 = vld [vmem:[%s1976 + $0x28] sm:$0xff]
      %v1983 = vld [vmem:[%s1976 + $0x30] sm:$0xff]
      %v1984 = vld [vmem:[%s1976 + $0x38] sm:$0xff]
      %v1985 = vld [vmem:[%s1976 + $0x40] sm:$0xff]
      %v1986 = vld [vmem:[%s1976 + $0x48] sm:$0xff]
      %v1987 = vld [vmem:[%s1976 + $0x50] sm:$0xff]
      %v1988 = vld [vmem:[%s1976 + $0x58] sm:$0xff]
      %v1989 = vld [vmem:[%s1976 + $0x60] sm:$0xff]
      %v1990 = vld [vmem:[%s1976 + $0x68] sm:$0xff]
      %v1991 = vld [vmem:[%s1976 + $0x70] sm:$0xff]
      %v1992 = vld [vmem:[%s1976 + $0x78] sm:$0xff]
      %v1993 = vld [vmem:[%s1976 + $0x80] sm:$0xff]
      %v1994 = vld [vmem:[%s1976 + $0x88] sm:$0xff]
      %v1995 = vld [vmem:[%s1976 + $0x90] sm:$0xff]
      %v1996 = vld [vmem:[%s1976 + $0x98] sm:$0xff]
      %v1997 = vld [vmem:[%s1976 + $0xa0] sm:$0xff]
      %v1998 = vld [vmem:[%s1976 + $0xa8] sm:$0xff]
      %v1999 = vld [vmem:[%s1976 + $0xb0] sm:$0xff]
      %v2000 = vld [vmem:[%s1976 + $0xb8] sm:$0xff]
      %v2001 = vld [vmem:[%s1976 + $0xc0] sm:$0xff]
      %v2002 = vld [vmem:[%s1976 + $0xc8] sm:$0xff]
      %v2003 = vld [vmem:[%s1976 + $0xd0] sm:$0xff]
      %v2004 = vld [vmem:[%s1976 + $0xd8] sm:$0xff]
      %v2005 = vld [vmem:[%s1976 + $0xe0] sm:$0xff]
      %v2006 = vld [vmem:[%s1976 + $0xe8] sm:$0xff]
      %v2007 = vld [vmem:[%s1976 + $0xf0] sm:$0xff]
      %v2008 = vld [vmem:[%s1976 + $0xf8] sm:$0xff]
      %2009 = vmatprep.subr.mxu0 0.0
      %2010 = vmatpush1.msra.mxu0 %v1992
      %2011 = vmatprep.subr.mxu0 0.0
      %2012 = vmatpush1.msra.mxu0 %v1991
      %2013 = vmatprep.subr.mxu0 0.0
      %2014 = vmatpush1.msra.mxu0 %v1990
      %2015 = vmatprep.subr.mxu0 0.0
      %2016 = vmatpush1.msra.mxu0 %v1989
      %2017 = vmatprep.subr.mxu0 0.0
      %2018 = vmatpush1.msra.mxu0 %v1988
      %2019 = vmatprep.subr.mxu0 0.0
      %2020 = vmatpush1.msra.mxu0 %v1987
      %2021 = vmatprep.subr.mxu0 0.0
      %2022 = vmatpush1.msra.mxu0 %v1986
      %2023 = vmatprep.subr.mxu0 0.0
      %2024 = vmatpush1.msra.mxu0 %v1985
      %2025 = vmatprep.subr.mxu0 0.0
      %2026 = vmatpush1.msra.mxu0 %v1984
      %2027 = vmatprep.subr.mxu0 0.0
      %2028 = vmatpush1.msra.mxu0 %v1983
      %2029 = vmatprep.subr.mxu0 0.0
      %2030 = vmatpush1.msra.mxu0 %v1982
      %2031 = vmatprep.subr.mxu0 0.0
      %2032 = vmatpush1.msra.mxu0 %v1981
      %2033 = vmatprep.subr.mxu0 0.0
      %2034 = vmatpush1.msra.mxu0 %v1980
      %2035 = vmatprep.subr.mxu0 0.0
      %2036 = vmatpush1.msra.mxu0 %v1979
      %2037 = vmatprep.subr.mxu0 0.0
      %2038 = vmatpush1.msra.mxu0 %v1978
      %2039 = vmatprep.subr.mxu0 0.0
      %2040 = vmatpush1.msra.mxu0 %v1977
      %2041 = vmatprep.subr.mxu0 0.0
      %2042 = vmatpush2.msra.mxu0 %v2008
      %2043 = vmatprep.subr.mxu0 0.0
      %2044 = vmatpush2.msra.mxu0 %v2007
      %2045 = vmatprep.subr.mxu0 0.0
      %2046 = vmatpush2.msra.mxu0 %v2006
      %2047 = vmatprep.subr.mxu0 0.0
      %2048 = vmatpush2.msra.mxu0 %v2005
      %2049 = vmatprep.subr.mxu0 0.0
      %2050 = vmatpush2.msra.mxu0 %v2004
      %2051 = vmatprep.subr.mxu0 0.0
      %2052 = vmatpush2.msra.mxu0 %v2003
      %2053 = vmatprep.subr.mxu0 0.0
      %2054 = vmatpush2.msra.mxu0 %v2002
      %2055 = vmatprep.subr.mxu0 0.0
      %2056 = vmatpush2.msra.mxu0 %v2001
      %2057 = vmatprep.subr.mxu0 0.0
      %2058 = vmatpush2.msra.mxu0 %v2000
      %2059 = vmatprep.subr.mxu0 0.0
      %2060 = vmatpush2.msra.mxu0 %v1999
      %2061 = vmatprep.subr.mxu0 0.0
      %2062 = vmatpush2.msra.mxu0 %v1998
      %2063 = vmatprep.subr.mxu0 0.0
      %2064 = vmatpush2.msra.mxu0 %v1997
      %2065 = vmatprep.subr.mxu0 0.0
      %2066 = vmatpush2.msra.mxu0 %v1996
      %2067 = vmatprep.subr.mxu0 0.0
      %2068 = vmatpush2.msra.mxu0 %v1995
      %2069 = vmatprep.subr.mxu0 0.0
      %2070 = vmatpush2.msra.mxu0 %v1994
      %2071 = vmatprep.subr.mxu0 0.0
      %2072 = vmatpush2.msra.mxu0 %v1993
      %2073 = vmatprep.mubr.f32.mxu0 %v719
      %2074 = vmatmul.mubr.f32.gmra.mxu0 %v685
      %v2075 = vpop.f32.mrf.mxu0
      %v2076 = vadd.f32 0.0, %v2075
      %v2077 = vpop.f32.mrf.mxu0
      %2078 = vdwg.mxu0
      %s2079 = scalar_lea.vmem %s1, 64
      %v2080 = vld [vmem:[%s2079] sm:$0xf]
      %v2081 = vld [vmem:[%s2079 + $0x4] sm:$0xf]
      %v2082 = vpack.c.bf16 %v2076, %v2076
      %v2085 = vunpack.c.l.b16 %v2080
      %v2086 = vunpack.c.l.b16 %v2081
      %v2087 = vpack.c.b16 %v2086, %v2085
      %v2089 = vsel %vm906, %v2087, 0
      %v2092 = vand.u32 %v2082, %v913
      %2094 = vmatprep.subr.bf16.mxu0 0
      %2095 = vmatpush1.bf16.msra.mxu0 0
      %2096 = vmatprep.subr.bf16.mxu0 0
      %2097 = vmatpush1.bf16.msra.mxu0 0
      %2098 = vmatprep.subr.bf16.mxu0 0
      %2099 = vmatpush1.bf16.msra.mxu0 0
      %2100 = vmatprep.subr.bf16.mxu0 0
      %2101 = vmatpush1.bf16.msra.mxu0 0
      %2102 = vmatprep.subr.bf16.mxu0 0
      %2103 = vmatpush1.bf16.msra.mxu0 0
      %2104 = vmatprep.subr.bf16.mxu0 0
      %2105 = vmatpush1.bf16.msra.mxu0 0
      %2106 = vmatprep.subr.bf16.mxu0 0
      %2107 = vmatpush1.bf16.msra.mxu0 0
      %2108 = vmatprep.subr.bf16.mxu0 0
      %2109 = vmatpush1.bf16.msra.mxu0 %v2092
      %2110 = vmatprep.subr.bf16.mxu0 0
      %2111 = vmatpush2.bf16.msra.mxu0 0
      %2112 = vmatprep.subr.bf16.mxu0 0
      %2113 = vmatpush2.bf16.msra.mxu0 0
      %2114 = vmatprep.subr.bf16.mxu0 0
      %2115 = vmatpush2.bf16.msra.mxu0 0
      %2116 = vmatprep.subr.bf16.mxu0 0
      %2117 = vmatpush2.bf16.msra.mxu0 0
      %2118 = vmatprep.subr.bf16.mxu0 0
      %2119 = vmatpush2.bf16.msra.mxu0 0
      %2120 = vmatprep.subr.bf16.mxu0 0
      %2121 = vmatpush2.bf16.msra.mxu0 0
      %2122 = vmatprep.subr.bf16.mxu0 0
      %2123 = vmatpush2.bf16.msra.mxu0 0
      %2124 = vmatprep.subr.bf16.mxu0 0
      %2125 = vmatpush2.bf16.msra.mxu0 0
      %2126 = vmatprep.mubr.bf16.mxu0 0
      %2127 = vmatmul.mubr.bf16.gmra.mxu0 %v2089
      %v2128 = vpop.f32.mrf.mxu0
      %v2129 = vadd.f32 0.0, %v2128
      %v2130 = vpop.f32.mrf.mxu0
      %v2131 = vpop.f32.mrf.mxu0
      %v2132 = vadd.f32 0.0, %v2131
      %v2133 = vpop.f32.mrf.mxu0
      %2134 = vdwg.mxu0
      %v2135 = vadd.f32 %v1974, %v2129
      %v2136 = vadd.f32 %v1975, %v2132
      %v2137 = vld [vmem:[%s3] sm:$0xff]
      %v2138 = vld [vmem:[%s3 + $0x8] sm:$0xff]
      %2140 = vset.pattern.permute.xlu0 0
      %2141 = vperm.xlu0 %2140, %v2137
      %v2142 = vpop.permute.xlu0 %2141
      %2145 = vset.pattern.permute.xlu0 0
      %2146 = vperm.xlu0 %2145, %v2138
      %v2147 = vpop.permute.xlu0 %2146
      %v2149 = vadd.f32 %v2135, %v2142
      %v2150 = vadd.f32 %v2136, %v2147
      %v2151 = vmax.f32 %v2149, 0.0
      %v2152 = vmax.f32 %v2150, 0.0
      %v2153 = vld [vmem:[%s5] sm:$0xff]
      %v2154 = vld [vmem:[%s5 + $0x8] sm:$0xff]
      %v2155 = vld [vmem:[%s5 + $0x10] sm:$0xff]
      %v2156 = vld [vmem:[%s5 + $0x18] sm:$0xff]
      %v2157 = vld [vmem:[%s5 + $0x20] sm:$0xff]
      %v2158 = vld [vmem:[%s5 + $0x28] sm:$0xff]
      %v2159 = vld [vmem:[%s5 + $0x30] sm:$0xff]
      %v2160 = vld [vmem:[%s5 + $0x38] sm:$0xff]
      %vm2161 = vcmask 523264
      %v2163 = vsel %vm2161, %v2151, 0
      %v2166 = vsel %vm2161, %v2152, 0
      %2168 = vmatprep.subr.mxu0 0.0
      %2169 = vmatpush1.msra.mxu0 0.0
      %2170 = vmatprep.subr.mxu0 0.0
      %2171 = vmatpush1.msra.mxu0 0.0
      %2172 = vmatprep.subr.mxu0 0.0
      %2173 = vmatpush1.msra.mxu0 0.0
      %2174 = vmatprep.subr.mxu0 0.0
      %2175 = vmatpush1.msra.mxu0 0.0
      %2176 = vmatprep.subr.mxu0 0.0
      %2177 = vmatpush1.msra.mxu0 0.0
      %2178 = vmatprep.subr.mxu0 0.0
      %2179 = vmatpush1.msra.mxu0 0.0
      %2180 = vmatprep.subr.mxu0 0.0
      %2181 = vmatpush1.msra.mxu0 0.0
      %2182 = vmatprep.subr.mxu0 0.0
      %2183 = vmatpush1.msra.mxu0 0.0
      %2184 = vmatprep.subr.mxu0 0.0
      %2185 = vmatpush1.msra.mxu0 %v2160
      %2186 = vmatprep.subr.mxu0 0.0
      %2187 = vmatpush1.msra.mxu0 %v2159
      %2188 = vmatprep.subr.mxu0 0.0
      %2189 = vmatpush1.msra.mxu0 %v2158
      %2190 = vmatprep.subr.mxu0 0.0
      %2191 = vmatpush1.msra.mxu0 %v2157
      %2192 = vmatprep.subr.mxu0 0.0
      %2193 = vmatpush1.msra.mxu0 %v2156
      %2194 = vmatprep.subr.mxu0 0.0
      %2195 = vmatpush1.msra.mxu0 %v2155
      %2196 = vmatprep.subr.mxu0 0.0
      %2197 = vmatpush1.msra.mxu0 %v2154
      %2198 = vmatprep.subr.mxu0 0.0
      %2199 = vmatpush1.msra.mxu0 %v2153
      %2200 = vmatprep.subr.mxu0 0.0
      %2201 = vmatpush2.msra.mxu0 0.0
      %2202 = vmatprep.subr.mxu0 0.0
      %2203 = vmatpush2.msra.mxu0 0.0
      %2204 = vmatprep.subr.mxu0 0.0
      %2205 = vmatpush2.msra.mxu0 0.0
      %2206 = vmatprep.subr.mxu0 0.0
      %2207 = vmatpush2.msra.mxu0 0.0
      %2208 = vmatprep.subr.mxu0 0.0
      %2209 = vmatpush2.msra.mxu0 0.0
      %2210 = vmatprep.subr.mxu0 0.0
      %2211 = vmatpush2.msra.mxu0 0.0
      %2212 = vmatprep.subr.mxu0 0.0
      %2213 = vmatpush2.msra.mxu0 0.0
      %2214 = vmatprep.subr.mxu0 0.0
      %2215 = vmatpush2.msra.mxu0 0.0
      %2216 = vmatprep.subr.mxu0 0.0
      %2217 = vmatpush2.msra.mxu0 0.0
      %2218 = vmatprep.subr.mxu0 0.0
      %2219 = vmatpush2.msra.mxu0 0.0
      %2220 = vmatprep.subr.mxu0 0.0
      %2221 = vmatpush2.msra.mxu0 0.0
      %2222 = vmatprep.subr.mxu0 0.0
      %2223 = vmatpush2.msra.mxu0 0.0
      %2224 = vmatprep.subr.mxu0 0.0
      %2225 = vmatpush2.msra.mxu0 0.0
      %2226 = vmatprep.subr.mxu0 0.0
      %2227 = vmatpush2.msra.mxu0 0.0
      %2228 = vmatprep.subr.mxu0 0.0
      %2229 = vmatpush2.msra.mxu0 0.0
      %2230 = vmatprep.subr.mxu0 0.0
      %2231 = vmatpush2.msra.mxu0 0.0
      %2232 = vmatprep.mubr.f32.mxu0 0.0
      %2233 = vmatmul.mubr.f32.gmra.mxu0 %v2163
      %v2234 = vpop.f32.mrf.mxu0
      %v2235 = vadd.f32 0.0, %v2234
      %v2236 = vpop.f32.mrf.mxu0
      %2237 = vmatprep.mubr.f32.mxu0 0.0
      %2238 = vmatmul.mubr.f32.gmra.mxu0 %v2166
      %v2239 = vpop.f32.mrf.mxu0
      %v2240 = vadd.f32 0.0, %v2239
      %v2241 = vpop.f32.mrf.mxu0
      %2242 = vdwg.mxu0
      %v2243 = vld [vmem:[%s4] sm:$0xf]
      %v2244 = vld [vmem:[%s4 + $0x4] sm:$0xf]
      %v2245 = vld [vmem:[%s4 + $0x8] sm:$0xf]
      %v2246 = vld [vmem:[%s4 + $0xc] sm:$0xf]
      %v2247 = vpack.c.bf16 %v2240, %v2235
      %s2248 = scalar_lea.vmem %s5, 64
      %v2249 = vld [vmem:[%s2248] sm:$0xff]
      %v2250 = vld [vmem:[%s2248 + $0x8] sm:$0xff]
      %v2251 = vld [vmem:[%s2248 + $0x10] sm:$0xff]
      %v2252 = vld [vmem:[%s2248 + $0x18] sm:$0xff]
      %v2253 = vld [vmem:[%s2248 + $0x20] sm:$0xff]
      %v2254 = vld [vmem:[%s2248 + $0x28] sm:$0xff]
      %v2255 = vld [vmem:[%s2248 + $0x30] sm:$0xff]
      %v2256 = vld [vmem:[%s2248 + $0x38] sm:$0xff]
      %2257 = vmatprep.subr.mxu0 0.0
      %2258 = vmatpush1.msra.mxu0 0.0
      %2259 = vmatprep.subr.mxu0 0.0
      %2260 = vmatpush1.msra.mxu0 0.0
      %2261 = vmatprep.subr.mxu0 0.0
      %2262 = vmatpush1.msra.mxu0 0.0
      %2263 = vmatprep.subr.mxu0 0.0
      %2264 = vmatpush1.msra.mxu0 0.0
      %2265 = vmatprep.subr.mxu0 0.0
      %2266 = vmatpush1.msra.mxu0 0.0
      %2267 = vmatprep.subr.mxu0 0.0
      %2268 = vmatpush1.msra.mxu0 0.0
      %2269 = vmatprep.subr.mxu0 0.0
      %2270 = vmatpush1.msra.mxu0 0.0
      %2271 = vmatprep.subr.mxu0 0.0
      %2272 = vmatpush1.msra.mxu0 0.0
      %2273 = vmatprep.subr.mxu0 0.0
      %2274 = vmatpush1.msra.mxu0 %v2256
      %2275 = vmatprep.subr.mxu0 0.0
      %2276 = vmatpush1.msra.mxu0 %v2255
      %2277 = vmatprep.subr.mxu0 0.0
      %2278 = vmatpush1.msra.mxu0 %v2254
      %2279 = vmatprep.subr.mxu0 0.0
      %2280 = vmatpush1.msra.mxu0 %v2253
      %2281 = vmatprep.subr.mxu0 0.0
      %2282 = vmatpush1.msra.mxu0 %v2252
      %2283 = vmatprep.subr.mxu0 0.0
      %2284 = vmatpush1.msra.mxu0 %v2251
      %2285 = vmatprep.subr.mxu0 0.0
      %2286 = vmatpush1.msra.mxu0 %v2250
      %2287 = vmatprep.subr.mxu0 0.0
      %2288 = vmatpush1.msra.mxu0 %v2249
      %2289 = vmatprep.subr.mxu0 0.0
      %2290 = vmatpush2.msra.mxu0 0.0
      %2291 = vmatprep.subr.mxu0 0.0
      %2292 = vmatpush2.msra.mxu0 0.0
      %2293 = vmatprep.subr.mxu0 0.0
      %2294 = vmatpush2.msra.mxu0 0.0
      %2295 = vmatprep.subr.mxu0 0.0
      %2296 = vmatpush2.msra.mxu0 0.0
      %2297 = vmatprep.subr.mxu0 0.0
      %2298 = vmatpush2.msra.mxu0 0.0
      %2299 = vmatprep.subr.mxu0 0.0
      %2300 = vmatpush2.msra.mxu0 0.0
      %2301 = vmatprep.subr.mxu0 0.0
      %2302 = vmatpush2.msra.mxu0 0.0
      %2303 = vmatprep.subr.mxu0 0.0
      %2304 = vmatpush2.msra.mxu0 0.0
      %2305 = vmatprep.subr.mxu0 0.0
      %2306 = vmatpush2.msra.mxu0 0.0
      %2307 = vmatprep.subr.mxu0 0.0
      %2308 = vmatpush2.msra.mxu0 0.0
      %2309 = vmatprep.subr.mxu0 0.0
      %2310 = vmatpush2.msra.mxu0 0.0
      %2311 = vmatprep.subr.mxu0 0.0
      %2312 = vmatpush2.msra.mxu0 0.0
      %2313 = vmatprep.subr.mxu0 0.0
      %2314 = vmatpush2.msra.mxu0 0.0
      %2315 = vmatprep.subr.mxu0 0.0
      %2316 = vmatpush2.msra.mxu0 0.0
      %2317 = vmatprep.subr.mxu0 0.0
      %2318 = vmatpush2.msra.mxu0 0.0
      %2319 = vmatprep.subr.mxu0 0.0
      %2320 = vmatpush2.msra.mxu0 0.0
      %2321 = vmatprep.mubr.f32.mxu0 0.0
      %2322 = vmatmul.mubr.f32.gmra.mxu0 %v2163
      %v2323 = vpop.f32.mrf.mxu0
      %v2324 = vadd.f32 0.0, %v2323
      %v2325 = vpop.f32.mrf.mxu0
      %2326 = vmatprep.mubr.f32.mxu0 0.0
      %2327 = vmatmul.mubr.f32.gmra.mxu0 %v2166
      %v2328 = vpop.f32.mrf.mxu0
      %v2329 = vadd.f32 0.0, %v2328
      %v2330 = vpop.f32.mrf.mxu0
      %2331 = vdwg.mxu0
      %s2332 = scalar_lea.vmem %s4, 16
      %v2333 = vld [vmem:[%s2332] sm:$0xf]
      %v2334 = vld [vmem:[%s2332 + $0x4] sm:$0xf]
      %v2335 = vld [vmem:[%s2332 + $0x8] sm:$0xf]
      %v2336 = vld [vmem:[%s2332 + $0xc] sm:$0xf]
      %v2337 = vpack.c.bf16 %v2329, %v2324
      %v2342 = vunpack.c.l.b16 %v2333
      %v2343 = vunpack.c.l.b16 %v2334
      %v2344 = vunpack.c.l.b16 %v2335
      %v2345 = vunpack.c.l.b16 %v2336
      %v2346 = vpack.c.b16 %v2343, %v2342
      %v2347 = vpack.c.b16 %v2345, %v2344
      %vm2348 = vcmask 130048
      %v2350 = vsel %vm2348, %v2346, 0
      %v2353 = vsel %vm2348, %v2347, 0
      %2355 = vmatprep.subr.bf16.mxu0 0
      %2356 = vmatpush1.bf16.msra.mxu0 0
      %2357 = vmatprep.subr.bf16.mxu0 0
      %2358 = vmatpush1.bf16.msra.mxu0 0
      %2359 = vmatprep.subr.bf16.mxu0 0
      %2360 = vmatpush1.bf16.msra.mxu0 0
      %2361 = vmatprep.subr.bf16.mxu0 0
      %2362 = vmatpush1.bf16.msra.mxu0 0
      %2363 = vmatprep.subr.bf16.mxu0 0
      %2364 = vmatpush1.bf16.msra.mxu0 0
      %2365 = vmatprep.subr.bf16.mxu0 0
      %2366 = vmatpush1.bf16.msra.mxu0 0
      %2367 = vmatprep.subr.bf16.mxu0 0
      %2368 = vmatpush1.bf16.msra.mxu0 0
      %2369 = vmatprep.subr.bf16.mxu0 0
      %2370 = vmatpush1.bf16.msra.mxu0 %v2337
      %2371 = vmatprep.subr.bf16.mxu0 0
      %2372 = vmatpush2.bf16.msra.mxu0 0
      %2373 = vmatprep.subr.bf16.mxu0 0
      %2374 = vmatpush2.bf16.msra.mxu0 0
      %2375 = vmatprep.subr.bf16.mxu0 0
      %2376 = vmatpush2.bf16.msra.mxu0 0
      %2377 = vmatprep.subr.bf16.mxu0 0
      %2378 = vmatpush2.bf16.msra.mxu0 0
      %2379 = vmatprep.subr.bf16.mxu0 0
      %2380 = vmatpush2.bf16.msra.mxu0 0
      %2381 = vmatprep.subr.bf16.mxu0 0
      %2382 = vmatpush2.bf16.msra.mxu0 0
      %2383 = vmatprep.subr.bf16.mxu0 0
      %2384 = vmatpush2.bf16.msra.mxu0 0
      %2385 = vmatprep.subr.bf16.mxu0 0
      %2386 = vmatpush2.bf16.msra.mxu0 0
      %2387 = vmatprep.mubr.bf16.mxu0 0
      %2388 = vmatmul.mubr.bf16.gmra.mxu0 %v2350
      %v2389 = vpop.f32.mrf.mxu0
      %v2390 = vadd.f32 0.0, %v2389
      %v2391 = vpop.f32.mrf.mxu0
      %v2392 = vpop.f32.mrf.mxu0
      %v2393 = vadd.f32 0.0, %v2392
      %v2394 = vpop.f32.mrf.mxu0
      %2395 = vmatprep.mubr.bf16.mxu0 0
      %2396 = vmatmul.mubr.bf16.gmra.mxu0 %v2353
      %v2397 = vpop.f32.mrf.mxu0
      %v2398 = vadd.f32 0.0, %v2397
      %v2399 = vpop.f32.mrf.mxu0
      %v2400 = vpop.f32.mrf.mxu0
      %v2401 = vadd.f32 0.0, %v2400
      %v2402 = vpop.f32.mrf.mxu0
      %2403 = vdwg.mxu0
      %v2408 = vunpack.c.l.b16 %v2243
      %v2409 = vunpack.c.l.b16 %v2244
      %v2410 = vunpack.c.l.b16 %v2245
      %v2411 = vunpack.c.l.b16 %v2246
      %v2412 = vpack.c.b16 %v2409, %v2408
      %v2413 = vpack.c.b16 %v2411, %v2410
      %v2415 = vsel %vm2348, %v2412, 0
      %v2418 = vsel %vm2348, %v2413, 0
      %2420 = vmatprep.subr.bf16.mxu0 0
      %2421 = vmatpush1.bf16.msra.mxu0 0
      %2422 = vmatprep.subr.bf16.mxu0 0
      %2423 = vmatpush1.bf16.msra.mxu0 0
      %2424 = vmatprep.subr.bf16.mxu0 0
      %2425 = vmatpush1.bf16.msra.mxu0 0
      %2426 = vmatprep.subr.bf16.mxu0 0
      %2427 = vmatpush1.bf16.msra.mxu0 0
      %2428 = vmatprep.subr.bf16.mxu0 0
      %2429 = vmatpush1.bf16.msra.mxu0 0
      %2430 = vmatprep.subr.bf16.mxu0 0
      %2431 = vmatpush1.bf16.msra.mxu0 0
      %2432 = vmatprep.subr.bf16.mxu0 0
      %2433 = vmatpush1.bf16.msra.mxu0 0
      %2434 = vmatprep.subr.bf16.mxu0 0
      %2435 = vmatpush1.bf16.msra.mxu0 %v2247
      %2436 = vmatprep.subr.bf16.mxu0 0
      %2437 = vmatpush2.bf16.msra.mxu0 0
      %2438 = vmatprep.subr.bf16.mxu0 0
      %2439 = vmatpush2.bf16.msra.mxu0 0
      %2440 = vmatprep.subr.bf16.mxu0 0
      %2441 = vmatpush2.bf16.msra.mxu0 0
      %2442 = vmatprep.subr.bf16.mxu0 0
      %2443 = vmatpush2.bf16.msra.mxu0 0
      %2444 = vmatprep.subr.bf16.mxu0 0
      %2445 = vmatpush2.bf16.msra.mxu0 0
      %2446 = vmatprep.subr.bf16.mxu0 0
      %2447 = vmatpush2.bf16.msra.mxu0 0
      %2448 = vmatprep.subr.bf16.mxu0 0
      %2449 = vmatpush2.bf16.msra.mxu0 0
      %2450 = vmatprep.subr.bf16.mxu0 0
      %2451 = vmatpush2.bf16.msra.mxu0 0
      %2452 = vmatprep.mubr.bf16.mxu0 0
      %2453 = vmatmul.mubr.bf16.gmra.mxu0 %v2415
      %v2454 = vpop.f32.mrf.mxu0
      %v2455 = vadd.f32 %v2390, %v2454
      %v2456 = vpop.f32.mrf.mxu0
      %v2457 = vpop.f32.mrf.mxu0
      %v2458 = vadd.f32 %v2393, %v2457
      %v2459 = vpop.f32.mrf.mxu0
      %2460 = vmatprep.mubr.bf16.mxu0 0
      %2461 = vmatmul.mubr.bf16.gmra.mxu0 %v2418
      %v2462 = vpop.f32.mrf.mxu0
      %v2463 = vadd.f32 %v2398, %v2462
      %v2464 = vpop.f32.mrf.mxu0
      %v2465 = vpop.f32.mrf.mxu0
      %v2466 = vadd.f32 %v2401, %v2465
      %v2467 = vpop.f32.mrf.mxu0
      %2468 = vdwg.mxu0
      %s2469 = scalar_lea.vmem %s5, 128
      %v2470 = vld [vmem:[%s2469] sm:$0xff]
      %v2471 = vld [vmem:[%s2469 + $0x8] sm:$0xff]
      %v2472 = vld [vmem:[%s2469 + $0x10] sm:$0xff]
      %v2473 = vld [vmem:[%s2469 + $0x18] sm:$0xff]
      %v2474 = vld [vmem:[%s2469 + $0x20] sm:$0xff]
      %v2475 = vld [vmem:[%s2469 + $0x28] sm:$0xff]
      %v2476 = vld [vmem:[%s2469 + $0x30] sm:$0xff]
      %v2477 = vld [vmem:[%s2469 + $0x38] sm:$0xff]
      %2478 = vmatprep.subr.mxu0 0.0
      %2479 = vmatpush1.msra.mxu0 0.0
      %2480 = vmatprep.subr.mxu0 0.0
      %2481 = vmatpush1.msra.mxu0 0.0
      %2482 = vmatprep.subr.mxu0 0.0
      %2483 = vmatpush1.msra.mxu0 0.0
      %2484 = vmatprep.subr.mxu0 0.0
      %2485 = vmatpush1.msra.mxu0 0.0
      %2486 = vmatprep.subr.mxu0 0.0
      %2487 = vmatpush1.msra.mxu0 0.0
      %2488 = vmatprep.subr.mxu0 0.0
      %2489 = vmatpush1.msra.mxu0 0.0
      %2490 = vmatprep.subr.mxu0 0.0
      %2491 = vmatpush1.msra.mxu0 0.0
      %2492 = vmatprep.subr.mxu0 0.0
      %2493 = vmatpush1.msra.mxu0 0.0
      %2494 = vmatprep.subr.mxu0 0.0
      %2495 = vmatpush1.msra.mxu0 %v2477
      %2496 = vmatprep.subr.mxu0 0.0
      %2497 = vmatpush1.msra.mxu0 %v2476
      %2498 = vmatprep.subr.mxu0 0.0
      %2499 = vmatpush1.msra.mxu0 %v2475
      %2500 = vmatprep.subr.mxu0 0.0
      %2501 = vmatpush1.msra.mxu0 %v2474
      %2502 = vmatprep.subr.mxu0 0.0
      %2503 = vmatpush1.msra.mxu0 %v2473
      %2504 = vmatprep.subr.mxu0 0.0
      %2505 = vmatpush1.msra.mxu0 %v2472
      %2506 = vmatprep.subr.mxu0 0.0
      %2507 = vmatpush1.msra.mxu0 %v2471
      %2508 = vmatprep.subr.mxu0 0.0
      %2509 = vmatpush1.msra.mxu0 %v2470
      %2510 = vmatprep.subr.mxu0 0.0
      %2511 = vmatpush2.msra.mxu0 0.0
      %2512 = vmatprep.subr.mxu0 0.0
      %2513 = vmatpush2.msra.mxu0 0.0
      %2514 = vmatprep.subr.mxu0 0.0
      %2515 = vmatpush2.msra.mxu0 0.0
      %2516 = vmatprep.subr.mxu0 0.0
      %2517 = vmatpush2.msra.mxu0 0.0
      %2518 = vmatprep.subr.mxu0 0.0
      %2519 = vmatpush2.msra.mxu0 0.0
      %2520 = vmatprep.subr.mxu0 0.0
      %2521 = vmatpush2.msra.mxu0 0.0
      %2522 = vmatprep.subr.mxu0 0.0
      %2523 = vmatpush2.msra.mxu0 0.0
      %2524 = vmatprep.subr.mxu0 0.0
      %2525 = vmatpush2.msra.mxu0 0.0
      %2526 = vmatprep.subr.mxu0 0.0
      %2527 = vmatpush2.msra.mxu0 0.0
      %2528 = vmatprep.subr.mxu0 0.0
      %2529 = vmatpush2.msra.mxu0 0.0
      %2530 = vmatprep.subr.mxu0 0.0
      %2531 = vmatpush2.msra.mxu0 0.0
      %2532 = vmatprep.subr.mxu0 0.0
      %2533 = vmatpush2.msra.mxu0 0.0
      %2534 = vmatprep.subr.mxu0 0.0
      %2535 = vmatpush2.msra.mxu0 0.0
      %2536 = vmatprep.subr.mxu0 0.0
      %2537 = vmatpush2.msra.mxu0 0.0
      %2538 = vmatprep.subr.mxu0 0.0
      %2539 = vmatpush2.msra.mxu0 0.0
      %2540 = vmatprep.subr.mxu0 0.0
      %2541 = vmatpush2.msra.mxu0 0.0
      %2542 = vmatprep.mubr.f32.mxu0 0.0
      %2543 = vmatmul.mubr.f32.gmra.mxu0 %v2163
      %v2544 = vpop.f32.mrf.mxu0
      %v2545 = vadd.f32 0.0, %v2544
      %v2546 = vpop.f32.mrf.mxu0
      %2547 = vmatprep.mubr.f32.mxu0 0.0
      %2548 = vmatmul.mubr.f32.gmra.mxu0 %v2166
      %v2549 = vpop.f32.mrf.mxu0
      %v2550 = vadd.f32 0.0, %v2549
      %v2551 = vpop.f32.mrf.mxu0
      %2552 = vdwg.mxu0
      %s2553 = scalar_lea.vmem %s4, 32
      %v2554 = vld [vmem:[%s2553] sm:$0xf]
      %v2555 = vld [vmem:[%s2553 + $0x4] sm:$0xf]
      %v2556 = vld [vmem:[%s2553 + $0x8] sm:$0xf]
      %v2557 = vld [vmem:[%s2553 + $0xc] sm:$0xf]
      %v2558 = vpack.c.bf16 %v2550, %v2545
      %v2563 = vunpack.c.l.b16 %v2554
      %v2564 = vunpack.c.l.b16 %v2555
      %v2565 = vunpack.c.l.b16 %v2556
      %v2566 = vunpack.c.l.b16 %v2557
      %v2567 = vpack.c.b16 %v2564, %v2563
      %v2568 = vpack.c.b16 %v2566, %v2565
      %v2570 = vsel %vm2348, %v2567, 0
      %v2573 = vsel %vm2348, %v2568, 0
      %2575 = vmatprep.subr.bf16.mxu0 0
      %2576 = vmatpush1.bf16.msra.mxu0 0
      %2577 = vmatprep.subr.bf16.mxu0 0
      %2578 = vmatpush1.bf16.msra.mxu0 0
      %2579 = vmatprep.subr.bf16.mxu0 0
      %2580 = vmatpush1.bf16.msra.mxu0 0
      %2581 = vmatprep.subr.bf16.mxu0 0
      %2582 = vmatpush1.bf16.msra.mxu0 0
      %2583 = vmatprep.subr.bf16.mxu0 0
      %2584 = vmatpush1.bf16.msra.mxu0 0
      %2585 = vmatprep.subr.bf16.mxu0 0
      %2586 = vmatpush1.bf16.msra.mxu0 0
      %2587 = vmatprep.subr.bf16.mxu0 0
      %2588 = vmatpush1.bf16.msra.mxu0 0
      %2589 = vmatprep.subr.bf16.mxu0 0
      %2590 = vmatpush1.bf16.msra.mxu0 %v2558
      %2591 = vmatprep.subr.bf16.mxu0 0
      %2592 = vmatpush2.bf16.msra.mxu0 0
      %2593 = vmatprep.subr.bf16.mxu0 0
      %2594 = vmatpush2.bf16.msra.mxu0 0
      %2595 = vmatprep.subr.bf16.mxu0 0
      %2596 = vmatpush2.bf16.msra.mxu0 0
      %2597 = vmatprep.subr.bf16.mxu0 0
      %2598 = vmatpush2.bf16.msra.mxu0 0
      %2599 = vmatprep.subr.bf16.mxu0 0
      %2600 = vmatpush2.bf16.msra.mxu0 0
      %2601 = vmatprep.subr.bf16.mxu0 0
      %2602 = vmatpush2.bf16.msra.mxu0 0
      %2603 = vmatprep.subr.bf16.mxu0 0
      %2604 = vmatpush2.bf16.msra.mxu0 0
      %2605 = vmatprep.subr.bf16.mxu0 0
      %2606 = vmatpush2.bf16.msra.mxu0 0
      %2607 = vmatprep.mubr.bf16.mxu0 0
      %2608 = vmatmul.mubr.bf16.gmra.mxu0 %v2570
      %v2609 = vpop.f32.mrf.mxu0
      %v2610 = vadd.f32 0.0, %v2609
      %v2611 = vpop.f32.mrf.mxu0
      %v2612 = vpop.f32.mrf.mxu0
      %v2613 = vadd.f32 0.0, %v2612
      %v2614 = vpop.f32.mrf.mxu0
      %2615 = vmatprep.mubr.bf16.mxu0 0
      %2616 = vmatmul.mubr.bf16.gmra.mxu0 %v2573
      %v2617 = vpop.f32.mrf.mxu0
      %v2618 = vadd.f32 0.0, %v2617
      %v2619 = vpop.f32.mrf.mxu0
      %v2620 = vpop.f32.mrf.mxu0
      %v2621 = vadd.f32 0.0, %v2620
      %v2622 = vpop.f32.mrf.mxu0
      %2623 = vdwg.mxu0
      %v2624 = vadd.f32 %v2455, %v2610
      %v2625 = vadd.f32 %v2458, %v2613
      %v2626 = vadd.f32 %v2463, %v2618
      %v2627 = vadd.f32 %v2466, %v2621
      %s2628 = scalar_lea.vmem %s5, 192
      %v2629 = vld [vmem:[%s2628] sm:$0xff]
      %v2630 = vld [vmem:[%s2628 + $0x8] sm:$0xff]
      %v2631 = vld [vmem:[%s2628 + $0x10] sm:$0xff]
      %v2632 = vld [vmem:[%s2628 + $0x18] sm:$0xff]
      %v2633 = vld [vmem:[%s2628 + $0x20] sm:$0xff]
      %v2634 = vld [vmem:[%s2628 + $0x28] sm:$0xff]
      %v2635 = vld [vmem:[%s2628 + $0x30] sm:$0xff]
      %v2636 = vld [vmem:[%s2628 + $0x38] sm:$0xff]
      %2637 = vmatprep.subr.mxu0 0.0
      %2638 = vmatpush1.msra.mxu0 0.0
      %2639 = vmatprep.subr.mxu0 0.0
      %2640 = vmatpush1.msra.mxu0 0.0
      %2641 = vmatprep.subr.mxu0 0.0
      %2642 = vmatpush1.msra.mxu0 0.0
      %2643 = vmatprep.subr.mxu0 0.0
      %2644 = vmatpush1.msra.mxu0 0.0
      %2645 = vmatprep.subr.mxu0 0.0
      %2646 = vmatpush1.msra.mxu0 0.0
      %2647 = vmatprep.subr.mxu0 0.0
      %2648 = vmatpush1.msra.mxu0 0.0
      %2649 = vmatprep.subr.mxu0 0.0
      %2650 = vmatpush1.msra.mxu0 0.0
      %2651 = vmatprep.subr.mxu0 0.0
      %2652 = vmatpush1.msra.mxu0 0.0
      %2653 = vmatprep.subr.mxu0 0.0
      %2654 = vmatpush1.msra.mxu0 %v2636
      %2655 = vmatprep.subr.mxu0 0.0
      %2656 = vmatpush1.msra.mxu0 %v2635
      %2657 = vmatprep.subr.mxu0 0.0
      %2658 = vmatpush1.msra.mxu0 %v2634
      %2659 = vmatprep.subr.mxu0 0.0
      %2660 = vmatpush1.msra.mxu0 %v2633
      %2661 = vmatprep.subr.mxu0 0.0
      %2662 = vmatpush1.msra.mxu0 %v2632
      %2663 = vmatprep.subr.mxu0 0.0
      %2664 = vmatpush1.msra.mxu0 %v2631
      %2665 = vmatprep.subr.mxu0 0.0
      %2666 = vmatpush1.msra.mxu0 %v2630
      %2667 = vmatprep.subr.mxu0 0.0
      %2668 = vmatpush1.msra.mxu0 %v2629
      %2669 = vmatprep.subr.mxu0 0.0
      %2670 = vmatpush2.msra.mxu0 0.0
      %2671 = vmatprep.subr.mxu0 0.0
      %2672 = vmatpush2.msra.mxu0 0.0
      %2673 = vmatprep.subr.mxu0 0.0
      %2674 = vmatpush2.msra.mxu0 0.0
      %2675 = vmatprep.subr.mxu0 0.0
      %2676 = vmatpush2.msra.mxu0 0.0
      %2677 = vmatprep.subr.mxu0 0.0
      %2678 = vmatpush2.msra.mxu0 0.0
      %2679 = vmatprep.subr.mxu0 0.0
      %2680 = vmatpush2.msra.mxu0 0.0
      %2681 = vmatprep.subr.mxu0 0.0
      %2682 = vmatpush2.msra.mxu0 0.0
      %2683 = vmatprep.subr.mxu0 0.0
      %2684 = vmatpush2.msra.mxu0 0.0
      %2685 = vmatprep.subr.mxu0 0.0
      %2686 = vmatpush2.msra.mxu0 0.0
      %2687 = vmatprep.subr.mxu0 0.0
      %2688 = vmatpush2.msra.mxu0 0.0
      %2689 = vmatprep.subr.mxu0 0.0
      %2690 = vmatpush2.msra.mxu0 0.0
      %2691 = vmatprep.subr.mxu0 0.0
      %2692 = vmatpush2.msra.mxu0 0.0
      %2693 = vmatprep.subr.mxu0 0.0
      %2694 = vmatpush2.msra.mxu0 0.0
      %2695 = vmatprep.subr.mxu0 0.0
      %2696 = vmatpush2.msra.mxu0 0.0
      %2697 = vmatprep.subr.mxu0 0.0
      %2698 = vmatpush2.msra.mxu0 0.0
      %2699 = vmatprep.subr.mxu0 0.0
      %2700 = vmatpush2.msra.mxu0 0.0
      %2701 = vmatprep.mubr.f32.mxu0 0.0
      %2702 = vmatmul.mubr.f32.gmra.mxu0 %v2163
      %v2703 = vpop.f32.mrf.mxu0
      %v2704 = vadd.f32 0.0, %v2703
      %v2705 = vpop.f32.mrf.mxu0
      %2706 = vmatprep.mubr.f32.mxu0 0.0
      %2707 = vmatmul.mubr.f32.gmra.mxu0 %v2166
      %v2708 = vpop.f32.mrf.mxu0
      %v2709 = vadd.f32 0.0, %v2708
      %v2710 = vpop.f32.mrf.mxu0
      %2711 = vdwg.mxu0
      %s2712 = scalar_lea.vmem %s4, 48
      %v2713 = vld [vmem:[%s2712] sm:$0xf]
      %v2714 = vld [vmem:[%s2712 + $0x4] sm:$0xf]
      %v2715 = vld [vmem:[%s2712 + $0x8] sm:$0xf]
      %v2716 = vld [vmem:[%s2712 + $0xc] sm:$0xf]
      %v2717 = vpack.c.bf16 %v2709, %v2704
      %v2722 = vunpack.c.l.b16 %v2713
      %v2723 = vunpack.c.l.b16 %v2714
      %v2724 = vunpack.c.l.b16 %v2715
      %v2725 = vunpack.c.l.b16 %v2716
      %v2726 = vpack.c.b16 %v2723, %v2722
      %v2727 = vpack.c.b16 %v2725, %v2724
      %v2729 = vsel %vm2348, %v2726, 0
      %v2732 = vsel %vm2348, %v2727, 0
      %2734 = vmatprep.subr.bf16.mxu0 0
      %2735 = vmatpush1.bf16.msra.mxu0 0
      %2736 = vmatprep.subr.bf16.mxu0 0
      %2737 = vmatpush1.bf16.msra.mxu0 0
      %2738 = vmatprep.subr.bf16.mxu0 0
      %2739 = vmatpush1.bf16.msra.mxu0 0
      %2740 = vmatprep.subr.bf16.mxu0 0
      %2741 = vmatpush1.bf16.msra.mxu0 0
      %2742 = vmatprep.subr.bf16.mxu0 0
      %2743 = vmatpush1.bf16.msra.mxu0 0
      %2744 = vmatprep.subr.bf16.mxu0 0
      %2745 = vmatpush1.bf16.msra.mxu0 0
      %2746 = vmatprep.subr.bf16.mxu0 0
      %2747 = vmatpush1.bf16.msra.mxu0 0
      %2748 = vmatprep.subr.bf16.mxu0 0
      %2749 = vmatpush1.bf16.msra.mxu0 %v2717
      %2750 = vmatprep.subr.bf16.mxu0 0
      %2751 = vmatpush2.bf16.msra.mxu0 0
      %2752 = vmatprep.subr.bf16.mxu0 0
      %2753 = vmatpush2.bf16.msra.mxu0 0
      %2754 = vmatprep.subr.bf16.mxu0 0
      %2755 = vmatpush2.bf16.msra.mxu0 0
      %2756 = vmatprep.subr.bf16.mxu0 0
      %2757 = vmatpush2.bf16.msra.mxu0 0
      %2758 = vmatprep.subr.bf16.mxu0 0
      %2759 = vmatpush2.bf16.msra.mxu0 0
      %2760 = vmatprep.subr.bf16.mxu0 0
      %2761 = vmatpush2.bf16.msra.mxu0 0
      %2762 = vmatprep.subr.bf16.mxu0 0
      %2763 = vmatpush2.bf16.msra.mxu0 0
      %2764 = vmatprep.subr.bf16.mxu0 0
      %2765 = vmatpush2.bf16.msra.mxu0 0
      %2766 = vmatprep.mubr.bf16.mxu0 0
      %2767 = vmatmul.mubr.bf16.gmra.mxu0 %v2729
      %v2768 = vpop.f32.mrf.mxu0
      %v2769 = vadd.f32 0.0, %v2768
      %v2770 = vpop.f32.mrf.mxu0
      %v2771 = vpop.f32.mrf.mxu0
      %v2772 = vadd.f32 0.0, %v2771
      %v2773 = vpop.f32.mrf.mxu0
      %2774 = vmatprep.mubr.bf16.mxu0 0
      %2775 = vmatmul.mubr.bf16.gmra.mxu0 %v2732
      %v2776 = vpop.f32.mrf.mxu0
      %v2777 = vadd.f32 0.0, %v2776
      %v2778 = vpop.f32.mrf.mxu0
      %v2779 = vpop.f32.mrf.mxu0
      %v2780 = vadd.f32 0.0, %v2779
      %v2781 = vpop.f32.mrf.mxu0
      %2782 = vdwg.mxu0
      %v2783 = vadd.f32 %v2624, %v2769
      %v2784 = vadd.f32 %v2625, %v2772
      %v2785 = vadd.f32 %v2626, %v2777
      %v2786 = vadd.f32 %v2627, %v2780
      %s2787 = scalar_lea.vmem %s5, 256
      %v2788 = vld [vmem:[%s2787] sm:$0xff]
      %v2789 = vld [vmem:[%s2787 + $0x8] sm:$0xff]
      %v2790 = vld [vmem:[%s2787 + $0x10] sm:$0xff]
      %v2791 = vld [vmem:[%s2787 + $0x18] sm:$0xff]
      %v2792 = vld [vmem:[%s2787 + $0x20] sm:$0xff]
      %v2793 = vld [vmem:[%s2787 + $0x28] sm:$0xff]
      %v2794 = vld [vmem:[%s2787 + $0x30] sm:$0xff]
      %v2795 = vld [vmem:[%s2787 + $0x38] sm:$0xff]
      %2796 = vmatprep.subr.mxu0 0.0
      %2797 = vmatpush1.msra.mxu0 0.0
      %2798 = vmatprep.subr.mxu0 0.0
      %2799 = vmatpush1.msra.mxu0 0.0
      %2800 = vmatprep.subr.mxu0 0.0
      %2801 = vmatpush1.msra.mxu0 0.0
      %2802 = vmatprep.subr.mxu0 0.0
      %2803 = vmatpush1.msra.mxu0 0.0
      %2804 = vmatprep.subr.mxu0 0.0
      %2805 = vmatpush1.msra.mxu0 0.0
      %2806 = vmatprep.subr.mxu0 0.0
      %2807 = vmatpush1.msra.mxu0 0.0
      %2808 = vmatprep.subr.mxu0 0.0
      %2809 = vmatpush1.msra.mxu0 0.0
      %2810 = vmatprep.subr.mxu0 0.0
      %2811 = vmatpush1.msra.mxu0 0.0
      %2812 = vmatprep.subr.mxu0 0.0
      %2813 = vmatpush1.msra.mxu0 %v2795
      %2814 = vmatprep.subr.mxu0 0.0
      %2815 = vmatpush1.msra.mxu0 %v2794
      %2816 = vmatprep.subr.mxu0 0.0
      %2817 = vmatpush1.msra.mxu0 %v2793
      %2818 = vmatprep.subr.mxu0 0.0
      %2819 = vmatpush1.msra.mxu0 %v2792
      %2820 = vmatprep.subr.mxu0 0.0
      %2821 = vmatpush1.msra.mxu0 %v2791
      %2822 = vmatprep.subr.mxu0 0.0
      %2823 = vmatpush1.msra.mxu0 %v2790
      %2824 = vmatprep.subr.mxu0 0.0
      %2825 = vmatpush1.msra.mxu0 %v2789
      %2826 = vmatprep.subr.mxu0 0.0
      %2827 = vmatpush1.msra.mxu0 %v2788
      %2828 = vmatprep.subr.mxu0 0.0
      %2829 = vmatpush2.msra.mxu0 0.0
      %2830 = vmatprep.subr.mxu0 0.0
      %2831 = vmatpush2.msra.mxu0 0.0
      %2832 = vmatprep.subr.mxu0 0.0
      %2833 = vmatpush2.msra.mxu0 0.0
      %2834 = vmatprep.subr.mxu0 0.0
      %2835 = vmatpush2.msra.mxu0 0.0
      %2836 = vmatprep.subr.mxu0 0.0
      %2837 = vmatpush2.msra.mxu0 0.0
      %2838 = vmatprep.subr.mxu0 0.0
      %2839 = vmatpush2.msra.mxu0 0.0
      %2840 = vmatprep.subr.mxu0 0.0
      %2841 = vmatpush2.msra.mxu0 0.0
      %2842 = vmatprep.subr.mxu0 0.0
      %2843 = vmatpush2.msra.mxu0 0.0
      %2844 = vmatprep.subr.mxu0 0.0
      %2845 = vmatpush2.msra.mxu0 0.0
      %2846 = vmatprep.subr.mxu0 0.0
      %2847 = vmatpush2.msra.mxu0 0.0
      %2848 = vmatprep.subr.mxu0 0.0
      %2849 = vmatpush2.msra.mxu0 0.0
      %2850 = vmatprep.subr.mxu0 0.0
      %2851 = vmatpush2.msra.mxu0 0.0
      %2852 = vmatprep.subr.mxu0 0.0
      %2853 = vmatpush2.msra.mxu0 0.0
      %2854 = vmatprep.subr.mxu0 0.0
      %2855 = vmatpush2.msra.mxu0 0.0
      %2856 = vmatprep.subr.mxu0 0.0
      %2857 = vmatpush2.msra.mxu0 0.0
      %2858 = vmatprep.subr.mxu0 0.0
      %2859 = vmatpush2.msra.mxu0 0.0
      %2860 = vmatprep.mubr.f32.mxu0 0.0
      %2861 = vmatmul.mubr.f32.gmra.mxu0 %v2163
      %v2862 = vpop.f32.mrf.mxu0
      %v2863 = vadd.f32 0.0, %v2862
      %v2864 = vpop.f32.mrf.mxu0
      %2865 = vmatprep.mubr.f32.mxu0 0.0
      %2866 = vmatmul.mubr.f32.gmra.mxu0 %v2166
      %v2867 = vpop.f32.mrf.mxu0
      %v2868 = vadd.f32 0.0, %v2867
      %v2869 = vpop.f32.mrf.mxu0
      %2870 = vdwg.mxu0
      %s2871 = scalar_lea.vmem %s4, 64
      %v2872 = vld [vmem:[%s2871] sm:$0xf]
      %v2873 = vld [vmem:[%s2871 + $0x4] sm:$0xf]
      %v2874 = vld [vmem:[%s2871 + $0x8] sm:$0xf]
      %v2875 = vld [vmem:[%s2871 + $0xc] sm:$0xf]
      %v2876 = vpack.c.bf16 %v2868, %v2863
      %v2881 = vunpack.c.l.b16 %v2872
      %v2882 = vunpack.c.l.b16 %v2873
      %v2883 = vunpack.c.l.b16 %v2874
      %v2884 = vunpack.c.l.b16 %v2875
      %v2885 = vpack.c.b16 %v2882, %v2881
      %v2886 = vpack.c.b16 %v2884, %v2883
      %v2888 = vsel %vm2348, %v2885, 0
      %v2891 = vsel %vm2348, %v2886, 0
      %2893 = vmatprep.subr.bf16.mxu0 0
      %2894 = vmatpush1.bf16.msra.mxu0 0
      %2895 = vmatprep.subr.bf16.mxu0 0
      %2896 = vmatpush1.bf16.msra.mxu0 0
      %2897 = vmatprep.subr.bf16.mxu0 0
      %2898 = vmatpush1.bf16.msra.mxu0 0
      %2899 = vmatprep.subr.bf16.mxu0 0
      %2900 = vmatpush1.bf16.msra.mxu0 0
      %2901 = vmatprep.subr.bf16.mxu0 0
      %2902 = vmatpush1.bf16.msra.mxu0 0
      %2903 = vmatprep.subr.bf16.mxu0 0
      %2904 = vmatpush1.bf16.msra.mxu0 0
      %2905 = vmatprep.subr.bf16.mxu0 0
      %2906 = vmatpush1.bf16.msra.mxu0 0
      %2907 = vmatprep.subr.bf16.mxu0 0
      %2908 = vmatpush1.bf16.msra.mxu0 %v2876
      %2909 = vmatprep.subr.bf16.mxu0 0
      %2910 = vmatpush2.bf16.msra.mxu0 0
      %2911 = vmatprep.subr.bf16.mxu0 0
      %2912 = vmatpush2.bf16.msra.mxu0 0
      %2913 = vmatprep.subr.bf16.mxu0 0
      %2914 = vmatpush2.bf16.msra.mxu0 0
      %2915 = vmatprep.subr.bf16.mxu0 0
      %2916 = vmatpush2.bf16.msra.mxu0 0
      %2917 = vmatprep.subr.bf16.mxu0 0
      %2918 = vmatpush2.bf16.msra.mxu0 0
      %2919 = vmatprep.subr.bf16.mxu0 0
      %2920 = vmatpush2.bf16.msra.mxu0 0
      %2921 = vmatprep.subr.bf16.mxu0 0
      %2922 = vmatpush2.bf16.msra.mxu0 0
      %2923 = vmatprep.subr.bf16.mxu0 0
      %2924 = vmatpush2.bf16.msra.mxu0 0
      %2925 = vmatprep.mubr.bf16.mxu0 0
      %2926 = vmatmul.mubr.bf16.gmra.mxu0 %v2888
      %v2927 = vpop.f32.mrf.mxu0
      %v2928 = vadd.f32 0.0, %v2927
      %v2929 = vpop.f32.mrf.mxu0
      %v2930 = vpop.f32.mrf.mxu0
      %v2931 = vadd.f32 0.0, %v2930
      %v2932 = vpop.f32.mrf.mxu0
      %2933 = vmatprep.mubr.bf16.mxu0 0
      %2934 = vmatmul.mubr.bf16.gmra.mxu0 %v2891
      %v2935 = vpop.f32.mrf.mxu0
      %v2936 = vadd.f32 0.0, %v2935
      %v2937 = vpop.f32.mrf.mxu0
      %v2938 = vpop.f32.mrf.mxu0
      %v2939 = vadd.f32 0.0, %v2938
      %v2940 = vpop.f32.mrf.mxu0
      %2941 = vdwg.mxu0
      %v2942 = vadd.f32 %v2783, %v2928
      %v2943 = vadd.f32 %v2784, %v2931
      %v2944 = vadd.f32 %v2785, %v2936
      %v2945 = vadd.f32 %v2786, %v2939
      %s2946 = scalar_lea.vmem %s5, 320
      %v2947 = vld [vmem:[%s2946] sm:$0xff]
      %v2948 = vld [vmem:[%s2946 + $0x8] sm:$0xff]
      %v2949 = vld [vmem:[%s2946 + $0x10] sm:$0xff]
      %v2950 = vld [vmem:[%s2946 + $0x18] sm:$0xff]
      %v2951 = vld [vmem:[%s2946 + $0x20] sm:$0xff]
      %v2952 = vld [vmem:[%s2946 + $0x28] sm:$0xff]
      %v2953 = vld [vmem:[%s2946 + $0x30] sm:$0xff]
      %v2954 = vld [vmem:[%s2946 + $0x38] sm:$0xff]
      %2955 = vmatprep.subr.mxu0 0.0
      %2956 = vmatpush1.msra.mxu0 0.0
      %2957 = vmatprep.subr.mxu0 0.0
      %2958 = vmatpush1.msra.mxu0 0.0
      %2959 = vmatprep.subr.mxu0 0.0
      %2960 = vmatpush1.msra.mxu0 0.0
      %2961 = vmatprep.subr.mxu0 0.0
      %2962 = vmatpush1.msra.mxu0 0.0
      %2963 = vmatprep.subr.mxu0 0.0
      %2964 = vmatpush1.msra.mxu0 0.0
      %2965 = vmatprep.subr.mxu0 0.0
      %2966 = vmatpush1.msra.mxu0 0.0
      %2967 = vmatprep.subr.mxu0 0.0
      %2968 = vmatpush1.msra.mxu0 0.0
      %2969 = vmatprep.subr.mxu0 0.0
      %2970 = vmatpush1.msra.mxu0 0.0
      %2971 = vmatprep.subr.mxu0 0.0
      %2972 = vmatpush1.msra.mxu0 %v2954
      %2973 = vmatprep.subr.mxu0 0.0
      %2974 = vmatpush1.msra.mxu0 %v2953
      %2975 = vmatprep.subr.mxu0 0.0
      %2976 = vmatpush1.msra.mxu0 %v2952
      %2977 = vmatprep.subr.mxu0 0.0
      %2978 = vmatpush1.msra.mxu0 %v2951
      %2979 = vmatprep.subr.mxu0 0.0
      %2980 = vmatpush1.msra.mxu0 %v2950
      %2981 = vmatprep.subr.mxu0 0.0
      %2982 = vmatpush1.msra.mxu0 %v2949
      %2983 = vmatprep.subr.mxu0 0.0
      %2984 = vmatpush1.msra.mxu0 %v2948
      %2985 = vmatprep.subr.mxu0 0.0
      %2986 = vmatpush1.msra.mxu0 %v2947
      %2987 = vmatprep.subr.mxu0 0.0
      %2988 = vmatpush2.msra.mxu0 0.0
      %2989 = vmatprep.subr.mxu0 0.0
      %2990 = vmatpush2.msra.mxu0 0.0
      %2991 = vmatprep.subr.mxu0 0.0
      %2992 = vmatpush2.msra.mxu0 0.0
      %2993 = vmatprep.subr.mxu0 0.0
      %2994 = vmatpush2.msra.mxu0 0.0
      %2995 = vmatprep.subr.mxu0 0.0
      %2996 = vmatpush2.msra.mxu0 0.0
      %2997 = vmatprep.subr.mxu0 0.0
      %2998 = vmatpush2.msra.mxu0 0.0
      %2999 = vmatprep.subr.mxu0 0.0
      %3000 = vmatpush2.msra.mxu0 0.0
      %3001 = vmatprep.subr.mxu0 0.0
      %3002 = vmatpush2.msra.mxu0 0.0
      %3003 = vmatprep.subr.mxu0 0.0
      %3004 = vmatpush2.msra.mxu0 0.0
      %3005 = vmatprep.subr.mxu0 0.0
      %3006 = vmatpush2.msra.mxu0 0.0
      %3007 = vmatprep.subr.mxu0 0.0
      %3008 = vmatpush2.msra.mxu0 0.0
      %3009 = vmatprep.subr.mxu0 0.0
      %3010 = vmatpush2.msra.mxu0 0.0
      %3011 = vmatprep.subr.mxu0 0.0
      %3012 = vmatpush2.msra.mxu0 0.0
      %3013 = vmatprep.subr.mxu0 0.0
      %3014 = vmatpush2.msra.mxu0 0.0
      %3015 = vmatprep.subr.mxu0 0.0
      %3016 = vmatpush2.msra.mxu0 0.0
      %3017 = vmatprep.subr.mxu0 0.0
      %3018 = vmatpush2.msra.mxu0 0.0
      %3019 = vmatprep.mubr.f32.mxu0 0.0
      %3020 = vmatmul.mubr.f32.gmra.mxu0 %v2163
      %v3021 = vpop.f32.mrf.mxu0
      %v3022 = vadd.f32 0.0, %v3021
      %v3023 = vpop.f32.mrf.mxu0
      %3024 = vmatprep.mubr.f32.mxu0 0.0
      %3025 = vmatmul.mubr.f32.gmra.mxu0 %v2166
      %v3026 = vpop.f32.mrf.mxu0
      %v3027 = vadd.f32 0.0, %v3026
      %v3028 = vpop.f32.mrf.mxu0
      %3029 = vdwg.mxu0
      %s3030 = scalar_lea.vmem %s4, 80
      %v3031 = vld [vmem:[%s3030] sm:$0xf]
      %v3032 = vld [vmem:[%s3030 + $0x4] sm:$0xf]
      %v3033 = vld [vmem:[%s3030 + $0x8] sm:$0xf]
      %v3034 = vld [vmem:[%s3030 + $0xc] sm:$0xf]
      %v3035 = vpack.c.bf16 %v3027, %v3022
      %v3040 = vunpack.c.l.b16 %v3031
      %v3041 = vunpack.c.l.b16 %v3032
      %v3042 = vunpack.c.l.b16 %v3033
      %v3043 = vunpack.c.l.b16 %v3034
      %v3044 = vpack.c.b16 %v3041, %v3040
      %v3045 = vpack.c.b16 %v3043, %v3042
      %v3047 = vsel %vm2348, %v3044, 0
      %v3050 = vsel %vm2348, %v3045, 0
      %3052 = vmatprep.subr.bf16.mxu0 0
      %3053 = vmatpush1.bf16.msra.mxu0 0
      %3054 = vmatprep.subr.bf16.mxu0 0
      %3055 = vmatpush1.bf16.msra.mxu0 0
      %3056 = vmatprep.subr.bf16.mxu0 0
      %3057 = vmatpush1.bf16.msra.mxu0 0
      %3058 = vmatprep.subr.bf16.mxu0 0
      %3059 = vmatpush1.bf16.msra.mxu0 0
      %3060 = vmatprep.subr.bf16.mxu0 0
      %3061 = vmatpush1.bf16.msra.mxu0 0
      %3062 = vmatprep.subr.bf16.mxu0 0
      %3063 = vmatpush1.bf16.msra.mxu0 0
      %3064 = vmatprep.subr.bf16.mxu0 0
      %3065 = vmatpush1.bf16.msra.mxu0 0
      %3066 = vmatprep.subr.bf16.mxu0 0
      %3067 = vmatpush1.bf16.msra.mxu0 %v3035
      %3068 = vmatprep.subr.bf16.mxu0 0
      %3069 = vmatpush2.bf16.msra.mxu0 0
      %3070 = vmatprep.subr.bf16.mxu0 0
      %3071 = vmatpush2.bf16.msra.mxu0 0
      %3072 = vmatprep.subr.bf16.mxu0 0
      %3073 = vmatpush2.bf16.msra.mxu0 0
      %3074 = vmatprep.subr.bf16.mxu0 0
      %3075 = vmatpush2.bf16.msra.mxu0 0
      %3076 = vmatprep.subr.bf16.mxu0 0
      %3077 = vmatpush2.bf16.msra.mxu0 0
      %3078 = vmatprep.subr.bf16.mxu0 0
      %3079 = vmatpush2.bf16.msra.mxu0 0
      %3080 = vmatprep.subr.bf16.mxu0 0
      %3081 = vmatpush2.bf16.msra.mxu0 0
      %3082 = vmatprep.subr.bf16.mxu0 0
      %3083 = vmatpush2.bf16.msra.mxu0 0
      %3084 = vmatprep.mubr.bf16.mxu0 0
      %3085 = vmatmul.mubr.bf16.gmra.mxu0 %v3047
      %v3086 = vpop.f32.mrf.mxu0
      %v3087 = vadd.f32 0.0, %v3086
      %v3088 = vpop.f32.mrf.mxu0
      %v3089 = vpop.f32.mrf.mxu0
      %v3090 = vadd.f32 0.0, %v3089
      %v3091 = vpop.f32.mrf.mxu0
      %3092 = vmatprep.mubr.bf16.mxu0 0
      %3093 = vmatmul.mubr.bf16.gmra.mxu0 %v3050
      %v3094 = vpop.f32.mrf.mxu0
      %v3095 = vadd.f32 0.0, %v3094
      %v3096 = vpop.f32.mrf.mxu0
      %v3097 = vpop.f32.mrf.mxu0
      %v3098 = vadd.f32 0.0, %v3097
      %v3099 = vpop.f32.mrf.mxu0
      %3100 = vdwg.mxu0
      %v3101 = vadd.f32 %v2942, %v3087
      %v3102 = vadd.f32 %v2943, %v3090
      %v3103 = vadd.f32 %v2944, %v3095
      %v3104 = vadd.f32 %v2945, %v3098
      %s3105 = scalar_lea.vmem %s5, 384
      %v3106 = vld [vmem:[%s3105] sm:$0xff]
      %v3107 = vld [vmem:[%s3105 + $0x8] sm:$0xff]
      %v3108 = vld [vmem:[%s3105 + $0x10] sm:$0xff]
      %v3109 = vld [vmem:[%s3105 + $0x18] sm:$0xff]
      %v3110 = vld [vmem:[%s3105 + $0x20] sm:$0xff]
      %v3111 = vld [vmem:[%s3105 + $0x28] sm:$0xff]
      %v3112 = vld [vmem:[%s3105 + $0x30] sm:$0xff]
      %v3113 = vld [vmem:[%s3105 + $0x38] sm:$0xff]
      %3114 = vmatprep.subr.mxu0 0.0
      %3115 = vmatpush1.msra.mxu0 0.0
      %3116 = vmatprep.subr.mxu0 0.0
      %3117 = vmatpush1.msra.mxu0 0.0
      %3118 = vmatprep.subr.mxu0 0.0
      %3119 = vmatpush1.msra.mxu0 0.0
      %3120 = vmatprep.subr.mxu0 0.0
      %3121 = vmatpush1.msra.mxu0 0.0
      %3122 = vmatprep.subr.mxu0 0.0
      %3123 = vmatpush1.msra.mxu0 0.0
      %3124 = vmatprep.subr.mxu0 0.0
      %3125 = vmatpush1.msra.mxu0 0.0
      %3126 = vmatprep.subr.mxu0 0.0
      %3127 = vmatpush1.msra.mxu0 0.0
      %3128 = vmatprep.subr.mxu0 0.0
      %3129 = vmatpush1.msra.mxu0 0.0
      %3130 = vmatprep.subr.mxu0 0.0
      %3131 = vmatpush1.msra.mxu0 %v3113
      %3132 = vmatprep.subr.mxu0 0.0
      %3133 = vmatpush1.msra.mxu0 %v3112
      %3134 = vmatprep.subr.mxu0 0.0
      %3135 = vmatpush1.msra.mxu0 %v3111
      %3136 = vmatprep.subr.mxu0 0.0
      %3137 = vmatpush1.msra.mxu0 %v3110
      %3138 = vmatprep.subr.mxu0 0.0
      %3139 = vmatpush1.msra.mxu0 %v3109
      %3140 = vmatprep.subr.mxu0 0.0
      %3141 = vmatpush1.msra.mxu0 %v3108
      %3142 = vmatprep.subr.mxu0 0.0
      %3143 = vmatpush1.msra.mxu0 %v3107
      %3144 = vmatprep.subr.mxu0 0.0
      %3145 = vmatpush1.msra.mxu0 %v3106
      %3146 = vmatprep.subr.mxu0 0.0
      %3147 = vmatpush2.msra.mxu0 0.0
      %3148 = vmatprep.subr.mxu0 0.0
      %3149 = vmatpush2.msra.mxu0 0.0
      %3150 = vmatprep.subr.mxu0 0.0
      %3151 = vmatpush2.msra.mxu0 0.0
      %3152 = vmatprep.subr.mxu0 0.0
      %3153 = vmatpush2.msra.mxu0 0.0
      %3154 = vmatprep.subr.mxu0 0.0
      %3155 = vmatpush2.msra.mxu0 0.0
      %3156 = vmatprep.subr.mxu0 0.0
      %3157 = vmatpush2.msra.mxu0 0.0
      %3158 = vmatprep.subr.mxu0 0.0
      %3159 = vmatpush2.msra.mxu0 0.0
      %3160 = vmatprep.subr.mxu0 0.0
      %3161 = vmatpush2.msra.mxu0 0.0
      %3162 = vmatprep.subr.mxu0 0.0
      %3163 = vmatpush2.msra.mxu0 0.0
      %3164 = vmatprep.subr.mxu0 0.0
      %3165 = vmatpush2.msra.mxu0 0.0
      %3166 = vmatprep.subr.mxu0 0.0
      %3167 = vmatpush2.msra.mxu0 0.0
      %3168 = vmatprep.subr.mxu0 0.0
      %3169 = vmatpush2.msra.mxu0 0.0
      %3170 = vmatprep.subr.mxu0 0.0
      %3171 = vmatpush2.msra.mxu0 0.0
      %3172 = vmatprep.subr.mxu0 0.0
      %3173 = vmatpush2.msra.mxu0 0.0
      %3174 = vmatprep.subr.mxu0 0.0
      %3175 = vmatpush2.msra.mxu0 0.0
      %3176 = vmatprep.subr.mxu0 0.0
      %3177 = vmatpush2.msra.mxu0 0.0
      %3178 = vmatprep.mubr.f32.mxu0 0.0
      %3179 = vmatmul.mubr.f32.gmra.mxu0 %v2163
      %v3180 = vpop.f32.mrf.mxu0
      %v3181 = vadd.f32 0.0, %v3180
      %v3182 = vpop.f32.mrf.mxu0
      %3183 = vmatprep.mubr.f32.mxu0 0.0
      %3184 = vmatmul.mubr.f32.gmra.mxu0 %v2166
      %v3185 = vpop.f32.mrf.mxu0
      %v3186 = vadd.f32 0.0, %v3185
      %v3187 = vpop.f32.mrf.mxu0
      %3188 = vdwg.mxu0
      %s3189 = scalar_lea.vmem %s4, 96
      %v3190 = vld [vmem:[%s3189] sm:$0xf]
      %v3191 = vld [vmem:[%s3189 + $0x4] sm:$0xf]
      %v3192 = vld [vmem:[%s3189 + $0x8] sm:$0xf]
      %v3193 = vld [vmem:[%s3189 + $0xc] sm:$0xf]
      %v3194 = vpack.c.bf16 %v3186, %v3181
      %v3199 = vunpack.c.l.b16 %v3190
      %v3200 = vunpack.c.l.b16 %v3191
      %v3201 = vunpack.c.l.b16 %v3192
      %v3202 = vunpack.c.l.b16 %v3193
      %v3203 = vpack.c.b16 %v3200, %v3199
      %v3204 = vpack.c.b16 %v3202, %v3201
      %v3206 = vsel %vm2348, %v3203, 0
      %v3209 = vsel %vm2348, %v3204, 0
      %3211 = vmatprep.subr.bf16.mxu0 0
      %3212 = vmatpush1.bf16.msra.mxu0 0
      %3213 = vmatprep.subr.bf16.mxu0 0
      %3214 = vmatpush1.bf16.msra.mxu0 0
      %3215 = vmatprep.subr.bf16.mxu0 0
      %3216 = vmatpush1.bf16.msra.mxu0 0
      %3217 = vmatprep.subr.bf16.mxu0 0
      %3218 = vmatpush1.bf16.msra.mxu0 0
      %3219 = vmatprep.subr.bf16.mxu0 0
      %3220 = vmatpush1.bf16.msra.mxu0 0
      %3221 = vmatprep.subr.bf16.mxu0 0
      %3222 = vmatpush1.bf16.msra.mxu0 0
      %3223 = vmatprep.subr.bf16.mxu0 0
      %3224 = vmatpush1.bf16.msra.mxu0 0
      %3225 = vmatprep.subr.bf16.mxu0 0
      %3226 = vmatpush1.bf16.msra.mxu0 %v3194
      %3227 = vmatprep.subr.bf16.mxu0 0
      %3228 = vmatpush2.bf16.msra.mxu0 0
      %3229 = vmatprep.subr.bf16.mxu0 0
      %3230 = vmatpush2.bf16.msra.mxu0 0
      %3231 = vmatprep.subr.bf16.mxu0 0
      %3232 = vmatpush2.bf16.msra.mxu0 0
      %3233 = vmatprep.subr.bf16.mxu0 0
      %3234 = vmatpush2.bf16.msra.mxu0 0
      %3235 = vmatprep.subr.bf16.mxu0 0
      %3236 = vmatpush2.bf16.msra.mxu0 0
      %3237 = vmatprep.subr.bf16.mxu0 0
      %3238 = vmatpush2.bf16.msra.mxu0 0
      %3239 = vmatprep.subr.bf16.mxu0 0
      %3240 = vmatpush2.bf16.msra.mxu0 0
      %3241 = vmatprep.subr.bf16.mxu0 0
      %3242 = vmatpush2.bf16.msra.mxu0 0
      %3243 = vmatprep.mubr.bf16.mxu0 0
      %3244 = vmatmul.mubr.bf16.gmra.mxu0 %v3206
      %v3245 = vpop.f32.mrf.mxu0
      %v3246 = vadd.f32 0.0, %v3245
      %v3247 = vpop.f32.mrf.mxu0
      %v3248 = vpop.f32.mrf.mxu0
      %v3249 = vadd.f32 0.0, %v3248
      %v3250 = vpop.f32.mrf.mxu0
      %3251 = vmatprep.mubr.bf16.mxu0 0
      %3252 = vmatmul.mubr.bf16.gmra.mxu0 %v3209
      %v3253 = vpop.f32.mrf.mxu0
      %v3254 = vadd.f32 0.0, %v3253
      %v3255 = vpop.f32.mrf.mxu0
      %v3256 = vpop.f32.mrf.mxu0
      %v3257 = vadd.f32 0.0, %v3256
      %v3258 = vpop.f32.mrf.mxu0
      %3259 = vdwg.mxu0
      %v3260 = vadd.f32 %v3101, %v3246
      %v3261 = vadd.f32 %v3102, %v3249
      %v3262 = vadd.f32 %v3103, %v3254
      %v3263 = vadd.f32 %v3104, %v3257
      %s3264 = scalar_lea.vmem %s5, 448
      %v3265 = vld [vmem:[%s3264] sm:$0xff]
      %v3266 = vld [vmem:[%s3264 + $0x8] sm:$0xff]
      %v3267 = vld [vmem:[%s3264 + $0x10] sm:$0xff]
      %v3268 = vld [vmem:[%s3264 + $0x18] sm:$0xff]
      %v3269 = vld [vmem:[%s3264 + $0x20] sm:$0xff]
      %v3270 = vld [vmem:[%s3264 + $0x28] sm:$0xff]
      %v3271 = vld [vmem:[%s3264 + $0x30] sm:$0xff]
      %v3272 = vld [vmem:[%s3264 + $0x38] sm:$0xff]
      %3273 = vmatprep.subr.mxu0 0.0
      %3274 = vmatpush1.msra.mxu0 0.0
      %3275 = vmatprep.subr.mxu0 0.0
      %3276 = vmatpush1.msra.mxu0 0.0
      %3277 = vmatprep.subr.mxu0 0.0
      %3278 = vmatpush1.msra.mxu0 0.0
      %3279 = vmatprep.subr.mxu0 0.0
      %3280 = vmatpush1.msra.mxu0 0.0
      %3281 = vmatprep.subr.mxu0 0.0
      %3282 = vmatpush1.msra.mxu0 0.0
      %3283 = vmatprep.subr.mxu0 0.0
      %3284 = vmatpush1.msra.mxu0 0.0
      %3285 = vmatprep.subr.mxu0 0.0
      %3286 = vmatpush1.msra.mxu0 0.0
      %3287 = vmatprep.subr.mxu0 0.0
      %3288 = vmatpush1.msra.mxu0 0.0
      %3289 = vmatprep.subr.mxu0 0.0
      %3290 = vmatpush1.msra.mxu0 %v3272
      %3291 = vmatprep.subr.mxu0 0.0
      %3292 = vmatpush1.msra.mxu0 %v3271
      %3293 = vmatprep.subr.mxu0 0.0
      %3294 = vmatpush1.msra.mxu0 %v3270
      %3295 = vmatprep.subr.mxu0 0.0
      %3296 = vmatpush1.msra.mxu0 %v3269
      %3297 = vmatprep.subr.mxu0 0.0
      %3298 = vmatpush1.msra.mxu0 %v3268
      %3299 = vmatprep.subr.mxu0 0.0
      %3300 = vmatpush1.msra.mxu0 %v3267
      %3301 = vmatprep.subr.mxu0 0.0
      %3302 = vmatpush1.msra.mxu0 %v3266
      %3303 = vmatprep.subr.mxu0 0.0
      %3304 = vmatpush1.msra.mxu0 %v3265
      %3305 = vmatprep.subr.mxu0 0.0
      %3306 = vmatpush2.msra.mxu0 0.0
      %3307 = vmatprep.subr.mxu0 0.0
      %3308 = vmatpush2.msra.mxu0 0.0
      %3309 = vmatprep.subr.mxu0 0.0
      %3310 = vmatpush2.msra.mxu0 0.0
      %3311 = vmatprep.subr.mxu0 0.0
      %3312 = vmatpush2.msra.mxu0 0.0
      %3313 = vmatprep.subr.mxu0 0.0
      %3314 = vmatpush2.msra.mxu0 0.0
      %3315 = vmatprep.subr.mxu0 0.0
      %3316 = vmatpush2.msra.mxu0 0.0
      %3317 = vmatprep.subr.mxu0 0.0
      %3318 = vmatpush2.msra.mxu0 0.0
      %3319 = vmatprep.subr.mxu0 0.0
      %3320 = vmatpush2.msra.mxu0 0.0
      %3321 = vmatprep.subr.mxu0 0.0
      %3322 = vmatpush2.msra.mxu0 0.0
      %3323 = vmatprep.subr.mxu0 0.0
      %3324 = vmatpush2.msra.mxu0 0.0
      %3325 = vmatprep.subr.mxu0 0.0
      %3326 = vmatpush2.msra.mxu0 0.0
      %3327 = vmatprep.subr.mxu0 0.0
      %3328 = vmatpush2.msra.mxu0 0.0
      %3329 = vmatprep.subr.mxu0 0.0
      %3330 = vmatpush2.msra.mxu0 0.0
      %3331 = vmatprep.subr.mxu0 0.0
      %3332 = vmatpush2.msra.mxu0 0.0
      %3333 = vmatprep.subr.mxu0 0.0
      %3334 = vmatpush2.msra.mxu0 0.0
      %3335 = vmatprep.subr.mxu0 0.0
      %3336 = vmatpush2.msra.mxu0 0.0
      %3337 = vmatprep.mubr.f32.mxu0 0.0
      %3338 = vmatmul.mubr.f32.gmra.mxu0 %v2163
      %v3339 = vpop.f32.mrf.mxu0
      %v3340 = vadd.f32 0.0, %v3339
      %v3341 = vpop.f32.mrf.mxu0
      %3342 = vmatprep.mubr.f32.mxu0 0.0
      %3343 = vmatmul.mubr.f32.gmra.mxu0 %v2166
      %v3344 = vpop.f32.mrf.mxu0
      %v3345 = vadd.f32 0.0, %v3344
      %v3346 = vpop.f32.mrf.mxu0
      %3347 = vdwg.mxu0
      %s3348 = scalar_lea.vmem %s4, 112
      %v3349 = vld [vmem:[%s3348] sm:$0xf]
      %v3350 = vld [vmem:[%s3348 + $0x4] sm:$0xf]
      %v3351 = vld [vmem:[%s3348 + $0x8] sm:$0xf]
      %v3352 = vld [vmem:[%s3348 + $0xc] sm:$0xf]
      %v3353 = vpack.c.bf16 %v3345, %v3340
      %v3358 = vunpack.c.l.b16 %v3349
      %v3359 = vunpack.c.l.b16 %v3350
      %v3360 = vunpack.c.l.b16 %v3351
      %v3361 = vunpack.c.l.b16 %v3352
      %v3362 = vpack.c.b16 %v3359, %v3358
      %v3363 = vpack.c.b16 %v3361, %v3360
      %v3365 = vsel %vm2348, %v3362, 0
      %v3368 = vsel %vm2348, %v3363, 0
      %3370 = vmatprep.subr.bf16.mxu0 0
      %3371 = vmatpush1.bf16.msra.mxu0 0
      %3372 = vmatprep.subr.bf16.mxu0 0
      %3373 = vmatpush1.bf16.msra.mxu0 0
      %3374 = vmatprep.subr.bf16.mxu0 0
      %3375 = vmatpush1.bf16.msra.mxu0 0
      %3376 = vmatprep.subr.bf16.mxu0 0
      %3377 = vmatpush1.bf16.msra.mxu0 0
      %3378 = vmatprep.subr.bf16.mxu0 0
      %3379 = vmatpush1.bf16.msra.mxu0 0
      %3380 = vmatprep.subr.bf16.mxu0 0
      %3381 = vmatpush1.bf16.msra.mxu0 0
      %3382 = vmatprep.subr.bf16.mxu0 0
      %3383 = vmatpush1.bf16.msra.mxu0 0
      %3384 = vmatprep.subr.bf16.mxu0 0
      %3385 = vmatpush1.bf16.msra.mxu0 %v3353
      %3386 = vmatprep.subr.bf16.mxu0 0
      %3387 = vmatpush2.bf16.msra.mxu0 0
      %3388 = vmatprep.subr.bf16.mxu0 0
      %3389 = vmatpush2.bf16.msra.mxu0 0
      %3390 = vmatprep.subr.bf16.mxu0 0
      %3391 = vmatpush2.bf16.msra.mxu0 0
      %3392 = vmatprep.subr.bf16.mxu0 0
      %3393 = vmatpush2.bf16.msra.mxu0 0
      %3394 = vmatprep.subr.bf16.mxu0 0
      %3395 = vmatpush2.bf16.msra.mxu0 0
      %3396 = vmatprep.subr.bf16.mxu0 0
      %3397 = vmatpush2.bf16.msra.mxu0 0
      %3398 = vmatprep.subr.bf16.mxu0 0
      %3399 = vmatpush2.bf16.msra.mxu0 0
      %3400 = vmatprep.subr.bf16.mxu0 0
      %3401 = vmatpush2.bf16.msra.mxu0 0
      %3402 = vmatprep.mubr.bf16.mxu0 0
      %3403 = vmatmul.mubr.bf16.gmra.mxu0 %v3365
      %v3404 = vpop.f32.mrf.mxu0
      %v3405 = vadd.f32 0.0, %v3404
      %v3406 = vpop.f32.mrf.mxu0
      %v3407 = vpop.f32.mrf.mxu0
      %v3408 = vadd.f32 0.0, %v3407
      %v3409 = vpop.f32.mrf.mxu0
      %3410 = vmatprep.mubr.bf16.mxu0 0
      %3411 = vmatmul.mubr.bf16.gmra.mxu0 %v3368
      %v3412 = vpop.f32.mrf.mxu0
      %v3413 = vadd.f32 0.0, %v3412
      %v3414 = vpop.f32.mrf.mxu0
      %v3415 = vpop.f32.mrf.mxu0
      %v3416 = vadd.f32 0.0, %v3415
      %v3417 = vpop.f32.mrf.mxu0
      %3418 = vdwg.mxu0
      %v3419 = vadd.f32 %v3260, %v3405
      %v3420 = vadd.f32 %v3261, %v3408
      %v3421 = vadd.f32 %v3262, %v3413
      %v3422 = vadd.f32 %v3263, %v3416
      %s3423 = scalar_lea.vmem %s5, 512
      %v3424 = vld [vmem:[%s3423] sm:$0xff]
      %v3425 = vld [vmem:[%s3423 + $0x8] sm:$0xff]
      %v3426 = vld [vmem:[%s3423 + $0x10] sm:$0xff]
      %v3427 = vld [vmem:[%s3423 + $0x18] sm:$0xff]
      %v3428 = vld [vmem:[%s3423 + $0x20] sm:$0xff]
      %v3429 = vld [vmem:[%s3423 + $0x28] sm:$0xff]
      %v3430 = vld [vmem:[%s3423 + $0x30] sm:$0xff]
      %v3431 = vld [vmem:[%s3423 + $0x38] sm:$0xff]
      %3432 = vmatprep.subr.mxu0 0.0
      %3433 = vmatpush1.msra.mxu0 0.0
      %3434 = vmatprep.subr.mxu0 0.0
      %3435 = vmatpush1.msra.mxu0 0.0
      %3436 = vmatprep.subr.mxu0 0.0
      %3437 = vmatpush1.msra.mxu0 0.0
      %3438 = vmatprep.subr.mxu0 0.0
      %3439 = vmatpush1.msra.mxu0 0.0
      %3440 = vmatprep.subr.mxu0 0.0
      %3441 = vmatpush1.msra.mxu0 0.0
      %3442 = vmatprep.subr.mxu0 0.0
      %3443 = vmatpush1.msra.mxu0 0.0
      %3444 = vmatprep.subr.mxu0 0.0
      %3445 = vmatpush1.msra.mxu0 0.0
      %3446 = vmatprep.subr.mxu0 0.0
      %3447 = vmatpush1.msra.mxu0 0.0
      %3448 = vmatprep.subr.mxu0 0.0
      %3449 = vmatpush1.msra.mxu0 %v3431
      %3450 = vmatprep.subr.mxu0 0.0
      %3451 = vmatpush1.msra.mxu0 %v3430
      %3452 = vmatprep.subr.mxu0 0.0
      %3453 = vmatpush1.msra.mxu0 %v3429
      %3454 = vmatprep.subr.mxu0 0.0
      %3455 = vmatpush1.msra.mxu0 %v3428
      %3456 = vmatprep.subr.mxu0 0.0
      %3457 = vmatpush1.msra.mxu0 %v3427
      %3458 = vmatprep.subr.mxu0 0.0
      %3459 = vmatpush1.msra.mxu0 %v3426
      %3460 = vmatprep.subr.mxu0 0.0
      %3461 = vmatpush1.msra.mxu0 %v3425
      %3462 = vmatprep.subr.mxu0 0.0
      %3463 = vmatpush1.msra.mxu0 %v3424
      %3464 = vmatprep.subr.mxu0 0.0
      %3465 = vmatpush2.msra.mxu0 0.0
      %3466 = vmatprep.subr.mxu0 0.0
      %3467 = vmatpush2.msra.mxu0 0.0
      %3468 = vmatprep.subr.mxu0 0.0
      %3469 = vmatpush2.msra.mxu0 0.0
      %3470 = vmatprep.subr.mxu0 0.0
      %3471 = vmatpush2.msra.mxu0 0.0
      %3472 = vmatprep.subr.mxu0 0.0
      %3473 = vmatpush2.msra.mxu0 0.0
      %3474 = vmatprep.subr.mxu0 0.0
      %3475 = vmatpush2.msra.mxu0 0.0
      %3476 = vmatprep.subr.mxu0 0.0
      %3477 = vmatpush2.msra.mxu0 0.0
      %3478 = vmatprep.subr.mxu0 0.0
      %3479 = vmatpush2.msra.mxu0 0.0
      %3480 = vmatprep.subr.mxu0 0.0
      %3481 = vmatpush2.msra.mxu0 0.0
      %3482 = vmatprep.subr.mxu0 0.0
      %3483 = vmatpush2.msra.mxu0 0.0
      %3484 = vmatprep.subr.mxu0 0.0
      %3485 = vmatpush2.msra.mxu0 0.0
      %3486 = vmatprep.subr.mxu0 0.0
      %3487 = vmatpush2.msra.mxu0 0.0
      %3488 = vmatprep.subr.mxu0 0.0
      %3489 = vmatpush2.msra.mxu0 0.0
      %3490 = vmatprep.subr.mxu0 0.0
      %3491 = vmatpush2.msra.mxu0 0.0
      %3492 = vmatprep.subr.mxu0 0.0
      %3493 = vmatpush2.msra.mxu0 0.0
      %3494 = vmatprep.subr.mxu0 0.0
      %3495 = vmatpush2.msra.mxu0 0.0
      %3496 = vmatprep.mubr.f32.mxu0 0.0
      %3497 = vmatmul.mubr.f32.gmra.mxu0 %v2163
      %v3498 = vpop.f32.mrf.mxu0
      %v3499 = vadd.f32 0.0, %v3498
      %v3500 = vpop.f32.mrf.mxu0
      %3501 = vmatprep.mubr.f32.mxu0 0.0
      %3502 = vmatmul.mubr.f32.gmra.mxu0 %v2166
      %v3503 = vpop.f32.mrf.mxu0
      %v3504 = vadd.f32 0.0, %v3503
      %v3505 = vpop.f32.mrf.mxu0
      %3506 = vdwg.mxu0
      %s3507 = scalar_lea.vmem %s4, 128
      %v3508 = vld [vmem:[%s3507] sm:$0xf]
      %v3509 = vld [vmem:[%s3507 + $0x4] sm:$0xf]
      %v3510 = vld [vmem:[%s3507 + $0x8] sm:$0xf]
      %v3511 = vld [vmem:[%s3507 + $0xc] sm:$0xf]
      %v3512 = vpack.c.bf16 %v3504, %v3499
      %v3517 = vunpack.c.l.b16 %v3508
      %v3518 = vunpack.c.l.b16 %v3509
      %v3519 = vunpack.c.l.b16 %v3510
      %v3520 = vunpack.c.l.b16 %v3511
      %v3521 = vpack.c.b16 %v3518, %v3517
      %v3522 = vpack.c.b16 %v3520, %v3519
      %v3524 = vsel %vm2348, %v3521, 0
      %v3527 = vsel %vm2348, %v3522, 0
      %3529 = vmatprep.subr.bf16.mxu0 0
      %3530 = vmatpush1.bf16.msra.mxu0 0
      %3531 = vmatprep.subr.bf16.mxu0 0
      %3532 = vmatpush1.bf16.msra.mxu0 0
      %3533 = vmatprep.subr.bf16.mxu0 0
      %3534 = vmatpush1.bf16.msra.mxu0 0
      %3535 = vmatprep.subr.bf16.mxu0 0
      %3536 = vmatpush1.bf16.msra.mxu0 0
      %3537 = vmatprep.subr.bf16.mxu0 0
      %3538 = vmatpush1.bf16.msra.mxu0 0
      %3539 = vmatprep.subr.bf16.mxu0 0
      %3540 = vmatpush1.bf16.msra.mxu0 0
      %3541 = vmatprep.subr.bf16.mxu0 0
      %3542 = vmatpush1.bf16.msra.mxu0 0
      %3543 = vmatprep.subr.bf16.mxu0 0
      %3544 = vmatpush1.bf16.msra.mxu0 %v3512
      %3545 = vmatprep.subr.bf16.mxu0 0
      %3546 = vmatpush2.bf16.msra.mxu0 0
      %3547 = vmatprep.subr.bf16.mxu0 0
      %3548 = vmatpush2.bf16.msra.mxu0 0
      %3549 = vmatprep.subr.bf16.mxu0 0
      %3550 = vmatpush2.bf16.msra.mxu0 0
      %3551 = vmatprep.subr.bf16.mxu0 0
      %3552 = vmatpush2.bf16.msra.mxu0 0
      %3553 = vmatprep.subr.bf16.mxu0 0
      %3554 = vmatpush2.bf16.msra.mxu0 0
      %3555 = vmatprep.subr.bf16.mxu0 0
      %3556 = vmatpush2.bf16.msra.mxu0 0
      %3557 = vmatprep.subr.bf16.mxu0 0
      %3558 = vmatpush2.bf16.msra.mxu0 0
      %3559 = vmatprep.subr.bf16.mxu0 0
      %3560 = vmatpush2.bf16.msra.mxu0 0
      %3561 = vmatprep.mubr.bf16.mxu0 0
      %3562 = vmatmul.mubr.bf16.gmra.mxu0 %v3524
      %v3563 = vpop.f32.mrf.mxu0
      %v3564 = vadd.f32 0.0, %v3563
      %v3565 = vpop.f32.mrf.mxu0
      %v3566 = vpop.f32.mrf.mxu0
      %v3567 = vadd.f32 0.0, %v3566
      %v3568 = vpop.f32.mrf.mxu0
      %3569 = vmatprep.mubr.bf16.mxu0 0
      %3570 = vmatmul.mubr.bf16.gmra.mxu0 %v3527
      %v3571 = vpop.f32.mrf.mxu0
      %v3572 = vadd.f32 0.0, %v3571
      %v3573 = vpop.f32.mrf.mxu0
      %v3574 = vpop.f32.mrf.mxu0
      %v3575 = vadd.f32 0.0, %v3574
      %v3576 = vpop.f32.mrf.mxu0
      %3577 = vdwg.mxu0
      %v3578 = vadd.f32 %v3419, %v3564
      %v3579 = vadd.f32 %v3420, %v3567
      %v3580 = vadd.f32 %v3421, %v3572
      %v3581 = vadd.f32 %v3422, %v3575
      %v3582 = vld [vmem:[%s6] sm:$0xff]
      %v3583 = vld [vmem:[%s6 + $0x8] sm:$0xff]
      %v3584 = vld [vmem:[%s6 + $0x10] sm:$0xff]
      %v3585 = vld [vmem:[%s6 + $0x18] sm:$0xff]
      %3587 = vset.pattern.permute.xlu0 0
      %3588 = vperm.xlu0 %3587, %v3582
      %v3589 = vpop.permute.xlu0 %3588
      %3592 = vset.pattern.permute.xlu0 0
      %3593 = vperm.xlu0 %3592, %v3583
      %v3594 = vpop.permute.xlu0 %3593
      %3597 = vset.pattern.permute.xlu0 0
      %3598 = vperm.xlu0 %3597, %v3584
      %v3599 = vpop.permute.xlu0 %3598
      %3602 = vset.pattern.permute.xlu0 0
      %3603 = vperm.xlu0 %3602, %v3585
      %v3604 = vpop.permute.xlu0 %3603
      %v3606 = vadd.f32 %v3578, %v3589
      %v3607 = vadd.f32 %v3579, %v3594
      %v3608 = vadd.f32 %v3580, %v3599
      %v3609 = vadd.f32 %v3581, %v3604
      %v3610 = vmax.f32 %v3606, 0.0
      %v3611 = vmax.f32 %v3607, 0.0
      %v3612 = vmax.f32 %v3608, 0.0
      %v3613 = vmax.f32 %v3609, 0.0
      %v3614 = vld [vmem:[%s8] sm:$0xff]
      %v3615 = vld [vmem:[%s8 + $0x8] sm:$0xff]
      %v3617 = vsel %vm2348, %v3610, 0
      %v3620 = vsel %vm2348, %v3611, 0
      %v3623 = vsel %vm2348, %v3612, 0
      %v3626 = vsel %vm2348, %v3613, 0
      %3628 = vmatprep.subr.mxu0 0.0
      %3629 = vmatpush1.msra.mxu0 0.0
      %3630 = vmatprep.subr.mxu0 0.0
      %3631 = vmatpush1.msra.mxu0 0.0
      %3632 = vmatprep.subr.mxu0 0.0
      %3633 = vmatpush1.msra.mxu0 0.0
      %3634 = vmatprep.subr.mxu0 0.0
      %3635 = vmatpush1.msra.mxu0 0.0
      %3636 = vmatprep.subr.mxu0 0.0
      %3637 = vmatpush1.msra.mxu0 0.0
      %3638 = vmatprep.subr.mxu0 0.0
      %3639 = vmatpush1.msra.mxu0 0.0
      %3640 = vmatprep.subr.mxu0 0.0
      %3641 = vmatpush1.msra.mxu0 0.0
      %3642 = vmatprep.subr.mxu0 0.0
      %3643 = vmatpush1.msra.mxu0 0.0
      %3644 = vmatprep.subr.mxu0 0.0
      %3645 = vmatpush1.msra.mxu0 0.0
      %3646 = vmatprep.subr.mxu0 0.0
      %3647 = vmatpush1.msra.mxu0 0.0
      %3648 = vmatprep.subr.mxu0 0.0
      %3649 = vmatpush1.msra.mxu0 0.0
      %3650 = vmatprep.subr.mxu0 0.0
      %3651 = vmatpush1.msra.mxu0 0.0
      %3652 = vmatprep.subr.mxu0 0.0
      %3653 = vmatpush1.msra.mxu0 0.0
      %3654 = vmatprep.subr.mxu0 0.0
      %3655 = vmatpush1.msra.mxu0 0.0
      %3656 = vmatprep.subr.mxu0 0.0
      %3657 = vmatpush1.msra.mxu0 %v3615
      %3658 = vmatprep.subr.mxu0 0.0
      %3659 = vmatpush1.msra.mxu0 %v3614
      %3660 = vmatprep.subr.mxu0 0.0
      %3661 = vmatpush2.msra.mxu0 0.0
      %3662 = vmatprep.subr.mxu0 0.0
      %3663 = vmatpush2.msra.mxu0 0.0
      %3664 = vmatprep.subr.mxu0 0.0
      %3665 = vmatpush2.msra.mxu0 0.0
      %3666 = vmatprep.subr.mxu0 0.0
      %3667 = vmatpush2.msra.mxu0 0.0
      %3668 = vmatprep.subr.mxu0 0.0
      %3669 = vmatpush2.msra.mxu0 0.0
      %3670 = vmatprep.subr.mxu0 0.0
      %3671 = vmatpush2.msra.mxu0 0.0
      %3672 = vmatprep.subr.mxu0 0.0
      %3673 = vmatpush2.msra.mxu0 0.0
      %3674 = vmatprep.subr.mxu0 0.0
      %3675 = vmatpush2.msra.mxu0 0.0
      %3676 = vmatprep.subr.mxu0 0.0
      %3677 = vmatpush2.msra.mxu0 0.0
      %3678 = vmatprep.subr.mxu0 0.0
      %3679 = vmatpush2.msra.mxu0 0.0
      %3680 = vmatprep.subr.mxu0 0.0
      %3681 = vmatpush2.msra.mxu0 0.0
      %3682 = vmatprep.subr.mxu0 0.0
      %3683 = vmatpush2.msra.mxu0 0.0
      %3684 = vmatprep.subr.mxu0 0.0
      %3685 = vmatpush2.msra.mxu0 0.0
      %3686 = vmatprep.subr.mxu0 0.0
      %3687 = vmatpush2.msra.mxu0 0.0
      %3688 = vmatprep.subr.mxu0 0.0
      %3689 = vmatpush2.msra.mxu0 0.0
      %3690 = vmatprep.subr.mxu0 0.0
      %3691 = vmatpush2.msra.mxu0 0.0
      %3692 = vmatprep.mubr.f32.mxu0 0.0
      %3693 = vmatmul.mubr.f32.gmra.mxu0 %v3617
      %v3694 = vpop.f32.mrf.mxu0
      %v3695 = vadd.f32 0.0, %v3694
      %v3696 = vpop.f32.mrf.mxu0
      %3697 = vmatprep.mubr.f32.mxu0 0.0
      %3698 = vmatmul.mubr.f32.gmra.mxu0 %v3620
      %v3699 = vpop.f32.mrf.mxu0
      %v3700 = vadd.f32 0.0, %v3699
      %v3701 = vpop.f32.mrf.mxu0
      %3702 = vmatprep.mubr.f32.mxu0 0.0
      %3703 = vmatmul.mubr.f32.gmra.mxu0 %v3623
      %v3704 = vpop.f32.mrf.mxu0
      %v3705 = vadd.f32 0.0, %v3704
      %v3706 = vpop.f32.mrf.mxu0
      %3707 = vmatprep.mubr.f32.mxu0 0.0
      %3708 = vmatmul.mubr.f32.gmra.mxu0 %v3626
      %v3709 = vpop.f32.mrf.mxu0
      %v3710 = vadd.f32 0.0, %v3709
      %v3711 = vpop.f32.mrf.mxu0
      %3712 = vdwg.mxu0
      %v3713 = vld [vmem:[%s7] sm:$0xf]
      %v3714 = vld [vmem:[%s7 + $0x4] sm:$0xf]
      %v3715 = vld [vmem:[%s7 + $0x8] sm:$0xf]
      %v3716 = vld [vmem:[%s7 + $0xc] sm:$0xf]
      %v3717 = vld [vmem:[%s7 + $0x10] sm:$0xf]
      %v3718 = vld [vmem:[%s7 + $0x14] sm:$0xf]
      %v3719 = vld [vmem:[%s7 + $0x18] sm:$0xf]
      %v3720 = vld [vmem:[%s7 + $0x1c] sm:$0xf]
      %v3721 = vpack.c.bf16 %v3700, %v3695
      %v3722 = vpack.c.bf16 %v3710, %v3705
      %s3723 = scalar_lea.vmem %s8, 16
      %v3724 = vld [vmem:[%s3723] sm:$0xff]
      %v3725 = vld [vmem:[%s3723 + $0x8] sm:$0xff]
      %3726 = vmatprep.subr.mxu0 0.0
      %3727 = vmatpush1.msra.mxu0 0.0
      %3728 = vmatprep.subr.mxu0 0.0
      %3729 = vmatpush1.msra.mxu0 0.0
      %3730 = vmatprep.subr.mxu0 0.0
      %3731 = vmatpush1.msra.mxu0 0.0
      %3732 = vmatprep.subr.mxu0 0.0
      %3733 = vmatpush1.msra.mxu0 0.0
      %3734 = vmatprep.subr.mxu0 0.0
      %3735 = vmatpush1.msra.mxu0 0.0
      %3736 = vmatprep.subr.mxu0 0.0
      %3737 = vmatpush1.msra.mxu0 0.0
      %3738 = vmatprep.subr.mxu0 0.0
      %3739 = vmatpush1.msra.mxu0 0.0
      %3740 = vmatprep.subr.mxu0 0.0
      %3741 = vmatpush1.msra.mxu0 0.0
      %3742 = vmatprep.subr.mxu0 0.0
      %3743 = vmatpush1.msra.mxu0 0.0
      %3744 = vmatprep.subr.mxu0 0.0
      %3745 = vmatpush1.msra.mxu0 0.0
      %3746 = vmatprep.subr.mxu0 0.0
      %3747 = vmatpush1.msra.mxu0 0.0
      %3748 = vmatprep.subr.mxu0 0.0
      %3749 = vmatpush1.msra.mxu0 0.0
      %3750 = vmatprep.subr.mxu0 0.0
      %3751 = vmatpush1.msra.mxu0 0.0
      %3752 = vmatprep.subr.mxu0 0.0
      %3753 = vmatpush1.msra.mxu0 0.0
      %3754 = vmatprep.subr.mxu0 0.0
      %3755 = vmatpush1.msra.mxu0 %v3725
      %3756 = vmatprep.subr.mxu0 0.0
      %3757 = vmatpush1.msra.mxu0 %v3724
      %3758 = vmatprep.subr.mxu0 0.0
      %3759 = vmatpush2.msra.mxu0 0.0
      %3760 = vmatprep.subr.mxu0 0.0
      %3761 = vmatpush2.msra.mxu0 0.0
      %3762 = vmatprep.subr.mxu0 0.0
      %3763 = vmatpush2.msra.mxu0 0.0
      %3764 = vmatprep.subr.mxu0 0.0
      %3765 = vmatpush2.msra.mxu0 0.0
      %3766 = vmatprep.subr.mxu0 0.0
      %3767 = vmatpush2.msra.mxu0 0.0
      %3768 = vmatprep.subr.mxu0 0.0
      %3769 = vmatpush2.msra.mxu0 0.0
      %3770 = vmatprep.subr.mxu0 0.0
      %3771 = vmatpush2.msra.mxu0 0.0
      %3772 = vmatprep.subr.mxu0 0.0
      %3773 = vmatpush2.msra.mxu0 0.0
      %3774 = vmatprep.subr.mxu0 0.0
      %3775 = vmatpush2.msra.mxu0 0.0
      %3776 = vmatprep.subr.mxu0 0.0
      %3777 = vmatpush2.msra.mxu0 0.0
      %3778 = vmatprep.subr.mxu0 0.0
      %3779 = vmatpush2.msra.mxu0 0.0
      %3780 = vmatprep.subr.mxu0 0.0
      %3781 = vmatpush2.msra.mxu0 0.0
      %3782 = vmatprep.subr.mxu0 0.0
      %3783 = vmatpush2.msra.mxu0 0.0
      %3784 = vmatprep.subr.mxu0 0.0
      %3785 = vmatpush2.msra.mxu0 0.0
      %3786 = vmatprep.subr.mxu0 0.0
      %3787 = vmatpush2.msra.mxu0 0.0
      %3788 = vmatprep.subr.mxu0 0.0
      %3789 = vmatpush2.msra.mxu0 0.0
      %3790 = vmatprep.mubr.f32.mxu0 0.0
      %3791 = vmatmul.mubr.f32.gmra.mxu0 %v3617
      %v3792 = vpop.f32.mrf.mxu0
      %v3793 = vadd.f32 0.0, %v3792
      %v3794 = vpop.f32.mrf.mxu0
      %3795 = vmatprep.mubr.f32.mxu0 0.0
      %3796 = vmatmul.mubr.f32.gmra.mxu0 %v3620
      %v3797 = vpop.f32.mrf.mxu0
      %v3798 = vadd.f32 0.0, %v3797
      %v3799 = vpop.f32.mrf.mxu0
      %3800 = vmatprep.mubr.f32.mxu0 0.0
      %3801 = vmatmul.mubr.f32.gmra.mxu0 %v3623
      %v3802 = vpop.f32.mrf.mxu0
      %v3803 = vadd.f32 0.0, %v3802
      %v3804 = vpop.f32.mrf.mxu0
      %3805 = vmatprep.mubr.f32.mxu0 0.0
      %3806 = vmatmul.mubr.f32.gmra.mxu0 %v3626
      %v3807 = vpop.f32.mrf.mxu0
      %v3808 = vadd.f32 0.0, %v3807
      %v3809 = vpop.f32.mrf.mxu0
      %3810 = vdwg.mxu0
      %s3811 = scalar_lea.vmem %s7, 32
      %v3812 = vld [vmem:[%s3811] sm:$0xf]
      %v3813 = vld [vmem:[%s3811 + $0x4] sm:$0xf]
      %v3814 = vld [vmem:[%s3811 + $0x8] sm:$0xf]
      %v3815 = vld [vmem:[%s3811 + $0xc] sm:$0xf]
      %v3816 = vld [vmem:[%s3811 + $0x10] sm:$0xf]
      %v3817 = vld [vmem:[%s3811 + $0x14] sm:$0xf]
      %v3818 = vld [vmem:[%s3811 + $0x18] sm:$0xf]
      %v3819 = vld [vmem:[%s3811 + $0x1c] sm:$0xf]
      %v3820 = vpack.c.bf16 %v3798, %v3793
      %v3821 = vpack.c.bf16 %v3808, %v3803
      %v3830 = vunpack.c.l.b16 %v3812
      %v3831 = vunpack.c.l.b16 %v3813
      %v3832 = vunpack.c.l.b16 %v3814
      %v3833 = vunpack.c.l.b16 %v3815
      %v3834 = vunpack.c.l.b16 %v3816
      %v3835 = vunpack.c.l.b16 %v3817
      %v3836 = vunpack.c.l.b16 %v3818
      %v3837 = vunpack.c.l.b16 %v3819
      %v3838 = vpack.c.b16 %v3831, %v3830
      %v3839 = vpack.c.b16 %v3833, %v3832
      %v3840 = vpack.c.b16 %v3835, %v3834
      %v3841 = vpack.c.b16 %v3837, %v3836
      %vm3842 = vcmask 261120
      %v3844 = vsel %vm3842, %v3838, 0
      %v3847 = vsel %vm3842, %v3839, 0
      %v3850 = vsel %vm3842, %v3840, 0
      %v3853 = vsel %vm3842, %v3841, 0
      %3855 = vmatprep.subr.bf16.mxu0 0
      %3856 = vmatpush1.bf16.msra.mxu0 0
      %3857 = vmatprep.subr.bf16.mxu0 0
      %3858 = vmatpush1.bf16.msra.mxu0 0
      %3859 = vmatprep.subr.bf16.mxu0 0
      %3860 = vmatpush1.bf16.msra.mxu0 0
      %3861 = vmatprep.subr.bf16.mxu0 0
      %3862 = vmatpush1.bf16.msra.mxu0 0
      %3863 = vmatprep.subr.bf16.mxu0 0
      %3864 = vmatpush1.bf16.msra.mxu0 0
      %3865 = vmatprep.subr.bf16.mxu0 0
      %3866 = vmatpush1.bf16.msra.mxu0 0
      %3867 = vmatprep.subr.bf16.mxu0 0
      %3868 = vmatpush1.bf16.msra.mxu0 %v3821
      %3869 = vmatprep.subr.bf16.mxu0 0
      %3870 = vmatpush1.bf16.msra.mxu0 %v3820
      %3871 = vmatprep.subr.bf16.mxu0 0
      %3872 = vmatpush2.bf16.msra.mxu0 0
      %3873 = vmatprep.subr.bf16.mxu0 0
      %3874 = vmatpush2.bf16.msra.mxu0 0
      %3875 = vmatprep.subr.bf16.mxu0 0
      %3876 = vmatpush2.bf16.msra.mxu0 0
      %3877 = vmatprep.subr.bf16.mxu0 0
      %3878 = vmatpush2.bf16.msra.mxu0 0
      %3879 = vmatprep.subr.bf16.mxu0 0
      %3880 = vmatpush2.bf16.msra.mxu0 0
      %3881 = vmatprep.subr.bf16.mxu0 0
      %3882 = vmatpush2.bf16.msra.mxu0 0
      %3883 = vmatprep.subr.bf16.mxu0 0
      %3884 = vmatpush2.bf16.msra.mxu0 0
      %3885 = vmatprep.subr.bf16.mxu0 0
      %3886 = vmatpush2.bf16.msra.mxu0 0
      %3887 = vmatprep.mubr.bf16.mxu0 0
      %3888 = vmatmul.mubr.bf16.gmra.mxu0 %v3844
      %v3889 = vpop.f32.mrf.mxu0
      %v3890 = vadd.f32 0.0, %v3889
      %v3891 = vpop.f32.mrf.mxu0
      %v3892 = vpop.f32.mrf.mxu0
      %v3893 = vadd.f32 0.0, %v3892
      %v3894 = vpop.f32.mrf.mxu0
      %3895 = vmatprep.mubr.bf16.mxu0 0
      %3896 = vmatmul.mubr.bf16.gmra.mxu0 %v3847
      %v3897 = vpop.f32.mrf.mxu0
      %v3898 = vadd.f32 0.0, %v3897
      %v3899 = vpop.f32.mrf.mxu0
      %v3900 = vpop.f32.mrf.mxu0
      %v3901 = vadd.f32 0.0, %v3900
      %v3902 = vpop.f32.mrf.mxu0
      %3903 = vmatprep.mubr.bf16.mxu0 0
      %3904 = vmatmul.mubr.bf16.gmra.mxu0 %v3850
      %v3905 = vpop.f32.mrf.mxu0
      %v3906 = vadd.f32 0.0, %v3905
      %v3907 = vpop.f32.mrf.mxu0
      %v3908 = vpop.f32.mrf.mxu0
      %v3909 = vadd.f32 0.0, %v3908
      %v3910 = vpop.f32.mrf.mxu0
      %3911 = vmatprep.mubr.bf16.mxu0 0
      %3912 = vmatmul.mubr.bf16.gmra.mxu0 %v3853
      %v3913 = vpop.f32.mrf.mxu0
      %v3914 = vadd.f32 0.0, %v3913
      %v3915 = vpop.f32.mrf.mxu0
      %v3916 = vpop.f32.mrf.mxu0
      %v3917 = vadd.f32 0.0, %v3916
      %v3918 = vpop.f32.mrf.mxu0
      %3919 = vdwg.mxu0
      %v3928 = vunpack.c.l.b16 %v3713
      %v3929 = vunpack.c.l.b16 %v3714
      %v3930 = vunpack.c.l.b16 %v3715
      %v3931 = vunpack.c.l.b16 %v3716
      %v3932 = vunpack.c.l.b16 %v3717
      %v3933 = vunpack.c.l.b16 %v3718
      %v3934 = vunpack.c.l.b16 %v3719
      %v3935 = vunpack.c.l.b16 %v3720
      %v3936 = vpack.c.b16 %v3929, %v3928
      %v3937 = vpack.c.b16 %v3931, %v3930
      %v3938 = vpack.c.b16 %v3933, %v3932
      %v3939 = vpack.c.b16 %v3935, %v3934
      %v3941 = vsel %vm3842, %v3936, 0
      %v3944 = vsel %vm3842, %v3937, 0
      %v3947 = vsel %vm3842, %v3938, 0
      %v3950 = vsel %vm3842, %v3939, 0
      %3952 = vmatprep.subr.bf16.mxu0 0
      %3953 = vmatpush1.bf16.msra.mxu0 0
      %3954 = vmatprep.subr.bf16.mxu0 0
      %3955 = vmatpush1.bf16.msra.mxu0 0
      %3956 = vmatprep.subr.bf16.mxu0 0
      %3957 = vmatpush1.bf16.msra.mxu0 0
      %3958 = vmatprep.subr.bf16.mxu0 0
      %3959 = vmatpush1.bf16.msra.mxu0 0
      %3960 = vmatprep.subr.bf16.mxu0 0
      %3961 = vmatpush1.bf16.msra.mxu0 0
      %3962 = vmatprep.subr.bf16.mxu0 0
      %3963 = vmatpush1.bf16.msra.mxu0 0
      %3964 = vmatprep.subr.bf16.mxu0 0
      %3965 = vmatpush1.bf16.msra.mxu0 %v3722
      %3966 = vmatprep.subr.bf16.mxu0 0
      %3967 = vmatpush1.bf16.msra.mxu0 %v3721
      %3968 = vmatprep.subr.bf16.mxu0 0
      %3969 = vmatpush2.bf16.msra.mxu0 0
      %3970 = vmatprep.subr.bf16.mxu0 0
      %3971 = vmatpush2.bf16.msra.mxu0 0
      %3972 = vmatprep.subr.bf16.mxu0 0
      %3973 = vmatpush2.bf16.msra.mxu0 0
      %3974 = vmatprep.subr.bf16.mxu0 0
      %3975 = vmatpush2.bf16.msra.mxu0 0
      %3976 = vmatprep.subr.bf16.mxu0 0
      %3977 = vmatpush2.bf16.msra.mxu0 0
      %3978 = vmatprep.subr.bf16.mxu0 0
      %3979 = vmatpush2.bf16.msra.mxu0 0
      %3980 = vmatprep.subr.bf16.mxu0 0
      %3981 = vmatpush2.bf16.msra.mxu0 0
      %3982 = vmatprep.subr.bf16.mxu0 0
      %3983 = vmatpush2.bf16.msra.mxu0 0
      %3984 = vmatprep.mubr.bf16.mxu0 0
      %3985 = vmatmul.mubr.bf16.gmra.mxu0 %v3941
      %v3986 = vpop.f32.mrf.mxu0
      %v3987 = vadd.f32 %v3890, %v3986
      %v3988 = vpop.f32.mrf.mxu0
      %v3989 = vpop.f32.mrf.mxu0
      %v3990 = vadd.f32 %v3893, %v3989
      %v3991 = vpop.f32.mrf.mxu0
      %3992 = vmatprep.mubr.bf16.mxu0 0
      %3993 = vmatmul.mubr.bf16.gmra.mxu0 %v3944
      %v3994 = vpop.f32.mrf.mxu0
      %v3995 = vadd.f32 %v3898, %v3994
      %v3996 = vpop.f32.mrf.mxu0
      %v3997 = vpop.f32.mrf.mxu0
      %v3998 = vadd.f32 %v3901, %v3997
      %v3999 = vpop.f32.mrf.mxu0
      %4000 = vmatprep.mubr.bf16.mxu0 0
      %4001 = vmatmul.mubr.bf16.gmra.mxu0 %v3947
      %v4002 = vpop.f32.mrf.mxu0
      %v4003 = vadd.f32 %v3906, %v4002
      %v4004 = vpop.f32.mrf.mxu0
      %v4005 = vpop.f32.mrf.mxu0
      %v4006 = vadd.f32 %v3909, %v4005
      %v4007 = vpop.f32.mrf.mxu0
      %4008 = vmatprep.mubr.bf16.mxu0 0
      %4009 = vmatmul.mubr.bf16.gmra.mxu0 %v3950
      %v4010 = vpop.f32.mrf.mxu0
      %v4011 = vadd.f32 %v3914, %v4010
      %v4012 = vpop.f32.mrf.mxu0
      %v4013 = vpop.f32.mrf.mxu0
      %v4014 = vadd.f32 %v3917, %v4013
      %v4015 = vpop.f32.mrf.mxu0
      %4016 = vdwg.mxu0
      %s4017 = scalar_lea.vmem %s8, 32
      %v4018 = vld [vmem:[%s4017] sm:$0xff]
      %v4019 = vld [vmem:[%s4017 + $0x8] sm:$0xff]
      %4020 = vmatprep.subr.mxu0 0.0
      %4021 = vmatpush1.msra.mxu0 0.0
      %4022 = vmatprep.subr.mxu0 0.0
      %4023 = vmatpush1.msra.mxu0 0.0
      %4024 = vmatprep.subr.mxu0 0.0
      %4025 = vmatpush1.msra.mxu0 0.0
      %4026 = vmatprep.subr.mxu0 0.0
      %4027 = vmatpush1.msra.mxu0 0.0
      %4028 = vmatprep.subr.mxu0 0.0
      %4029 = vmatpush1.msra.mxu0 0.0
      %4030 = vmatprep.subr.mxu0 0.0
      %4031 = vmatpush1.msra.mxu0 0.0
      %4032 = vmatprep.subr.mxu0 0.0
      %4033 = vmatpush1.msra.mxu0 0.0
      %4034 = vmatprep.subr.mxu0 0.0
      %4035 = vmatpush1.msra.mxu0 0.0
      %4036 = vmatprep.subr.mxu0 0.0
      %4037 = vmatpush1.msra.mxu0 0.0
      %4038 = vmatprep.subr.mxu0 0.0
      %4039 = vmatpush1.msra.mxu0 0.0
      %4040 = vmatprep.subr.mxu0 0.0
      %4041 = vmatpush1.msra.mxu0 0.0
      %4042 = vmatprep.subr.mxu0 0.0
      %4043 = vmatpush1.msra.mxu0 0.0
      %4044 = vmatprep.subr.mxu0 0.0
      %4045 = vmatpush1.msra.mxu0 0.0
      %4046 = vmatprep.subr.mxu0 0.0
      %4047 = vmatpush1.msra.mxu0 0.0
      %4048 = vmatprep.subr.mxu0 0.0
      %4049 = vmatpush1.msra.mxu0 %v4019
      %4050 = vmatprep.subr.mxu0 0.0
      %4051 = vmatpush1.msra.mxu0 %v4018
      %4052 = vmatprep.subr.mxu0 0.0
      %4053 = vmatpush2.msra.mxu0 0.0
      %4054 = vmatprep.subr.mxu0 0.0
      %4055 = vmatpush2.msra.mxu0 0.0
      %4056 = vmatprep.subr.mxu0 0.0
      %4057 = vmatpush2.msra.mxu0 0.0
      %4058 = vmatprep.subr.mxu0 0.0
      %4059 = vmatpush2.msra.mxu0 0.0
      %4060 = vmatprep.subr.mxu0 0.0
      %4061 = vmatpush2.msra.mxu0 0.0
      %4062 = vmatprep.subr.mxu0 0.0
      %4063 = vmatpush2.msra.mxu0 0.0
      %4064 = vmatprep.subr.mxu0 0.0
      %4065 = vmatpush2.msra.mxu0 0.0
      %4066 = vmatprep.subr.mxu0 0.0
      %4067 = vmatpush2.msra.mxu0 0.0
      %4068 = vmatprep.subr.mxu0 0.0
      %4069 = vmatpush2.msra.mxu0 0.0
      %4070 = vmatprep.subr.mxu0 0.0
      %4071 = vmatpush2.msra.mxu0 0.0
      %4072 = vmatprep.subr.mxu0 0.0
      %4073 = vmatpush2.msra.mxu0 0.0
      %4074 = vmatprep.subr.mxu0 0.0
      %4075 = vmatpush2.msra.mxu0 0.0
      %4076 = vmatprep.subr.mxu0 0.0
      %4077 = vmatpush2.msra.mxu0 0.0
      %4078 = vmatprep.subr.mxu0 0.0
      %4079 = vmatpush2.msra.mxu0 0.0
      %4080 = vmatprep.subr.mxu0 0.0
      %4081 = vmatpush2.msra.mxu0 0.0
      %4082 = vmatprep.subr.mxu0 0.0
      %4083 = vmatpush2.msra.mxu0 0.0
      %4084 = vmatprep.mubr.f32.mxu0 0.0
      %4085 = vmatmul.mubr.f32.gmra.mxu0 %v3617
      %v4086 = vpop.f32.mrf.mxu0
      %v4087 = vadd.f32 0.0, %v4086
      %v4088 = vpop.f32.mrf.mxu0
      %4089 = vmatprep.mubr.f32.mxu0 0.0
      %4090 = vmatmul.mubr.f32.gmra.mxu0 %v3620
      %v4091 = vpop.f32.mrf.mxu0
      %v4092 = vadd.f32 0.0, %v4091
      %v4093 = vpop.f32.mrf.mxu0
      %4094 = vmatprep.mubr.f32.mxu0 0.0
      %4095 = vmatmul.mubr.f32.gmra.mxu0 %v3623
      %v4096 = vpop.f32.mrf.mxu0
      %v4097 = vadd.f32 0.0, %v4096
      %v4098 = vpop.f32.mrf.mxu0
      %4099 = vmatprep.mubr.f32.mxu0 0.0
      %4100 = vmatmul.mubr.f32.gmra.mxu0 %v3626
      %v4101 = vpop.f32.mrf.mxu0
      %v4102 = vadd.f32 0.0, %v4101
      %v4103 = vpop.f32.mrf.mxu0
      %4104 = vdwg.mxu0
      %s4105 = scalar_lea.vmem %s7, 64
      %v4106 = vld [vmem:[%s4105] sm:$0xf]
      %v4107 = vld [vmem:[%s4105 + $0x4] sm:$0xf]
      %v4108 = vld [vmem:[%s4105 + $0x8] sm:$0xf]
      %v4109 = vld [vmem:[%s4105 + $0xc] sm:$0xf]
      %v4110 = vld [vmem:[%s4105 + $0x10] sm:$0xf]
      %v4111 = vld [vmem:[%s4105 + $0x14] sm:$0xf]
      %v4112 = vld [vmem:[%s4105 + $0x18] sm:$0xf]
      %v4113 = vld [vmem:[%s4105 + $0x1c] sm:$0xf]
      %v4114 = vpack.c.bf16 %v4092, %v4087
      %v4115 = vpack.c.bf16 %v4102, %v4097
      %v4124 = vunpack.c.l.b16 %v4106
      %v4125 = vunpack.c.l.b16 %v4107
      %v4126 = vunpack.c.l.b16 %v4108
      %v4127 = vunpack.c.l.b16 %v4109
      %v4128 = vunpack.c.l.b16 %v4110
      %v4129 = vunpack.c.l.b16 %v4111
      %v4130 = vunpack.c.l.b16 %v4112
      %v4131 = vunpack.c.l.b16 %v4113
      %v4132 = vpack.c.b16 %v4125, %v4124
      %v4133 = vpack.c.b16 %v4127, %v4126
      %v4134 = vpack.c.b16 %v4129, %v4128
      %v4135 = vpack.c.b16 %v4131, %v4130
      %v4137 = vsel %vm3842, %v4132, 0
      %v4140 = vsel %vm3842, %v4133, 0
      %v4143 = vsel %vm3842, %v4134, 0
      %v4146 = vsel %vm3842, %v4135, 0
      %4148 = vmatprep.subr.bf16.mxu0 0
      %4149 = vmatpush1.bf16.msra.mxu0 0
      %4150 = vmatprep.subr.bf16.mxu0 0
      %4151 = vmatpush1.bf16.msra.mxu0 0
      %4152 = vmatprep.subr.bf16.mxu0 0
      %4153 = vmatpush1.bf16.msra.mxu0 0
      %4154 = vmatprep.subr.bf16.mxu0 0
      %4155 = vmatpush1.bf16.msra.mxu0 0
      %4156 = vmatprep.subr.bf16.mxu0 0
      %4157 = vmatpush1.bf16.msra.mxu0 0
      %4158 = vmatprep.subr.bf16.mxu0 0
      %4159 = vmatpush1.bf16.msra.mxu0 0
      %4160 = vmatprep.subr.bf16.mxu0 0
      %4161 = vmatpush1.bf16.msra.mxu0 %v4115
      %4162 = vmatprep.subr.bf16.mxu0 0
      %4163 = vmatpush1.bf16.msra.mxu0 %v4114
      %4164 = vmatprep.subr.bf16.mxu0 0
      %4165 = vmatpush2.bf16.msra.mxu0 0
      %4166 = vmatprep.subr.bf16.mxu0 0
      %4167 = vmatpush2.bf16.msra.mxu0 0
      %4168 = vmatprep.subr.bf16.mxu0 0
      %4169 = vmatpush2.bf16.msra.mxu0 0
      %4170 = vmatprep.subr.bf16.mxu0 0
      %4171 = vmatpush2.bf16.msra.mxu0 0
      %4172 = vmatprep.subr.bf16.mxu0 0
      %4173 = vmatpush2.bf16.msra.mxu0 0
      %4174 = vmatprep.subr.bf16.mxu0 0
      %4175 = vmatpush2.bf16.msra.mxu0 0
      %4176 = vmatprep.subr.bf16.mxu0 0
      %4177 = vmatpush2.bf16.msra.mxu0 0
      %4178 = vmatprep.subr.bf16.mxu0 0
      %4179 = vmatpush2.bf16.msra.mxu0 0
      %4180 = vmatprep.mubr.bf16.mxu0 0
      %4181 = vmatmul.mubr.bf16.gmra.mxu0 %v4137
      %v4182 = vpop.f32.mrf.mxu0
      %v4183 = vadd.f32 0.0, %v4182
      %v4184 = vpop.f32.mrf.mxu0
      %v4185 = vpop.f32.mrf.mxu0
      %v4186 = vadd.f32 0.0, %v4185
      %v4187 = vpop.f32.mrf.mxu0
      %4188 = vmatprep.mubr.bf16.mxu0 0
      %4189 = vmatmul.mubr.bf16.gmra.mxu0 %v4140
      %v4190 = vpop.f32.mrf.mxu0
      %v4191 = vadd.f32 0.0, %v4190
      %v4192 = vpop.f32.mrf.mxu0
      %v4193 = vpop.f32.mrf.mxu0
      %v4194 = vadd.f32 0.0, %v4193
      %v4195 = vpop.f32.mrf.mxu0
      %4196 = vmatprep.mubr.bf16.mxu0 0
      %4197 = vmatmul.mubr.bf16.gmra.mxu0 %v4143
      %v4198 = vpop.f32.mrf.mxu0
      %v4199 = vadd.f32 0.0, %v4198
      %v4200 = vpop.f32.mrf.mxu0
      %v4201 = vpop.f32.mrf.mxu0
      %v4202 = vadd.f32 0.0, %v4201
      %v4203 = vpop.f32.mrf.mxu0
      %4204 = vmatprep.mubr.bf16.mxu0 0
      %4205 = vmatmul.mubr.bf16.gmra.mxu0 %v4146
      %v4206 = vpop.f32.mrf.mxu0
      %v4207 = vadd.f32 0.0, %v4206
      %v4208 = vpop.f32.mrf.mxu0
      %v4209 = vpop.f32.mrf.mxu0
      %v4210 = vadd.f32 0.0, %v4209
      %v4211 = vpop.f32.mrf.mxu0
      %4212 = vdwg.mxu0
      %v4213 = vadd.f32 %v3987, %v4183
      %v4214 = vadd.f32 %v3990, %v4186
      %v4215 = vadd.f32 %v3995, %v4191
      %v4216 = vadd.f32 %v3998, %v4194
      %v4217 = vadd.f32 %v4003, %v4199
      %v4218 = vadd.f32 %v4006, %v4202
      %v4219 = vadd.f32 %v4011, %v4207
      %v4220 = vadd.f32 %v4014, %v4210
      %s4221 = scalar_lea.vmem %s8, 48
      %v4222 = vld [vmem:[%s4221] sm:$0xff]
      %v4223 = vld [vmem:[%s4221 + $0x8] sm:$0xff]
      %4224 = vmatprep.subr.mxu0 0.0
      %4225 = vmatpush1.msra.mxu0 0.0
      %4226 = vmatprep.subr.mxu0 0.0
      %4227 = vmatpush1.msra.mxu0 0.0
      %4228 = vmatprep.subr.mxu0 0.0
      %4229 = vmatpush1.msra.mxu0 0.0
      %4230 = vmatprep.subr.mxu0 0.0
      %4231 = vmatpush1.msra.mxu0 0.0
      %4232 = vmatprep.subr.mxu0 0.0
      %4233 = vmatpush1.msra.mxu0 0.0
      %4234 = vmatprep.subr.mxu0 0.0
      %4235 = vmatpush1.msra.mxu0 0.0
      %4236 = vmatprep.subr.mxu0 0.0
      %4237 = vmatpush1.msra.mxu0 0.0
      %4238 = vmatprep.subr.mxu0 0.0
      %4239 = vmatpush1.msra.mxu0 0.0
      %4240 = vmatprep.subr.mxu0 0.0
      %4241 = vmatpush1.msra.mxu0 0.0
      %4242 = vmatprep.subr.mxu0 0.0
      %4243 = vmatpush1.msra.mxu0 0.0
      %4244 = vmatprep.subr.mxu0 0.0
      %4245 = vmatpush1.msra.mxu0 0.0
      %4246 = vmatprep.subr.mxu0 0.0
      %4247 = vmatpush1.msra.mxu0 0.0
      %4248 = vmatprep.subr.mxu0 0.0
      %4249 = vmatpush1.msra.mxu0 0.0
      %4250 = vmatprep.subr.mxu0 0.0
      %4251 = vmatpush1.msra.mxu0 0.0
      %4252 = vmatprep.subr.mxu0 0.0
      %4253 = vmatpush1.msra.mxu0 %v4223
      %4254 = vmatprep.subr.mxu0 0.0
      %4255 = vmatpush1.msra.mxu0 %v4222
      %4256 = vmatprep.subr.mxu0 0.0
      %4257 = vmatpush2.msra.mxu0 0.0
      %4258 = vmatprep.subr.mxu0 0.0
      %4259 = vmatpush2.msra.mxu0 0.0
      %4260 = vmatprep.subr.mxu0 0.0
      %4261 = vmatpush2.msra.mxu0 0.0
      %4262 = vmatprep.subr.mxu0 0.0
      %4263 = vmatpush2.msra.mxu0 0.0
      %4264 = vmatprep.subr.mxu0 0.0
      %4265 = vmatpush2.msra.mxu0 0.0
      %4266 = vmatprep.subr.mxu0 0.0
      %4267 = vmatpush2.msra.mxu0 0.0
      %4268 = vmatprep.subr.mxu0 0.0
      %4269 = vmatpush2.msra.mxu0 0.0
      %4270 = vmatprep.subr.mxu0 0.0
      %4271 = vmatpush2.msra.mxu0 0.0
      %4272 = vmatprep.subr.mxu0 0.0
      %4273 = vmatpush2.msra.mxu0 0.0
      %4274 = vmatprep.subr.mxu0 0.0
      %4275 = vmatpush2.msra.mxu0 0.0
      %4276 = vmatprep.subr.mxu0 0.0
      %4277 = vmatpush2.msra.mxu0 0.0
      %4278 = vmatprep.subr.mxu0 0.0
      %4279 = vmatpush2.msra.mxu0 0.0
      %4280 = vmatprep.subr.mxu0 0.0
      %4281 = vmatpush2.msra.mxu0 0.0
      %4282 = vmatprep.subr.mxu0 0.0
      %4283 = vmatpush2.msra.mxu0 0.0
      %4284 = vmatprep.subr.mxu0 0.0
      %4285 = vmatpush2.msra.mxu0 0.0
      %4286 = vmatprep.subr.mxu0 0.0
      %4287 = vmatpush2.msra.mxu0 0.0
      %4288 = vmatprep.mubr.f32.mxu0 0.0
      %4289 = vmatmul.mubr.f32.gmra.mxu0 %v3617
      %v4290 = vpop.f32.mrf.mxu0
      %v4291 = vadd.f32 0.0, %v4290
      %v4292 = vpop.f32.mrf.mxu0
      %4293 = vmatprep.mubr.f32.mxu0 0.0
      %4294 = vmatmul.mubr.f32.gmra.mxu0 %v3620
      %v4295 = vpop.f32.mrf.mxu0
      %v4296 = vadd.f32 0.0, %v4295
      %v4297 = vpop.f32.mrf.mxu0
      %4298 = vmatprep.mubr.f32.mxu0 0.0
      %4299 = vmatmul.mubr.f32.gmra.mxu0 %v3623
      %v4300 = vpop.f32.mrf.mxu0
      %v4301 = vadd.f32 0.0, %v4300
      %v4302 = vpop.f32.mrf.mxu0
      %4303 = vmatprep.mubr.f32.mxu0 0.0
      %4304 = vmatmul.mubr.f32.gmra.mxu0 %v3626
      %v4305 = vpop.f32.mrf.mxu0
      %v4306 = vadd.f32 0.0, %v4305
      %v4307 = vpop.f32.mrf.mxu0
      %4308 = vdwg.mxu0
      %s4309 = scalar_lea.vmem %s7, 96
      %v4310 = vld [vmem:[%s4309] sm:$0xf]
      %v4311 = vld [vmem:[%s4309 + $0x4] sm:$0xf]
      %v4312 = vld [vmem:[%s4309 + $0x8] sm:$0xf]
      %v4313 = vld [vmem:[%s4309 + $0xc] sm:$0xf]
      %v4314 = vld [vmem:[%s4309 + $0x10] sm:$0xf]
      %v4315 = vld [vmem:[%s4309 + $0x14] sm:$0xf]
      %v4316 = vld [vmem:[%s4309 + $0x18] sm:$0xf]
      %v4317 = vld [vmem:[%s4309 + $0x1c] sm:$0xf]
      %v4318 = vpack.c.bf16 %v4296, %v4291
      %v4319 = vpack.c.bf16 %v4306, %v4301
      %v4328 = vunpack.c.l.b16 %v4310
      %v4329 = vunpack.c.l.b16 %v4311
      %v4330 = vunpack.c.l.b16 %v4312
      %v4331 = vunpack.c.l.b16 %v4313
      %v4332 = vunpack.c.l.b16 %v4314
      %v4333 = vunpack.c.l.b16 %v4315
      %v4334 = vunpack.c.l.b16 %v4316
      %v4335 = vunpack.c.l.b16 %v4317
      %v4336 = vpack.c.b16 %v4329, %v4328
      %v4337 = vpack.c.b16 %v4331, %v4330
      %v4338 = vpack.c.b16 %v4333, %v4332
      %v4339 = vpack.c.b16 %v4335, %v4334
      %v4341 = vsel %vm3842, %v4336, 0
      %v4344 = vsel %vm3842, %v4337, 0
      %v4347 = vsel %vm3842, %v4338, 0
      %v4350 = vsel %vm3842, %v4339, 0
      %4352 = vmatprep.subr.bf16.mxu0 0
      %4353 = vmatpush1.bf16.msra.mxu0 0
      %4354 = vmatprep.subr.bf16.mxu0 0
      %4355 = vmatpush1.bf16.msra.mxu0 0
      %4356 = vmatprep.subr.bf16.mxu0 0
      %4357 = vmatpush1.bf16.msra.mxu0 0
      %4358 = vmatprep.subr.bf16.mxu0 0
      %4359 = vmatpush1.bf16.msra.mxu0 0
      %4360 = vmatprep.subr.bf16.mxu0 0
      %4361 = vmatpush1.bf16.msra.mxu0 0
      %4362 = vmatprep.subr.bf16.mxu0 0
      %4363 = vmatpush1.bf16.msra.mxu0 0
      %4364 = vmatprep.subr.bf16.mxu0 0
      %4365 = vmatpush1.bf16.msra.mxu0 %v4319
      %4366 = vmatprep.subr.bf16.mxu0 0
      %4367 = vmatpush1.bf16.msra.mxu0 %v4318
      %4368 = vmatprep.subr.bf16.mxu0 0
      %4369 = vmatpush2.bf16.msra.mxu0 0
      %4370 = vmatprep.subr.bf16.mxu0 0
      %4371 = vmatpush2.bf16.msra.mxu0 0
      %4372 = vmatprep.subr.bf16.mxu0 0
      %4373 = vmatpush2.bf16.msra.mxu0 0
      %4374 = vmatprep.subr.bf16.mxu0 0
      %4375 = vmatpush2.bf16.msra.mxu0 0
      %4376 = vmatprep.subr.bf16.mxu0 0
      %4377 = vmatpush2.bf16.msra.mxu0 0
      %4378 = vmatprep.subr.bf16.mxu0 0
      %4379 = vmatpush2.bf16.msra.mxu0 0
      %4380 = vmatprep.subr.bf16.mxu0 0
      %4381 = vmatpush2.bf16.msra.mxu0 0
      %4382 = vmatprep.subr.bf16.mxu0 0
      %4383 = vmatpush2.bf16.msra.mxu0 0
      %4384 = vmatprep.mubr.bf16.mxu0 0
      %4385 = vmatmul.mubr.bf16.gmra.mxu0 %v4341
      %v4386 = vpop.f32.mrf.mxu0
      %v4387 = vadd.f32 0.0, %v4386
      %v4388 = vpop.f32.mrf.mxu0
      %v4389 = vpop.f32.mrf.mxu0
      %v4390 = vadd.f32 0.0, %v4389
      %v4391 = vpop.f32.mrf.mxu0
      %4392 = vmatprep.mubr.bf16.mxu0 0
      %4393 = vmatmul.mubr.bf16.gmra.mxu0 %v4344
      %v4394 = vpop.f32.mrf.mxu0
      %v4395 = vadd.f32 0.0, %v4394
      %v4396 = vpop.f32.mrf.mxu0
      %v4397 = vpop.f32.mrf.mxu0
      %v4398 = vadd.f32 0.0, %v4397
      %v4399 = vpop.f32.mrf.mxu0
      %4400 = vmatprep.mubr.bf16.mxu0 0
      %4401 = vmatmul.mubr.bf16.gmra.mxu0 %v4347
      %v4402 = vpop.f32.mrf.mxu0
      %v4403 = vadd.f32 0.0, %v4402
      %v4404 = vpop.f32.mrf.mxu0
      %v4405 = vpop.f32.mrf.mxu0
      %v4406 = vadd.f32 0.0, %v4405
      %v4407 = vpop.f32.mrf.mxu0
      %4408 = vmatprep.mubr.bf16.mxu0 0
      %4409 = vmatmul.mubr.bf16.gmra.mxu0 %v4350
      %v4410 = vpop.f32.mrf.mxu0
      %v4411 = vadd.f32 0.0, %v4410
      %v4412 = vpop.f32.mrf.mxu0
      %v4413 = vpop.f32.mrf.mxu0
      %v4414 = vadd.f32 0.0, %v4413
      %v4415 = vpop.f32.mrf.mxu0
      %4416 = vdwg.mxu0
      %v4417 = vadd.f32 %v4213, %v4387
      %v4418 = vadd.f32 %v4214, %v4390
      %v4419 = vadd.f32 %v4215, %v4395
      %v4420 = vadd.f32 %v4216, %v4398
      %v4421 = vadd.f32 %v4217, %v4403
      %v4422 = vadd.f32 %v4218, %v4406
      %v4423 = vadd.f32 %v4219, %v4411
      %v4424 = vadd.f32 %v4220, %v4414
      %s4425 = scalar_lea.vmem %s8, 64
      %v4426 = vld [vmem:[%s4425] sm:$0xff]
      %v4427 = vld [vmem:[%s4425 + $0x8] sm:$0xff]
      %4428 = vmatprep.subr.mxu0 0.0
      %4429 = vmatpush1.msra.mxu0 0.0
      %4430 = vmatprep.subr.mxu0 0.0
      %4431 = vmatpush1.msra.mxu0 0.0
      %4432 = vmatprep.subr.mxu0 0.0
      %4433 = vmatpush1.msra.mxu0 0.0
      %4434 = vmatprep.subr.mxu0 0.0
      %4435 = vmatpush1.msra.mxu0 0.0
      %4436 = vmatprep.subr.mxu0 0.0
      %4437 = vmatpush1.msra.mxu0 0.0
      %4438 = vmatprep.subr.mxu0 0.0
      %4439 = vmatpush1.msra.mxu0 0.0
      %4440 = vmatprep.subr.mxu0 0.0
      %4441 = vmatpush1.msra.mxu0 0.0
      %4442 = vmatprep.subr.mxu0 0.0
      %4443 = vmatpush1.msra.mxu0 0.0
      %4444 = vmatprep.subr.mxu0 0.0
      %4445 = vmatpush1.msra.mxu0 0.0
      %4446 = vmatprep.subr.mxu0 0.0
      %4447 = vmatpush1.msra.mxu0 0.0
      %4448 = vmatprep.subr.mxu0 0.0
      %4449 = vmatpush1.msra.mxu0 0.0
      %4450 = vmatprep.subr.mxu0 0.0
      %4451 = vmatpush1.msra.mxu0 0.0
      %4452 = vmatprep.subr.mxu0 0.0
      %4453 = vmatpush1.msra.mxu0 0.0
      %4454 = vmatprep.subr.mxu0 0.0
      %4455 = vmatpush1.msra.mxu0 0.0
      %4456 = vmatprep.subr.mxu0 0.0
      %4457 = vmatpush1.msra.mxu0 %v4427
      %4458 = vmatprep.subr.mxu0 0.0
      %4459 = vmatpush1.msra.mxu0 %v4426
      %4460 = vmatprep.subr.mxu0 0.0
      %4461 = vmatpush2.msra.mxu0 0.0
      %4462 = vmatprep.subr.mxu0 0.0
      %4463 = vmatpush2.msra.mxu0 0.0
      %4464 = vmatprep.subr.mxu0 0.0
      %4465 = vmatpush2.msra.mxu0 0.0
      %4466 = vmatprep.subr.mxu0 0.0
      %4467 = vmatpush2.msra.mxu0 0.0
      %4468 = vmatprep.subr.mxu0 0.0
      %4469 = vmatpush2.msra.mxu0 0.0
      %4470 = vmatprep.subr.mxu0 0.0
      %4471 = vmatpush2.msra.mxu0 0.0
      %4472 = vmatprep.subr.mxu0 0.0
      %4473 = vmatpush2.msra.mxu0 0.0
      %4474 = vmatprep.subr.mxu0 0.0
      %4475 = vmatpush2.msra.mxu0 0.0
      %4476 = vmatprep.subr.mxu0 0.0
      %4477 = vmatpush2.msra.mxu0 0.0
      %4478 = vmatprep.subr.mxu0 0.0
      %4479 = vmatpush2.msra.mxu0 0.0
      %4480 = vmatprep.subr.mxu0 0.0
      %4481 = vmatpush2.msra.mxu0 0.0
      %4482 = vmatprep.subr.mxu0 0.0
      %4483 = vmatpush2.msra.mxu0 0.0
      %4484 = vmatprep.subr.mxu0 0.0
      %4485 = vmatpush2.msra.mxu0 0.0
      %4486 = vmatprep.subr.mxu0 0.0
      %4487 = vmatpush2.msra.mxu0 0.0
      %4488 = vmatprep.subr.mxu0 0.0
      %4489 = vmatpush2.msra.mxu0 0.0
      %4490 = vmatprep.subr.mxu0 0.0
      %4491 = vmatpush2.msra.mxu0 0.0
      %4492 = vmatprep.mubr.f32.mxu0 0.0
      %4493 = vmatmul.mubr.f32.gmra.mxu0 %v3617
      %v4494 = vpop.f32.mrf.mxu0
      %v4495 = vadd.f32 0.0, %v4494
      %v4496 = vpop.f32.mrf.mxu0
      %4497 = vmatprep.mubr.f32.mxu0 0.0
      %4498 = vmatmul.mubr.f32.gmra.mxu0 %v3620
      %v4499 = vpop.f32.mrf.mxu0
      %v4500 = vadd.f32 0.0, %v4499
      %v4501 = vpop.f32.mrf.mxu0
      %4502 = vmatprep.mubr.f32.mxu0 0.0
      %4503 = vmatmul.mubr.f32.gmra.mxu0 %v3623
      %v4504 = vpop.f32.mrf.mxu0
      %v4505 = vadd.f32 0.0, %v4504
      %v4506 = vpop.f32.mrf.mxu0
      %4507 = vmatprep.mubr.f32.mxu0 0.0
      %4508 = vmatmul.mubr.f32.gmra.mxu0 %v3626
      %v4509 = vpop.f32.mrf.mxu0
      %v4510 = vadd.f32 0.0, %v4509
      %v4511 = vpop.f32.mrf.mxu0
      %4512 = vdwg.mxu0
      %s4513 = scalar_lea.vmem %s7, 128
      %v4514 = vld [vmem:[%s4513] sm:$0xf]
      %v4515 = vld [vmem:[%s4513 + $0x4] sm:$0xf]
      %v4516 = vld [vmem:[%s4513 + $0x8] sm:$0xf]
      %v4517 = vld [vmem:[%s4513 + $0xc] sm:$0xf]
      %v4518 = vld [vmem:[%s4513 + $0x10] sm:$0xf]
      %v4519 = vld [vmem:[%s4513 + $0x14] sm:$0xf]
      %v4520 = vld [vmem:[%s4513 + $0x18] sm:$0xf]
      %v4521 = vld [vmem:[%s4513 + $0x1c] sm:$0xf]
      %v4522 = vpack.c.bf16 %v4500, %v4495
      %v4523 = vpack.c.bf16 %v4510, %v4505
      %v4532 = vunpack.c.l.b16 %v4514
      %v4533 = vunpack.c.l.b16 %v4515
      %v4534 = vunpack.c.l.b16 %v4516
      %v4535 = vunpack.c.l.b16 %v4517
      %v4536 = vunpack.c.l.b16 %v4518
      %v4537 = vunpack.c.l.b16 %v4519
      %v4538 = vunpack.c.l.b16 %v4520
      %v4539 = vunpack.c.l.b16 %v4521
      %v4540 = vpack.c.b16 %v4533, %v4532
      %v4541 = vpack.c.b16 %v4535, %v4534
      %v4542 = vpack.c.b16 %v4537, %v4536
      %v4543 = vpack.c.b16 %v4539, %v4538
      %v4545 = vsel %vm3842, %v4540, 0
      %v4548 = vsel %vm3842, %v4541, 0
      %v4551 = vsel %vm3842, %v4542, 0
      %v4554 = vsel %vm3842, %v4543, 0
      %4556 = vmatprep.subr.bf16.mxu0 0
      %4557 = vmatpush1.bf16.msra.mxu0 0
      %4558 = vmatprep.subr.bf16.mxu0 0
      %4559 = vmatpush1.bf16.msra.mxu0 0
      %4560 = vmatprep.subr.bf16.mxu0 0
      %4561 = vmatpush1.bf16.msra.mxu0 0
      %4562 = vmatprep.subr.bf16.mxu0 0
      %4563 = vmatpush1.bf16.msra.mxu0 0
      %4564 = vmatprep.subr.bf16.mxu0 0
      %4565 = vmatpush1.bf16.msra.mxu0 0
      %4566 = vmatprep.subr.bf16.mxu0 0
      %4567 = vmatpush1.bf16.msra.mxu0 0
      %4568 = vmatprep.subr.bf16.mxu0 0
      %4569 = vmatpush1.bf16.msra.mxu0 %v4523
      %4570 = vmatprep.subr.bf16.mxu0 0
      %4571 = vmatpush1.bf16.msra.mxu0 %v4522
      %4572 = vmatprep.subr.bf16.mxu0 0
      %4573 = vmatpush2.bf16.msra.mxu0 0
      %4574 = vmatprep.subr.bf16.mxu0 0
      %4575 = vmatpush2.bf16.msra.mxu0 0
      %4576 = vmatprep.subr.bf16.mxu0 0
      %4577 = vmatpush2.bf16.msra.mxu0 0
      %4578 = vmatprep.subr.bf16.mxu0 0
      %4579 = vmatpush2.bf16.msra.mxu0 0
      %4580 = vmatprep.subr.bf16.mxu0 0
      %4581 = vmatpush2.bf16.msra.mxu0 0
      %4582 = vmatprep.subr.bf16.mxu0 0
      %4583 = vmatpush2.bf16.msra.mxu0 0
      %4584 = vmatprep.subr.bf16.mxu0 0
      %4585 = vmatpush2.bf16.msra.mxu0 0
      %4586 = vmatprep.subr.bf16.mxu0 0
      %4587 = vmatpush2.bf16.msra.mxu0 0
      %4588 = vmatprep.mubr.bf16.mxu0 0
      %4589 = vmatmul.mubr.bf16.gmra.mxu0 %v4545
      %v4590 = vpop.f32.mrf.mxu0
      %v4591 = vadd.f32 0.0, %v4590
      %v4592 = vpop.f32.mrf.mxu0
      %v4593 = vpop.f32.mrf.mxu0
      %v4594 = vadd.f32 0.0, %v4593
      %v4595 = vpop.f32.mrf.mxu0
      %4596 = vmatprep.mubr.bf16.mxu0 0
      %4597 = vmatmul.mubr.bf16.gmra.mxu0 %v4548
      %v4598 = vpop.f32.mrf.mxu0
      %v4599 = vadd.f32 0.0, %v4598
      %v4600 = vpop.f32.mrf.mxu0
      %v4601 = vpop.f32.mrf.mxu0
      %v4602 = vadd.f32 0.0, %v4601
      %v4603 = vpop.f32.mrf.mxu0
      %4604 = vmatprep.mubr.bf16.mxu0 0
      %4605 = vmatmul.mubr.bf16.gmra.mxu0 %v4551
      %v4606 = vpop.f32.mrf.mxu0
      %v4607 = vadd.f32 0.0, %v4606
      %v4608 = vpop.f32.mrf.mxu0
      %v4609 = vpop.f32.mrf.mxu0
      %v4610 = vadd.f32 0.0, %v4609
      %v4611 = vpop.f32.mrf.mxu0
      %4612 = vmatprep.mubr.bf16.mxu0 0
      %4613 = vmatmul.mubr.bf16.gmra.mxu0 %v4554
      %v4614 = vpop.f32.mrf.mxu0
      %v4615 = vadd.f32 0.0, %v4614
      %v4616 = vpop.f32.mrf.mxu0
      %v4617 = vpop.f32.mrf.mxu0
      %v4618 = vadd.f32 0.0, %v4617
      %v4619 = vpop.f32.mrf.mxu0
      %4620 = vdwg.mxu0
      %v4621 = vadd.f32 %v4417, %v4591
      %v4622 = vadd.f32 %v4418, %v4594
      %v4623 = vadd.f32 %v4419, %v4599
      %v4624 = vadd.f32 %v4420, %v4602
      %v4625 = vadd.f32 %v4421, %v4607
      %v4626 = vadd.f32 %v4422, %v4610
      %v4627 = vadd.f32 %v4423, %v4615
      %v4628 = vadd.f32 %v4424, %v4618
      %s4629 = scalar_lea.vmem %s8, 80
      %v4630 = vld [vmem:[%s4629] sm:$0xff]
      %v4631 = vld [vmem:[%s4629 + $0x8] sm:$0xff]
      %4632 = vmatprep.subr.mxu0 0.0
      %4633 = vmatpush1.msra.mxu0 0.0
      %4634 = vmatprep.subr.mxu0 0.0
      %4635 = vmatpush1.msra.mxu0 0.0
      %4636 = vmatprep.subr.mxu0 0.0
      %4637 = vmatpush1.msra.mxu0 0.0
      %4638 = vmatprep.subr.mxu0 0.0
      %4639 = vmatpush1.msra.mxu0 0.0
      %4640 = vmatprep.subr.mxu0 0.0
      %4641 = vmatpush1.msra.mxu0 0.0
      %4642 = vmatprep.subr.mxu0 0.0
      %4643 = vmatpush1.msra.mxu0 0.0
      %4644 = vmatprep.subr.mxu0 0.0
      %4645 = vmatpush1.msra.mxu0 0.0
      %4646 = vmatprep.subr.mxu0 0.0
      %4647 = vmatpush1.msra.mxu0 0.0
      %4648 = vmatprep.subr.mxu0 0.0
      %4649 = vmatpush1.msra.mxu0 0.0
      %4650 = vmatprep.subr.mxu0 0.0
      %4651 = vmatpush1.msra.mxu0 0.0
      %4652 = vmatprep.subr.mxu0 0.0
      %4653 = vmatpush1.msra.mxu0 0.0
      %4654 = vmatprep.subr.mxu0 0.0
      %4655 = vmatpush1.msra.mxu0 0.0
      %4656 = vmatprep.subr.mxu0 0.0
      %4657 = vmatpush1.msra.mxu0 0.0
      %4658 = vmatprep.subr.mxu0 0.0
      %4659 = vmatpush1.msra.mxu0 0.0
      %4660 = vmatprep.subr.mxu0 0.0
      %4661 = vmatpush1.msra.mxu0 %v4631
      %4662 = vmatprep.subr.mxu0 0.0
      %4663 = vmatpush1.msra.mxu0 %v4630
      %4664 = vmatprep.subr.mxu0 0.0
      %4665 = vmatpush2.msra.mxu0 0.0
      %4666 = vmatprep.subr.mxu0 0.0
      %4667 = vmatpush2.msra.mxu0 0.0
      %4668 = vmatprep.subr.mxu0 0.0
      %4669 = vmatpush2.msra.mxu0 0.0
      %4670 = vmatprep.subr.mxu0 0.0
      %4671 = vmatpush2.msra.mxu0 0.0
      %4672 = vmatprep.subr.mxu0 0.0
      %4673 = vmatpush2.msra.mxu0 0.0
      %4674 = vmatprep.subr.mxu0 0.0
      %4675 = vmatpush2.msra.mxu0 0.0
      %4676 = vmatprep.subr.mxu0 0.0
      %4677 = vmatpush2.msra.mxu0 0.0
      %4678 = vmatprep.subr.mxu0 0.0
      %4679 = vmatpush2.msra.mxu0 0.0
      %4680 = vmatprep.subr.mxu0 0.0
      %4681 = vmatpush2.msra.mxu0 0.0
      %4682 = vmatprep.subr.mxu0 0.0
      %4683 = vmatpush2.msra.mxu0 0.0
      %4684 = vmatprep.subr.mxu0 0.0
      %4685 = vmatpush2.msra.mxu0 0.0
      %4686 = vmatprep.subr.mxu0 0.0
      %4687 = vmatpush2.msra.mxu0 0.0
      %4688 = vmatprep.subr.mxu0 0.0
      %4689 = vmatpush2.msra.mxu0 0.0
      %4690 = vmatprep.subr.mxu0 0.0
      %4691 = vmatpush2.msra.mxu0 0.0
      %4692 = vmatprep.subr.mxu0 0.0
      %4693 = vmatpush2.msra.mxu0 0.0
      %4694 = vmatprep.subr.mxu0 0.0
      %4695 = vmatpush2.msra.mxu0 0.0
      %4696 = vmatprep.mubr.f32.mxu0 0.0
      %4697 = vmatmul.mubr.f32.gmra.mxu0 %v3617
      %v4698 = vpop.f32.mrf.mxu0
      %v4699 = vadd.f32 0.0, %v4698
      %v4700 = vpop.f32.mrf.mxu0
      %4701 = vmatprep.mubr.f32.mxu0 0.0
      %4702 = vmatmul.mubr.f32.gmra.mxu0 %v3620
      %v4703 = vpop.f32.mrf.mxu0
      %v4704 = vadd.f32 0.0, %v4703
      %v4705 = vpop.f32.mrf.mxu0
      %4706 = vmatprep.mubr.f32.mxu0 0.0
      %4707 = vmatmul.mubr.f32.gmra.mxu0 %v3623
      %v4708 = vpop.f32.mrf.mxu0
      %v4709 = vadd.f32 0.0, %v4708
      %v4710 = vpop.f32.mrf.mxu0
      %4711 = vmatprep.mubr.f32.mxu0 0.0
      %4712 = vmatmul.mubr.f32.gmra.mxu0 %v3626
      %v4713 = vpop.f32.mrf.mxu0
      %v4714 = vadd.f32 0.0, %v4713
      %v4715 = vpop.f32.mrf.mxu0
      %4716 = vdwg.mxu0
      %s4717 = scalar_lea.vmem %s7, 160
      %v4718 = vld [vmem:[%s4717] sm:$0xf]
      %v4719 = vld [vmem:[%s4717 + $0x4] sm:$0xf]
      %v4720 = vld [vmem:[%s4717 + $0x8] sm:$0xf]
      %v4721 = vld [vmem:[%s4717 + $0xc] sm:$0xf]
      %v4722 = vld [vmem:[%s4717 + $0x10] sm:$0xf]
      %v4723 = vld [vmem:[%s4717 + $0x14] sm:$0xf]
      %v4724 = vld [vmem:[%s4717 + $0x18] sm:$0xf]
      %v4725 = vld [vmem:[%s4717 + $0x1c] sm:$0xf]
      %v4726 = vpack.c.bf16 %v4704, %v4699
      %v4727 = vpack.c.bf16 %v4714, %v4709
      %v4736 = vunpack.c.l.b16 %v4718
      %v4737 = vunpack.c.l.b16 %v4719
      %v4738 = vunpack.c.l.b16 %v4720
      %v4739 = vunpack.c.l.b16 %v4721
      %v4740 = vunpack.c.l.b16 %v4722
      %v4741 = vunpack.c.l.b16 %v4723
      %v4742 = vunpack.c.l.b16 %v4724
      %v4743 = vunpack.c.l.b16 %v4725
      %v4744 = vpack.c.b16 %v4737, %v4736
      %v4745 = vpack.c.b16 %v4739, %v4738
      %v4746 = vpack.c.b16 %v4741, %v4740
      %v4747 = vpack.c.b16 %v4743, %v4742
      %v4749 = vsel %vm3842, %v4744, 0
      %v4752 = vsel %vm3842, %v4745, 0
      %v4755 = vsel %vm3842, %v4746, 0
      %v4758 = vsel %vm3842, %v4747, 0
      %4760 = vmatprep.subr.bf16.mxu0 0
      %4761 = vmatpush1.bf16.msra.mxu0 0
      %4762 = vmatprep.subr.bf16.mxu0 0
      %4763 = vmatpush1.bf16.msra.mxu0 0
      %4764 = vmatprep.subr.bf16.mxu0 0
      %4765 = vmatpush1.bf16.msra.mxu0 0
      %4766 = vmatprep.subr.bf16.mxu0 0
      %4767 = vmatpush1.bf16.msra.mxu0 0
      %4768 = vmatprep.subr.bf16.mxu0 0
      %4769 = vmatpush1.bf16.msra.mxu0 0
      %4770 = vmatprep.subr.bf16.mxu0 0
      %4771 = vmatpush1.bf16.msra.mxu0 0
      %4772 = vmatprep.subr.bf16.mxu0 0
      %4773 = vmatpush1.bf16.msra.mxu0 %v4727
      %4774 = vmatprep.subr.bf16.mxu0 0
      %4775 = vmatpush1.bf16.msra.mxu0 %v4726
      %4776 = vmatprep.subr.bf16.mxu0 0
      %4777 = vmatpush2.bf16.msra.mxu0 0
      %4778 = vmatprep.subr.bf16.mxu0 0
      %4779 = vmatpush2.bf16.msra.mxu0 0
      %4780 = vmatprep.subr.bf16.mxu0 0
      %4781 = vmatpush2.bf16.msra.mxu0 0
      %4782 = vmatprep.subr.bf16.mxu0 0
      %4783 = vmatpush2.bf16.msra.mxu0 0
      %4784 = vmatprep.subr.bf16.mxu0 0
      %4785 = vmatpush2.bf16.msra.mxu0 0
      %4786 = vmatprep.subr.bf16.mxu0 0
      %4787 = vmatpush2.bf16.msra.mxu0 0
      %4788 = vmatprep.subr.bf16.mxu0 0
      %4789 = vmatpush2.bf16.msra.mxu0 0
      %4790 = vmatprep.subr.bf16.mxu0 0
      %4791 = vmatpush2.bf16.msra.mxu0 0
      %4792 = vmatprep.mubr.bf16.mxu0 0
      %4793 = vmatmul.mubr.bf16.gmra.mxu0 %v4749
      %v4794 = vpop.f32.mrf.mxu0
      %v4795 = vadd.f32 0.0, %v4794
      %v4796 = vpop.f32.mrf.mxu0
      %v4797 = vpop.f32.mrf.mxu0
      %v4798 = vadd.f32 0.0, %v4797
      %v4799 = vpop.f32.mrf.mxu0
      %4800 = vmatprep.mubr.bf16.mxu0 0
      %4801 = vmatmul.mubr.bf16.gmra.mxu0 %v4752
      %v4802 = vpop.f32.mrf.mxu0
      %v4803 = vadd.f32 0.0, %v4802
      %v4804 = vpop.f32.mrf.mxu0
      %v4805 = vpop.f32.mrf.mxu0
      %v4806 = vadd.f32 0.0, %v4805
      %v4807 = vpop.f32.mrf.mxu0
      %4808 = vmatprep.mubr.bf16.mxu0 0
      %4809 = vmatmul.mubr.bf16.gmra.mxu0 %v4755
      %v4810 = vpop.f32.mrf.mxu0
      %v4811 = vadd.f32 0.0, %v4810
      %v4812 = vpop.f32.mrf.mxu0
      %v4813 = vpop.f32.mrf.mxu0
      %v4814 = vadd.f32 0.0, %v4813
      %v4815 = vpop.f32.mrf.mxu0
      %4816 = vmatprep.mubr.bf16.mxu0 0
      %4817 = vmatmul.mubr.bf16.gmra.mxu0 %v4758
      %v4818 = vpop.f32.mrf.mxu0
      %v4819 = vadd.f32 0.0, %v4818
      %v4820 = vpop.f32.mrf.mxu0
      %v4821 = vpop.f32.mrf.mxu0
      %v4822 = vadd.f32 0.0, %v4821
      %v4823 = vpop.f32.mrf.mxu0
      %4824 = vdwg.mxu0
      %v4825 = vadd.f32 %v4621, %v4795
      %v4826 = vadd.f32 %v4622, %v4798
      %v4827 = vadd.f32 %v4623, %v4803
      %v4828 = vadd.f32 %v4624, %v4806
      %v4829 = vadd.f32 %v4625, %v4811
      %v4830 = vadd.f32 %v4626, %v4814
      %v4831 = vadd.f32 %v4627, %v4819
      %v4832 = vadd.f32 %v4628, %v4822
      %s4833 = scalar_lea.vmem %s8, 96
      %v4834 = vld [vmem:[%s4833] sm:$0xff]
      %v4835 = vld [vmem:[%s4833 + $0x8] sm:$0xff]
      %4836 = vmatprep.subr.mxu0 0.0
      %4837 = vmatpush1.msra.mxu0 0.0
      %4838 = vmatprep.subr.mxu0 0.0
      %4839 = vmatpush1.msra.mxu0 0.0
      %4840 = vmatprep.subr.mxu0 0.0
      %4841 = vmatpush1.msra.mxu0 0.0
      %4842 = vmatprep.subr.mxu0 0.0
      %4843 = vmatpush1.msra.mxu0 0.0
      %4844 = vmatprep.subr.mxu0 0.0
      %4845 = vmatpush1.msra.mxu0 0.0
      %4846 = vmatprep.subr.mxu0 0.0
      %4847 = vmatpush1.msra.mxu0 0.0
      %4848 = vmatprep.subr.mxu0 0.0
      %4849 = vmatpush1.msra.mxu0 0.0
      %4850 = vmatprep.subr.mxu0 0.0
      %4851 = vmatpush1.msra.mxu0 0.0
      %4852 = vmatprep.subr.mxu0 0.0
      %4853 = vmatpush1.msra.mxu0 0.0
      %4854 = vmatprep.subr.mxu0 0.0
      %4855 = vmatpush1.msra.mxu0 0.0
      %4856 = vmatprep.subr.mxu0 0.0
      %4857 = vmatpush1.msra.mxu0 0.0
      %4858 = vmatprep.subr.mxu0 0.0
      %4859 = vmatpush1.msra.mxu0 0.0
      %4860 = vmatprep.subr.mxu0 0.0
      %4861 = vmatpush1.msra.mxu0 0.0
      %4862 = vmatprep.subr.mxu0 0.0
      %4863 = vmatpush1.msra.mxu0 0.0
      %4864 = vmatprep.subr.mxu0 0.0
      %4865 = vmatpush1.msra.mxu0 %v4835
      %4866 = vmatprep.subr.mxu0 0.0
      %4867 = vmatpush1.msra.mxu0 %v4834
      %4868 = vmatprep.subr.mxu0 0.0
      %4869 = vmatpush2.msra.mxu0 0.0
      %4870 = vmatprep.subr.mxu0 0.0
      %4871 = vmatpush2.msra.mxu0 0.0
      %4872 = vmatprep.subr.mxu0 0.0
      %4873 = vmatpush2.msra.mxu0 0.0
      %4874 = vmatprep.subr.mxu0 0.0
      %4875 = vmatpush2.msra.mxu0 0.0
      %4876 = vmatprep.subr.mxu0 0.0
      %4877 = vmatpush2.msra.mxu0 0.0
      %4878 = vmatprep.subr.mxu0 0.0
      %4879 = vmatpush2.msra.mxu0 0.0
      %4880 = vmatprep.subr.mxu0 0.0
      %4881 = vmatpush2.msra.mxu0 0.0
      %4882 = vmatprep.subr.mxu0 0.0
      %4883 = vmatpush2.msra.mxu0 0.0
      %4884 = vmatprep.subr.mxu0 0.0
      %4885 = vmatpush2.msra.mxu0 0.0
      %4886 = vmatprep.subr.mxu0 0.0
      %4887 = vmatpush2.msra.mxu0 0.0
      %4888 = vmatprep.subr.mxu0 0.0
      %4889 = vmatpush2.msra.mxu0 0.0
      %4890 = vmatprep.subr.mxu0 0.0
      %4891 = vmatpush2.msra.mxu0 0.0
      %4892 = vmatprep.subr.mxu0 0.0
      %4893 = vmatpush2.msra.mxu0 0.0
      %4894 = vmatprep.subr.mxu0 0.0
      %4895 = vmatpush2.msra.mxu0 0.0
      %4896 = vmatprep.subr.mxu0 0.0
      %4897 = vmatpush2.msra.mxu0 0.0
      %4898 = vmatprep.subr.mxu0 0.0
      %4899 = vmatpush2.msra.mxu0 0.0
      %4900 = vmatprep.mubr.f32.mxu0 0.0
      %4901 = vmatmul.mubr.f32.gmra.mxu0 %v3617
      %v4902 = vpop.f32.mrf.mxu0
      %v4903 = vadd.f32 0.0, %v4902
      %v4904 = vpop.f32.mrf.mxu0
      %4905 = vmatprep.mubr.f32.mxu0 0.0
      %4906 = vmatmul.mubr.f32.gmra.mxu0 %v3620
      %v4907 = vpop.f32.mrf.mxu0
      %v4908 = vadd.f32 0.0, %v4907
      %v4909 = vpop.f32.mrf.mxu0
      %4910 = vmatprep.mubr.f32.mxu0 0.0
      %4911 = vmatmul.mubr.f32.gmra.mxu0 %v3623
      %v4912 = vpop.f32.mrf.mxu0
      %v4913 = vadd.f32 0.0, %v4912
      %v4914 = vpop.f32.mrf.mxu0
      %4915 = vmatprep.mubr.f32.mxu0 0.0
      %4916 = vmatmul.mubr.f32.gmra.mxu0 %v3626
      %v4917 = vpop.f32.mrf.mxu0
      %v4918 = vadd.f32 0.0, %v4917
      %v4919 = vpop.f32.mrf.mxu0
      %4920 = vdwg.mxu0
      %s4921 = scalar_lea.vmem %s7, 192
      %v4922 = vld [vmem:[%s4921] sm:$0xf]
      %v4923 = vld [vmem:[%s4921 + $0x4] sm:$0xf]
      %v4924 = vld [vmem:[%s4921 + $0x8] sm:$0xf]
      %v4925 = vld [vmem:[%s4921 + $0xc] sm:$0xf]
      %v4926 = vld [vmem:[%s4921 + $0x10] sm:$0xf]
      %v4927 = vld [vmem:[%s4921 + $0x14] sm:$0xf]
      %v4928 = vld [vmem:[%s4921 + $0x18] sm:$0xf]
      %v4929 = vld [vmem:[%s4921 + $0x1c] sm:$0xf]
      %v4930 = vpack.c.bf16 %v4908, %v4903
      %v4931 = vpack.c.bf16 %v4918, %v4913
      %v4940 = vunpack.c.l.b16 %v4922
      %v4941 = vunpack.c.l.b16 %v4923
      %v4942 = vunpack.c.l.b16 %v4924
      %v4943 = vunpack.c.l.b16 %v4925
      %v4944 = vunpack.c.l.b16 %v4926
      %v4945 = vunpack.c.l.b16 %v4927
      %v4946 = vunpack.c.l.b16 %v4928
      %v4947 = vunpack.c.l.b16 %v4929
      %v4948 = vpack.c.b16 %v4941, %v4940
      %v4949 = vpack.c.b16 %v4943, %v4942
      %v4950 = vpack.c.b16 %v4945, %v4944
      %v4951 = vpack.c.b16 %v4947, %v4946
      %v4953 = vsel %vm3842, %v4948, 0
      %v4956 = vsel %vm3842, %v4949, 0
      %v4959 = vsel %vm3842, %v4950, 0
      %v4962 = vsel %vm3842, %v4951, 0
      %4964 = vmatprep.subr.bf16.mxu0 0
      %4965 = vmatpush1.bf16.msra.mxu0 0
      %4966 = vmatprep.subr.bf16.mxu0 0
      %4967 = vmatpush1.bf16.msra.mxu0 0
      %4968 = vmatprep.subr.bf16.mxu0 0
      %4969 = vmatpush1.bf16.msra.mxu0 0
      %4970 = vmatprep.subr.bf16.mxu0 0
      %4971 = vmatpush1.bf16.msra.mxu0 0
      %4972 = vmatprep.subr.bf16.mxu0 0
      %4973 = vmatpush1.bf16.msra.mxu0 0
      %4974 = vmatprep.subr.bf16.mxu0 0
      %4975 = vmatpush1.bf16.msra.mxu0 0
      %4976 = vmatprep.subr.bf16.mxu0 0
      %4977 = vmatpush1.bf16.msra.mxu0 %v4931
      %4978 = vmatprep.subr.bf16.mxu0 0
      %4979 = vmatpush1.bf16.msra.mxu0 %v4930
      %4980 = vmatprep.subr.bf16.mxu0 0
      %4981 = vmatpush2.bf16.msra.mxu0 0
      %4982 = vmatprep.subr.bf16.mxu0 0
      %4983 = vmatpush2.bf16.msra.mxu0 0
      %4984 = vmatprep.subr.bf16.mxu0 0
      %4985 = vmatpush2.bf16.msra.mxu0 0
      %4986 = vmatprep.subr.bf16.mxu0 0
      %4987 = vmatpush2.bf16.msra.mxu0 0
      %4988 = vmatprep.subr.bf16.mxu0 0
      %4989 = vmatpush2.bf16.msra.mxu0 0
      %4990 = vmatprep.subr.bf16.mxu0 0
      %4991 = vmatpush2.bf16.msra.mxu0 0
      %4992 = vmatprep.subr.bf16.mxu0 0
      %4993 = vmatpush2.bf16.msra.mxu0 0
      %4994 = vmatprep.subr.bf16.mxu0 0
      %4995 = vmatpush2.bf16.msra.mxu0 0
      %4996 = vmatprep.mubr.bf16.mxu0 0
      %4997 = vmatmul.mubr.bf16.gmra.mxu0 %v4953
      %v4998 = vpop.f32.mrf.mxu0
      %v4999 = vadd.f32 0.0, %v4998
      %v5000 = vpop.f32.mrf.mxu0
      %v5001 = vpop.f32.mrf.mxu0
      %v5002 = vadd.f32 0.0, %v5001
      %v5003 = vpop.f32.mrf.mxu0
      %5004 = vmatprep.mubr.bf16.mxu0 0
      %5005 = vmatmul.mubr.bf16.gmra.mxu0 %v4956
      %v5006 = vpop.f32.mrf.mxu0
      %v5007 = vadd.f32 0.0, %v5006
      %v5008 = vpop.f32.mrf.mxu0
      %v5009 = vpop.f32.mrf.mxu0
      %v5010 = vadd.f32 0.0, %v5009
      %v5011 = vpop.f32.mrf.mxu0
      %5012 = vmatprep.mubr.bf16.mxu0 0
      %5013 = vmatmul.mubr.bf16.gmra.mxu0 %v4959
      %v5014 = vpop.f32.mrf.mxu0
      %v5015 = vadd.f32 0.0, %v5014
      %v5016 = vpop.f32.mrf.mxu0
      %v5017 = vpop.f32.mrf.mxu0
      %v5018 = vadd.f32 0.0, %v5017
      %v5019 = vpop.f32.mrf.mxu0
      %5020 = vmatprep.mubr.bf16.mxu0 0
      %5021 = vmatmul.mubr.bf16.gmra.mxu0 %v4962
      %v5022 = vpop.f32.mrf.mxu0
      %v5023 = vadd.f32 0.0, %v5022
      %v5024 = vpop.f32.mrf.mxu0
      %v5025 = vpop.f32.mrf.mxu0
      %v5026 = vadd.f32 0.0, %v5025
      %v5027 = vpop.f32.mrf.mxu0
      %5028 = vdwg.mxu0
      %v5029 = vadd.f32 %v4825, %v4999
      %v5030 = vadd.f32 %v4826, %v5002
      %v5031 = vadd.f32 %v4827, %v5007
      %v5032 = vadd.f32 %v4828, %v5010
      %v5033 = vadd.f32 %v4829, %v5015
      %v5034 = vadd.f32 %v4830, %v5018
      %v5035 = vadd.f32 %v4831, %v5023
      %v5036 = vadd.f32 %v4832, %v5026
      %s5037 = scalar_lea.vmem %s8, 112
      %v5038 = vld [vmem:[%s5037] sm:$0xff]
      %v5039 = vld [vmem:[%s5037 + $0x8] sm:$0xff]
      %5040 = vmatprep.subr.mxu0 0.0
      %5041 = vmatpush1.msra.mxu0 0.0
      %5042 = vmatprep.subr.mxu0 0.0
      %5043 = vmatpush1.msra.mxu0 0.0
      %5044 = vmatprep.subr.mxu0 0.0
      %5045 = vmatpush1.msra.mxu0 0.0
      %5046 = vmatprep.subr.mxu0 0.0
      %5047 = vmatpush1.msra.mxu0 0.0
      %5048 = vmatprep.subr.mxu0 0.0
      %5049 = vmatpush1.msra.mxu0 0.0
      %5050 = vmatprep.subr.mxu0 0.0
      %5051 = vmatpush1.msra.mxu0 0.0
      %5052 = vmatprep.subr.mxu0 0.0
      %5053 = vmatpush1.msra.mxu0 0.0
      %5054 = vmatprep.subr.mxu0 0.0
      %5055 = vmatpush1.msra.mxu0 0.0
      %5056 = vmatprep.subr.mxu0 0.0
      %5057 = vmatpush1.msra.mxu0 0.0
      %5058 = vmatprep.subr.mxu0 0.0
      %5059 = vmatpush1.msra.mxu0 0.0
      %5060 = vmatprep.subr.mxu0 0.0
      %5061 = vmatpush1.msra.mxu0 0.0
      %5062 = vmatprep.subr.mxu0 0.0
      %5063 = vmatpush1.msra.mxu0 0.0
      %5064 = vmatprep.subr.mxu0 0.0
      %5065 = vmatpush1.msra.mxu0 0.0
      %5066 = vmatprep.subr.mxu0 0.0
      %5067 = vmatpush1.msra.mxu0 0.0
      %5068 = vmatprep.subr.mxu0 0.0
      %5069 = vmatpush1.msra.mxu0 %v5039
      %5070 = vmatprep.subr.mxu0 0.0
      %5071 = vmatpush1.msra.mxu0 %v5038
      %5072 = vmatprep.subr.mxu0 0.0
      %5073 = vmatpush2.msra.mxu0 0.0
      %5074 = vmatprep.subr.mxu0 0.0
      %5075 = vmatpush2.msra.mxu0 0.0
      %5076 = vmatprep.subr.mxu0 0.0
      %5077 = vmatpush2.msra.mxu0 0.0
      %5078 = vmatprep.subr.mxu0 0.0
      %5079 = vmatpush2.msra.mxu0 0.0
      %5080 = vmatprep.subr.mxu0 0.0
      %5081 = vmatpush2.msra.mxu0 0.0
      %5082 = vmatprep.subr.mxu0 0.0
      %5083 = vmatpush2.msra.mxu0 0.0
      %5084 = vmatprep.subr.mxu0 0.0
      %5085 = vmatpush2.msra.mxu0 0.0
      %5086 = vmatprep.subr.mxu0 0.0
      %5087 = vmatpush2.msra.mxu0 0.0
      %5088 = vmatprep.subr.mxu0 0.0
      %5089 = vmatpush2.msra.mxu0 0.0
      %5090 = vmatprep.subr.mxu0 0.0
      %5091 = vmatpush2.msra.mxu0 0.0
      %5092 = vmatprep.subr.mxu0 0.0
      %5093 = vmatpush2.msra.mxu0 0.0
      %5094 = vmatprep.subr.mxu0 0.0
      %5095 = vmatpush2.msra.mxu0 0.0
      %5096 = vmatprep.subr.mxu0 0.0
      %5097 = vmatpush2.msra.mxu0 0.0
      %5098 = vmatprep.subr.mxu0 0.0
      %5099 = vmatpush2.msra.mxu0 0.0
      %5100 = vmatprep.subr.mxu0 0.0
      %5101 = vmatpush2.msra.mxu0 0.0
      %5102 = vmatprep.subr.mxu0 0.0
      %5103 = vmatpush2.msra.mxu0 0.0
      %5104 = vmatprep.mubr.f32.mxu0 0.0
      %5105 = vmatmul.mubr.f32.gmra.mxu0 %v3617
      %v5106 = vpop.f32.mrf.mxu0
      %v5107 = vadd.f32 0.0, %v5106
      %v5108 = vpop.f32.mrf.mxu0
      %5109 = vmatprep.mubr.f32.mxu0 0.0
      %5110 = vmatmul.mubr.f32.gmra.mxu0 %v3620
      %v5111 = vpop.f32.mrf.mxu0
      %v5112 = vadd.f32 0.0, %v5111
      %v5113 = vpop.f32.mrf.mxu0
      %5114 = vmatprep.mubr.f32.mxu0 0.0
      %5115 = vmatmul.mubr.f32.gmra.mxu0 %v3623
      %v5116 = vpop.f32.mrf.mxu0
      %v5117 = vadd.f32 0.0, %v5116
      %v5118 = vpop.f32.mrf.mxu0
      %5119 = vmatprep.mubr.f32.mxu0 0.0
      %5120 = vmatmul.mubr.f32.gmra.mxu0 %v3626
      %v5121 = vpop.f32.mrf.mxu0
      %v5122 = vadd.f32 0.0, %v5121
      %v5123 = vpop.f32.mrf.mxu0
      %5124 = vdwg.mxu0
      %s5125 = scalar_lea.vmem %s7, 224
      %v5126 = vld [vmem:[%s5125] sm:$0xf]
      %v5127 = vld [vmem:[%s5125 + $0x4] sm:$0xf]
      %v5128 = vld [vmem:[%s5125 + $0x8] sm:$0xf]
      %v5129 = vld [vmem:[%s5125 + $0xc] sm:$0xf]
      %v5130 = vld [vmem:[%s5125 + $0x10] sm:$0xf]
      %v5131 = vld [vmem:[%s5125 + $0x14] sm:$0xf]
      %v5132 = vld [vmem:[%s5125 + $0x18] sm:$0xf]
      %v5133 = vld [vmem:[%s5125 + $0x1c] sm:$0xf]
      %v5134 = vpack.c.bf16 %v5112, %v5107
      %v5135 = vpack.c.bf16 %v5122, %v5117
      %v5144 = vunpack.c.l.b16 %v5126
      %v5145 = vunpack.c.l.b16 %v5127
      %v5146 = vunpack.c.l.b16 %v5128
      %v5147 = vunpack.c.l.b16 %v5129
      %v5148 = vunpack.c.l.b16 %v5130
      %v5149 = vunpack.c.l.b16 %v5131
      %v5150 = vunpack.c.l.b16 %v5132
      %v5151 = vunpack.c.l.b16 %v5133
      %v5152 = vpack.c.b16 %v5145, %v5144
      %v5153 = vpack.c.b16 %v5147, %v5146
      %v5154 = vpack.c.b16 %v5149, %v5148
      %v5155 = vpack.c.b16 %v5151, %v5150
      %v5157 = vsel %vm3842, %v5152, 0
      %v5160 = vsel %vm3842, %v5153, 0
      %v5163 = vsel %vm3842, %v5154, 0
      %v5166 = vsel %vm3842, %v5155, 0
      %5168 = vmatprep.subr.bf16.mxu0 0
      %5169 = vmatpush1.bf16.msra.mxu0 0
      %5170 = vmatprep.subr.bf16.mxu0 0
      %5171 = vmatpush1.bf16.msra.mxu0 0
      %5172 = vmatprep.subr.bf16.mxu0 0
      %5173 = vmatpush1.bf16.msra.mxu0 0
      %5174 = vmatprep.subr.bf16.mxu0 0
      %5175 = vmatpush1.bf16.msra.mxu0 0
      %5176 = vmatprep.subr.bf16.mxu0 0
      %5177 = vmatpush1.bf16.msra.mxu0 0
      %5178 = vmatprep.subr.bf16.mxu0 0
      %5179 = vmatpush1.bf16.msra.mxu0 0
      %5180 = vmatprep.subr.bf16.mxu0 0
      %5181 = vmatpush1.bf16.msra.mxu0 %v5135
      %5182 = vmatprep.subr.bf16.mxu0 0
      %5183 = vmatpush1.bf16.msra.mxu0 %v5134
      %5184 = vmatprep.subr.bf16.mxu0 0
      %5185 = vmatpush2.bf16.msra.mxu0 0
      %5186 = vmatprep.subr.bf16.mxu0 0
      %5187 = vmatpush2.bf16.msra.mxu0 0
      %5188 = vmatprep.subr.bf16.mxu0 0
      %5189 = vmatpush2.bf16.msra.mxu0 0
      %5190 = vmatprep.subr.bf16.mxu0 0
      %5191 = vmatpush2.bf16.msra.mxu0 0
      %5192 = vmatprep.subr.bf16.mxu0 0
      %5193 = vmatpush2.bf16.msra.mxu0 0
      %5194 = vmatprep.subr.bf16.mxu0 0
      %5195 = vmatpush2.bf16.msra.mxu0 0
      %5196 = vmatprep.subr.bf16.mxu0 0
      %5197 = vmatpush2.bf16.msra.mxu0 0
      %5198 = vmatprep.subr.bf16.mxu0 0
      %5199 = vmatpush2.bf16.msra.mxu0 0
      %5200 = vmatprep.mubr.bf16.mxu0 0
      %5201 = vmatmul.mubr.bf16.gmra.mxu0 %v5157
      %v5202 = vpop.f32.mrf.mxu0
      %v5203 = vadd.f32 0.0, %v5202
      %v5204 = vpop.f32.mrf.mxu0
      %v5205 = vpop.f32.mrf.mxu0
      %v5206 = vadd.f32 0.0, %v5205
      %v5207 = vpop.f32.mrf.mxu0
      %5208 = vmatprep.mubr.bf16.mxu0 0
      %5209 = vmatmul.mubr.bf16.gmra.mxu0 %v5160
      %v5210 = vpop.f32.mrf.mxu0
      %v5211 = vadd.f32 0.0, %v5210
      %v5212 = vpop.f32.mrf.mxu0
      %v5213 = vpop.f32.mrf.mxu0
      %v5214 = vadd.f32 0.0, %v5213
      %v5215 = vpop.f32.mrf.mxu0
      %5216 = vmatprep.mubr.bf16.mxu0 0
      %5217 = vmatmul.mubr.bf16.gmra.mxu0 %v5163
      %v5218 = vpop.f32.mrf.mxu0
      %v5219 = vadd.f32 0.0, %v5218
      %v5220 = vpop.f32.mrf.mxu0
      %v5221 = vpop.f32.mrf.mxu0
      %v5222 = vadd.f32 0.0, %v5221
      %v5223 = vpop.f32.mrf.mxu0
      %5224 = vmatprep.mubr.bf16.mxu0 0
      %5225 = vmatmul.mubr.bf16.gmra.mxu0 %v5166
      %v5226 = vpop.f32.mrf.mxu0
      %v5227 = vadd.f32 0.0, %v5226
      %v5228 = vpop.f32.mrf.mxu0
      %v5229 = vpop.f32.mrf.mxu0
      %v5230 = vadd.f32 0.0, %v5229
      %v5231 = vpop.f32.mrf.mxu0
      %5232 = vdwg.mxu0
      %v5233 = vadd.f32 %v5029, %v5203
      %v5234 = vadd.f32 %v5030, %v5206
      %v5235 = vadd.f32 %v5031, %v5211
      %v5236 = vadd.f32 %v5032, %v5214
      %v5237 = vadd.f32 %v5033, %v5219
      %v5238 = vadd.f32 %v5034, %v5222
      %v5239 = vadd.f32 %v5035, %v5227
      %v5240 = vadd.f32 %v5036, %v5230
      %s5241 = scalar_lea.vmem %s8, 128
      %v5242 = vld [vmem:[%s5241] sm:$0xff]
      %v5243 = vld [vmem:[%s5241 + $0x8] sm:$0xff]
      %5244 = vmatprep.subr.mxu0 0.0
      %5245 = vmatpush1.msra.mxu0 0.0
      %5246 = vmatprep.subr.mxu0 0.0
      %5247 = vmatpush1.msra.mxu0 0.0
      %5248 = vmatprep.subr.mxu0 0.0
      %5249 = vmatpush1.msra.mxu0 0.0
      %5250 = vmatprep.subr.mxu0 0.0
      %5251 = vmatpush1.msra.mxu0 0.0
      %5252 = vmatprep.subr.mxu0 0.0
      %5253 = vmatpush1.msra.mxu0 0.0
      %5254 = vmatprep.subr.mxu0 0.0
      %5255 = vmatpush1.msra.mxu0 0.0
      %5256 = vmatprep.subr.mxu0 0.0
      %5257 = vmatpush1.msra.mxu0 0.0
      %5258 = vmatprep.subr.mxu0 0.0
      %5259 = vmatpush1.msra.mxu0 0.0
      %5260 = vmatprep.subr.mxu0 0.0
      %5261 = vmatpush1.msra.mxu0 0.0
      %5262 = vmatprep.subr.mxu0 0.0
      %5263 = vmatpush1.msra.mxu0 0.0
      %5264 = vmatprep.subr.mxu0 0.0
      %5265 = vmatpush1.msra.mxu0 0.0
      %5266 = vmatprep.subr.mxu0 0.0
      %5267 = vmatpush1.msra.mxu0 0.0
      %5268 = vmatprep.subr.mxu0 0.0
      %5269 = vmatpush1.msra.mxu0 0.0
      %5270 = vmatprep.subr.mxu0 0.0
      %5271 = vmatpush1.msra.mxu0 0.0
      %5272 = vmatprep.subr.mxu0 0.0
      %5273 = vmatpush1.msra.mxu0 %v5243
      %5274 = vmatprep.subr.mxu0 0.0
      %5275 = vmatpush1.msra.mxu0 %v5242
      %5276 = vmatprep.subr.mxu0 0.0
      %5277 = vmatpush2.msra.mxu0 0.0
      %5278 = vmatprep.subr.mxu0 0.0
      %5279 = vmatpush2.msra.mxu0 0.0
      %5280 = vmatprep.subr.mxu0 0.0
      %5281 = vmatpush2.msra.mxu0 0.0
      %5282 = vmatprep.subr.mxu0 0.0
      %5283 = vmatpush2.msra.mxu0 0.0
      %5284 = vmatprep.subr.mxu0 0.0
      %5285 = vmatpush2.msra.mxu0 0.0
      %5286 = vmatprep.subr.mxu0 0.0
      %5287 = vmatpush2.msra.mxu0 0.0
      %5288 = vmatprep.subr.mxu0 0.0
      %5289 = vmatpush2.msra.mxu0 0.0
      %5290 = vmatprep.subr.mxu0 0.0
      %5291 = vmatpush2.msra.mxu0 0.0
      %5292 = vmatprep.subr.mxu0 0.0
      %5293 = vmatpush2.msra.mxu0 0.0
      %5294 = vmatprep.subr.mxu0 0.0
      %5295 = vmatpush2.msra.mxu0 0.0
      %5296 = vmatprep.subr.mxu0 0.0
      %5297 = vmatpush2.msra.mxu0 0.0
      %5298 = vmatprep.subr.mxu0 0.0
      %5299 = vmatpush2.msra.mxu0 0.0
      %5300 = vmatprep.subr.mxu0 0.0
      %5301 = vmatpush2.msra.mxu0 0.0
      %5302 = vmatprep.subr.mxu0 0.0
      %5303 = vmatpush2.msra.mxu0 0.0
      %5304 = vmatprep.subr.mxu0 0.0
      %5305 = vmatpush2.msra.mxu0 0.0
      %5306 = vmatprep.subr.mxu0 0.0
      %5307 = vmatpush2.msra.mxu0 0.0
      %5308 = vmatprep.mubr.f32.mxu0 0.0
      %5309 = vmatmul.mubr.f32.gmra.mxu0 %v3617
      %v5310 = vpop.f32.mrf.mxu0
      %v5311 = vadd.f32 0.0, %v5310
      %v5312 = vpop.f32.mrf.mxu0
      %5313 = vmatprep.mubr.f32.mxu0 0.0
      %5314 = vmatmul.mubr.f32.gmra.mxu0 %v3620
      %v5315 = vpop.f32.mrf.mxu0
      %v5316 = vadd.f32 0.0, %v5315
      %v5317 = vpop.f32.mrf.mxu0
      %5318 = vmatprep.mubr.f32.mxu0 0.0
      %5319 = vmatmul.mubr.f32.gmra.mxu0 %v3623
      %v5320 = vpop.f32.mrf.mxu0
      %v5321 = vadd.f32 0.0, %v5320
      %v5322 = vpop.f32.mrf.mxu0
      %5323 = vmatprep.mubr.f32.mxu0 0.0
      %5324 = vmatmul.mubr.f32.gmra.mxu0 %v3626
      %v5325 = vpop.f32.mrf.mxu0
      %v5326 = vadd.f32 0.0, %v5325
      %v5327 = vpop.f32.mrf.mxu0
      %5328 = vdwg.mxu0
      %s5329 = scalar_lea.vmem %s7, 256
      %v5330 = vld [vmem:[%s5329] sm:$0xf]
      %v5331 = vld [vmem:[%s5329 + $0x4] sm:$0xf]
      %v5332 = vld [vmem:[%s5329 + $0x8] sm:$0xf]
      %v5333 = vld [vmem:[%s5329 + $0xc] sm:$0xf]
      %v5334 = vld [vmem:[%s5329 + $0x10] sm:$0xf]
      %v5335 = vld [vmem:[%s5329 + $0x14] sm:$0xf]
      %v5336 = vld [vmem:[%s5329 + $0x18] sm:$0xf]
      %v5337 = vld [vmem:[%s5329 + $0x1c] sm:$0xf]
      %v5338 = vpack.c.bf16 %v5316, %v5311
      %v5339 = vpack.c.bf16 %v5326, %v5321
      %v5348 = vunpack.c.l.b16 %v5330
      %v5349 = vunpack.c.l.b16 %v5331
      %v5350 = vunpack.c.l.b16 %v5332
      %v5351 = vunpack.c.l.b16 %v5333
      %v5352 = vunpack.c.l.b16 %v5334
      %v5353 = vunpack.c.l.b16 %v5335
      %v5354 = vunpack.c.l.b16 %v5336
      %v5355 = vunpack.c.l.b16 %v5337
      %v5356 = vpack.c.b16 %v5349, %v5348
      %v5357 = vpack.c.b16 %v5351, %v5350
      %v5358 = vpack.c.b16 %v5353, %v5352
      %v5359 = vpack.c.b16 %v5355, %v5354
      %v5361 = vsel %vm3842, %v5356, 0
      %v5364 = vsel %vm3842, %v5357, 0
      %v5367 = vsel %vm3842, %v5358, 0
      %v5370 = vsel %vm3842, %v5359, 0
      %5372 = vmatprep.subr.bf16.mxu0 0
      %5373 = vmatpush1.bf16.msra.mxu0 0
      %5374 = vmatprep.subr.bf16.mxu0 0
      %5375 = vmatpush1.bf16.msra.mxu0 0
      %5376 = vmatprep.subr.bf16.mxu0 0
      %5377 = vmatpush1.bf16.msra.mxu0 0
      %5378 = vmatprep.subr.bf16.mxu0 0
      %5379 = vmatpush1.bf16.msra.mxu0 0
      %5380 = vmatprep.subr.bf16.mxu0 0
      %5381 = vmatpush1.bf16.msra.mxu0 0
      %5382 = vmatprep.subr.bf16.mxu0 0
      %5383 = vmatpush1.bf16.msra.mxu0 0
      %5384 = vmatprep.subr.bf16.mxu0 0
      %5385 = vmatpush1.bf16.msra.mxu0 %v5339
      %5386 = vmatprep.subr.bf16.mxu0 0
      %5387 = vmatpush1.bf16.msra.mxu0 %v5338
      %5388 = vmatprep.subr.bf16.mxu0 0
      %5389 = vmatpush2.bf16.msra.mxu0 0
      %5390 = vmatprep.subr.bf16.mxu0 0
      %5391 = vmatpush2.bf16.msra.mxu0 0
      %5392 = vmatprep.subr.bf16.mxu0 0
      %5393 = vmatpush2.bf16.msra.mxu0 0
      %5394 = vmatprep.subr.bf16.mxu0 0
      %5395 = vmatpush2.bf16.msra.mxu0 0
      %5396 = vmatprep.subr.bf16.mxu0 0
      %5397 = vmatpush2.bf16.msra.mxu0 0
      %5398 = vmatprep.subr.bf16.mxu0 0
      %5399 = vmatpush2.bf16.msra.mxu0 0
      %5400 = vmatprep.subr.bf16.mxu0 0
      %5401 = vmatpush2.bf16.msra.mxu0 0
      %5402 = vmatprep.subr.bf16.mxu0 0
      %5403 = vmatpush2.bf16.msra.mxu0 0
      %5404 = vmatprep.mubr.bf16.mxu0 0
      %5405 = vmatmul.mubr.bf16.gmra.mxu0 %v5361
      %v5406 = vpop.f32.mrf.mxu0
      %v5407 = vadd.f32 0.0, %v5406
      %v5408 = vpop.f32.mrf.mxu0
      %v5409 = vpop.f32.mrf.mxu0
      %v5410 = vadd.f32 0.0, %v5409
      %v5411 = vpop.f32.mrf.mxu0
      %5412 = vmatprep.mubr.bf16.mxu0 0
      %5413 = vmatmul.mubr.bf16.gmra.mxu0 %v5364
      %v5414 = vpop.f32.mrf.mxu0
      %v5415 = vadd.f32 0.0, %v5414
      %v5416 = vpop.f32.mrf.mxu0
      %v5417 = vpop.f32.mrf.mxu0
      %v5418 = vadd.f32 0.0, %v5417
      %v5419 = vpop.f32.mrf.mxu0
      %5420 = vmatprep.mubr.bf16.mxu0 0
      %5421 = vmatmul.mubr.bf16.gmra.mxu0 %v5367
      %v5422 = vpop.f32.mrf.mxu0
      %v5423 = vadd.f32 0.0, %v5422
      %v5424 = vpop.f32.mrf.mxu0
      %v5425 = vpop.f32.mrf.mxu0
      %v5426 = vadd.f32 0.0, %v5425
      %v5427 = vpop.f32.mrf.mxu0
      %5428 = vmatprep.mubr.bf16.mxu0 0
      %5429 = vmatmul.mubr.bf16.gmra.mxu0 %v5370
      %v5430 = vpop.f32.mrf.mxu0
      %v5431 = vadd.f32 0.0, %v5430
      %v5432 = vpop.f32.mrf.mxu0
      %v5433 = vpop.f32.mrf.mxu0
      %v5434 = vadd.f32 0.0, %v5433
      %v5435 = vpop.f32.mrf.mxu0
      %5436 = vdwg.mxu0
      %v5437 = vadd.f32 %v5233, %v5407
      %v5438 = vadd.f32 %v5234, %v5410
      %v5439 = vadd.f32 %v5235, %v5415
      %v5440 = vadd.f32 %v5236, %v5418
      %v5441 = vadd.f32 %v5237, %v5423
      %v5442 = vadd.f32 %v5238, %v5426
      %v5443 = vadd.f32 %v5239, %v5431
      %v5444 = vadd.f32 %v5240, %v5434
      %v5445 = vld [vmem:[%s9] sm:$0xff]
      %v5446 = vld [vmem:[%s9 + $0x8] sm:$0xff]
      %v5447 = vld [vmem:[%s9 + $0x10] sm:$0xff]
      %v5448 = vld [vmem:[%s9 + $0x18] sm:$0xff]
      %v5449 = vld [vmem:[%s9 + $0x20] sm:$0xff]
      %v5450 = vld [vmem:[%s9 + $0x28] sm:$0xff]
      %v5451 = vld [vmem:[%s9 + $0x30] sm:$0xff]
      %v5452 = vld [vmem:[%s9 + $0x38] sm:$0xff]
      %5454 = vset.pattern.permute.xlu0 0
      %5455 = vperm.xlu0 %5454, %v5445
      %v5456 = vpop.permute.xlu0 %5455
      %5459 = vset.pattern.permute.xlu0 0
      %5460 = vperm.xlu0 %5459, %v5446
      %v5461 = vpop.permute.xlu0 %5460
      %5464 = vset.pattern.permute.xlu0 0
      %5465 = vperm.xlu0 %5464, %v5447
      %v5466 = vpop.permute.xlu0 %5465
      %5469 = vset.pattern.permute.xlu0 0
      %5470 = vperm.xlu0 %5469, %v5448
      %v5471 = vpop.permute.xlu0 %5470
      %5474 = vset.pattern.permute.xlu0 0
      %5475 = vperm.xlu0 %5474, %v5449
      %v5476 = vpop.permute.xlu0 %5475
      %5479 = vset.pattern.permute.xlu0 0
      %5480 = vperm.xlu0 %5479, %v5450
      %v5481 = vpop.permute.xlu0 %5480
      %5484 = vset.pattern.permute.xlu0 0
      %5485 = vperm.xlu0 %5484, %v5451
      %v5486 = vpop.permute.xlu0 %5485
      %5489 = vset.pattern.permute.xlu0 0
      %5490 = vperm.xlu0 %5489, %v5452
      %v5491 = vpop.permute.xlu0 %5490
      %v5493 = vadd.f32 %v5437, %v5456
      %v5494 = vadd.f32 %v5438, %v5461
      %v5495 = vadd.f32 %v5439, %v5466
      %v5496 = vadd.f32 %v5440, %v5471
      %v5497 = vadd.f32 %v5441, %v5476
      %v5498 = vadd.f32 %v5442, %v5481
      %v5499 = vadd.f32 %v5443, %v5486
      %v5500 = vadd.f32 %v5444, %v5491
      %v5501 = vmax.f32 %v5493, 0.0
      %v5502 = vmax.f32 %v5494, 0.0
      %v5503 = vmax.f32 %v5495, 0.0
      %v5504 = vmax.f32 %v5496, 0.0
      %v5505 = vmax.f32 %v5497, 0.0
      %v5506 = vmax.f32 %v5498, 0.0
      %v5507 = vmax.f32 %v5499, 0.0
      %v5508 = vmax.f32 %v5500, 0.0
      %v5509 = vld [vmem:[%s11] sm:$0xf]
      %vm5510 = vcmask 31744
      %v5512 = vsel %vm5510, %v5501, 0
      %v5515 = vsel %vm5510, %v5502, 0
      %v5518 = vsel %vm5510, %v5503, 0
      %v5521 = vsel %vm5510, %v5504, 0
      %v5524 = vsel %vm5510, %v5505, 0
      %v5527 = vsel %vm5510, %v5506, 0
      %v5530 = vsel %vm5510, %v5507, 0
      %v5533 = vsel %vm5510, %v5508, 0
      %vm5535 = vcmask 1043456
      %v5537 = vsel %vm5535, %v5509, 0
      %5539 = vmatprep.subr.mxu0 0.0
      %5540 = vmatpush1.msra.mxu0 0.0
      %5541 = vmatprep.subr.mxu0 0.0
      %5542 = vmatpush1.msra.mxu0 0.0
      %5543 = vmatprep.subr.mxu0 0.0
      %5544 = vmatpush1.msra.mxu0 0.0
      %5545 = vmatprep.subr.mxu0 0.0
      %5546 = vmatpush1.msra.mxu0 0.0
      %5547 = vmatprep.subr.mxu0 0.0
      %5548 = vmatpush1.msra.mxu0 0.0
      %5549 = vmatprep.subr.mxu0 0.0
      %5550 = vmatpush1.msra.mxu0 0.0
      %5551 = vmatprep.subr.mxu0 0.0
      %5552 = vmatpush1.msra.mxu0 0.0
      %5553 = vmatprep.subr.mxu0 0.0
      %5554 = vmatpush1.msra.mxu0 0.0
      %5555 = vmatprep.subr.mxu0 0.0
      %5556 = vmatpush1.msra.mxu0 0.0
      %5557 = vmatprep.subr.mxu0 0.0
      %5558 = vmatpush1.msra.mxu0 0.0
      %5559 = vmatprep.subr.mxu0 0.0
      %5560 = vmatpush1.msra.mxu0 0.0
      %5561 = vmatprep.subr.mxu0 0.0
      %5562 = vmatpush1.msra.mxu0 0.0
      %5563 = vmatprep.subr.mxu0 0.0
      %5564 = vmatpush1.msra.mxu0 0.0
      %5565 = vmatprep.subr.mxu0 0.0
      %5566 = vmatpush1.msra.mxu0 0.0
      %5567 = vmatprep.subr.mxu0 0.0
      %5568 = vmatpush1.msra.mxu0 0.0
      %5569 = vmatprep.subr.mxu0 0.0
      %5570 = vmatpush1.msra.mxu0 %v5537
      %5571 = vmatprep.subr.mxu0 0.0
      %5572 = vmatpush2.msra.mxu0 0.0
      %5573 = vmatprep.subr.mxu0 0.0
      %5574 = vmatpush2.msra.mxu0 0.0
      %5575 = vmatprep.subr.mxu0 0.0
      %5576 = vmatpush2.msra.mxu0 0.0
      %5577 = vmatprep.subr.mxu0 0.0
      %5578 = vmatpush2.msra.mxu0 0.0
      %5579 = vmatprep.subr.mxu0 0.0
      %5580 = vmatpush2.msra.mxu0 0.0
      %5581 = vmatprep.subr.mxu0 0.0
      %5582 = vmatpush2.msra.mxu0 0.0
      %5583 = vmatprep.subr.mxu0 0.0
      %5584 = vmatpush2.msra.mxu0 0.0
      %5585 = vmatprep.subr.mxu0 0.0
      %5586 = vmatpush2.msra.mxu0 0.0
      %5587 = vmatprep.subr.mxu0 0.0
      %5588 = vmatpush2.msra.mxu0 0.0
      %5589 = vmatprep.subr.mxu0 0.0
      %5590 = vmatpush2.msra.mxu0 0.0
      %5591 = vmatprep.subr.mxu0 0.0
      %5592 = vmatpush2.msra.mxu0 0.0
      %5593 = vmatprep.subr.mxu0 0.0
      %5594 = vmatpush2.msra.mxu0 0.0
      %5595 = vmatprep.subr.mxu0 0.0
      %5596 = vmatpush2.msra.mxu0 0.0
      %5597 = vmatprep.subr.mxu0 0.0
      %5598 = vmatpush2.msra.mxu0 0.0
      %5599 = vmatprep.subr.mxu0 0.0
      %5600 = vmatpush2.msra.mxu0 0.0
      %5601 = vmatprep.subr.mxu0 0.0
      %5602 = vmatpush2.msra.mxu0 0.0
      %5603 = vmatprep.mubr.f32.mxu0 0.0
      %5604 = vmatmul.mubr.f32.gmra.mxu0 %v5512
      %v5605 = vpop.f32.mrf.mxu0
      %v5606 = vadd.f32 0.0, %v5605
      %v5607 = vpop.f32.mrf.mxu0
      %5608 = vmatprep.mubr.f32.mxu0 0.0
      %5609 = vmatmul.mubr.f32.gmra.mxu0 %v5515
      %v5610 = vpop.f32.mrf.mxu0
      %v5611 = vadd.f32 0.0, %v5610
      %v5612 = vpop.f32.mrf.mxu0
      %5613 = vmatprep.mubr.f32.mxu0 0.0
      %5614 = vmatmul.mubr.f32.gmra.mxu0 %v5518
      %v5615 = vpop.f32.mrf.mxu0
      %v5616 = vadd.f32 0.0, %v5615
      %v5617 = vpop.f32.mrf.mxu0
      %5618 = vmatprep.mubr.f32.mxu0 0.0
      %5619 = vmatmul.mubr.f32.gmra.mxu0 %v5521
      %v5620 = vpop.f32.mrf.mxu0
      %v5621 = vadd.f32 0.0, %v5620
      %v5622 = vpop.f32.mrf.mxu0
      %5623 = vmatprep.mubr.f32.mxu0 0.0
      %5624 = vmatmul.mubr.f32.gmra.mxu0 %v5524
      %v5625 = vpop.f32.mrf.mxu0
      %v5626 = vadd.f32 0.0, %v5625
      %v5627 = vpop.f32.mrf.mxu0
      %5628 = vmatprep.mubr.f32.mxu0 0.0
      %5629 = vmatmul.mubr.f32.gmra.mxu0 %v5527
      %v5630 = vpop.f32.mrf.mxu0
      %v5631 = vadd.f32 0.0, %v5630
      %v5632 = vpop.f32.mrf.mxu0
      %5633 = vmatprep.mubr.f32.mxu0 0.0
      %5634 = vmatmul.mubr.f32.gmra.mxu0 %v5530
      %v5635 = vpop.f32.mrf.mxu0
      %v5636 = vadd.f32 0.0, %v5635
      %v5637 = vpop.f32.mrf.mxu0
      %5638 = vmatprep.mubr.f32.mxu0 0.0
      %5639 = vmatmul.mubr.f32.gmra.mxu0 %v5533
      %v5640 = vpop.f32.mrf.mxu0
      %v5641 = vadd.f32 0.0, %v5640
      %v5642 = vpop.f32.mrf.mxu0
      %5643 = vdwg.mxu0
      %v5644 = vpack.c.bf16 %v5611, %v5606
      %v5645 = vpack.c.bf16 %v5621, %v5616
      %v5646 = vpack.c.bf16 %v5631, %v5626
      %v5647 = vpack.c.bf16 %v5641, %v5636
      %s5648 = scalar_lea.vmem %s11, 4
      %v5649 = vld [vmem:[%s5648] sm:$0xf]
      %v5651 = vsel %vm5535, %v5649, 0
      %5653 = vmatprep.subr.mxu0 0.0
      %5654 = vmatpush1.msra.mxu0 0.0
      %5655 = vmatprep.subr.mxu0 0.0
      %5656 = vmatpush1.msra.mxu0 0.0
      %5657 = vmatprep.subr.mxu0 0.0
      %5658 = vmatpush1.msra.mxu0 0.0
      %5659 = vmatprep.subr.mxu0 0.0
      %5660 = vmatpush1.msra.mxu0 0.0
      %5661 = vmatprep.subr.mxu0 0.0
      %5662 = vmatpush1.msra.mxu0 0.0
      %5663 = vmatprep.subr.mxu0 0.0
      %5664 = vmatpush1.msra.mxu0 0.0
      %5665 = vmatprep.subr.mxu0 0.0
      %5666 = vmatpush1.msra.mxu0 0.0
      %5667 = vmatprep.subr.mxu0 0.0
      %5668 = vmatpush1.msra.mxu0 0.0
      %5669 = vmatprep.subr.mxu0 0.0
      %5670 = vmatpush1.msra.mxu0 0.0
      %5671 = vmatprep.subr.mxu0 0.0
      %5672 = vmatpush1.msra.mxu0 0.0
      %5673 = vmatprep.subr.mxu0 0.0
      %5674 = vmatpush1.msra.mxu0 0.0
      %5675 = vmatprep.subr.mxu0 0.0
      %5676 = vmatpush1.msra.mxu0 0.0
      %5677 = vmatprep.subr.mxu0 0.0
      %5678 = vmatpush1.msra.mxu0 0.0
      %5679 = vmatprep.subr.mxu0 0.0
      %5680 = vmatpush1.msra.mxu0 0.0
      %5681 = vmatprep.subr.mxu0 0.0
      %5682 = vmatpush1.msra.mxu0 0.0
      %5683 = vmatprep.subr.mxu0 0.0
      %5684 = vmatpush1.msra.mxu0 %v5651
      %5685 = vmatprep.subr.mxu0 0.0
      %5686 = vmatpush2.msra.mxu0 0.0
      %5687 = vmatprep.subr.mxu0 0.0
      %5688 = vmatpush2.msra.mxu0 0.0
      %5689 = vmatprep.subr.mxu0 0.0
      %5690 = vmatpush2.msra.mxu0 0.0
      %5691 = vmatprep.subr.mxu0 0.0
      %5692 = vmatpush2.msra.mxu0 0.0
      %5693 = vmatprep.subr.mxu0 0.0
      %5694 = vmatpush2.msra.mxu0 0.0
      %5695 = vmatprep.subr.mxu0 0.0
      %5696 = vmatpush2.msra.mxu0 0.0
      %5697 = vmatprep.subr.mxu0 0.0
      %5698 = vmatpush2.msra.mxu0 0.0
      %5699 = vmatprep.subr.mxu0 0.0
      %5700 = vmatpush2.msra.mxu0 0.0
      %5701 = vmatprep.subr.mxu0 0.0
      %5702 = vmatpush2.msra.mxu0 0.0
      %5703 = vmatprep.subr.mxu0 0.0
      %5704 = vmatpush2.msra.mxu0 0.0
      %5705 = vmatprep.subr.mxu0 0.0
      %5706 = vmatpush2.msra.mxu0 0.0
      %5707 = vmatprep.subr.mxu0 0.0
      %5708 = vmatpush2.msra.mxu0 0.0
      %5709 = vmatprep.subr.mxu0 0.0
      %5710 = vmatpush2.msra.mxu0 0.0
      %5711 = vmatprep.subr.mxu0 0.0
      %5712 = vmatpush2.msra.mxu0 0.0
      %5713 = vmatprep.subr.mxu0 0.0
      %5714 = vmatpush2.msra.mxu0 0.0
      %5715 = vmatprep.subr.mxu0 0.0
      %5716 = vmatpush2.msra.mxu0 0.0
      %5717 = vmatprep.mubr.f32.mxu0 0.0
      %5718 = vmatmul.mubr.f32.gmra.mxu0 %v5512
      %v5719 = vpop.f32.mrf.mxu0
      %v5720 = vadd.f32 0.0, %v5719
      %v5721 = vpop.f32.mrf.mxu0
      %5722 = vmatprep.mubr.f32.mxu0 0.0
      %5723 = vmatmul.mubr.f32.gmra.mxu0 %v5515
      %v5724 = vpop.f32.mrf.mxu0
      %v5725 = vadd.f32 0.0, %v5724
      %v5726 = vpop.f32.mrf.mxu0
      %5727 = vmatprep.mubr.f32.mxu0 0.0
      %5728 = vmatmul.mubr.f32.gmra.mxu0 %v5518
      %v5729 = vpop.f32.mrf.mxu0
      %v5730 = vadd.f32 0.0, %v5729
      %v5731 = vpop.f32.mrf.mxu0
      %5732 = vmatprep.mubr.f32.mxu0 0.0
      %5733 = vmatmul.mubr.f32.gmra.mxu0 %v5521
      %v5734 = vpop.f32.mrf.mxu0
      %v5735 = vadd.f32 0.0, %v5734
      %v5736 = vpop.f32.mrf.mxu0
      %5737 = vmatprep.mubr.f32.mxu0 0.0
      %5738 = vmatmul.mubr.f32.gmra.mxu0 %v5524
      %v5739 = vpop.f32.mrf.mxu0
      %v5740 = vadd.f32 0.0, %v5739
      %v5741 = vpop.f32.mrf.mxu0
      %5742 = vmatprep.mubr.f32.mxu0 0.0
      %5743 = vmatmul.mubr.f32.gmra.mxu0 %v5527
      %v5744 = vpop.f32.mrf.mxu0
      %v5745 = vadd.f32 0.0, %v5744
      %v5746 = vpop.f32.mrf.mxu0
      %5747 = vmatprep.mubr.f32.mxu0 0.0
      %5748 = vmatmul.mubr.f32.gmra.mxu0 %v5530
      %v5749 = vpop.f32.mrf.mxu0
      %v5750 = vadd.f32 0.0, %v5749
      %v5751 = vpop.f32.mrf.mxu0
      %5752 = vmatprep.mubr.f32.mxu0 0.0
      %5753 = vmatmul.mubr.f32.gmra.mxu0 %v5533
      %v5754 = vpop.f32.mrf.mxu0
      %v5755 = vadd.f32 0.0, %v5754
      %v5756 = vpop.f32.mrf.mxu0
      %5757 = vdwg.mxu0
      %v5758 = vpack.c.bf16 %v5725, %v5720
      %v5759 = vpack.c.bf16 %v5735, %v5730
      %v5760 = vpack.c.bf16 %v5745, %v5740
      %v5761 = vpack.c.bf16 %v5755, %v5750
      %s5762 = scalar_lea.vmem %s11, 8
      %v5763 = vld [vmem:[%s5762] sm:$0xf]
      %v5765 = vsel %vm5535, %v5763, 0
      %5767 = vmatprep.subr.mxu0 0.0
      %5768 = vmatpush1.msra.mxu0 0.0
      %5769 = vmatprep.subr.mxu0 0.0
      %5770 = vmatpush1.msra.mxu0 0.0
      %5771 = vmatprep.subr.mxu0 0.0
      %5772 = vmatpush1.msra.mxu0 0.0
      %5773 = vmatprep.subr.mxu0 0.0
      %5774 = vmatpush1.msra.mxu0 0.0
      %5775 = vmatprep.subr.mxu0 0.0
      %5776 = vmatpush1.msra.mxu0 0.0
      %5777 = vmatprep.subr.mxu0 0.0
      %5778 = vmatpush1.msra.mxu0 0.0
      %5779 = vmatprep.subr.mxu0 0.0
      %5780 = vmatpush1.msra.mxu0 0.0
      %5781 = vmatprep.subr.mxu0 0.0
      %5782 = vmatpush1.msra.mxu0 0.0
      %5783 = vmatprep.subr.mxu0 0.0
      %5784 = vmatpush1.msra.mxu0 0.0
      %5785 = vmatprep.subr.mxu0 0.0
      %5786 = vmatpush1.msra.mxu0 0.0
      %5787 = vmatprep.subr.mxu0 0.0
      %5788 = vmatpush1.msra.mxu0 0.0
      %5789 = vmatprep.subr.mxu0 0.0
      %5790 = vmatpush1.msra.mxu0 0.0
      %5791 = vmatprep.subr.mxu0 0.0
      %5792 = vmatpush1.msra.mxu0 0.0
      %5793 = vmatprep.subr.mxu0 0.0
      %5794 = vmatpush1.msra.mxu0 0.0
      %5795 = vmatprep.subr.mxu0 0.0
      %5796 = vmatpush1.msra.mxu0 0.0
      %5797 = vmatprep.subr.mxu0 0.0
      %5798 = vmatpush1.msra.mxu0 %v5765
      %5799 = vmatprep.subr.mxu0 0.0
      %5800 = vmatpush2.msra.mxu0 0.0
      %5801 = vmatprep.subr.mxu0 0.0
      %5802 = vmatpush2.msra.mxu0 0.0
      %5803 = vmatprep.subr.mxu0 0.0
      %5804 = vmatpush2.msra.mxu0 0.0
      %5805 = vmatprep.subr.mxu0 0.0
      %5806 = vmatpush2.msra.mxu0 0.0
      %5807 = vmatprep.subr.mxu0 0.0
      %5808 = vmatpush2.msra.mxu0 0.0
      %5809 = vmatprep.subr.mxu0 0.0
      %5810 = vmatpush2.msra.mxu0 0.0
      %5811 = vmatprep.subr.mxu0 0.0
      %5812 = vmatpush2.msra.mxu0 0.0
      %5813 = vmatprep.subr.mxu0 0.0
      %5814 = vmatpush2.msra.mxu0 0.0
      %5815 = vmatprep.subr.mxu0 0.0
      %5816 = vmatpush2.msra.mxu0 0.0
      %5817 = vmatprep.subr.mxu0 0.0
      %5818 = vmatpush2.msra.mxu0 0.0
      %5819 = vmatprep.subr.mxu0 0.0
      %5820 = vmatpush2.msra.mxu0 0.0
      %5821 = vmatprep.subr.mxu0 0.0
      %5822 = vmatpush2.msra.mxu0 0.0
      %5823 = vmatprep.subr.mxu0 0.0
      %5824 = vmatpush2.msra.mxu0 0.0
      %5825 = vmatprep.subr.mxu0 0.0
      %5826 = vmatpush2.msra.mxu0 0.0
      %5827 = vmatprep.subr.mxu0 0.0
      %5828 = vmatpush2.msra.mxu0 0.0
      %5829 = vmatprep.subr.mxu0 0.0
      %5830 = vmatpush2.msra.mxu0 0.0
      %5831 = vmatprep.mubr.f32.mxu0 0.0
      %5832 = vmatmul.mubr.f32.gmra.mxu0 %v5512
      %v5833 = vpop.f32.mrf.mxu0
      %v5834 = vadd.f32 0.0, %v5833
      %v5835 = vpop.f32.mrf.mxu0
      %5836 = vmatprep.mubr.f32.mxu0 0.0
      %5837 = vmatmul.mubr.f32.gmra.mxu0 %v5515
      %v5838 = vpop.f32.mrf.mxu0
      %v5839 = vadd.f32 0.0, %v5838
      %v5840 = vpop.f32.mrf.mxu0
      %5841 = vmatprep.mubr.f32.mxu0 0.0
      %5842 = vmatmul.mubr.f32.gmra.mxu0 %v5518
      %v5843 = vpop.f32.mrf.mxu0
      %v5844 = vadd.f32 0.0, %v5843
      %v5845 = vpop.f32.mrf.mxu0
      %5846 = vmatprep.mubr.f32.mxu0 0.0
      %5847 = vmatmul.mubr.f32.gmra.mxu0 %v5521
      %v5848 = vpop.f32.mrf.mxu0
      %v5849 = vadd.f32 0.0, %v5848
      %v5850 = vpop.f32.mrf.mxu0
      %5851 = vmatprep.mubr.f32.mxu0 0.0
      %5852 = vmatmul.mubr.f32.gmra.mxu0 %v5524
      %v5853 = vpop.f32.mrf.mxu0
      %v5854 = vadd.f32 0.0, %v5853
      %v5855 = vpop.f32.mrf.mxu0
      %5856 = vmatprep.mubr.f32.mxu0 0.0
      %5857 = vmatmul.mubr.f32.gmra.mxu0 %v5527
      %v5858 = vpop.f32.mrf.mxu0
      %v5859 = vadd.f32 0.0, %v5858
      %v5860 = vpop.f32.mrf.mxu0
      %5861 = vmatprep.mubr.f32.mxu0 0.0
      %5862 = vmatmul.mubr.f32.gmra.mxu0 %v5530
      %v5863 = vpop.f32.mrf.mxu0
      %v5864 = vadd.f32 0.0, %v5863
      %v5865 = vpop.f32.mrf.mxu0
      %5866 = vmatprep.mubr.f32.mxu0 0.0
      %5867 = vmatmul.mubr.f32.gmra.mxu0 %v5533
      %v5868 = vpop.f32.mrf.mxu0
      %v5869 = vadd.f32 0.0, %v5868
      %v5870 = vpop.f32.mrf.mxu0
      %5871 = vdwg.mxu0
      %v5872 = vpack.c.bf16 %v5839, %v5834
      %v5873 = vpack.c.bf16 %v5849, %v5844
      %v5874 = vpack.c.bf16 %v5859, %v5854
      %v5875 = vpack.c.bf16 %v5869, %v5864
      %s5876 = scalar_lea.vmem %s11, 12
      %v5877 = vld [vmem:[%s5876] sm:$0xf]
      %v5879 = vsel %vm5535, %v5877, 0
      %5881 = vmatprep.subr.mxu0 0.0
      %5882 = vmatpush1.msra.mxu0 0.0
      %5883 = vmatprep.subr.mxu0 0.0
      %5884 = vmatpush1.msra.mxu0 0.0
      %5885 = vmatprep.subr.mxu0 0.0
      %5886 = vmatpush1.msra.mxu0 0.0
      %5887 = vmatprep.subr.mxu0 0.0
      %5888 = vmatpush1.msra.mxu0 0.0
      %5889 = vmatprep.subr.mxu0 0.0
      %5890 = vmatpush1.msra.mxu0 0.0
      %5891 = vmatprep.subr.mxu0 0.0
      %5892 = vmatpush1.msra.mxu0 0.0
      %5893 = vmatprep.subr.mxu0 0.0
      %5894 = vmatpush1.msra.mxu0 0.0
      %5895 = vmatprep.subr.mxu0 0.0
      %5896 = vmatpush1.msra.mxu0 0.0
      %5897 = vmatprep.subr.mxu0 0.0
      %5898 = vmatpush1.msra.mxu0 0.0
      %5899 = vmatprep.subr.mxu0 0.0
      %5900 = vmatpush1.msra.mxu0 0.0
      %5901 = vmatprep.subr.mxu0 0.0
      %5902 = vmatpush1.msra.mxu0 0.0
      %5903 = vmatprep.subr.mxu0 0.0
      %5904 = vmatpush1.msra.mxu0 0.0
      %5905 = vmatprep.subr.mxu0 0.0
      %5906 = vmatpush1.msra.mxu0 0.0
      %5907 = vmatprep.subr.mxu0 0.0
      %5908 = vmatpush1.msra.mxu0 0.0
      %5909 = vmatprep.subr.mxu0 0.0
      %5910 = vmatpush1.msra.mxu0 0.0
      %5911 = vmatprep.subr.mxu0 0.0
      %5912 = vmatpush1.msra.mxu0 %v5879
      %5913 = vmatprep.subr.mxu0 0.0
      %5914 = vmatpush2.msra.mxu0 0.0
      %5915 = vmatprep.subr.mxu0 0.0
      %5916 = vmatpush2.msra.mxu0 0.0
      %5917 = vmatprep.subr.mxu0 0.0
      %5918 = vmatpush2.msra.mxu0 0.0
      %5919 = vmatprep.subr.mxu0 0.0
      %5920 = vmatpush2.msra.mxu0 0.0
      %5921 = vmatprep.subr.mxu0 0.0
      %5922 = vmatpush2.msra.mxu0 0.0
      %5923 = vmatprep.subr.mxu0 0.0
      %5924 = vmatpush2.msra.mxu0 0.0
      %5925 = vmatprep.subr.mxu0 0.0
      %5926 = vmatpush2.msra.mxu0 0.0
      %5927 = vmatprep.subr.mxu0 0.0
      %5928 = vmatpush2.msra.mxu0 0.0
      %5929 = vmatprep.subr.mxu0 0.0
      %5930 = vmatpush2.msra.mxu0 0.0
      %5931 = vmatprep.subr.mxu0 0.0
      %5932 = vmatpush2.msra.mxu0 0.0
      %5933 = vmatprep.subr.mxu0 0.0
      %5934 = vmatpush2.msra.mxu0 0.0
      %5935 = vmatprep.subr.mxu0 0.0
      %5936 = vmatpush2.msra.mxu0 0.0
      %5937 = vmatprep.subr.mxu0 0.0
      %5938 = vmatpush2.msra.mxu0 0.0
      %5939 = vmatprep.subr.mxu0 0.0
      %5940 = vmatpush2.msra.mxu0 0.0
      %5941 = vmatprep.subr.mxu0 0.0
      %5942 = vmatpush2.msra.mxu0 0.0
      %5943 = vmatprep.subr.mxu0 0.0
      %5944 = vmatpush2.msra.mxu0 0.0
      %5945 = vmatprep.mubr.f32.mxu0 0.0
      %5946 = vmatmul.mubr.f32.gmra.mxu0 %v5512
      %v5947 = vpop.f32.mrf.mxu0
      %v5948 = vadd.f32 0.0, %v5947
      %v5949 = vpop.f32.mrf.mxu0
      %5950 = vmatprep.mubr.f32.mxu0 0.0
      %5951 = vmatmul.mubr.f32.gmra.mxu0 %v5515
      %v5952 = vpop.f32.mrf.mxu0
      %v5953 = vadd.f32 0.0, %v5952
      %v5954 = vpop.f32.mrf.mxu0
      %5955 = vmatprep.mubr.f32.mxu0 0.0
      %5956 = vmatmul.mubr.f32.gmra.mxu0 %v5518
      %v5957 = vpop.f32.mrf.mxu0
      %v5958 = vadd.f32 0.0, %v5957
      %v5959 = vpop.f32.mrf.mxu0
      %5960 = vmatprep.mubr.f32.mxu0 0.0
      %5961 = vmatmul.mubr.f32.gmra.mxu0 %v5521
      %v5962 = vpop.f32.mrf.mxu0
      %v5963 = vadd.f32 0.0, %v5962
      %v5964 = vpop.f32.mrf.mxu0
      %5965 = vmatprep.mubr.f32.mxu0 0.0
      %5966 = vmatmul.mubr.f32.gmra.mxu0 %v5524
      %v5967 = vpop.f32.mrf.mxu0
      %v5968 = vadd.f32 0.0, %v5967
      %v5969 = vpop.f32.mrf.mxu0
      %5970 = vmatprep.mubr.f32.mxu0 0.0
      %5971 = vmatmul.mubr.f32.gmra.mxu0 %v5527
      %v5972 = vpop.f32.mrf.mxu0
      %v5973 = vadd.f32 0.0, %v5972
      %v5974 = vpop.f32.mrf.mxu0
      %5975 = vmatprep.mubr.f32.mxu0 0.0
      %5976 = vmatmul.mubr.f32.gmra.mxu0 %v5530
      %v5977 = vpop.f32.mrf.mxu0
      %v5978 = vadd.f32 0.0, %v5977
      %v5979 = vpop.f32.mrf.mxu0
      %5980 = vmatprep.mubr.f32.mxu0 0.0
      %5981 = vmatmul.mubr.f32.gmra.mxu0 %v5533
      %v5982 = vpop.f32.mrf.mxu0
      %v5983 = vadd.f32 0.0, %v5982
      %v5984 = vpop.f32.mrf.mxu0
      %5985 = vdwg.mxu0
      %v5986 = vpack.c.bf16 %v5953, %v5948
      %v5987 = vpack.c.bf16 %v5963, %v5958
      %v5988 = vpack.c.bf16 %v5973, %v5968
      %v5989 = vpack.c.bf16 %v5983, %v5978
      %v5990 = vld [vmem:[%s10] sm:$0xf]
      %v5991 = vld [vmem:[%s10 + $0x4] sm:$0xf]
      %v5992 = vld [vmem:[%s10 + $0x8] sm:$0xf]
      %v5993 = vld [vmem:[%s10 + $0xc] sm:$0xf]
      %v5998 = vunpack.c.l.b16 %v5990
      %v5999 = vunpack.c.l.b16 %v5991
      %v6000 = vunpack.c.l.b16 %v5992
      %v6001 = vunpack.c.l.b16 %v5993
      %v6002 = vpack.c.b16 %v5999, %v5998
      %v6003 = vpack.c.b16 %v6001, %v6000
      %v6005 = vsel %vm2161, %v6002, 0
      %v6008 = vsel %vm2161, %v6003, 0
      %6010 = vmatprep.subr.bf16.mxu0 0
      %6011 = vmatpush1.bf16.msra.mxu0 0
      %6012 = vmatprep.subr.bf16.mxu0 0
      %6013 = vmatpush1.bf16.msra.mxu0 0
      %6014 = vmatprep.subr.bf16.mxu0 0
      %6015 = vmatpush1.bf16.msra.mxu0 0
      %6016 = vmatprep.subr.bf16.mxu0 0
      %6017 = vmatpush1.bf16.msra.mxu0 0
      %6018 = vmatprep.subr.bf16.mxu0 0
      %6019 = vmatpush1.bf16.msra.mxu0 %v5647
      %6020 = vmatprep.subr.bf16.mxu0 0
      %6021 = vmatpush1.bf16.msra.mxu0 %v5646
      %6022 = vmatprep.subr.bf16.mxu0 0
      %6023 = vmatpush1.bf16.msra.mxu0 %v5645
      %6024 = vmatprep.subr.bf16.mxu0 0
      %6025 = vmatpush1.bf16.msra.mxu0 %v5644
      %6026 = vmatprep.subr.bf16.mxu0 0
      %6027 = vmatpush2.bf16.msra.mxu0 0
      %6028 = vmatprep.subr.bf16.mxu0 0
      %6029 = vmatpush2.bf16.msra.mxu0 0
      %6030 = vmatprep.subr.bf16.mxu0 0
      %6031 = vmatpush2.bf16.msra.mxu0 0
      %6032 = vmatprep.subr.bf16.mxu0 0
      %6033 = vmatpush2.bf16.msra.mxu0 0
      %6034 = vmatprep.subr.bf16.mxu0 0
      %6035 = vmatpush2.bf16.msra.mxu0 0
      %6036 = vmatprep.subr.bf16.mxu0 0
      %6037 = vmatpush2.bf16.msra.mxu0 0
      %6038 = vmatprep.subr.bf16.mxu0 0
      %6039 = vmatpush2.bf16.msra.mxu0 0
      %6040 = vmatprep.subr.bf16.mxu0 0
      %6041 = vmatpush2.bf16.msra.mxu0 0
      %6042 = vmatprep.mubr.bf16.mxu0 0
      %6043 = vmatmul.mubr.bf16.gmra.mxu0 %v6005
      %v6044 = vpop.f32.mrf.mxu0
      %v6045 = vadd.f32 0.0, %v6044
      %v6046 = vpop.f32.mrf.mxu0
      %v6047 = vpop.f32.mrf.mxu0
      %v6048 = vadd.f32 0.0, %v6047
      %v6049 = vpop.f32.mrf.mxu0
      %6050 = vmatprep.mubr.bf16.mxu0 0
      %6051 = vmatmul.mubr.bf16.gmra.mxu0 %v6008
      %v6052 = vpop.f32.mrf.mxu0
      %v6053 = vadd.f32 0.0, %v6052
      %v6054 = vpop.f32.mrf.mxu0
      %v6055 = vpop.f32.mrf.mxu0
      %v6056 = vadd.f32 0.0, %v6055
      %v6057 = vpop.f32.mrf.mxu0
      %6058 = vdwg.mxu0
      %s6059 = scalar_lea.vmem %s10, 16
      %v6060 = vld [vmem:[%s6059] sm:$0xf]
      %v6061 = vld [vmem:[%s6059 + $0x4] sm:$0xf]
      %v6062 = vld [vmem:[%s6059 + $0x8] sm:$0xf]
      %v6063 = vld [vmem:[%s6059 + $0xc] sm:$0xf]
      %s6064 = scalar_lea.vmem %s10, 32
      %v6065 = vld [vmem:[%s6064] sm:$0xf]
      %v6066 = vld [vmem:[%s6064 + $0x4] sm:$0xf]
      %v6067 = vld [vmem:[%s6064 + $0x8] sm:$0xf]
      %v6068 = vld [vmem:[%s6064 + $0xc] sm:$0xf]
      %v6073 = vunpack.c.l.b16 %v6065
      %v6074 = vunpack.c.l.b16 %v6066
      %v6075 = vunpack.c.l.b16 %v6067
      %v6076 = vunpack.c.l.b16 %v6068
      %v6077 = vpack.c.b16 %v6074, %v6073
      %v6078 = vpack.c.b16 %v6076, %v6075
      %v6080 = vsel %vm2161, %v6077, 0
      %v6083 = vsel %vm2161, %v6078, 0
      %6085 = vmatprep.subr.bf16.mxu0 0
      %6086 = vmatpush1.bf16.msra.mxu0 0
      %6087 = vmatprep.subr.bf16.mxu0 0
      %6088 = vmatpush1.bf16.msra.mxu0 0
      %6089 = vmatprep.subr.bf16.mxu0 0
      %6090 = vmatpush1.bf16.msra.mxu0 0
      %6091 = vmatprep.subr.bf16.mxu0 0
      %6092 = vmatpush1.bf16.msra.mxu0 0
      %6093 = vmatprep.subr.bf16.mxu0 0
      %6094 = vmatpush1.bf16.msra.mxu0 %v5761
      %6095 = vmatprep.subr.bf16.mxu0 0
      %6096 = vmatpush1.bf16.msra.mxu0 %v5760
      %6097 = vmatprep.subr.bf16.mxu0 0
      %6098 = vmatpush1.bf16.msra.mxu0 %v5759
      %6099 = vmatprep.subr.bf16.mxu0 0
      %6100 = vmatpush1.bf16.msra.mxu0 %v5758
      %6101 = vmatprep.subr.bf16.mxu0 0
      %6102 = vmatpush2.bf16.msra.mxu0 0
      %6103 = vmatprep.subr.bf16.mxu0 0
      %6104 = vmatpush2.bf16.msra.mxu0 0
      %6105 = vmatprep.subr.bf16.mxu0 0
      %6106 = vmatpush2.bf16.msra.mxu0 0
      %6107 = vmatprep.subr.bf16.mxu0 0
      %6108 = vmatpush2.bf16.msra.mxu0 0
      %6109 = vmatprep.subr.bf16.mxu0 0
      %6110 = vmatpush2.bf16.msra.mxu0 0
      %6111 = vmatprep.subr.bf16.mxu0 0
      %6112 = vmatpush2.bf16.msra.mxu0 0
      %6113 = vmatprep.subr.bf16.mxu0 0
      %6114 = vmatpush2.bf16.msra.mxu0 0
      %6115 = vmatprep.subr.bf16.mxu0 0
      %6116 = vmatpush2.bf16.msra.mxu0 0
      %6117 = vmatprep.mubr.bf16.mxu0 0
      %6118 = vmatmul.mubr.bf16.gmra.mxu0 %v6080
      %v6119 = vpop.f32.mrf.mxu0
      %v6120 = vadd.f32 0.0, %v6119
      %v6121 = vpop.f32.mrf.mxu0
      %v6122 = vpop.f32.mrf.mxu0
      %v6123 = vadd.f32 0.0, %v6122
      %v6124 = vpop.f32.mrf.mxu0
      %6125 = vmatprep.mubr.bf16.mxu0 0
      %6126 = vmatmul.mubr.bf16.gmra.mxu0 %v6083
      %v6127 = vpop.f32.mrf.mxu0
      %v6128 = vadd.f32 0.0, %v6127
      %v6129 = vpop.f32.mrf.mxu0
      %v6130 = vpop.f32.mrf.mxu0
      %v6131 = vadd.f32 0.0, %v6130
      %v6132 = vpop.f32.mrf.mxu0
      %6133 = vdwg.mxu0
      %v6138 = vunpack.c.l.b16 %v6060
      %v6139 = vunpack.c.l.b16 %v6061
      %v6140 = vunpack.c.l.b16 %v6062
      %v6141 = vunpack.c.l.b16 %v6063
      %v6142 = vpack.c.b16 %v6139, %v6138
      %v6143 = vpack.c.b16 %v6141, %v6140
      %v6145 = vsel %vm2161, %v6142, 0
      %v6148 = vsel %vm2161, %v6143, 0
      %6150 = vmatprep.subr.bf16.mxu0 0
      %6151 = vmatpush1.bf16.msra.mxu0 0
      %6152 = vmatprep.subr.bf16.mxu0 0
      %6153 = vmatpush1.bf16.msra.mxu0 0
      %6154 = vmatprep.subr.bf16.mxu0 0
      %6155 = vmatpush1.bf16.msra.mxu0 0
      %6156 = vmatprep.subr.bf16.mxu0 0
      %6157 = vmatpush1.bf16.msra.mxu0 0
      %6158 = vmatprep.subr.bf16.mxu0 0
      %6159 = vmatpush1.bf16.msra.mxu0 %v5647
      %6160 = vmatprep.subr.bf16.mxu0 0
      %6161 = vmatpush1.bf16.msra.mxu0 %v5646
      %6162 = vmatprep.subr.bf16.mxu0 0
      %6163 = vmatpush1.bf16.msra.mxu0 %v5645
      %6164 = vmatprep.subr.bf16.mxu0 0
      %6165 = vmatpush1.bf16.msra.mxu0 %v5644
      %6166 = vmatprep.subr.bf16.mxu0 0
      %6167 = vmatpush2.bf16.msra.mxu0 0
      %6168 = vmatprep.subr.bf16.mxu0 0
      %6169 = vmatpush2.bf16.msra.mxu0 0
      %6170 = vmatprep.subr.bf16.mxu0 0
      %6171 = vmatpush2.bf16.msra.mxu0 0
      %6172 = vmatprep.subr.bf16.mxu0 0
      %6173 = vmatpush2.bf16.msra.mxu0 0
      %6174 = vmatprep.subr.bf16.mxu0 0
      %6175 = vmatpush2.bf16.msra.mxu0 0
      %6176 = vmatprep.subr.bf16.mxu0 0
      %6177 = vmatpush2.bf16.msra.mxu0 0
      %6178 = vmatprep.subr.bf16.mxu0 0
      %6179 = vmatpush2.bf16.msra.mxu0 0
      %6180 = vmatprep.subr.bf16.mxu0 0
      %6181 = vmatpush2.bf16.msra.mxu0 0
      %6182 = vmatprep.mubr.bf16.mxu0 0
      %6183 = vmatmul.mubr.bf16.gmra.mxu0 %v6145
      %v6184 = vpop.f32.mrf.mxu0
      %v6185 = vadd.f32 %v6120, %v6184
      %v6186 = vpop.f32.mrf.mxu0
      %v6187 = vpop.f32.mrf.mxu0
      %v6188 = vadd.f32 %v6123, %v6187
      %v6189 = vpop.f32.mrf.mxu0
      %6190 = vmatprep.mubr.bf16.mxu0 0
      %6191 = vmatmul.mubr.bf16.gmra.mxu0 %v6148
      %v6192 = vpop.f32.mrf.mxu0
      %v6193 = vadd.f32 %v6128, %v6192
      %v6194 = vpop.f32.mrf.mxu0
      %v6195 = vpop.f32.mrf.mxu0
      %v6196 = vadd.f32 %v6131, %v6195
      %v6197 = vpop.f32.mrf.mxu0
      %6198 = vdwg.mxu0
      %s6199 = scalar_lea.vmem %s10, 48
      %v6200 = vld [vmem:[%s6199] sm:$0xf]
      %v6201 = vld [vmem:[%s6199 + $0x4] sm:$0xf]
      %v6202 = vld [vmem:[%s6199 + $0x8] sm:$0xf]
      %v6203 = vld [vmem:[%s6199 + $0xc] sm:$0xf]
      %s6204 = scalar_lea.vmem %s10, 64
      %v6205 = vld [vmem:[%s6204] sm:$0xf]
      %v6206 = vld [vmem:[%s6204 + $0x4] sm:$0xf]
      %v6207 = vld [vmem:[%s6204 + $0x8] sm:$0xf]
      %v6208 = vld [vmem:[%s6204 + $0xc] sm:$0xf]
      %v6213 = vunpack.c.l.b16 %v6205
      %v6214 = vunpack.c.l.b16 %v6206
      %v6215 = vunpack.c.l.b16 %v6207
      %v6216 = vunpack.c.l.b16 %v6208
      %v6217 = vpack.c.b16 %v6214, %v6213
      %v6218 = vpack.c.b16 %v6216, %v6215
      %v6220 = vsel %vm2161, %v6217, 0
      %v6223 = vsel %vm2161, %v6218, 0
      %6225 = vmatprep.subr.bf16.mxu0 0
      %6226 = vmatpush1.bf16.msra.mxu0 0
      %6227 = vmatprep.subr.bf16.mxu0 0
      %6228 = vmatpush1.bf16.msra.mxu0 0
      %6229 = vmatprep.subr.bf16.mxu0 0
      %6230 = vmatpush1.bf16.msra.mxu0 0
      %6231 = vmatprep.subr.bf16.mxu0 0
      %6232 = vmatpush1.bf16.msra.mxu0 0
      %6233 = vmatprep.subr.bf16.mxu0 0
      %6234 = vmatpush1.bf16.msra.mxu0 %v5875
      %6235 = vmatprep.subr.bf16.mxu0 0
      %6236 = vmatpush1.bf16.msra.mxu0 %v5874
      %6237 = vmatprep.subr.bf16.mxu0 0
      %6238 = vmatpush1.bf16.msra.mxu0 %v5873
      %6239 = vmatprep.subr.bf16.mxu0 0
      %6240 = vmatpush1.bf16.msra.mxu0 %v5872
      %6241 = vmatprep.subr.bf16.mxu0 0
      %6242 = vmatpush2.bf16.msra.mxu0 0
      %6243 = vmatprep.subr.bf16.mxu0 0
      %6244 = vmatpush2.bf16.msra.mxu0 0
      %6245 = vmatprep.subr.bf16.mxu0 0
      %6246 = vmatpush2.bf16.msra.mxu0 0
      %6247 = vmatprep.subr.bf16.mxu0 0
      %6248 = vmatpush2.bf16.msra.mxu0 0
      %6249 = vmatprep.subr.bf16.mxu0 0
      %6250 = vmatpush2.bf16.msra.mxu0 0
      %6251 = vmatprep.subr.bf16.mxu0 0
      %6252 = vmatpush2.bf16.msra.mxu0 0
      %6253 = vmatprep.subr.bf16.mxu0 0
      %6254 = vmatpush2.bf16.msra.mxu0 0
      %6255 = vmatprep.subr.bf16.mxu0 0
      %6256 = vmatpush2.bf16.msra.mxu0 0
      %6257 = vmatprep.mubr.bf16.mxu0 0
      %6258 = vmatmul.mubr.bf16.gmra.mxu0 %v6220
      %v6259 = vpop.f32.mrf.mxu0
      %v6260 = vadd.f32 0.0, %v6259
      %v6261 = vpop.f32.mrf.mxu0
      %v6262 = vpop.f32.mrf.mxu0
      %v6263 = vadd.f32 0.0, %v6262
      %v6264 = vpop.f32.mrf.mxu0
      %6265 = vmatprep.mubr.bf16.mxu0 0
      %6266 = vmatmul.mubr.bf16.gmra.mxu0 %v6223
      %v6267 = vpop.f32.mrf.mxu0
      %v6268 = vadd.f32 0.0, %v6267
      %v6269 = vpop.f32.mrf.mxu0
      %v6270 = vpop.f32.mrf.mxu0
      %v6271 = vadd.f32 0.0, %v6270
      %v6272 = vpop.f32.mrf.mxu0
      %6273 = vdwg.mxu0
      %v6278 = vunpack.c.l.b16 %v6200
      %v6279 = vunpack.c.l.b16 %v6201
      %v6280 = vunpack.c.l.b16 %v6202
      %v6281 = vunpack.c.l.b16 %v6203
      %v6282 = vpack.c.b16 %v6279, %v6278
      %v6283 = vpack.c.b16 %v6281, %v6280
      %v6285 = vsel %vm2161, %v6282, 0
      %v6288 = vsel %vm2161, %v6283, 0
      %6290 = vmatprep.subr.bf16.mxu0 0
      %6291 = vmatpush1.bf16.msra.mxu0 0
      %6292 = vmatprep.subr.bf16.mxu0 0
      %6293 = vmatpush1.bf16.msra.mxu0 0
      %6294 = vmatprep.subr.bf16.mxu0 0
      %6295 = vmatpush1.bf16.msra.mxu0 0
      %6296 = vmatprep.subr.bf16.mxu0 0
      %6297 = vmatpush1.bf16.msra.mxu0 0
      %6298 = vmatprep.subr.bf16.mxu0 0
      %6299 = vmatpush1.bf16.msra.mxu0 %v5647
      %6300 = vmatprep.subr.bf16.mxu0 0
      %6301 = vmatpush1.bf16.msra.mxu0 %v5646
      %6302 = vmatprep.subr.bf16.mxu0 0
      %6303 = vmatpush1.bf16.msra.mxu0 %v5645
      %6304 = vmatprep.subr.bf16.mxu0 0
      %6305 = vmatpush1.bf16.msra.mxu0 %v5644
      %6306 = vmatprep.subr.bf16.mxu0 0
      %6307 = vmatpush2.bf16.msra.mxu0 0
      %6308 = vmatprep.subr.bf16.mxu0 0
      %6309 = vmatpush2.bf16.msra.mxu0 0
      %6310 = vmatprep.subr.bf16.mxu0 0
      %6311 = vmatpush2.bf16.msra.mxu0 0
      %6312 = vmatprep.subr.bf16.mxu0 0
      %6313 = vmatpush2.bf16.msra.mxu0 0
      %6314 = vmatprep.subr.bf16.mxu0 0
      %6315 = vmatpush2.bf16.msra.mxu0 0
      %6316 = vmatprep.subr.bf16.mxu0 0
      %6317 = vmatpush2.bf16.msra.mxu0 0
      %6318 = vmatprep.subr.bf16.mxu0 0
      %6319 = vmatpush2.bf16.msra.mxu0 0
      %6320 = vmatprep.subr.bf16.mxu0 0
      %6321 = vmatpush2.bf16.msra.mxu0 0
      %6322 = vmatprep.mubr.bf16.mxu0 0
      %6323 = vmatmul.mubr.bf16.gmra.mxu0 %v6285
      %v6324 = vpop.f32.mrf.mxu0
      %v6325 = vadd.f32 %v6260, %v6324
      %v6326 = vpop.f32.mrf.mxu0
      %v6327 = vpop.f32.mrf.mxu0
      %v6328 = vadd.f32 %v6263, %v6327
      %v6329 = vpop.f32.mrf.mxu0
      %6330 = vmatprep.mubr.bf16.mxu0 0
      %6331 = vmatmul.mubr.bf16.gmra.mxu0 %v6288
      %v6332 = vpop.f32.mrf.mxu0
      %v6333 = vadd.f32 %v6268, %v6332
      %v6334 = vpop.f32.mrf.mxu0
      %v6335 = vpop.f32.mrf.mxu0
      %v6336 = vadd.f32 %v6271, %v6335
      %v6337 = vpop.f32.mrf.mxu0
      %6338 = vdwg.mxu0
      %s6339 = scalar_lea.vmem %s10, 80
      %v6340 = vld [vmem:[%s6339] sm:$0xf]
      %v6341 = vld [vmem:[%s6339 + $0x4] sm:$0xf]
      %v6342 = vld [vmem:[%s6339 + $0x8] sm:$0xf]
      %v6343 = vld [vmem:[%s6339 + $0xc] sm:$0xf]
      %s6344 = scalar_lea.vmem %s10, 96
      %v6345 = vld [vmem:[%s6344] sm:$0xf]
      %v6346 = vld [vmem:[%s6344 + $0x4] sm:$0xf]
      %v6347 = vld [vmem:[%s6344 + $0x8] sm:$0xf]
      %v6348 = vld [vmem:[%s6344 + $0xc] sm:$0xf]
      %v6353 = vunpack.c.l.b16 %v6345
      %v6354 = vunpack.c.l.b16 %v6346
      %v6355 = vunpack.c.l.b16 %v6347
      %v6356 = vunpack.c.l.b16 %v6348
      %v6357 = vpack.c.b16 %v6354, %v6353
      %v6358 = vpack.c.b16 %v6356, %v6355
      %v6360 = vsel %vm2161, %v6357, 0
      %v6363 = vsel %vm2161, %v6358, 0
      %6365 = vmatprep.subr.bf16.mxu0 0
      %6366 = vmatpush1.bf16.msra.mxu0 0
      %6367 = vmatprep.subr.bf16.mxu0 0
      %6368 = vmatpush1.bf16.msra.mxu0 0
      %6369 = vmatprep.subr.bf16.mxu0 0
      %6370 = vmatpush1.bf16.msra.mxu0 0
      %6371 = vmatprep.subr.bf16.mxu0 0
      %6372 = vmatpush1.bf16.msra.mxu0 0
      %6373 = vmatprep.subr.bf16.mxu0 0
      %6374 = vmatpush1.bf16.msra.mxu0 %v5761
      %6375 = vmatprep.subr.bf16.mxu0 0
      %6376 = vmatpush1.bf16.msra.mxu0 %v5760
      %6377 = vmatprep.subr.bf16.mxu0 0
      %6378 = vmatpush1.bf16.msra.mxu0 %v5759
      %6379 = vmatprep.subr.bf16.mxu0 0
      %6380 = vmatpush1.bf16.msra.mxu0 %v5758
      %6381 = vmatprep.subr.bf16.mxu0 0
      %6382 = vmatpush2.bf16.msra.mxu0 0
      %6383 = vmatprep.subr.bf16.mxu0 0
      %6384 = vmatpush2.bf16.msra.mxu0 0
      %6385 = vmatprep.subr.bf16.mxu0 0
      %6386 = vmatpush2.bf16.msra.mxu0 0
      %6387 = vmatprep.subr.bf16.mxu0 0
      %6388 = vmatpush2.bf16.msra.mxu0 0
      %6389 = vmatprep.subr.bf16.mxu0 0
      %6390 = vmatpush2.bf16.msra.mxu0 0
      %6391 = vmatprep.subr.bf16.mxu0 0
      %6392 = vmatpush2.bf16.msra.mxu0 0
      %6393 = vmatprep.subr.bf16.mxu0 0
      %6394 = vmatpush2.bf16.msra.mxu0 0
      %6395 = vmatprep.subr.bf16.mxu0 0
      %6396 = vmatpush2.bf16.msra.mxu0 0
      %6397 = vmatprep.mubr.bf16.mxu0 0
      %6398 = vmatmul.mubr.bf16.gmra.mxu0 %v6360
      %v6399 = vpop.f32.mrf.mxu0
      %v6400 = vadd.f32 0.0, %v6399
      %v6401 = vpop.f32.mrf.mxu0
      %v6402 = vpop.f32.mrf.mxu0
      %v6403 = vadd.f32 0.0, %v6402
      %v6404 = vpop.f32.mrf.mxu0
      %6405 = vmatprep.mubr.bf16.mxu0 0
      %6406 = vmatmul.mubr.bf16.gmra.mxu0 %v6363
      %v6407 = vpop.f32.mrf.mxu0
      %v6408 = vadd.f32 0.0, %v6407
      %v6409 = vpop.f32.mrf.mxu0
      %v6410 = vpop.f32.mrf.mxu0
      %v6411 = vadd.f32 0.0, %v6410
      %v6412 = vpop.f32.mrf.mxu0
      %6413 = vdwg.mxu0
      %v6418 = vunpack.c.l.b16 %v6340
      %v6419 = vunpack.c.l.b16 %v6341
      %v6420 = vunpack.c.l.b16 %v6342
      %v6421 = vunpack.c.l.b16 %v6343
      %v6422 = vpack.c.b16 %v6419, %v6418
      %v6423 = vpack.c.b16 %v6421, %v6420
      %v6425 = vsel %vm2161, %v6422, 0
      %v6428 = vsel %vm2161, %v6423, 0
      %6430 = vmatprep.subr.bf16.mxu0 0
      %6431 = vmatpush1.bf16.msra.mxu0 0
      %6432 = vmatprep.subr.bf16.mxu0 0
      %6433 = vmatpush1.bf16.msra.mxu0 0
      %6434 = vmatprep.subr.bf16.mxu0 0
      %6435 = vmatpush1.bf16.msra.mxu0 0
      %6436 = vmatprep.subr.bf16.mxu0 0
      %6437 = vmatpush1.bf16.msra.mxu0 0
      %6438 = vmatprep.subr.bf16.mxu0 0
      %6439 = vmatpush1.bf16.msra.mxu0 %v5647
      %6440 = vmatprep.subr.bf16.mxu0 0
      %6441 = vmatpush1.bf16.msra.mxu0 %v5646
      %6442 = vmatprep.subr.bf16.mxu0 0
      %6443 = vmatpush1.bf16.msra.mxu0 %v5645
      %6444 = vmatprep.subr.bf16.mxu0 0
      %6445 = vmatpush1.bf16.msra.mxu0 %v5644
      %6446 = vmatprep.subr.bf16.mxu0 0
      %6447 = vmatpush2.bf16.msra.mxu0 0
      %6448 = vmatprep.subr.bf16.mxu0 0
      %6449 = vmatpush2.bf16.msra.mxu0 0
      %6450 = vmatprep.subr.bf16.mxu0 0
      %6451 = vmatpush2.bf16.msra.mxu0 0
      %6452 = vmatprep.subr.bf16.mxu0 0
      %6453 = vmatpush2.bf16.msra.mxu0 0
      %6454 = vmatprep.subr.bf16.mxu0 0
      %6455 = vmatpush2.bf16.msra.mxu0 0
      %6456 = vmatprep.subr.bf16.mxu0 0
      %6457 = vmatpush2.bf16.msra.mxu0 0
      %6458 = vmatprep.subr.bf16.mxu0 0
      %6459 = vmatpush2.bf16.msra.mxu0 0
      %6460 = vmatprep.subr.bf16.mxu0 0
      %6461 = vmatpush2.bf16.msra.mxu0 0
      %6462 = vmatprep.mubr.bf16.mxu0 0
      %6463 = vmatmul.mubr.bf16.gmra.mxu0 %v6425
      %v6464 = vpop.f32.mrf.mxu0
      %v6465 = vadd.f32 %v6400, %v6464
      %v6466 = vpop.f32.mrf.mxu0
      %v6467 = vpop.f32.mrf.mxu0
      %v6468 = vadd.f32 %v6403, %v6467
      %v6469 = vpop.f32.mrf.mxu0
      %6470 = vmatprep.mubr.bf16.mxu0 0
      %6471 = vmatmul.mubr.bf16.gmra.mxu0 %v6428
      %v6472 = vpop.f32.mrf.mxu0
      %v6473 = vadd.f32 %v6408, %v6472
      %v6474 = vpop.f32.mrf.mxu0
      %v6475 = vpop.f32.mrf.mxu0
      %v6476 = vadd.f32 %v6411, %v6475
      %v6477 = vpop.f32.mrf.mxu0
      %6478 = vdwg.mxu0
      %s6479 = scalar_lea.vmem %s10, 112
      %v6480 = vld [vmem:[%s6479] sm:$0xf]
      %v6481 = vld [vmem:[%s6479 + $0x4] sm:$0xf]
      %v6482 = vld [vmem:[%s6479 + $0x8] sm:$0xf]
      %v6483 = vld [vmem:[%s6479 + $0xc] sm:$0xf]
      %v6488 = vunpack.c.l.b16 %v6480
      %v6489 = vunpack.c.l.b16 %v6481
      %v6490 = vunpack.c.l.b16 %v6482
      %v6491 = vunpack.c.l.b16 %v6483
      %v6492 = vpack.c.b16 %v6489, %v6488
      %v6493 = vpack.c.b16 %v6491, %v6490
      %v6495 = vsel %vm2161, %v6492, 0
      %v6498 = vsel %vm2161, %v6493, 0
      %6500 = vmatprep.subr.bf16.mxu0 0
      %6501 = vmatpush1.bf16.msra.mxu0 0
      %6502 = vmatprep.subr.bf16.mxu0 0
      %6503 = vmatpush1.bf16.msra.mxu0 0
      %6504 = vmatprep.subr.bf16.mxu0 0
      %6505 = vmatpush1.bf16.msra.mxu0 0
      %6506 = vmatprep.subr.bf16.mxu0 0
      %6507 = vmatpush1.bf16.msra.mxu0 0
      %6508 = vmatprep.subr.bf16.mxu0 0
      %6509 = vmatpush1.bf16.msra.mxu0 %v5875
      %6510 = vmatprep.subr.bf16.mxu0 0
      %6511 = vmatpush1.bf16.msra.mxu0 %v5874
      %6512 = vmatprep.subr.bf16.mxu0 0
      %6513 = vmatpush1.bf16.msra.mxu0 %v5873
      %6514 = vmatprep.subr.bf16.mxu0 0
      %6515 = vmatpush1.bf16.msra.mxu0 %v5872
      %6516 = vmatprep.subr.bf16.mxu0 0
      %6517 = vmatpush2.bf16.msra.mxu0 0
      %6518 = vmatprep.subr.bf16.mxu0 0
      %6519 = vmatpush2.bf16.msra.mxu0 0
      %6520 = vmatprep.subr.bf16.mxu0 0
      %6521 = vmatpush2.bf16.msra.mxu0 0
      %6522 = vmatprep.subr.bf16.mxu0 0
      %6523 = vmatpush2.bf16.msra.mxu0 0
      %6524 = vmatprep.subr.bf16.mxu0 0
      %6525 = vmatpush2.bf16.msra.mxu0 0
      %6526 = vmatprep.subr.bf16.mxu0 0
      %6527 = vmatpush2.bf16.msra.mxu0 0
      %6528 = vmatprep.subr.bf16.mxu0 0
      %6529 = vmatpush2.bf16.msra.mxu0 0
      %6530 = vmatprep.subr.bf16.mxu0 0
      %6531 = vmatpush2.bf16.msra.mxu0 0
      %6532 = vmatprep.mubr.bf16.mxu0 0
      %6533 = vmatmul.mubr.bf16.gmra.mxu0 %v6495
      %v6534 = vpop.f32.mrf.mxu0
      %v6535 = vadd.f32 0.0, %v6534
      %v6536 = vpop.f32.mrf.mxu0
      %v6537 = vpop.f32.mrf.mxu0
      %v6538 = vadd.f32 0.0, %v6537
      %v6539 = vpop.f32.mrf.mxu0
      %6540 = vmatprep.mubr.bf16.mxu0 0
      %6541 = vmatmul.mubr.bf16.gmra.mxu0 %v6498
      %v6542 = vpop.f32.mrf.mxu0
      %v6543 = vadd.f32 0.0, %v6542
      %v6544 = vpop.f32.mrf.mxu0
      %v6545 = vpop.f32.mrf.mxu0
      %v6546 = vadd.f32 0.0, %v6545
      %v6547 = vpop.f32.mrf.mxu0
      %6548 = vdwg.mxu0
      %v6549 = vadd.f32 %v6465, %v6535
      %v6550 = vadd.f32 %v6468, %v6538
      %v6551 = vadd.f32 %v6473, %v6543
      %v6552 = vadd.f32 %v6476, %v6546
      %s6553 = scalar_lea.vmem %s10, 128
      %v6554 = vld [vmem:[%s6553] sm:$0xf]
      %v6555 = vld [vmem:[%s6553 + $0x4] sm:$0xf]
      %v6556 = vld [vmem:[%s6553 + $0x8] sm:$0xf]
      %v6557 = vld [vmem:[%s6553 + $0xc] sm:$0xf]
      %v6562 = vunpack.c.l.b16 %v6554
      %v6563 = vunpack.c.l.b16 %v6555
      %v6564 = vunpack.c.l.b16 %v6556
      %v6565 = vunpack.c.l.b16 %v6557
      %v6566 = vpack.c.b16 %v6563, %v6562
      %v6567 = vpack.c.b16 %v6565, %v6564
      %v6569 = vsel %vm2161, %v6566, 0
      %v6572 = vsel %vm2161, %v6567, 0
      %6574 = vmatprep.subr.bf16.mxu0 0
      %6575 = vmatpush1.bf16.msra.mxu0 0
      %6576 = vmatprep.subr.bf16.mxu0 0
      %6577 = vmatpush1.bf16.msra.mxu0 0
      %6578 = vmatprep.subr.bf16.mxu0 0
      %6579 = vmatpush1.bf16.msra.mxu0 0
      %6580 = vmatprep.subr.bf16.mxu0 0
      %6581 = vmatpush1.bf16.msra.mxu0 0
      %6582 = vmatprep.subr.bf16.mxu0 0
      %6583 = vmatpush1.bf16.msra.mxu0 %v5989
      %6584 = vmatprep.subr.bf16.mxu0 0
      %6585 = vmatpush1.bf16.msra.mxu0 %v5988
      %6586 = vmatprep.subr.bf16.mxu0 0
      %6587 = vmatpush1.bf16.msra.mxu0 %v5987
      %6588 = vmatprep.subr.bf16.mxu0 0
      %6589 = vmatpush1.bf16.msra.mxu0 %v5986
      %6590 = vmatprep.subr.bf16.mxu0 0
      %6591 = vmatpush2.bf16.msra.mxu0 0
      %6592 = vmatprep.subr.bf16.mxu0 0
      %6593 = vmatpush2.bf16.msra.mxu0 0
      %6594 = vmatprep.subr.bf16.mxu0 0
      %6595 = vmatpush2.bf16.msra.mxu0 0
      %6596 = vmatprep.subr.bf16.mxu0 0
      %6597 = vmatpush2.bf16.msra.mxu0 0
      %6598 = vmatprep.subr.bf16.mxu0 0
      %6599 = vmatpush2.bf16.msra.mxu0 0
      %6600 = vmatprep.subr.bf16.mxu0 0
      %6601 = vmatpush2.bf16.msra.mxu0 0
      %6602 = vmatprep.subr.bf16.mxu0 0
      %6603 = vmatpush2.bf16.msra.mxu0 0
      %6604 = vmatprep.subr.bf16.mxu0 0
      %6605 = vmatpush2.bf16.msra.mxu0 0
      %6606 = vmatprep.mubr.bf16.mxu0 0
      %6607 = vmatmul.mubr.bf16.gmra.mxu0 %v6569
      %v6608 = vpop.f32.mrf.mxu0
      %v6609 = vadd.f32 0.0, %v6608
      %v6610 = vpop.f32.mrf.mxu0
      %v6611 = vpop.f32.mrf.mxu0
      %v6612 = vadd.f32 0.0, %v6611
      %v6613 = vpop.f32.mrf.mxu0
      %6614 = vmatprep.mubr.bf16.mxu0 0
      %6615 = vmatmul.mubr.bf16.gmra.mxu0 %v6572
      %v6616 = vpop.f32.mrf.mxu0
      %v6617 = vadd.f32 0.0, %v6616
      %v6618 = vpop.f32.mrf.mxu0
      %v6619 = vpop.f32.mrf.mxu0
      %v6620 = vadd.f32 0.0, %v6619
      %v6621 = vpop.f32.mrf.mxu0
      %6622 = vdwg.mxu0
      %v6623 = vadd.f32 %v6549, %v6609
      %v6624 = vadd.f32 %v6550, %v6612
      %v6625 = vadd.f32 %v6551, %v6617
      %v6626 = vadd.f32 %v6552, %v6620
      %v6627 = vld [vmem:[%s12] sm:$0xf]
      %s6628 = scalar_lea.vmem %s12, 4
      %v6629 = vld [vmem:[%s6628] sm:$0xf]
      %v6631 = vsel %vm5510, %v6185, 0
      %v6634 = vsel %vm5510, %v6188, 0
      %v6637 = vsel %vm5510, %v6193, 0
      %v6640 = vsel %vm5510, %v6196, 0
      %v6643 = vsel %vm5535, %v6629, 0
      %6645 = vmatprep.subr.mxu0 0.0
      %6646 = vmatpush1.msra.mxu0 0.0
      %6647 = vmatprep.subr.mxu0 0.0
      %6648 = vmatpush1.msra.mxu0 0.0
      %6649 = vmatprep.subr.mxu0 0.0
      %6650 = vmatpush1.msra.mxu0 0.0
      %6651 = vmatprep.subr.mxu0 0.0
      %6652 = vmatpush1.msra.mxu0 0.0
      %6653 = vmatprep.subr.mxu0 0.0
      %6654 = vmatpush1.msra.mxu0 0.0
      %6655 = vmatprep.subr.mxu0 0.0
      %6656 = vmatpush1.msra.mxu0 0.0
      %6657 = vmatprep.subr.mxu0 0.0
      %6658 = vmatpush1.msra.mxu0 0.0
      %6659 = vmatprep.subr.mxu0 0.0
      %6660 = vmatpush1.msra.mxu0 0.0
      %6661 = vmatprep.subr.mxu0 0.0
      %6662 = vmatpush1.msra.mxu0 0.0
      %6663 = vmatprep.subr.mxu0 0.0
      %6664 = vmatpush1.msra.mxu0 0.0
      %6665 = vmatprep.subr.mxu0 0.0
      %6666 = vmatpush1.msra.mxu0 0.0
      %6667 = vmatprep.subr.mxu0 0.0
      %6668 = vmatpush1.msra.mxu0 0.0
      %6669 = vmatprep.subr.mxu0 0.0
      %6670 = vmatpush1.msra.mxu0 0.0
      %6671 = vmatprep.subr.mxu0 0.0
      %6672 = vmatpush1.msra.mxu0 0.0
      %6673 = vmatprep.subr.mxu0 0.0
      %6674 = vmatpush1.msra.mxu0 0.0
      %6675 = vmatprep.subr.mxu0 0.0
      %6676 = vmatpush1.msra.mxu0 %v6643
      %6677 = vmatprep.subr.mxu0 0.0
      %6678 = vmatpush2.msra.mxu0 0.0
      %6679 = vmatprep.subr.mxu0 0.0
      %6680 = vmatpush2.msra.mxu0 0.0
      %6681 = vmatprep.subr.mxu0 0.0
      %6682 = vmatpush2.msra.mxu0 0.0
      %6683 = vmatprep.subr.mxu0 0.0
      %6684 = vmatpush2.msra.mxu0 0.0
      %6685 = vmatprep.subr.mxu0 0.0
      %6686 = vmatpush2.msra.mxu0 0.0
      %6687 = vmatprep.subr.mxu0 0.0
      %6688 = vmatpush2.msra.mxu0 0.0
      %6689 = vmatprep.subr.mxu0 0.0
      %6690 = vmatpush2.msra.mxu0 0.0
      %6691 = vmatprep.subr.mxu0 0.0
      %6692 = vmatpush2.msra.mxu0 0.0
      %6693 = vmatprep.subr.mxu0 0.0
      %6694 = vmatpush2.msra.mxu0 0.0
      %6695 = vmatprep.subr.mxu0 0.0
      %6696 = vmatpush2.msra.mxu0 0.0
      %6697 = vmatprep.subr.mxu0 0.0
      %6698 = vmatpush2.msra.mxu0 0.0
      %6699 = vmatprep.subr.mxu0 0.0
      %6700 = vmatpush2.msra.mxu0 0.0
      %6701 = vmatprep.subr.mxu0 0.0
      %6702 = vmatpush2.msra.mxu0 0.0
      %6703 = vmatprep.subr.mxu0 0.0
      %6704 = vmatpush2.msra.mxu0 0.0
      %6705 = vmatprep.subr.mxu0 0.0
      %6706 = vmatpush2.msra.mxu0 0.0
      %6707 = vmatprep.subr.mxu0 0.0
      %6708 = vmatpush2.msra.mxu0 0.0
      %6709 = vmatprep.mubr.f32.mxu0 0.0
      %6710 = vmatmul.mubr.f32.gmra.mxu0 %v6631
      %v6711 = vpop.f32.mrf.mxu0
      %v6712 = vadd.f32 0.0, %v6711
      %v6713 = vpop.f32.mrf.mxu0
      %6714 = vmatprep.mubr.f32.mxu0 0.0
      %6715 = vmatmul.mubr.f32.gmra.mxu0 %v6634
      %v6716 = vpop.f32.mrf.mxu0
      %v6717 = vadd.f32 0.0, %v6716
      %v6718 = vpop.f32.mrf.mxu0
      %6719 = vmatprep.mubr.f32.mxu0 0.0
      %6720 = vmatmul.mubr.f32.gmra.mxu0 %v6637
      %v6721 = vpop.f32.mrf.mxu0
      %v6722 = vadd.f32 0.0, %v6721
      %v6723 = vpop.f32.mrf.mxu0
      %6724 = vmatprep.mubr.f32.mxu0 0.0
      %6725 = vmatmul.mubr.f32.gmra.mxu0 %v6640
      %v6726 = vpop.f32.mrf.mxu0
      %v6727 = vadd.f32 0.0, %v6726
      %v6728 = vpop.f32.mrf.mxu0
      %6729 = vdwg.mxu0
      %v6731 = vsel %vm5510, %v6045, 0
      %v6734 = vsel %vm5510, %v6048, 0
      %v6737 = vsel %vm5510, %v6053, 0
      %v6740 = vsel %vm5510, %v6056, 0
      %v6743 = vsel %vm5535, %v6627, 0
      %6745 = vmatprep.subr.mxu0 0.0
      %6746 = vmatpush1.msra.mxu0 0.0
      %6747 = vmatprep.subr.mxu0 0.0
      %6748 = vmatpush1.msra.mxu0 0.0
      %6749 = vmatprep.subr.mxu0 0.0
      %6750 = vmatpush1.msra.mxu0 0.0
      %6751 = vmatprep.subr.mxu0 0.0
      %6752 = vmatpush1.msra.mxu0 0.0
      %6753 = vmatprep.subr.mxu0 0.0
      %6754 = vmatpush1.msra.mxu0 0.0
      %6755 = vmatprep.subr.mxu0 0.0
      %6756 = vmatpush1.msra.mxu0 0.0
      %6757 = vmatprep.subr.mxu0 0.0
      %6758 = vmatpush1.msra.mxu0 0.0
      %6759 = vmatprep.subr.mxu0 0.0
      %6760 = vmatpush1.msra.mxu0 0.0
      %6761 = vmatprep.subr.mxu0 0.0
      %6762 = vmatpush1.msra.mxu0 0.0
      %6763 = vmatprep.subr.mxu0 0.0
      %6764 = vmatpush1.msra.mxu0 0.0
      %6765 = vmatprep.subr.mxu0 0.0
      %6766 = vmatpush1.msra.mxu0 0.0
      %6767 = vmatprep.subr.mxu0 0.0
      %6768 = vmatpush1.msra.mxu0 0.0
      %6769 = vmatprep.subr.mxu0 0.0
      %6770 = vmatpush1.msra.mxu0 0.0
      %6771 = vmatprep.subr.mxu0 0.0
      %6772 = vmatpush1.msra.mxu0 0.0
      %6773 = vmatprep.subr.mxu0 0.0
      %6774 = vmatpush1.msra.mxu0 0.0
      %6775 = vmatprep.subr.mxu0 0.0
      %6776 = vmatpush1.msra.mxu0 %v6743
      %6777 = vmatprep.subr.mxu0 0.0
      %6778 = vmatpush2.msra.mxu0 0.0
      %6779 = vmatprep.subr.mxu0 0.0
      %6780 = vmatpush2.msra.mxu0 0.0
      %6781 = vmatprep.subr.mxu0 0.0
      %6782 = vmatpush2.msra.mxu0 0.0
      %6783 = vmatprep.subr.mxu0 0.0
      %6784 = vmatpush2.msra.mxu0 0.0
      %6785 = vmatprep.subr.mxu0 0.0
      %6786 = vmatpush2.msra.mxu0 0.0
      %6787 = vmatprep.subr.mxu0 0.0
      %6788 = vmatpush2.msra.mxu0 0.0
      %6789 = vmatprep.subr.mxu0 0.0
      %6790 = vmatpush2.msra.mxu0 0.0
      %6791 = vmatprep.subr.mxu0 0.0
      %6792 = vmatpush2.msra.mxu0 0.0
      %6793 = vmatprep.subr.mxu0 0.0
      %6794 = vmatpush2.msra.mxu0 0.0
      %6795 = vmatprep.subr.mxu0 0.0
      %6796 = vmatpush2.msra.mxu0 0.0
      %6797 = vmatprep.subr.mxu0 0.0
      %6798 = vmatpush2.msra.mxu0 0.0
      %6799 = vmatprep.subr.mxu0 0.0
      %6800 = vmatpush2.msra.mxu0 0.0
      %6801 = vmatprep.subr.mxu0 0.0
      %6802 = vmatpush2.msra.mxu0 0.0
      %6803 = vmatprep.subr.mxu0 0.0
      %6804 = vmatpush2.msra.mxu0 0.0
      %6805 = vmatprep.subr.mxu0 0.0
      %6806 = vmatpush2.msra.mxu0 0.0
      %6807 = vmatprep.subr.mxu0 0.0
      %6808 = vmatpush2.msra.mxu0 0.0
      %6809 = vmatprep.mubr.f32.mxu0 0.0
      %6810 = vmatmul.mubr.f32.gmra.mxu0 %v6731
      %v6811 = vpop.f32.mrf.mxu0
      %v6812 = vadd.f32 %v6712, %v6811
      %v6813 = vpop.f32.mrf.mxu0
      %6814 = vmatprep.mubr.f32.mxu0 0.0
      %6815 = vmatmul.mubr.f32.gmra.mxu0 %v6734
      %v6816 = vpop.f32.mrf.mxu0
      %v6817 = vadd.f32 %v6717, %v6816
      %v6818 = vpop.f32.mrf.mxu0
      %6819 = vmatprep.mubr.f32.mxu0 0.0
      %6820 = vmatmul.mubr.f32.gmra.mxu0 %v6737
      %v6821 = vpop.f32.mrf.mxu0
      %v6822 = vadd.f32 %v6722, %v6821
      %v6823 = vpop.f32.mrf.mxu0
      %6824 = vmatprep.mubr.f32.mxu0 0.0
      %6825 = vmatmul.mubr.f32.gmra.mxu0 %v6740
      %v6826 = vpop.f32.mrf.mxu0
      %v6827 = vadd.f32 %v6727, %v6826
      %v6828 = vpop.f32.mrf.mxu0
      %6829 = vdwg.mxu0
      %s6830 = scalar_lea.vmem %s12, 8
      %v6831 = vld [vmem:[%s6830] sm:$0xf]
      %v6833 = vsel %vm5510, %v6325, 0
      %v6836 = vsel %vm5510, %v6328, 0
      %v6839 = vsel %vm5510, %v6333, 0
      %v6842 = vsel %vm5510, %v6336, 0
      %v6845 = vsel %vm5535, %v6831, 0
      %6847 = vmatprep.subr.mxu0 0.0
      %6848 = vmatpush1.msra.mxu0 0.0
      %6849 = vmatprep.subr.mxu0 0.0
      %6850 = vmatpush1.msra.mxu0 0.0
      %6851 = vmatprep.subr.mxu0 0.0
      %6852 = vmatpush1.msra.mxu0 0.0
      %6853 = vmatprep.subr.mxu0 0.0
      %6854 = vmatpush1.msra.mxu0 0.0
      %6855 = vmatprep.subr.mxu0 0.0
      %6856 = vmatpush1.msra.mxu0 0.0
      %6857 = vmatprep.subr.mxu0 0.0
      %6858 = vmatpush1.msra.mxu0 0.0
      %6859 = vmatprep.subr.mxu0 0.0
      %6860 = vmatpush1.msra.mxu0 0.0
      %6861 = vmatprep.subr.mxu0 0.0
      %6862 = vmatpush1.msra.mxu0 0.0
      %6863 = vmatprep.subr.mxu0 0.0
      %6864 = vmatpush1.msra.mxu0 0.0
      %6865 = vmatprep.subr.mxu0 0.0
      %6866 = vmatpush1.msra.mxu0 0.0
      %6867 = vmatprep.subr.mxu0 0.0
      %6868 = vmatpush1.msra.mxu0 0.0
      %6869 = vmatprep.subr.mxu0 0.0
      %6870 = vmatpush1.msra.mxu0 0.0
      %6871 = vmatprep.subr.mxu0 0.0
      %6872 = vmatpush1.msra.mxu0 0.0
      %6873 = vmatprep.subr.mxu0 0.0
      %6874 = vmatpush1.msra.mxu0 0.0
      %6875 = vmatprep.subr.mxu0 0.0
      %6876 = vmatpush1.msra.mxu0 0.0
      %6877 = vmatprep.subr.mxu0 0.0
      %6878 = vmatpush1.msra.mxu0 %v6845
      %6879 = vmatprep.subr.mxu0 0.0
      %6880 = vmatpush2.msra.mxu0 0.0
      %6881 = vmatprep.subr.mxu0 0.0
      %6882 = vmatpush2.msra.mxu0 0.0
      %6883 = vmatprep.subr.mxu0 0.0
      %6884 = vmatpush2.msra.mxu0 0.0
      %6885 = vmatprep.subr.mxu0 0.0
      %6886 = vmatpush2.msra.mxu0 0.0
      %6887 = vmatprep.subr.mxu0 0.0
      %6888 = vmatpush2.msra.mxu0 0.0
      %6889 = vmatprep.subr.mxu0 0.0
      %6890 = vmatpush2.msra.mxu0 0.0
      %6891 = vmatprep.subr.mxu0 0.0
      %6892 = vmatpush2.msra.mxu0 0.0
      %6893 = vmatprep.subr.mxu0 0.0
      %6894 = vmatpush2.msra.mxu0 0.0
      %6895 = vmatprep.subr.mxu0 0.0
      %6896 = vmatpush2.msra.mxu0 0.0
      %6897 = vmatprep.subr.mxu0 0.0
      %6898 = vmatpush2.msra.mxu0 0.0
      %6899 = vmatprep.subr.mxu0 0.0
      %6900 = vmatpush2.msra.mxu0 0.0
      %6901 = vmatprep.subr.mxu0 0.0
      %6902 = vmatpush2.msra.mxu0 0.0
      %6903 = vmatprep.subr.mxu0 0.0
      %6904 = vmatpush2.msra.mxu0 0.0
      %6905 = vmatprep.subr.mxu0 0.0
      %6906 = vmatpush2.msra.mxu0 0.0
      %6907 = vmatprep.subr.mxu0 0.0
      %6908 = vmatpush2.msra.mxu0 0.0
      %6909 = vmatprep.subr.mxu0 0.0
      %6910 = vmatpush2.msra.mxu0 0.0
      %6911 = vmatprep.mubr.f32.mxu0 0.0
      %6912 = vmatmul.mubr.f32.gmra.mxu0 %v6833
      %v6913 = vpop.f32.mrf.mxu0
      %v6914 = vadd.f32 0.0, %v6913
      %v6915 = vpop.f32.mrf.mxu0
      %6916 = vmatprep.mubr.f32.mxu0 0.0
      %6917 = vmatmul.mubr.f32.gmra.mxu0 %v6836
      %v6918 = vpop.f32.mrf.mxu0
      %v6919 = vadd.f32 0.0, %v6918
      %v6920 = vpop.f32.mrf.mxu0
      %6921 = vmatprep.mubr.f32.mxu0 0.0
      %6922 = vmatmul.mubr.f32.gmra.mxu0 %v6839
      %v6923 = vpop.f32.mrf.mxu0
      %v6924 = vadd.f32 0.0, %v6923
      %v6925 = vpop.f32.mrf.mxu0
      %6926 = vmatprep.mubr.f32.mxu0 0.0
      %6927 = vmatmul.mubr.f32.gmra.mxu0 %v6842
      %v6928 = vpop.f32.mrf.mxu0
      %v6929 = vadd.f32 0.0, %v6928
      %v6930 = vpop.f32.mrf.mxu0
      %6931 = vdwg.mxu0
      %v6932 = vadd.f32 %v6812, %v6914
      %v6933 = vadd.f32 %v6817, %v6919
      %v6934 = vadd.f32 %v6822, %v6924
      %v6935 = vadd.f32 %v6827, %v6929
      %s6936 = scalar_lea.vmem %s12, 12
      %v6937 = vld [vmem:[%s6936] sm:$0xf]
      %v6939 = vsel %vm5510, %v6623, 0
      %v6942 = vsel %vm5510, %v6624, 0
      %v6945 = vsel %vm5510, %v6625, 0
      %v6948 = vsel %vm5510, %v6626, 0
      %v6951 = vsel %vm5535, %v6937, 0
      %6953 = vmatprep.subr.mxu0 0.0
      %6954 = vmatpush1.msra.mxu0 0.0
      %6955 = vmatprep.subr.mxu0 0.0
      %6956 = vmatpush1.msra.mxu0 0.0
      %6957 = vmatprep.subr.mxu0 0.0
      %6958 = vmatpush1.msra.mxu0 0.0
      %6959 = vmatprep.subr.mxu0 0.0
      %6960 = vmatpush1.msra.mxu0 0.0
      %6961 = vmatprep.subr.mxu0 0.0
      %6962 = vmatpush1.msra.mxu0 0.0
      %6963 = vmatprep.subr.mxu0 0.0
      %6964 = vmatpush1.msra.mxu0 0.0
      %6965 = vmatprep.subr.mxu0 0.0
      %6966 = vmatpush1.msra.mxu0 0.0
      %6967 = vmatprep.subr.mxu0 0.0
      %6968 = vmatpush1.msra.mxu0 0.0
      %6969 = vmatprep.subr.mxu0 0.0
      %6970 = vmatpush1.msra.mxu0 0.0
      %6971 = vmatprep.subr.mxu0 0.0
      %6972 = vmatpush1.msra.mxu0 0.0
      %6973 = vmatprep.subr.mxu0 0.0
      %6974 = vmatpush1.msra.mxu0 0.0
      %6975 = vmatprep.subr.mxu0 0.0
      %6976 = vmatpush1.msra.mxu0 0.0
      %6977 = vmatprep.subr.mxu0 0.0
      %6978 = vmatpush1.msra.mxu0 0.0
      %6979 = vmatprep.subr.mxu0 0.0
      %6980 = vmatpush1.msra.mxu0 0.0
      %6981 = vmatprep.subr.mxu0 0.0
      %6982 = vmatpush1.msra.mxu0 0.0
      %6983 = vmatprep.subr.mxu0 0.0
      %6984 = vmatpush1.msra.mxu0 %v6951
      %6985 = vmatprep.subr.mxu0 0.0
      %6986 = vmatpush2.msra.mxu0 0.0
      %6987 = vmatprep.subr.mxu0 0.0
      %6988 = vmatpush2.msra.mxu0 0.0
      %6989 = vmatprep.subr.mxu0 0.0
      %6990 = vmatpush2.msra.mxu0 0.0
      %6991 = vmatprep.subr.mxu0 0.0
      %6992 = vmatpush2.msra.mxu0 0.0
      %6993 = vmatprep.subr.mxu0 0.0
      %6994 = vmatpush2.msra.mxu0 0.0
      %6995 = vmatprep.subr.mxu0 0.0
      %6996 = vmatpush2.msra.mxu0 0.0
      %6997 = vmatprep.subr.mxu0 0.0
      %6998 = vmatpush2.msra.mxu0 0.0
      %6999 = vmatprep.subr.mxu0 0.0
      %7000 = vmatpush2.msra.mxu0 0.0
      %7001 = vmatprep.subr.mxu0 0.0
      %7002 = vmatpush2.msra.mxu0 0.0
      %7003 = vmatprep.subr.mxu0 0.0
      %7004 = vmatpush2.msra.mxu0 0.0
      %7005 = vmatprep.subr.mxu0 0.0
      %7006 = vmatpush2.msra.mxu0 0.0
      %7007 = vmatprep.subr.mxu0 0.0
      %7008 = vmatpush2.msra.mxu0 0.0
      %7009 = vmatprep.subr.mxu0 0.0
      %7010 = vmatpush2.msra.mxu0 0.0
      %7011 = vmatprep.subr.mxu0 0.0
      %7012 = vmatpush2.msra.mxu0 0.0
      %7013 = vmatprep.subr.mxu0 0.0
      %7014 = vmatpush2.msra.mxu0 0.0
      %7015 = vmatprep.subr.mxu0 0.0
      %7016 = vmatpush2.msra.mxu0 0.0
      %7017 = vmatprep.mubr.f32.mxu0 0.0
      %7018 = vmatmul.mubr.f32.gmra.mxu0 %v6939
      %v7019 = vpop.f32.mrf.mxu0
      %v7020 = vadd.f32 0.0, %v7019
      %v7021 = vpop.f32.mrf.mxu0
      %7022 = vmatprep.mubr.f32.mxu0 0.0
      %7023 = vmatmul.mubr.f32.gmra.mxu0 %v6942
      %v7024 = vpop.f32.mrf.mxu0
      %v7025 = vadd.f32 0.0, %v7024
      %v7026 = vpop.f32.mrf.mxu0
      %7027 = vmatprep.mubr.f32.mxu0 0.0
      %7028 = vmatmul.mubr.f32.gmra.mxu0 %v6945
      %v7029 = vpop.f32.mrf.mxu0
      %v7030 = vadd.f32 0.0, %v7029
      %v7031 = vpop.f32.mrf.mxu0
      %7032 = vmatprep.mubr.f32.mxu0 0.0
      %7033 = vmatmul.mubr.f32.gmra.mxu0 %v6948
      %v7034 = vpop.f32.mrf.mxu0
      %v7035 = vadd.f32 0.0, %v7034
      %v7036 = vpop.f32.mrf.mxu0
      %7037 = vdwg.mxu0
      %v7038 = vadd.f32 %v6932, %v7020
      %v7039 = vadd.f32 %v6933, %v7025
      %v7040 = vadd.f32 %v6934, %v7030
      %v7041 = vadd.f32 %v6935, %v7035
      %v7042 = vld [vmem:[%s13] sm:$0xff]
      %v7043 = vld [vmem:[%s13 + $0x8] sm:$0xff]
      %v7044 = vld [vmem:[%s13 + $0x10] sm:$0xff]
      %v7045 = vld [vmem:[%s13 + $0x18] sm:$0xff]
      %7047 = vset.pattern.permute.xlu0 0
      %7048 = vperm.xlu0 %7047, %v7042
      %v7049 = vpop.permute.xlu0 %7048
      %7052 = vset.pattern.permute.xlu0 0
      %7053 = vperm.xlu0 %7052, %v7043
      %v7054 = vpop.permute.xlu0 %7053
      %7057 = vset.pattern.permute.xlu0 0
      %7058 = vperm.xlu0 %7057, %v7044
      %v7059 = vpop.permute.xlu0 %7058
      %7062 = vset.pattern.permute.xlu0 0
      %7063 = vperm.xlu0 %7062, %v7045
      %v7064 = vpop.permute.xlu0 %7063
      %v7066 = vadd.f32 %v7038, %v7049
      %v7067 = vadd.f32 %v7039, %v7054
      %v7068 = vadd.f32 %v7040, %v7059
      %v7069 = vadd.f32 %v7041, %v7064
      %v7070 = vmax.f32 %v7066, 0.0
      %v7071 = vmax.f32 %v7067, 0.0
      %v7072 = vmax.f32 %v7068, 0.0
      %v7073 = vmax.f32 %v7069, 0.0
      %v7074 = vld [vmem:[%s15] sm:$0xff]
      %v7075 = vld [vmem:[%s15 + $0x8] sm:$0xff]
      %v7077 = vsel %vm2348, %v7070, 0
      %v7080 = vsel %vm2348, %v7071, 0
      %v7083 = vsel %vm2348, %v7072, 0
      %v7086 = vsel %vm2348, %v7073, 0
      %7088 = vmatprep.subr.mxu0 0.0
      %7089 = vmatpush1.msra.mxu0 0.0
      %7090 = vmatprep.subr.mxu0 0.0
      %7091 = vmatpush1.msra.mxu0 0.0
      %7092 = vmatprep.subr.mxu0 0.0
      %7093 = vmatpush1.msra.mxu0 0.0
      %7094 = vmatprep.subr.mxu0 0.0
      %7095 = vmatpush1.msra.mxu0 0.0
      %7096 = vmatprep.subr.mxu0 0.0
      %7097 = vmatpush1.msra.mxu0 0.0
      %7098 = vmatprep.subr.mxu0 0.0
      %7099 = vmatpush1.msra.mxu0 0.0
      %7100 = vmatprep.subr.mxu0 0.0
      %7101 = vmatpush1.msra.mxu0 0.0
      %7102 = vmatprep.subr.mxu0 0.0
      %7103 = vmatpush1.msra.mxu0 0.0
      %7104 = vmatprep.subr.mxu0 0.0
      %7105 = vmatpush1.msra.mxu0 0.0
      %7106 = vmatprep.subr.mxu0 0.0
      %7107 = vmatpush1.msra.mxu0 0.0
      %7108 = vmatprep.subr.mxu0 0.0
      %7109 = vmatpush1.msra.mxu0 0.0
      %7110 = vmatprep.subr.mxu0 0.0
      %7111 = vmatpush1.msra.mxu0 0.0
      %7112 = vmatprep.subr.mxu0 0.0
      %7113 = vmatpush1.msra.mxu0 0.0
      %7114 = vmatprep.subr.mxu0 0.0
      %7115 = vmatpush1.msra.mxu0 0.0
      %7116 = vmatprep.subr.mxu0 0.0
      %7117 = vmatpush1.msra.mxu0 %v7075
      %7118 = vmatprep.subr.mxu0 0.0
      %7119 = vmatpush1.msra.mxu0 %v7074
      %7120 = vmatprep.subr.mxu0 0.0
      %7121 = vmatpush2.msra.mxu0 0.0
      %7122 = vmatprep.subr.mxu0 0.0
      %7123 = vmatpush2.msra.mxu0 0.0
      %7124 = vmatprep.subr.mxu0 0.0
      %7125 = vmatpush2.msra.mxu0 0.0
      %7126 = vmatprep.subr.mxu0 0.0
      %7127 = vmatpush2.msra.mxu0 0.0
      %7128 = vmatprep.subr.mxu0 0.0
      %7129 = vmatpush2.msra.mxu0 0.0
      %7130 = vmatprep.subr.mxu0 0.0
      %7131 = vmatpush2.msra.mxu0 0.0
      %7132 = vmatprep.subr.mxu0 0.0
      %7133 = vmatpush2.msra.mxu0 0.0
      %7134 = vmatprep.subr.mxu0 0.0
      %7135 = vmatpush2.msra.mxu0 0.0
      %7136 = vmatprep.subr.mxu0 0.0
      %7137 = vmatpush2.msra.mxu0 0.0
      %7138 = vmatprep.subr.mxu0 0.0
      %7139 = vmatpush2.msra.mxu0 0.0
      %7140 = vmatprep.subr.mxu0 0.0
      %7141 = vmatpush2.msra.mxu0 0.0
      %7142 = vmatprep.subr.mxu0 0.0
      %7143 = vmatpush2.msra.mxu0 0.0
      %7144 = vmatprep.subr.mxu0 0.0
      %7145 = vmatpush2.msra.mxu0 0.0
      %7146 = vmatprep.subr.mxu0 0.0
      %7147 = vmatpush2.msra.mxu0 0.0
      %7148 = vmatprep.subr.mxu0 0.0
      %7149 = vmatpush2.msra.mxu0 0.0
      %7150 = vmatprep.subr.mxu0 0.0
      %7151 = vmatpush2.msra.mxu0 0.0
      %7152 = vmatprep.mubr.f32.mxu0 0.0
      %7153 = vmatmul.mubr.f32.gmra.mxu0 %v7077
      %v7154 = vpop.f32.mrf.mxu0
      %v7155 = vadd.f32 0.0, %v7154
      %v7156 = vpop.f32.mrf.mxu0
      %7157 = vmatprep.mubr.f32.mxu0 0.0
      %7158 = vmatmul.mubr.f32.gmra.mxu0 %v7080
      %v7159 = vpop.f32.mrf.mxu0
      %v7160 = vadd.f32 0.0, %v7159
      %v7161 = vpop.f32.mrf.mxu0
      %7162 = vmatprep.mubr.f32.mxu0 0.0
      %7163 = vmatmul.mubr.f32.gmra.mxu0 %v7083
      %v7164 = vpop.f32.mrf.mxu0
      %v7165 = vadd.f32 0.0, %v7164
      %v7166 = vpop.f32.mrf.mxu0
      %7167 = vmatprep.mubr.f32.mxu0 0.0
      %7168 = vmatmul.mubr.f32.gmra.mxu0 %v7086
      %v7169 = vpop.f32.mrf.mxu0
      %v7170 = vadd.f32 0.0, %v7169
      %v7171 = vpop.f32.mrf.mxu0
      %7172 = vdwg.mxu0
      %v7173 = vpack.c.bf16 %v7160, %v7155
      %v7174 = vpack.c.bf16 %v7170, %v7165
      %s7175 = scalar_lea.vmem %s15, 16
      %v7176 = vld [vmem:[%s7175] sm:$0xff]
      %v7177 = vld [vmem:[%s7175 + $0x8] sm:$0xff]
      %7178 = vmatprep.subr.mxu0 0.0
      %7179 = vmatpush1.msra.mxu0 0.0
      %7180 = vmatprep.subr.mxu0 0.0
      %7181 = vmatpush1.msra.mxu0 0.0
      %7182 = vmatprep.subr.mxu0 0.0
      %7183 = vmatpush1.msra.mxu0 0.0
      %7184 = vmatprep.subr.mxu0 0.0
      %7185 = vmatpush1.msra.mxu0 0.0
      %7186 = vmatprep.subr.mxu0 0.0
      %7187 = vmatpush1.msra.mxu0 0.0
      %7188 = vmatprep.subr.mxu0 0.0
      %7189 = vmatpush1.msra.mxu0 0.0
      %7190 = vmatprep.subr.mxu0 0.0
      %7191 = vmatpush1.msra.mxu0 0.0
      %7192 = vmatprep.subr.mxu0 0.0
      %7193 = vmatpush1.msra.mxu0 0.0
      %7194 = vmatprep.subr.mxu0 0.0
      %7195 = vmatpush1.msra.mxu0 0.0
      %7196 = vmatprep.subr.mxu0 0.0
      %7197 = vmatpush1.msra.mxu0 0.0
      %7198 = vmatprep.subr.mxu0 0.0
      %7199 = vmatpush1.msra.mxu0 0.0
      %7200 = vmatprep.subr.mxu0 0.0
      %7201 = vmatpush1.msra.mxu0 0.0
      %7202 = vmatprep.subr.mxu0 0.0
      %7203 = vmatpush1.msra.mxu0 0.0
      %7204 = vmatprep.subr.mxu0 0.0
      %7205 = vmatpush1.msra.mxu0 0.0
      %7206 = vmatprep.subr.mxu0 0.0
      %7207 = vmatpush1.msra.mxu0 %v7177
      %7208 = vmatprep.subr.mxu0 0.0
      %7209 = vmatpush1.msra.mxu0 %v7176
      %7210 = vmatprep.subr.mxu0 0.0
      %7211 = vmatpush2.msra.mxu0 0.0
      %7212 = vmatprep.subr.mxu0 0.0
      %7213 = vmatpush2.msra.mxu0 0.0
      %7214 = vmatprep.subr.mxu0 0.0
      %7215 = vmatpush2.msra.mxu0 0.0
      %7216 = vmatprep.subr.mxu0 0.0
      %7217 = vmatpush2.msra.mxu0 0.0
      %7218 = vmatprep.subr.mxu0 0.0
      %7219 = vmatpush2.msra.mxu0 0.0
      %7220 = vmatprep.subr.mxu0 0.0
      %7221 = vmatpush2.msra.mxu0 0.0
      %7222 = vmatprep.subr.mxu0 0.0
      %7223 = vmatpush2.msra.mxu0 0.0
      %7224 = vmatprep.subr.mxu0 0.0
      %7225 = vmatpush2.msra.mxu0 0.0
      %7226 = vmatprep.subr.mxu0 0.0
      %7227 = vmatpush2.msra.mxu0 0.0
      %7228 = vmatprep.subr.mxu0 0.0
      %7229 = vmatpush2.msra.mxu0 0.0
      %7230 = vmatprep.subr.mxu0 0.0
      %7231 = vmatpush2.msra.mxu0 0.0
      %7232 = vmatprep.subr.mxu0 0.0
      %7233 = vmatpush2.msra.mxu0 0.0
      %7234 = vmatprep.subr.mxu0 0.0
      %7235 = vmatpush2.msra.mxu0 0.0
      %7236 = vmatprep.subr.mxu0 0.0
      %7237 = vmatpush2.msra.mxu0 0.0
      %7238 = vmatprep.subr.mxu0 0.0
      %7239 = vmatpush2.msra.mxu0 0.0
      %7240 = vmatprep.subr.mxu0 0.0
      %7241 = vmatpush2.msra.mxu0 0.0
      %7242 = vmatprep.mubr.f32.mxu0 0.0
      %7243 = vmatmul.mubr.f32.gmra.mxu0 %v7077
      %v7244 = vpop.f32.mrf.mxu0
      %v7245 = vadd.f32 0.0, %v7244
      %v7246 = vpop.f32.mrf.mxu0
      %7247 = vmatprep.mubr.f32.mxu0 0.0
      %7248 = vmatmul.mubr.f32.gmra.mxu0 %v7080
      %v7249 = vpop.f32.mrf.mxu0
      %v7250 = vadd.f32 0.0, %v7249
      %v7251 = vpop.f32.mrf.mxu0
      %7252 = vmatprep.mubr.f32.mxu0 0.0
      %7253 = vmatmul.mubr.f32.gmra.mxu0 %v7083
      %v7254 = vpop.f32.mrf.mxu0
      %v7255 = vadd.f32 0.0, %v7254
      %v7256 = vpop.f32.mrf.mxu0
      %7257 = vmatprep.mubr.f32.mxu0 0.0
      %7258 = vmatmul.mubr.f32.gmra.mxu0 %v7086
      %v7259 = vpop.f32.mrf.mxu0
      %v7260 = vadd.f32 0.0, %v7259
      %v7261 = vpop.f32.mrf.mxu0
      %7262 = vdwg.mxu0
      %v7263 = vpack.c.bf16 %v7250, %v7245
      %v7264 = vpack.c.bf16 %v7260, %v7255
      %s7265 = scalar_lea.vmem %s15, 32
      %v7266 = vld [vmem:[%s7265] sm:$0xff]
      %v7267 = vld [vmem:[%s7265 + $0x8] sm:$0xff]
      %7268 = vmatprep.subr.mxu0 0.0
      %7269 = vmatpush1.msra.mxu0 0.0
      %7270 = vmatprep.subr.mxu0 0.0
      %7271 = vmatpush1.msra.mxu0 0.0
      %7272 = vmatprep.subr.mxu0 0.0
      %7273 = vmatpush1.msra.mxu0 0.0
      %7274 = vmatprep.subr.mxu0 0.0
      %7275 = vmatpush1.msra.mxu0 0.0
      %7276 = vmatprep.subr.mxu0 0.0
      %7277 = vmatpush1.msra.mxu0 0.0
      %7278 = vmatprep.subr.mxu0 0.0
      %7279 = vmatpush1.msra.mxu0 0.0
      %7280 = vmatprep.subr.mxu0 0.0
      %7281 = vmatpush1.msra.mxu0 0.0
      %7282 = vmatprep.subr.mxu0 0.0
      %7283 = vmatpush1.msra.mxu0 0.0
      %7284 = vmatprep.subr.mxu0 0.0
      %7285 = vmatpush1.msra.mxu0 0.0
      %7286 = vmatprep.subr.mxu0 0.0
      %7287 = vmatpush1.msra.mxu0 0.0
      %7288 = vmatprep.subr.mxu0 0.0
      %7289 = vmatpush1.msra.mxu0 0.0
      %7290 = vmatprep.subr.mxu0 0.0
      %7291 = vmatpush1.msra.mxu0 0.0
      %7292 = vmatprep.subr.mxu0 0.0
      %7293 = vmatpush1.msra.mxu0 0.0
      %7294 = vmatprep.subr.mxu0 0.0
      %7295 = vmatpush1.msra.mxu0 0.0
      %7296 = vmatprep.subr.mxu0 0.0
      %7297 = vmatpush1.msra.mxu0 %v7267
      %7298 = vmatprep.subr.mxu0 0.0
      %7299 = vmatpush1.msra.mxu0 %v7266
      %7300 = vmatprep.subr.mxu0 0.0
      %7301 = vmatpush2.msra.mxu0 0.0
      %7302 = vmatprep.subr.mxu0 0.0
      %7303 = vmatpush2.msra.mxu0 0.0
      %7304 = vmatprep.subr.mxu0 0.0
      %7305 = vmatpush2.msra.mxu0 0.0
      %7306 = vmatprep.subr.mxu0 0.0
      %7307 = vmatpush2.msra.mxu0 0.0
      %7308 = vmatprep.subr.mxu0 0.0
      %7309 = vmatpush2.msra.mxu0 0.0
      %7310 = vmatprep.subr.mxu0 0.0
      %7311 = vmatpush2.msra.mxu0 0.0
      %7312 = vmatprep.subr.mxu0 0.0
      %7313 = vmatpush2.msra.mxu0 0.0
      %7314 = vmatprep.subr.mxu0 0.0
      %7315 = vmatpush2.msra.mxu0 0.0
      %7316 = vmatprep.subr.mxu0 0.0
      %7317 = vmatpush2.msra.mxu0 0.0
      %7318 = vmatprep.subr.mxu0 0.0
      %7319 = vmatpush2.msra.mxu0 0.0
      %7320 = vmatprep.subr.mxu0 0.0
      %7321 = vmatpush2.msra.mxu0 0.0
      %7322 = vmatprep.subr.mxu0 0.0
      %7323 = vmatpush2.msra.mxu0 0.0
      %7324 = vmatprep.subr.mxu0 0.0
      %7325 = vmatpush2.msra.mxu0 0.0
      %7326 = vmatprep.subr.mxu0 0.0
      %7327 = vmatpush2.msra.mxu0 0.0
      %7328 = vmatprep.subr.mxu0 0.0
      %7329 = vmatpush2.msra.mxu0 0.0
      %7330 = vmatprep.subr.mxu0 0.0
      %7331 = vmatpush2.msra.mxu0 0.0
      %7332 = vmatprep.mubr.f32.mxu0 0.0
      %7333 = vmatmul.mubr.f32.gmra.mxu0 %v7077
      %v7334 = vpop.f32.mrf.mxu0
      %v7335 = vadd.f32 0.0, %v7334
      %v7336 = vpop.f32.mrf.mxu0
      %7337 = vmatprep.mubr.f32.mxu0 0.0
      %7338 = vmatmul.mubr.f32.gmra.mxu0 %v7080
      %v7339 = vpop.f32.mrf.mxu0
      %v7340 = vadd.f32 0.0, %v7339
      %v7341 = vpop.f32.mrf.mxu0
      %7342 = vmatprep.mubr.f32.mxu0 0.0
      %7343 = vmatmul.mubr.f32.gmra.mxu0 %v7083
      %v7344 = vpop.f32.mrf.mxu0
      %v7345 = vadd.f32 0.0, %v7344
      %v7346 = vpop.f32.mrf.mxu0
      %7347 = vmatprep.mubr.f32.mxu0 0.0
      %7348 = vmatmul.mubr.f32.gmra.mxu0 %v7086
      %v7349 = vpop.f32.mrf.mxu0
      %v7350 = vadd.f32 0.0, %v7349
      %v7351 = vpop.f32.mrf.mxu0
      %7352 = vdwg.mxu0
      %v7353 = vpack.c.bf16 %v7340, %v7335
      %v7354 = vpack.c.bf16 %v7350, %v7345
      %s7355 = scalar_lea.vmem %s15, 48
      %v7356 = vld [vmem:[%s7355] sm:$0xff]
      %v7357 = vld [vmem:[%s7355 + $0x8] sm:$0xff]
      %7358 = vmatprep.subr.mxu0 0.0
      %7359 = vmatpush1.msra.mxu0 0.0
      %7360 = vmatprep.subr.mxu0 0.0
      %7361 = vmatpush1.msra.mxu0 0.0
      %7362 = vmatprep.subr.mxu0 0.0
      %7363 = vmatpush1.msra.mxu0 0.0
      %7364 = vmatprep.subr.mxu0 0.0
      %7365 = vmatpush1.msra.mxu0 0.0
      %7366 = vmatprep.subr.mxu0 0.0
      %7367 = vmatpush1.msra.mxu0 0.0
      %7368 = vmatprep.subr.mxu0 0.0
      %7369 = vmatpush1.msra.mxu0 0.0
      %7370 = vmatprep.subr.mxu0 0.0
      %7371 = vmatpush1.msra.mxu0 0.0
      %7372 = vmatprep.subr.mxu0 0.0
      %7373 = vmatpush1.msra.mxu0 0.0
      %7374 = vmatprep.subr.mxu0 0.0
      %7375 = vmatpush1.msra.mxu0 0.0
      %7376 = vmatprep.subr.mxu0 0.0
      %7377 = vmatpush1.msra.mxu0 0.0
      %7378 = vmatprep.subr.mxu0 0.0
      %7379 = vmatpush1.msra.mxu0 0.0
      %7380 = vmatprep.subr.mxu0 0.0
      %7381 = vmatpush1.msra.mxu0 0.0
      %7382 = vmatprep.subr.mxu0 0.0
      %7383 = vmatpush1.msra.mxu0 0.0
      %7384 = vmatprep.subr.mxu0 0.0
      %7385 = vmatpush1.msra.mxu0 0.0
      %7386 = vmatprep.subr.mxu0 0.0
      %7387 = vmatpush1.msra.mxu0 %v7357
      %7388 = vmatprep.subr.mxu0 0.0
      %7389 = vmatpush1.msra.mxu0 %v7356
      %7390 = vmatprep.subr.mxu0 0.0
      %7391 = vmatpush2.msra.mxu0 0.0
      %7392 = vmatprep.subr.mxu0 0.0
      %7393 = vmatpush2.msra.mxu0 0.0
      %7394 = vmatprep.subr.mxu0 0.0
      %7395 = vmatpush2.msra.mxu0 0.0
      %7396 = vmatprep.subr.mxu0 0.0
      %7397 = vmatpush2.msra.mxu0 0.0
      %7398 = vmatprep.subr.mxu0 0.0
      %7399 = vmatpush2.msra.mxu0 0.0
      %7400 = vmatprep.subr.mxu0 0.0
      %7401 = vmatpush2.msra.mxu0 0.0
      %7402 = vmatprep.subr.mxu0 0.0
      %7403 = vmatpush2.msra.mxu0 0.0
      %7404 = vmatprep.subr.mxu0 0.0
      %7405 = vmatpush2.msra.mxu0 0.0
      %7406 = vmatprep.subr.mxu0 0.0
      %7407 = vmatpush2.msra.mxu0 0.0
      %7408 = vmatprep.subr.mxu0 0.0
      %7409 = vmatpush2.msra.mxu0 0.0
      %7410 = vmatprep.subr.mxu0 0.0
      %7411 = vmatpush2.msra.mxu0 0.0
      %7412 = vmatprep.subr.mxu0 0.0
      %7413 = vmatpush2.msra.mxu0 0.0
      %7414 = vmatprep.subr.mxu0 0.0
      %7415 = vmatpush2.msra.mxu0 0.0
      %7416 = vmatprep.subr.mxu0 0.0
      %7417 = vmatpush2.msra.mxu0 0.0
      %7418 = vmatprep.subr.mxu0 0.0
      %7419 = vmatpush2.msra.mxu0 0.0
      %7420 = vmatprep.subr.mxu0 0.0
      %7421 = vmatpush2.msra.mxu0 0.0
      %7422 = vmatprep.mubr.f32.mxu0 0.0
      %7423 = vmatmul.mubr.f32.gmra.mxu0 %v7077
      %v7424 = vpop.f32.mrf.mxu0
      %v7425 = vadd.f32 0.0, %v7424
      %v7426 = vpop.f32.mrf.mxu0
      %7427 = vmatprep.mubr.f32.mxu0 0.0
      %7428 = vmatmul.mubr.f32.gmra.mxu0 %v7080
      %v7429 = vpop.f32.mrf.mxu0
      %v7430 = vadd.f32 0.0, %v7429
      %v7431 = vpop.f32.mrf.mxu0
      %7432 = vmatprep.mubr.f32.mxu0 0.0
      %7433 = vmatmul.mubr.f32.gmra.mxu0 %v7083
      %v7434 = vpop.f32.mrf.mxu0
      %v7435 = vadd.f32 0.0, %v7434
      %v7436 = vpop.f32.mrf.mxu0
      %7437 = vmatprep.mubr.f32.mxu0 0.0
      %7438 = vmatmul.mubr.f32.gmra.mxu0 %v7086
      %v7439 = vpop.f32.mrf.mxu0
      %v7440 = vadd.f32 0.0, %v7439
      %v7441 = vpop.f32.mrf.mxu0
      %7442 = vdwg.mxu0
      %v7443 = vpack.c.bf16 %v7430, %v7425
      %v7444 = vpack.c.bf16 %v7440, %v7435
      %v7445 = vld [vmem:[%s14] sm:$0xf]
      %v7446 = vld [vmem:[%s14 + $0x4] sm:$0xf]
      %v7449 = vunpack.c.l.b16 %v7445
      %v7450 = vunpack.c.l.b16 %v7446
      %v7451 = vpack.c.b16 %v7450, %v7449
      %v7453 = vsel %vm3842, %v7451, 0
      %7455 = vmatprep.subr.bf16.mxu0 0
      %7456 = vmatpush1.bf16.msra.mxu0 0
      %7457 = vmatprep.subr.bf16.mxu0 0
      %7458 = vmatpush1.bf16.msra.mxu0 0
      %7459 = vmatprep.subr.bf16.mxu0 0
      %7460 = vmatpush1.bf16.msra.mxu0 0
      %7461 = vmatprep.subr.bf16.mxu0 0
      %7462 = vmatpush1.bf16.msra.mxu0 0
      %7463 = vmatprep.subr.bf16.mxu0 0
      %7464 = vmatpush1.bf16.msra.mxu0 0
      %7465 = vmatprep.subr.bf16.mxu0 0
      %7466 = vmatpush1.bf16.msra.mxu0 0
      %7467 = vmatprep.subr.bf16.mxu0 0
      %7468 = vmatpush1.bf16.msra.mxu0 %v7174
      %7469 = vmatprep.subr.bf16.mxu0 0
      %7470 = vmatpush1.bf16.msra.mxu0 %v7173
      %7471 = vmatprep.subr.bf16.mxu0 0
      %7472 = vmatpush2.bf16.msra.mxu0 0
      %7473 = vmatprep.subr.bf16.mxu0 0
      %7474 = vmatpush2.bf16.msra.mxu0 0
      %7475 = vmatprep.subr.bf16.mxu0 0
      %7476 = vmatpush2.bf16.msra.mxu0 0
      %7477 = vmatprep.subr.bf16.mxu0 0
      %7478 = vmatpush2.bf16.msra.mxu0 0
      %7479 = vmatprep.subr.bf16.mxu0 0
      %7480 = vmatpush2.bf16.msra.mxu0 0
      %7481 = vmatprep.subr.bf16.mxu0 0
      %7482 = vmatpush2.bf16.msra.mxu0 0
      %7483 = vmatprep.subr.bf16.mxu0 0
      %7484 = vmatpush2.bf16.msra.mxu0 0
      %7485 = vmatprep.subr.bf16.mxu0 0
      %7486 = vmatpush2.bf16.msra.mxu0 0
      %7487 = vmatprep.mubr.bf16.mxu0 0
      %7488 = vmatmul.mubr.bf16.gmra.mxu0 %v7453
      %v7489 = vpop.f32.mrf.mxu0
      %v7490 = vadd.f32 0.0, %v7489
      %v7491 = vpop.f32.mrf.mxu0
      %v7492 = vpop.f32.mrf.mxu0
      %v7493 = vadd.f32 0.0, %v7492
      %v7494 = vpop.f32.mrf.mxu0
      %7495 = vdwg.mxu0
      %s7496 = scalar_lea.vmem %s14, 8
      %v7497 = vld [vmem:[%s7496] sm:$0xf]
      %v7498 = vld [vmem:[%s7496 + $0x4] sm:$0xf]
      %s7499 = scalar_lea.vmem %s14, 16
      %v7500 = vld [vmem:[%s7499] sm:$0xf]
      %v7501 = vld [vmem:[%s7499 + $0x4] sm:$0xf]
      %v7504 = vunpack.c.l.b16 %v7500
      %v7505 = vunpack.c.l.b16 %v7501
      %v7506 = vpack.c.b16 %v7505, %v7504
      %v7508 = vsel %vm3842, %v7506, 0
      %7510 = vmatprep.subr.bf16.mxu0 0
      %7511 = vmatpush1.bf16.msra.mxu0 0
      %7512 = vmatprep.subr.bf16.mxu0 0
      %7513 = vmatpush1.bf16.msra.mxu0 0
      %7514 = vmatprep.subr.bf16.mxu0 0
      %7515 = vmatpush1.bf16.msra.mxu0 0
      %7516 = vmatprep.subr.bf16.mxu0 0
      %7517 = vmatpush1.bf16.msra.mxu0 0
      %7518 = vmatprep.subr.bf16.mxu0 0
      %7519 = vmatpush1.bf16.msra.mxu0 0
      %7520 = vmatprep.subr.bf16.mxu0 0
      %7521 = vmatpush1.bf16.msra.mxu0 0
      %7522 = vmatprep.subr.bf16.mxu0 0
      %7523 = vmatpush1.bf16.msra.mxu0 %v7264
      %7524 = vmatprep.subr.bf16.mxu0 0
      %7525 = vmatpush1.bf16.msra.mxu0 %v7263
      %7526 = vmatprep.subr.bf16.mxu0 0
      %7527 = vmatpush2.bf16.msra.mxu0 0
      %7528 = vmatprep.subr.bf16.mxu0 0
      %7529 = vmatpush2.bf16.msra.mxu0 0
      %7530 = vmatprep.subr.bf16.mxu0 0
      %7531 = vmatpush2.bf16.msra.mxu0 0
      %7532 = vmatprep.subr.bf16.mxu0 0
      %7533 = vmatpush2.bf16.msra.mxu0 0
      %7534 = vmatprep.subr.bf16.mxu0 0
      %7535 = vmatpush2.bf16.msra.mxu0 0
      %7536 = vmatprep.subr.bf16.mxu0 0
      %7537 = vmatpush2.bf16.msra.mxu0 0
      %7538 = vmatprep.subr.bf16.mxu0 0
      %7539 = vmatpush2.bf16.msra.mxu0 0
      %7540 = vmatprep.subr.bf16.mxu0 0
      %7541 = vmatpush2.bf16.msra.mxu0 0
      %7542 = vmatprep.mubr.bf16.mxu0 0
      %7543 = vmatmul.mubr.bf16.gmra.mxu0 %v7508
      %v7544 = vpop.f32.mrf.mxu0
      %v7545 = vadd.f32 0.0, %v7544
      %v7546 = vpop.f32.mrf.mxu0
      %v7547 = vpop.f32.mrf.mxu0
      %v7548 = vadd.f32 0.0, %v7547
      %v7549 = vpop.f32.mrf.mxu0
      %7550 = vdwg.mxu0
      %v7553 = vunpack.c.l.b16 %v7497
      %v7554 = vunpack.c.l.b16 %v7498
      %v7555 = vpack.c.b16 %v7554, %v7553
      %v7557 = vsel %vm3842, %v7555, 0
      %7559 = vmatprep.subr.bf16.mxu0 0
      %7560 = vmatpush1.bf16.msra.mxu0 0
      %7561 = vmatprep.subr.bf16.mxu0 0
      %7562 = vmatpush1.bf16.msra.mxu0 0
      %7563 = vmatprep.subr.bf16.mxu0 0
      %7564 = vmatpush1.bf16.msra.mxu0 0
      %7565 = vmatprep.subr.bf16.mxu0 0
      %7566 = vmatpush1.bf16.msra.mxu0 0
      %7567 = vmatprep.subr.bf16.mxu0 0
      %7568 = vmatpush1.bf16.msra.mxu0 0
      %7569 = vmatprep.subr.bf16.mxu0 0
      %7570 = vmatpush1.bf16.msra.mxu0 0
      %7571 = vmatprep.subr.bf16.mxu0 0
      %7572 = vmatpush1.bf16.msra.mxu0 %v7174
      %7573 = vmatprep.subr.bf16.mxu0 0
      %7574 = vmatpush1.bf16.msra.mxu0 %v7173
      %7575 = vmatprep.subr.bf16.mxu0 0
      %7576 = vmatpush2.bf16.msra.mxu0 0
      %7577 = vmatprep.subr.bf16.mxu0 0
      %7578 = vmatpush2.bf16.msra.mxu0 0
      %7579 = vmatprep.subr.bf16.mxu0 0
      %7580 = vmatpush2.bf16.msra.mxu0 0
      %7581 = vmatprep.subr.bf16.mxu0 0
      %7582 = vmatpush2.bf16.msra.mxu0 0
      %7583 = vmatprep.subr.bf16.mxu0 0
      %7584 = vmatpush2.bf16.msra.mxu0 0
      %7585 = vmatprep.subr.bf16.mxu0 0
      %7586 = vmatpush2.bf16.msra.mxu0 0
      %7587 = vmatprep.subr.bf16.mxu0 0
      %7588 = vmatpush2.bf16.msra.mxu0 0
      %7589 = vmatprep.subr.bf16.mxu0 0
      %7590 = vmatpush2.bf16.msra.mxu0 0
      %7591 = vmatprep.mubr.bf16.mxu0 0
      %7592 = vmatmul.mubr.bf16.gmra.mxu0 %v7557
      %v7593 = vpop.f32.mrf.mxu0
      %v7594 = vadd.f32 %v7545, %v7593
      %v7595 = vpop.f32.mrf.mxu0
      %v7596 = vpop.f32.mrf.mxu0
      %v7597 = vadd.f32 %v7548, %v7596
      %v7598 = vpop.f32.mrf.mxu0
      %7599 = vdwg.mxu0
      %s7600 = scalar_lea.vmem %s14, 24
      %v7601 = vld [vmem:[%s7600] sm:$0xf]
      %v7602 = vld [vmem:[%s7600 + $0x4] sm:$0xf]
      %s7603 = scalar_lea.vmem %s14, 32
      %v7604 = vld [vmem:[%s7603] sm:$0xf]
      %v7605 = vld [vmem:[%s7603 + $0x4] sm:$0xf]
      %v7608 = vunpack.c.l.b16 %v7604
      %v7609 = vunpack.c.l.b16 %v7605
      %v7610 = vpack.c.b16 %v7609, %v7608
      %v7612 = vsel %vm3842, %v7610, 0
      %7614 = vmatprep.subr.bf16.mxu0 0
      %7615 = vmatpush1.bf16.msra.mxu0 0
      %7616 = vmatprep.subr.bf16.mxu0 0
      %7617 = vmatpush1.bf16.msra.mxu0 0
      %7618 = vmatprep.subr.bf16.mxu0 0
      %7619 = vmatpush1.bf16.msra.mxu0 0
      %7620 = vmatprep.subr.bf16.mxu0 0
      %7621 = vmatpush1.bf16.msra.mxu0 0
      %7622 = vmatprep.subr.bf16.mxu0 0
      %7623 = vmatpush1.bf16.msra.mxu0 0
      %7624 = vmatprep.subr.bf16.mxu0 0
      %7625 = vmatpush1.bf16.msra.mxu0 0
      %7626 = vmatprep.subr.bf16.mxu0 0
      %7627 = vmatpush1.bf16.msra.mxu0 %v7354
      %7628 = vmatprep.subr.bf16.mxu0 0
      %7629 = vmatpush1.bf16.msra.mxu0 %v7353
      %7630 = vmatprep.subr.bf16.mxu0 0
      %7631 = vmatpush2.bf16.msra.mxu0 0
      %7632 = vmatprep.subr.bf16.mxu0 0
      %7633 = vmatpush2.bf16.msra.mxu0 0
      %7634 = vmatprep.subr.bf16.mxu0 0
      %7635 = vmatpush2.bf16.msra.mxu0 0
      %7636 = vmatprep.subr.bf16.mxu0 0
      %7637 = vmatpush2.bf16.msra.mxu0 0
      %7638 = vmatprep.subr.bf16.mxu0 0
      %7639 = vmatpush2.bf16.msra.mxu0 0
      %7640 = vmatprep.subr.bf16.mxu0 0
      %7641 = vmatpush2.bf16.msra.mxu0 0
      %7642 = vmatprep.subr.bf16.mxu0 0
      %7643 = vmatpush2.bf16.msra.mxu0 0
      %7644 = vmatprep.subr.bf16.mxu0 0
      %7645 = vmatpush2.bf16.msra.mxu0 0
      %7646 = vmatprep.mubr.bf16.mxu0 0
      %7647 = vmatmul.mubr.bf16.gmra.mxu0 %v7612
      %v7648 = vpop.f32.mrf.mxu0
      %v7649 = vadd.f32 0.0, %v7648
      %v7650 = vpop.f32.mrf.mxu0
      %v7651 = vpop.f32.mrf.mxu0
      %v7652 = vadd.f32 0.0, %v7651
      %v7653 = vpop.f32.mrf.mxu0
      %7654 = vdwg.mxu0
      %v7657 = vunpack.c.l.b16 %v7601
      %v7658 = vunpack.c.l.b16 %v7602
      %v7659 = vpack.c.b16 %v7658, %v7657
      %v7661 = vsel %vm3842, %v7659, 0
      %7663 = vmatprep.subr.bf16.mxu0 0
      %7664 = vmatpush1.bf16.msra.mxu0 0
      %7665 = vmatprep.subr.bf16.mxu0 0
      %7666 = vmatpush1.bf16.msra.mxu0 0
      %7667 = vmatprep.subr.bf16.mxu0 0
      %7668 = vmatpush1.bf16.msra.mxu0 0
      %7669 = vmatprep.subr.bf16.mxu0 0
      %7670 = vmatpush1.bf16.msra.mxu0 0
      %7671 = vmatprep.subr.bf16.mxu0 0
      %7672 = vmatpush1.bf16.msra.mxu0 0
      %7673 = vmatprep.subr.bf16.mxu0 0
      %7674 = vmatpush1.bf16.msra.mxu0 0
      %7675 = vmatprep.subr.bf16.mxu0 0
      %7676 = vmatpush1.bf16.msra.mxu0 %v7174
      %7677 = vmatprep.subr.bf16.mxu0 0
      %7678 = vmatpush1.bf16.msra.mxu0 %v7173
      %7679 = vmatprep.subr.bf16.mxu0 0
      %7680 = vmatpush2.bf16.msra.mxu0 0
      %7681 = vmatprep.subr.bf16.mxu0 0
      %7682 = vmatpush2.bf16.msra.mxu0 0
      %7683 = vmatprep.subr.bf16.mxu0 0
      %7684 = vmatpush2.bf16.msra.mxu0 0
      %7685 = vmatprep.subr.bf16.mxu0 0
      %7686 = vmatpush2.bf16.msra.mxu0 0
      %7687 = vmatprep.subr.bf16.mxu0 0
      %7688 = vmatpush2.bf16.msra.mxu0 0
      %7689 = vmatprep.subr.bf16.mxu0 0
      %7690 = vmatpush2.bf16.msra.mxu0 0
      %7691 = vmatprep.subr.bf16.mxu0 0
      %7692 = vmatpush2.bf16.msra.mxu0 0
      %7693 = vmatprep.subr.bf16.mxu0 0
      %7694 = vmatpush2.bf16.msra.mxu0 0
      %7695 = vmatprep.mubr.bf16.mxu0 0
      %7696 = vmatmul.mubr.bf16.gmra.mxu0 %v7661
      %v7697 = vpop.f32.mrf.mxu0
      %v7698 = vadd.f32 %v7649, %v7697
      %v7699 = vpop.f32.mrf.mxu0
      %v7700 = vpop.f32.mrf.mxu0
      %v7701 = vadd.f32 %v7652, %v7700
      %v7702 = vpop.f32.mrf.mxu0
      %7703 = vdwg.mxu0
      %s7704 = scalar_lea.vmem %s14, 40
      %v7705 = vld [vmem:[%s7704] sm:$0xf]
      %v7706 = vld [vmem:[%s7704 + $0x4] sm:$0xf]
      %s7707 = scalar_lea.vmem %s14, 48
      %v7708 = vld [vmem:[%s7707] sm:$0xf]
      %v7709 = vld [vmem:[%s7707 + $0x4] sm:$0xf]
      %v7712 = vunpack.c.l.b16 %v7708
      %v7713 = vunpack.c.l.b16 %v7709
      %v7714 = vpack.c.b16 %v7713, %v7712
      %v7716 = vsel %vm3842, %v7714, 0
      %7718 = vmatprep.subr.bf16.mxu0 0
      %7719 = vmatpush1.bf16.msra.mxu0 0
      %7720 = vmatprep.subr.bf16.mxu0 0
      %7721 = vmatpush1.bf16.msra.mxu0 0
      %7722 = vmatprep.subr.bf16.mxu0 0
      %7723 = vmatpush1.bf16.msra.mxu0 0
      %7724 = vmatprep.subr.bf16.mxu0 0
      %7725 = vmatpush1.bf16.msra.mxu0 0
      %7726 = vmatprep.subr.bf16.mxu0 0
      %7727 = vmatpush1.bf16.msra.mxu0 0
      %7728 = vmatprep.subr.bf16.mxu0 0
      %7729 = vmatpush1.bf16.msra.mxu0 0
      %7730 = vmatprep.subr.bf16.mxu0 0
      %7731 = vmatpush1.bf16.msra.mxu0 %v7264
      %7732 = vmatprep.subr.bf16.mxu0 0
      %7733 = vmatpush1.bf16.msra.mxu0 %v7263
      %7734 = vmatprep.subr.bf16.mxu0 0
      %7735 = vmatpush2.bf16.msra.mxu0 0
      %7736 = vmatprep.subr.bf16.mxu0 0
      %7737 = vmatpush2.bf16.msra.mxu0 0
      %7738 = vmatprep.subr.bf16.mxu0 0
      %7739 = vmatpush2.bf16.msra.mxu0 0
      %7740 = vmatprep.subr.bf16.mxu0 0
      %7741 = vmatpush2.bf16.msra.mxu0 0
      %7742 = vmatprep.subr.bf16.mxu0 0
      %7743 = vmatpush2.bf16.msra.mxu0 0
      %7744 = vmatprep.subr.bf16.mxu0 0
      %7745 = vmatpush2.bf16.msra.mxu0 0
      %7746 = vmatprep.subr.bf16.mxu0 0
      %7747 = vmatpush2.bf16.msra.mxu0 0
      %7748 = vmatprep.subr.bf16.mxu0 0
      %7749 = vmatpush2.bf16.msra.mxu0 0
      %7750 = vmatprep.mubr.bf16.mxu0 0
      %7751 = vmatmul.mubr.bf16.gmra.mxu0 %v7716
      %v7752 = vpop.f32.mrf.mxu0
      %v7753 = vadd.f32 0.0, %v7752
      %v7754 = vpop.f32.mrf.mxu0
      %v7755 = vpop.f32.mrf.mxu0
      %v7756 = vadd.f32 0.0, %v7755
      %v7757 = vpop.f32.mrf.mxu0
      %7758 = vdwg.mxu0
      %v7761 = vunpack.c.l.b16 %v7705
      %v7762 = vunpack.c.l.b16 %v7706
      %v7763 = vpack.c.b16 %v7762, %v7761
      %v7765 = vsel %vm3842, %v7763, 0
      %7767 = vmatprep.subr.bf16.mxu0 0
      %7768 = vmatpush1.bf16.msra.mxu0 0
      %7769 = vmatprep.subr.bf16.mxu0 0
      %7770 = vmatpush1.bf16.msra.mxu0 0
      %7771 = vmatprep.subr.bf16.mxu0 0
      %7772 = vmatpush1.bf16.msra.mxu0 0
      %7773 = vmatprep.subr.bf16.mxu0 0
      %7774 = vmatpush1.bf16.msra.mxu0 0
      %7775 = vmatprep.subr.bf16.mxu0 0
      %7776 = vmatpush1.bf16.msra.mxu0 0
      %7777 = vmatprep.subr.bf16.mxu0 0
      %7778 = vmatpush1.bf16.msra.mxu0 0
      %7779 = vmatprep.subr.bf16.mxu0 0
      %7780 = vmatpush1.bf16.msra.mxu0 %v7174
      %7781 = vmatprep.subr.bf16.mxu0 0
      %7782 = vmatpush1.bf16.msra.mxu0 %v7173
      %7783 = vmatprep.subr.bf16.mxu0 0
      %7784 = vmatpush2.bf16.msra.mxu0 0
      %7785 = vmatprep.subr.bf16.mxu0 0
      %7786 = vmatpush2.bf16.msra.mxu0 0
      %7787 = vmatprep.subr.bf16.mxu0 0
      %7788 = vmatpush2.bf16.msra.mxu0 0
      %7789 = vmatprep.subr.bf16.mxu0 0
      %7790 = vmatpush2.bf16.msra.mxu0 0
      %7791 = vmatprep.subr.bf16.mxu0 0
      %7792 = vmatpush2.bf16.msra.mxu0 0
      %7793 = vmatprep.subr.bf16.mxu0 0
      %7794 = vmatpush2.bf16.msra.mxu0 0
      %7795 = vmatprep.subr.bf16.mxu0 0
      %7796 = vmatpush2.bf16.msra.mxu0 0
      %7797 = vmatprep.subr.bf16.mxu0 0
      %7798 = vmatpush2.bf16.msra.mxu0 0
      %7799 = vmatprep.mubr.bf16.mxu0 0
      %7800 = vmatmul.mubr.bf16.gmra.mxu0 %v7765
      %v7801 = vpop.f32.mrf.mxu0
      %v7802 = vadd.f32 %v7753, %v7801
      %v7803 = vpop.f32.mrf.mxu0
      %v7804 = vpop.f32.mrf.mxu0
      %v7805 = vadd.f32 %v7756, %v7804
      %v7806 = vpop.f32.mrf.mxu0
      %7807 = vdwg.mxu0
      %s7808 = scalar_lea.vmem %s14, 56
      %v7809 = vld [vmem:[%s7808] sm:$0xf]
      %v7810 = vld [vmem:[%s7808 + $0x4] sm:$0xf]
      %v7813 = vunpack.c.l.b16 %v7809
      %v7814 = vunpack.c.l.b16 %v7810
      %v7815 = vpack.c.b16 %v7814, %v7813
      %v7817 = vsel %vm3842, %v7815, 0
      %7819 = vmatprep.subr.bf16.mxu0 0
      %7820 = vmatpush1.bf16.msra.mxu0 0
      %7821 = vmatprep.subr.bf16.mxu0 0
      %7822 = vmatpush1.bf16.msra.mxu0 0
      %7823 = vmatprep.subr.bf16.mxu0 0
      %7824 = vmatpush1.bf16.msra.mxu0 0
      %7825 = vmatprep.subr.bf16.mxu0 0
      %7826 = vmatpush1.bf16.msra.mxu0 0
      %7827 = vmatprep.subr.bf16.mxu0 0
      %7828 = vmatpush1.bf16.msra.mxu0 0
      %7829 = vmatprep.subr.bf16.mxu0 0
      %7830 = vmatpush1.bf16.msra.mxu0 0
      %7831 = vmatprep.subr.bf16.mxu0 0
      %7832 = vmatpush1.bf16.msra.mxu0 %v7354
      %7833 = vmatprep.subr.bf16.mxu0 0
      %7834 = vmatpush1.bf16.msra.mxu0 %v7353
      %7835 = vmatprep.subr.bf16.mxu0 0
      %7836 = vmatpush2.bf16.msra.mxu0 0
      %7837 = vmatprep.subr.bf16.mxu0 0
      %7838 = vmatpush2.bf16.msra.mxu0 0
      %7839 = vmatprep.subr.bf16.mxu0 0
      %7840 = vmatpush2.bf16.msra.mxu0 0
      %7841 = vmatprep.subr.bf16.mxu0 0
      %7842 = vmatpush2.bf16.msra.mxu0 0
      %7843 = vmatprep.subr.bf16.mxu0 0
      %7844 = vmatpush2.bf16.msra.mxu0 0
      %7845 = vmatprep.subr.bf16.mxu0 0
      %7846 = vmatpush2.bf16.msra.mxu0 0
      %7847 = vmatprep.subr.bf16.mxu0 0
      %7848 = vmatpush2.bf16.msra.mxu0 0
      %7849 = vmatprep.subr.bf16.mxu0 0
      %7850 = vmatpush2.bf16.msra.mxu0 0
      %7851 = vmatprep.mubr.bf16.mxu0 0
      %7852 = vmatmul.mubr.bf16.gmra.mxu0 %v7817
      %v7853 = vpop.f32.mrf.mxu0
      %v7854 = vadd.f32 0.0, %v7853
      %v7855 = vpop.f32.mrf.mxu0
      %v7856 = vpop.f32.mrf.mxu0
      %v7857 = vadd.f32 0.0, %v7856
      %v7858 = vpop.f32.mrf.mxu0
      %7859 = vdwg.mxu0
      %v7860 = vadd.f32 %v7802, %v7854
      %v7861 = vadd.f32 %v7805, %v7857
      %s7862 = scalar_lea.vmem %s14, 64
      %v7863 = vld [vmem:[%s7862] sm:$0xf]
      %v7864 = vld [vmem:[%s7862 + $0x4] sm:$0xf]
      %v7867 = vunpack.c.l.b16 %v7863
      %v7868 = vunpack.c.l.b16 %v7864
      %v7869 = vpack.c.b16 %v7868, %v7867
      %v7871 = vsel %vm3842, %v7869, 0
      %7873 = vmatprep.subr.bf16.mxu0 0
      %7874 = vmatpush1.bf16.msra.mxu0 0
      %7875 = vmatprep.subr.bf16.mxu0 0
      %7876 = vmatpush1.bf16.msra.mxu0 0
      %7877 = vmatprep.subr.bf16.mxu0 0
      %7878 = vmatpush1.bf16.msra.mxu0 0
      %7879 = vmatprep.subr.bf16.mxu0 0
      %7880 = vmatpush1.bf16.msra.mxu0 0
      %7881 = vmatprep.subr.bf16.mxu0 0
      %7882 = vmatpush1.bf16.msra.mxu0 0
      %7883 = vmatprep.subr.bf16.mxu0 0
      %7884 = vmatpush1.bf16.msra.mxu0 0
      %7885 = vmatprep.subr.bf16.mxu0 0
      %7886 = vmatpush1.bf16.msra.mxu0 %v7444
      %7887 = vmatprep.subr.bf16.mxu0 0
      %7888 = vmatpush1.bf16.msra.mxu0 %v7443
      %7889 = vmatprep.subr.bf16.mxu0 0
      %7890 = vmatpush2.bf16.msra.mxu0 0
      %7891 = vmatprep.subr.bf16.mxu0 0
      %7892 = vmatpush2.bf16.msra.mxu0 0
      %7893 = vmatprep.subr.bf16.mxu0 0
      %7894 = vmatpush2.bf16.msra.mxu0 0
      %7895 = vmatprep.subr.bf16.mxu0 0
      %7896 = vmatpush2.bf16.msra.mxu0 0
      %7897 = vmatprep.subr.bf16.mxu0 0
      %7898 = vmatpush2.bf16.msra.mxu0 0
      %7899 = vmatprep.subr.bf16.mxu0 0
      %7900 = vmatpush2.bf16.msra.mxu0 0
      %7901 = vmatprep.subr.bf16.mxu0 0
      %7902 = vmatpush2.bf16.msra.mxu0 0
      %7903 = vmatprep.subr.bf16.mxu0 0
      %7904 = vmatpush2.bf16.msra.mxu0 0
      %7905 = vmatprep.mubr.bf16.mxu0 0
      %7906 = vmatmul.mubr.bf16.gmra.mxu0 %v7871
      %v7907 = vpop.f32.mrf.mxu0
      %v7908 = vadd.f32 0.0, %v7907
      %v7909 = vpop.f32.mrf.mxu0
      %v7910 = vpop.f32.mrf.mxu0
      %v7911 = vadd.f32 0.0, %v7910
      %v7912 = vpop.f32.mrf.mxu0
      %7913 = vdwg.mxu0
      %v7914 = vadd.f32 %v7860, %v7908
      %v7915 = vadd.f32 %v7861, %v7911
      %v7916 = vld [vmem:[%s16] sm:$0xff]
      %v7917 = vld [vmem:[%s16 + $0x8] sm:$0xff]
      %s7918 = scalar_lea.vmem %s16, 16
      %v7919 = vld [vmem:[%s7918] sm:$0xff]
      %v7920 = vld [vmem:[%s7918 + $0x8] sm:$0xff]
      %v7922 = vsel %vm2348, %v7594, 0
      %v7925 = vsel %vm2348, %v7597, 0
      %7927 = vmatprep.subr.mxu0 0.0
      %7928 = vmatpush1.msra.mxu0 0.0
      %7929 = vmatprep.subr.mxu0 0.0
      %7930 = vmatpush1.msra.mxu0 0.0
      %7931 = vmatprep.subr.mxu0 0.0
      %7932 = vmatpush1.msra.mxu0 0.0
      %7933 = vmatprep.subr.mxu0 0.0
      %7934 = vmatpush1.msra.mxu0 0.0
      %7935 = vmatprep.subr.mxu0 0.0
      %7936 = vmatpush1.msra.mxu0 0.0
      %7937 = vmatprep.subr.mxu0 0.0
      %7938 = vmatpush1.msra.mxu0 0.0
      %7939 = vmatprep.subr.mxu0 0.0
      %7940 = vmatpush1.msra.mxu0 0.0
      %7941 = vmatprep.subr.mxu0 0.0
      %7942 = vmatpush1.msra.mxu0 0.0
      %7943 = vmatprep.subr.mxu0 0.0
      %7944 = vmatpush1.msra.mxu0 0.0
      %7945 = vmatprep.subr.mxu0 0.0
      %7946 = vmatpush1.msra.mxu0 0.0
      %7947 = vmatprep.subr.mxu0 0.0
      %7948 = vmatpush1.msra.mxu0 0.0
      %7949 = vmatprep.subr.mxu0 0.0
      %7950 = vmatpush1.msra.mxu0 0.0
      %7951 = vmatprep.subr.mxu0 0.0
      %7952 = vmatpush1.msra.mxu0 0.0
      %7953 = vmatprep.subr.mxu0 0.0
      %7954 = vmatpush1.msra.mxu0 0.0
      %7955 = vmatprep.subr.mxu0 0.0
      %7956 = vmatpush1.msra.mxu0 %v7920
      %7957 = vmatprep.subr.mxu0 0.0
      %7958 = vmatpush1.msra.mxu0 %v7919
      %7959 = vmatprep.subr.mxu0 0.0
      %7960 = vmatpush2.msra.mxu0 0.0
      %7961 = vmatprep.subr.mxu0 0.0
      %7962 = vmatpush2.msra.mxu0 0.0
      %7963 = vmatprep.subr.mxu0 0.0
      %7964 = vmatpush2.msra.mxu0 0.0
      %7965 = vmatprep.subr.mxu0 0.0
      %7966 = vmatpush2.msra.mxu0 0.0
      %7967 = vmatprep.subr.mxu0 0.0
      %7968 = vmatpush2.msra.mxu0 0.0
      %7969 = vmatprep.subr.mxu0 0.0
      %7970 = vmatpush2.msra.mxu0 0.0
      %7971 = vmatprep.subr.mxu0 0.0
      %7972 = vmatpush2.msra.mxu0 0.0
      %7973 = vmatprep.subr.mxu0 0.0
      %7974 = vmatpush2.msra.mxu0 0.0
      %7975 = vmatprep.subr.mxu0 0.0
      %7976 = vmatpush2.msra.mxu0 0.0
      %7977 = vmatprep.subr.mxu0 0.0
      %7978 = vmatpush2.msra.mxu0 0.0
      %7979 = vmatprep.subr.mxu0 0.0
      %7980 = vmatpush2.msra.mxu0 0.0
      %7981 = vmatprep.subr.mxu0 0.0
      %7982 = vmatpush2.msra.mxu0 0.0
      %7983 = vmatprep.subr.mxu0 0.0
      %7984 = vmatpush2.msra.mxu0 0.0
      %7985 = vmatprep.subr.mxu0 0.0
      %7986 = vmatpush2.msra.mxu0 0.0
      %7987 = vmatprep.subr.mxu0 0.0
      %7988 = vmatpush2.msra.mxu0 0.0
      %7989 = vmatprep.subr.mxu0 0.0
      %7990 = vmatpush2.msra.mxu0 0.0
      %7991 = vmatprep.mubr.f32.mxu0 0.0
      %7992 = vmatmul.mubr.f32.gmra.mxu0 %v7922
      %v7993 = vpop.f32.mrf.mxu0
      %v7994 = vadd.f32 0.0, %v7993
      %v7995 = vpop.f32.mrf.mxu0
      %7996 = vmatprep.mubr.f32.mxu0 0.0
      %7997 = vmatmul.mubr.f32.gmra.mxu0 %v7925
      %v7998 = vpop.f32.mrf.mxu0
      %v7999 = vadd.f32 0.0, %v7998
      %v8000 = vpop.f32.mrf.mxu0
      %8001 = vdwg.mxu0
      %v8003 = vsel %vm2348, %v7490, 0
      %v8006 = vsel %vm2348, %v7493, 0
      %8008 = vmatprep.subr.mxu0 0.0
      %8009 = vmatpush1.msra.mxu0 0.0
      %8010 = vmatprep.subr.mxu0 0.0
      %8011 = vmatpush1.msra.mxu0 0.0
      %8012 = vmatprep.subr.mxu0 0.0
      %8013 = vmatpush1.msra.mxu0 0.0
      %8014 = vmatprep.subr.mxu0 0.0
      %8015 = vmatpush1.msra.mxu0 0.0
      %8016 = vmatprep.subr.mxu0 0.0
      %8017 = vmatpush1.msra.mxu0 0.0
      %8018 = vmatprep.subr.mxu0 0.0
      %8019 = vmatpush1.msra.mxu0 0.0
      %8020 = vmatprep.subr.mxu0 0.0
      %8021 = vmatpush1.msra.mxu0 0.0
      %8022 = vmatprep.subr.mxu0 0.0
      %8023 = vmatpush1.msra.mxu0 0.0
      %8024 = vmatprep.subr.mxu0 0.0
      %8025 = vmatpush1.msra.mxu0 0.0
      %8026 = vmatprep.subr.mxu0 0.0
      %8027 = vmatpush1.msra.mxu0 0.0
      %8028 = vmatprep.subr.mxu0 0.0
      %8029 = vmatpush1.msra.mxu0 0.0
      %8030 = vmatprep.subr.mxu0 0.0
      %8031 = vmatpush1.msra.mxu0 0.0
      %8032 = vmatprep.subr.mxu0 0.0
      %8033 = vmatpush1.msra.mxu0 0.0
      %8034 = vmatprep.subr.mxu0 0.0
      %8035 = vmatpush1.msra.mxu0 0.0
      %8036 = vmatprep.subr.mxu0 0.0
      %8037 = vmatpush1.msra.mxu0 %v7917
      %8038 = vmatprep.subr.mxu0 0.0
      %8039 = vmatpush1.msra.mxu0 %v7916
      %8040 = vmatprep.subr.mxu0 0.0
      %8041 = vmatpush2.msra.mxu0 0.0
      %8042 = vmatprep.subr.mxu0 0.0
      %8043 = vmatpush2.msra.mxu0 0.0
      %8044 = vmatprep.subr.mxu0 0.0
      %8045 = vmatpush2.msra.mxu0 0.0
      %8046 = vmatprep.subr.mxu0 0.0
      %8047 = vmatpush2.msra.mxu0 0.0
      %8048 = vmatprep.subr.mxu0 0.0
      %8049 = vmatpush2.msra.mxu0 0.0
      %8050 = vmatprep.subr.mxu0 0.0
      %8051 = vmatpush2.msra.mxu0 0.0
      %8052 = vmatprep.subr.mxu0 0.0
      %8053 = vmatpush2.msra.mxu0 0.0
      %8054 = vmatprep.subr.mxu0 0.0
      %8055 = vmatpush2.msra.mxu0 0.0
      %8056 = vmatprep.subr.mxu0 0.0
      %8057 = vmatpush2.msra.mxu0 0.0
      %8058 = vmatprep.subr.mxu0 0.0
      %8059 = vmatpush2.msra.mxu0 0.0
      %8060 = vmatprep.subr.mxu0 0.0
      %8061 = vmatpush2.msra.mxu0 0.0
      %8062 = vmatprep.subr.mxu0 0.0
      %8063 = vmatpush2.msra.mxu0 0.0
      %8064 = vmatprep.subr.mxu0 0.0
      %8065 = vmatpush2.msra.mxu0 0.0
      %8066 = vmatprep.subr.mxu0 0.0
      %8067 = vmatpush2.msra.mxu0 0.0
      %8068 = vmatprep.subr.mxu0 0.0
      %8069 = vmatpush2.msra.mxu0 0.0
      %8070 = vmatprep.subr.mxu0 0.0
      %8071 = vmatpush2.msra.mxu0 0.0
      %8072 = vmatprep.mubr.f32.mxu0 0.0
      %8073 = vmatmul.mubr.f32.gmra.mxu0 %v8003
      %v8074 = vpop.f32.mrf.mxu0
      %v8075 = vadd.f32 %v7994, %v8074
      %v8076 = vpop.f32.mrf.mxu0
      %8077 = vmatprep.mubr.f32.mxu0 0.0
      %8078 = vmatmul.mubr.f32.gmra.mxu0 %v8006
      %v8079 = vpop.f32.mrf.mxu0
      %v8080 = vadd.f32 %v7999, %v8079
      %v8081 = vpop.f32.mrf.mxu0
      %8082 = vdwg.mxu0
      %s8083 = scalar_lea.vmem %s16, 32
      %v8084 = vld [vmem:[%s8083] sm:$0xff]
      %v8085 = vld [vmem:[%s8083 + $0x8] sm:$0xff]
      %v8087 = vsel %vm2348, %v7698, 0
      %v8090 = vsel %vm2348, %v7701, 0
      %8092 = vmatprep.subr.mxu0 0.0
      %8093 = vmatpush1.msra.mxu0 0.0
      %8094 = vmatprep.subr.mxu0 0.0
      %8095 = vmatpush1.msra.mxu0 0.0
      %8096 = vmatprep.subr.mxu0 0.0
      %8097 = vmatpush1.msra.mxu0 0.0
      %8098 = vmatprep.subr.mxu0 0.0
      %8099 = vmatpush1.msra.mxu0 0.0
      %8100 = vmatprep.subr.mxu0 0.0
      %8101 = vmatpush1.msra.mxu0 0.0
      %8102 = vmatprep.subr.mxu0 0.0
      %8103 = vmatpush1.msra.mxu0 0.0
      %8104 = vmatprep.subr.mxu0 0.0
      %8105 = vmatpush1.msra.mxu0 0.0
      %8106 = vmatprep.subr.mxu0 0.0
      %8107 = vmatpush1.msra.mxu0 0.0
      %8108 = vmatprep.subr.mxu0 0.0
      %8109 = vmatpush1.msra.mxu0 0.0
      %8110 = vmatprep.subr.mxu0 0.0
      %8111 = vmatpush1.msra.mxu0 0.0
      %8112 = vmatprep.subr.mxu0 0.0
      %8113 = vmatpush1.msra.mxu0 0.0
      %8114 = vmatprep.subr.mxu0 0.0
      %8115 = vmatpush1.msra.mxu0 0.0
      %8116 = vmatprep.subr.mxu0 0.0
      %8117 = vmatpush1.msra.mxu0 0.0
      %8118 = vmatprep.subr.mxu0 0.0
      %8119 = vmatpush1.msra.mxu0 0.0
      %8120 = vmatprep.subr.mxu0 0.0
      %8121 = vmatpush1.msra.mxu0 %v8085
      %8122 = vmatprep.subr.mxu0 0.0
      %8123 = vmatpush1.msra.mxu0 %v8084
      %8124 = vmatprep.subr.mxu0 0.0
      %8125 = vmatpush2.msra.mxu0 0.0
      %8126 = vmatprep.subr.mxu0 0.0
      %8127 = vmatpush2.msra.mxu0 0.0
      %8128 = vmatprep.subr.mxu0 0.0
      %8129 = vmatpush2.msra.mxu0 0.0
      %8130 = vmatprep.subr.mxu0 0.0
      %8131 = vmatpush2.msra.mxu0 0.0
      %8132 = vmatprep.subr.mxu0 0.0
      %8133 = vmatpush2.msra.mxu0 0.0
      %8134 = vmatprep.subr.mxu0 0.0
      %8135 = vmatpush2.msra.mxu0 0.0
      %8136 = vmatprep.subr.mxu0 0.0
      %8137 = vmatpush2.msra.mxu0 0.0
      %8138 = vmatprep.subr.mxu0 0.0
      %8139 = vmatpush2.msra.mxu0 0.0
      %8140 = vmatprep.subr.mxu0 0.0
      %8141 = vmatpush2.msra.mxu0 0.0
      %8142 = vmatprep.subr.mxu0 0.0
      %8143 = vmatpush2.msra.mxu0 0.0
      %8144 = vmatprep.subr.mxu0 0.0
      %8145 = vmatpush2.msra.mxu0 0.0
      %8146 = vmatprep.subr.mxu0 0.0
      %8147 = vmatpush2.msra.mxu0 0.0
      %8148 = vmatprep.subr.mxu0 0.0
      %8149 = vmatpush2.msra.mxu0 0.0
      %8150 = vmatprep.subr.mxu0 0.0
      %8151 = vmatpush2.msra.mxu0 0.0
      %8152 = vmatprep.subr.mxu0 0.0
      %8153 = vmatpush2.msra.mxu0 0.0
      %8154 = vmatprep.subr.mxu0 0.0
      %8155 = vmatpush2.msra.mxu0 0.0
      %8156 = vmatprep.mubr.f32.mxu0 0.0
      %8157 = vmatmul.mubr.f32.gmra.mxu0 %v8087
      %v8158 = vpop.f32.mrf.mxu0
      %v8159 = vadd.f32 0.0, %v8158
      %v8160 = vpop.f32.mrf.mxu0
      %8161 = vmatprep.mubr.f32.mxu0 0.0
      %8162 = vmatmul.mubr.f32.gmra.mxu0 %v8090
      %v8163 = vpop.f32.mrf.mxu0
      %v8164 = vadd.f32 0.0, %v8163
      %v8165 = vpop.f32.mrf.mxu0
      %8166 = vdwg.mxu0
      %v8167 = vadd.f32 %v8075, %v8159
      %v8168 = vadd.f32 %v8080, %v8164
      %s8169 = scalar_lea.vmem %s16, 48
      %v8170 = vld [vmem:[%s8169] sm:$0xff]
      %v8171 = vld [vmem:[%s8169 + $0x8] sm:$0xff]
      %v8173 = vsel %vm2348, %v7914, 0
      %v8176 = vsel %vm2348, %v7915, 0
      %8178 = vmatprep.subr.mxu0 0.0
      %8179 = vmatpush1.msra.mxu0 0.0
      %8180 = vmatprep.subr.mxu0 0.0
      %8181 = vmatpush1.msra.mxu0 0.0
      %8182 = vmatprep.subr.mxu0 0.0
      %8183 = vmatpush1.msra.mxu0 0.0
      %8184 = vmatprep.subr.mxu0 0.0
      %8185 = vmatpush1.msra.mxu0 0.0
      %8186 = vmatprep.subr.mxu0 0.0
      %8187 = vmatpush1.msra.mxu0 0.0
      %8188 = vmatprep.subr.mxu0 0.0
      %8189 = vmatpush1.msra.mxu0 0.0
      %8190 = vmatprep.subr.mxu0 0.0
      %8191 = vmatpush1.msra.mxu0 0.0
      %8192 = vmatprep.subr.mxu0 0.0
      %8193 = vmatpush1.msra.mxu0 0.0
      %8194 = vmatprep.subr.mxu0 0.0
      %8195 = vmatpush1.msra.mxu0 0.0
      %8196 = vmatprep.subr.mxu0 0.0
      %8197 = vmatpush1.msra.mxu0 0.0
      %8198 = vmatprep.subr.mxu0 0.0
      %8199 = vmatpush1.msra.mxu0 0.0
      %8200 = vmatprep.subr.mxu0 0.0
      %8201 = vmatpush1.msra.mxu0 0.0
      %8202 = vmatprep.subr.mxu0 0.0
      %8203 = vmatpush1.msra.mxu0 0.0
      %8204 = vmatprep.subr.mxu0 0.0
      %8205 = vmatpush1.msra.mxu0 0.0
      %8206 = vmatprep.subr.mxu0 0.0
      %8207 = vmatpush1.msra.mxu0 %v8171
      %8208 = vmatprep.subr.mxu0 0.0
      %8209 = vmatpush1.msra.mxu0 %v8170
      %8210 = vmatprep.subr.mxu0 0.0
      %8211 = vmatpush2.msra.mxu0 0.0
      %8212 = vmatprep.subr.mxu0 0.0
      %8213 = vmatpush2.msra.mxu0 0.0
      %8214 = vmatprep.subr.mxu0 0.0
      %8215 = vmatpush2.msra.mxu0 0.0
      %8216 = vmatprep.subr.mxu0 0.0
      %8217 = vmatpush2.msra.mxu0 0.0
      %8218 = vmatprep.subr.mxu0 0.0
      %8219 = vmatpush2.msra.mxu0 0.0
      %8220 = vmatprep.subr.mxu0 0.0
      %8221 = vmatpush2.msra.mxu0 0.0
      %8222 = vmatprep.subr.mxu0 0.0
      %8223 = vmatpush2.msra.mxu0 0.0
      %8224 = vmatprep.subr.mxu0 0.0
      %8225 = vmatpush2.msra.mxu0 0.0
      %8226 = vmatprep.subr.mxu0 0.0
      %8227 = vmatpush2.msra.mxu0 0.0
      %8228 = vmatprep.subr.mxu0 0.0
      %8229 = vmatpush2.msra.mxu0 0.0
      %8230 = vmatprep.subr.mxu0 0.0
      %8231 = vmatpush2.msra.mxu0 0.0
      %8232 = vmatprep.subr.mxu0 0.0
      %8233 = vmatpush2.msra.mxu0 0.0
      %8234 = vmatprep.subr.mxu0 0.0
      %8235 = vmatpush2.msra.mxu0 0.0
      %8236 = vmatprep.subr.mxu0 0.0
      %8237 = vmatpush2.msra.mxu0 0.0
      %8238 = vmatprep.subr.mxu0 0.0
      %8239 = vmatpush2.msra.mxu0 0.0
      %8240 = vmatprep.subr.mxu0 0.0
      %8241 = vmatpush2.msra.mxu0 0.0
      %8242 = vmatprep.mubr.f32.mxu0 0.0
      %8243 = vmatmul.mubr.f32.gmra.mxu0 %v8173
      %v8244 = vpop.f32.mrf.mxu0
      %v8245 = vadd.f32 0.0, %v8244
      %v8246 = vpop.f32.mrf.mxu0
      %8247 = vmatprep.mubr.f32.mxu0 0.0
      %8248 = vmatmul.mubr.f32.gmra.mxu0 %v8176
      %v8249 = vpop.f32.mrf.mxu0
      %v8250 = vadd.f32 0.0, %v8249
      %v8251 = vpop.f32.mrf.mxu0
      %8252 = vdwg.mxu0
      %v8253 = vadd.f32 %v8167, %v8245
      %v8254 = vadd.f32 %v8168, %v8250
      %v8255 = vld [vmem:[%s17] sm:$0xff]
      %v8256 = vld [vmem:[%s17 + $0x8] sm:$0xff]
      %8258 = vset.pattern.permute.xlu0 0
      %8259 = vperm.xlu0 %8258, %v8255
      %v8260 = vpop.permute.xlu0 %8259
      %8263 = vset.pattern.permute.xlu0 0
      %8264 = vperm.xlu0 %8263, %v8256
      %v8265 = vpop.permute.xlu0 %8264
      %v8267 = vadd.f32 %v8253, %v8260
      %v8268 = vadd.f32 %v8254, %v8265
      %v8269 = vmax.f32 %v8267, 0.0
      %v8270 = vmax.f32 %v8268, 0.0
      %v8271 = vld [vmem:[%s19] sm:$0xff]
      %v8272 = vld [vmem:[%s19 + $0x8] sm:$0xff]
      %v8273 = vld [vmem:[%s19 + $0x10] sm:$0xff]
      %v8274 = vld [vmem:[%s19 + $0x18] sm:$0xff]
      %v8275 = vld [vmem:[%s19 + $0x20] sm:$0xff]
      %v8276 = vld [vmem:[%s19 + $0x28] sm:$0xff]
      %v8277 = vld [vmem:[%s19 + $0x30] sm:$0xff]
      %v8278 = vld [vmem:[%s19 + $0x38] sm:$0xff]
      %v8280 = vsel %vm2161, %v8269, 0
      %v8283 = vsel %vm2161, %v8270, 0
      %8285 = vmatprep.subr.mxu0 0.0
      %8286 = vmatpush1.msra.mxu0 0.0
      %8287 = vmatprep.subr.mxu0 0.0
      %8288 = vmatpush1.msra.mxu0 0.0
      %8289 = vmatprep.subr.mxu0 0.0
      %8290 = vmatpush1.msra.mxu0 0.0
      %8291 = vmatprep.subr.mxu0 0.0
      %8292 = vmatpush1.msra.mxu0 0.0
      %8293 = vmatprep.subr.mxu0 0.0
      %8294 = vmatpush1.msra.mxu0 0.0
      %8295 = vmatprep.subr.mxu0 0.0
      %8296 = vmatpush1.msra.mxu0 0.0
      %8297 = vmatprep.subr.mxu0 0.0
      %8298 = vmatpush1.msra.mxu0 0.0
      %8299 = vmatprep.subr.mxu0 0.0
      %8300 = vmatpush1.msra.mxu0 0.0
      %8301 = vmatprep.subr.mxu0 0.0
      %8302 = vmatpush1.msra.mxu0 %v8278
      %8303 = vmatprep.subr.mxu0 0.0
      %8304 = vmatpush1.msra.mxu0 %v8277
      %8305 = vmatprep.subr.mxu0 0.0
      %8306 = vmatpush1.msra.mxu0 %v8276
      %8307 = vmatprep.subr.mxu0 0.0
      %8308 = vmatpush1.msra.mxu0 %v8275
      %8309 = vmatprep.subr.mxu0 0.0
      %8310 = vmatpush1.msra.mxu0 %v8274
      %8311 = vmatprep.subr.mxu0 0.0
      %8312 = vmatpush1.msra.mxu0 %v8273
      %8313 = vmatprep.subr.mxu0 0.0
      %8314 = vmatpush1.msra.mxu0 %v8272
      %8315 = vmatprep.subr.mxu0 0.0
      %8316 = vmatpush1.msra.mxu0 %v8271
      %8317 = vmatprep.subr.mxu0 0.0
      %8318 = vmatpush2.msra.mxu0 0.0
      %8319 = vmatprep.subr.mxu0 0.0
      %8320 = vmatpush2.msra.mxu0 0.0
      %8321 = vmatprep.subr.mxu0 0.0
      %8322 = vmatpush2.msra.mxu0 0.0
      %8323 = vmatprep.subr.mxu0 0.0
      %8324 = vmatpush2.msra.mxu0 0.0
      %8325 = vmatprep.subr.mxu0 0.0
      %8326 = vmatpush2.msra.mxu0 0.0
      %8327 = vmatprep.subr.mxu0 0.0
      %8328 = vmatpush2.msra.mxu0 0.0
      %8329 = vmatprep.subr.mxu0 0.0
      %8330 = vmatpush2.msra.mxu0 0.0
      %8331 = vmatprep.subr.mxu0 0.0
      %8332 = vmatpush2.msra.mxu0 0.0
      %8333 = vmatprep.subr.mxu0 0.0
      %8334 = vmatpush2.msra.mxu0 0.0
      %8335 = vmatprep.subr.mxu0 0.0
      %8336 = vmatpush2.msra.mxu0 0.0
      %8337 = vmatprep.subr.mxu0 0.0
      %8338 = vmatpush2.msra.mxu0 0.0
      %8339 = vmatprep.subr.mxu0 0.0
      %8340 = vmatpush2.msra.mxu0 0.0
      %8341 = vmatprep.subr.mxu0 0.0
      %8342 = vmatpush2.msra.mxu0 0.0
      %8343 = vmatprep.subr.mxu0 0.0
      %8344 = vmatpush2.msra.mxu0 0.0
      %8345 = vmatprep.subr.mxu0 0.0
      %8346 = vmatpush2.msra.mxu0 0.0
      %8347 = vmatprep.subr.mxu0 0.0
      %8348 = vmatpush2.msra.mxu0 0.0
      %8349 = vmatprep.mubr.f32.mxu0 0.0
      %8350 = vmatmul.mubr.f32.gmra.mxu0 %v8280
      %v8351 = vpop.f32.mrf.mxu0
      %v8352 = vadd.f32 0.0, %v8351
      %v8353 = vpop.f32.mrf.mxu0
      %8354 = vmatprep.mubr.f32.mxu0 0.0
      %8355 = vmatmul.mubr.f32.gmra.mxu0 %v8283
      %v8356 = vpop.f32.mrf.mxu0
      %v8357 = vadd.f32 0.0, %v8356
      %v8358 = vpop.f32.mrf.mxu0
      %8359 = vdwg.mxu0
      %v8360 = vpack.c.bf16 %v8357, %v8352
      %s8361 = scalar_lea.vmem %s19, 64
      %v8362 = vld [vmem:[%s8361] sm:$0xff]
      %v8363 = vld [vmem:[%s8361 + $0x8] sm:$0xff]
      %v8364 = vld [vmem:[%s8361 + $0x10] sm:$0xff]
      %v8365 = vld [vmem:[%s8361 + $0x18] sm:$0xff]
      %v8366 = vld [vmem:[%s8361 + $0x20] sm:$0xff]
      %v8367 = vld [vmem:[%s8361 + $0x28] sm:$0xff]
      %v8368 = vld [vmem:[%s8361 + $0x30] sm:$0xff]
      %v8369 = vld [vmem:[%s8361 + $0x38] sm:$0xff]
      %8370 = vmatprep.subr.mxu0 0.0
      %8371 = vmatpush1.msra.mxu0 0.0
      %8372 = vmatprep.subr.mxu0 0.0
      %8373 = vmatpush1.msra.mxu0 0.0
      %8374 = vmatprep.subr.mxu0 0.0
      %8375 = vmatpush1.msra.mxu0 0.0
      %8376 = vmatprep.subr.mxu0 0.0
      %8377 = vmatpush1.msra.mxu0 0.0
      %8378 = vmatprep.subr.mxu0 0.0
      %8379 = vmatpush1.msra.mxu0 0.0
      %8380 = vmatprep.subr.mxu0 0.0
      %8381 = vmatpush1.msra.mxu0 0.0
      %8382 = vmatprep.subr.mxu0 0.0
      %8383 = vmatpush1.msra.mxu0 0.0
      %8384 = vmatprep.subr.mxu0 0.0
      %8385 = vmatpush1.msra.mxu0 0.0
      %8386 = vmatprep.subr.mxu0 0.0
      %8387 = vmatpush1.msra.mxu0 %v8369
      %8388 = vmatprep.subr.mxu0 0.0
      %8389 = vmatpush1.msra.mxu0 %v8368
      %8390 = vmatprep.subr.mxu0 0.0
      %8391 = vmatpush1.msra.mxu0 %v8367
      %8392 = vmatprep.subr.mxu0 0.0
      %8393 = vmatpush1.msra.mxu0 %v8366
      %8394 = vmatprep.subr.mxu0 0.0
      %8395 = vmatpush1.msra.mxu0 %v8365
      %8396 = vmatprep.subr.mxu0 0.0
      %8397 = vmatpush1.msra.mxu0 %v8364
      %8398 = vmatprep.subr.mxu0 0.0
      %8399 = vmatpush1.msra.mxu0 %v8363
      %8400 = vmatprep.subr.mxu0 0.0
      %8401 = vmatpush1.msra.mxu0 %v8362
      %8402 = vmatprep.subr.mxu0 0.0
      %8403 = vmatpush2.msra.mxu0 0.0
      %8404 = vmatprep.subr.mxu0 0.0
      %8405 = vmatpush2.msra.mxu0 0.0
      %8406 = vmatprep.subr.mxu0 0.0
      %8407 = vmatpush2.msra.mxu0 0.0
      %8408 = vmatprep.subr.mxu0 0.0
      %8409 = vmatpush2.msra.mxu0 0.0
      %8410 = vmatprep.subr.mxu0 0.0
      %8411 = vmatpush2.msra.mxu0 0.0
      %8412 = vmatprep.subr.mxu0 0.0
      %8413 = vmatpush2.msra.mxu0 0.0
      %8414 = vmatprep.subr.mxu0 0.0
      %8415 = vmatpush2.msra.mxu0 0.0
      %8416 = vmatprep.subr.mxu0 0.0
      %8417 = vmatpush2.msra.mxu0 0.0
      %8418 = vmatprep.subr.mxu0 0.0
      %8419 = vmatpush2.msra.mxu0 0.0
      %8420 = vmatprep.subr.mxu0 0.0
      %8421 = vmatpush2.msra.mxu0 0.0
      %8422 = vmatprep.subr.mxu0 0.0
      %8423 = vmatpush2.msra.mxu0 0.0
      %8424 = vmatprep.subr.mxu0 0.0
      %8425 = vmatpush2.msra.mxu0 0.0
      %8426 = vmatprep.subr.mxu0 0.0
      %8427 = vmatpush2.msra.mxu0 0.0
      %8428 = vmatprep.subr.mxu0 0.0
      %8429 = vmatpush2.msra.mxu0 0.0
      %8430 = vmatprep.subr.mxu0 0.0
      %8431 = vmatpush2.msra.mxu0 0.0
      %8432 = vmatprep.subr.mxu0 0.0
      %8433 = vmatpush2.msra.mxu0 0.0
      %8434 = vmatprep.mubr.f32.mxu0 0.0
      %8435 = vmatmul.mubr.f32.gmra.mxu0 %v8280
      %v8436 = vpop.f32.mrf.mxu0
      %v8437 = vadd.f32 0.0, %v8436
      %v8438 = vpop.f32.mrf.mxu0
      %8439 = vmatprep.mubr.f32.mxu0 0.0
      %8440 = vmatmul.mubr.f32.gmra.mxu0 %v8283
      %v8441 = vpop.f32.mrf.mxu0
      %v8442 = vadd.f32 0.0, %v8441
      %v8443 = vpop.f32.mrf.mxu0
      %8444 = vdwg.mxu0
      %v8445 = vpack.c.bf16 %v8442, %v8437
      %s8446 = scalar_lea.vmem %s19, 128
      %v8447 = vld [vmem:[%s8446] sm:$0xff]
      %v8448 = vld [vmem:[%s8446 + $0x8] sm:$0xff]
      %v8449 = vld [vmem:[%s8446 + $0x10] sm:$0xff]
      %v8450 = vld [vmem:[%s8446 + $0x18] sm:$0xff]
      %v8451 = vld [vmem:[%s8446 + $0x20] sm:$0xff]
      %v8452 = vld [vmem:[%s8446 + $0x28] sm:$0xff]
      %v8453 = vld [vmem:[%s8446 + $0x30] sm:$0xff]
      %v8454 = vld [vmem:[%s8446 + $0x38] sm:$0xff]
      %8455 = vmatprep.subr.mxu0 0.0
      %8456 = vmatpush1.msra.mxu0 0.0
      %8457 = vmatprep.subr.mxu0 0.0
      %8458 = vmatpush1.msra.mxu0 0.0
      %8459 = vmatprep.subr.mxu0 0.0
      %8460 = vmatpush1.msra.mxu0 0.0
      %8461 = vmatprep.subr.mxu0 0.0
      %8462 = vmatpush1.msra.mxu0 0.0
      %8463 = vmatprep.subr.mxu0 0.0
      %8464 = vmatpush1.msra.mxu0 0.0
      %8465 = vmatprep.subr.mxu0 0.0
      %8466 = vmatpush1.msra.mxu0 0.0
      %8467 = vmatprep.subr.mxu0 0.0
      %8468 = vmatpush1.msra.mxu0 0.0
      %8469 = vmatprep.subr.mxu0 0.0
      %8470 = vmatpush1.msra.mxu0 0.0
      %8471 = vmatprep.subr.mxu0 0.0
      %8472 = vmatpush1.msra.mxu0 %v8454
      %8473 = vmatprep.subr.mxu0 0.0
      %8474 = vmatpush1.msra.mxu0 %v8453
      %8475 = vmatprep.subr.mxu0 0.0
      %8476 = vmatpush1.msra.mxu0 %v8452
      %8477 = vmatprep.subr.mxu0 0.0
      %8478 = vmatpush1.msra.mxu0 %v8451
      %8479 = vmatprep.subr.mxu0 0.0
      %8480 = vmatpush1.msra.mxu0 %v8450
      %8481 = vmatprep.subr.mxu0 0.0
      %8482 = vmatpush1.msra.mxu0 %v8449
      %8483 = vmatprep.subr.mxu0 0.0
      %8484 = vmatpush1.msra.mxu0 %v8448
      %8485 = vmatprep.subr.mxu0 0.0
      %8486 = vmatpush1.msra.mxu0 %v8447
      %8487 = vmatprep.subr.mxu0 0.0
      %8488 = vmatpush2.msra.mxu0 0.0
      %8489 = vmatprep.subr.mxu0 0.0
      %8490 = vmatpush2.msra.mxu0 0.0
      %8491 = vmatprep.subr.mxu0 0.0
      %8492 = vmatpush2.msra.mxu0 0.0
      %8493 = vmatprep.subr.mxu0 0.0
      %8494 = vmatpush2.msra.mxu0 0.0
      %8495 = vmatprep.subr.mxu0 0.0
      %8496 = vmatpush2.msra.mxu0 0.0
      %8497 = vmatprep.subr.mxu0 0.0
      %8498 = vmatpush2.msra.mxu0 0.0
      %8499 = vmatprep.subr.mxu0 0.0
      %8500 = vmatpush2.msra.mxu0 0.0
      %8501 = vmatprep.subr.mxu0 0.0
      %8502 = vmatpush2.msra.mxu0 0.0
      %8503 = vmatprep.subr.mxu0 0.0
      %8504 = vmatpush2.msra.mxu0 0.0
      %8505 = vmatprep.subr.mxu0 0.0
      %8506 = vmatpush2.msra.mxu0 0.0
      %8507 = vmatprep.subr.mxu0 0.0
      %8508 = vmatpush2.msra.mxu0 0.0
      %8509 = vmatprep.subr.mxu0 0.0
      %8510 = vmatpush2.msra.mxu0 0.0
      %8511 = vmatprep.subr.mxu0 0.0
      %8512 = vmatpush2.msra.mxu0 0.0
      %8513 = vmatprep.subr.mxu0 0.0
      %8514 = vmatpush2.msra.mxu0 0.0
      %8515 = vmatprep.subr.mxu0 0.0
      %8516 = vmatpush2.msra.mxu0 0.0
      %8517 = vmatprep.subr.mxu0 0.0
      %8518 = vmatpush2.msra.mxu0 0.0
      %8519 = vmatprep.mubr.f32.mxu0 0.0
      %8520 = vmatmul.mubr.f32.gmra.mxu0 %v8280
      %v8521 = vpop.f32.mrf.mxu0
      %v8522 = vadd.f32 0.0, %v8521
      %v8523 = vpop.f32.mrf.mxu0
      %8524 = vmatprep.mubr.f32.mxu0 0.0
      %8525 = vmatmul.mubr.f32.gmra.mxu0 %v8283
      %v8526 = vpop.f32.mrf.mxu0
      %v8527 = vadd.f32 0.0, %v8526
      %v8528 = vpop.f32.mrf.mxu0
      %8529 = vdwg.mxu0
      %v8530 = vpack.c.bf16 %v8527, %v8522
      %s8531 = scalar_lea.vmem %s19, 192
      %v8532 = vld [vmem:[%s8531] sm:$0xff]
      %v8533 = vld [vmem:[%s8531 + $0x8] sm:$0xff]
      %v8534 = vld [vmem:[%s8531 + $0x10] sm:$0xff]
      %v8535 = vld [vmem:[%s8531 + $0x18] sm:$0xff]
      %v8536 = vld [vmem:[%s8531 + $0x20] sm:$0xff]
      %v8537 = vld [vmem:[%s8531 + $0x28] sm:$0xff]
      %v8538 = vld [vmem:[%s8531 + $0x30] sm:$0xff]
      %v8539 = vld [vmem:[%s8531 + $0x38] sm:$0xff]
      %8540 = vmatprep.subr.mxu0 0.0
      %8541 = vmatpush1.msra.mxu0 0.0
      %8542 = vmatprep.subr.mxu0 0.0
      %8543 = vmatpush1.msra.mxu0 0.0
      %8544 = vmatprep.subr.mxu0 0.0
      %8545 = vmatpush1.msra.mxu0 0.0
      %8546 = vmatprep.subr.mxu0 0.0
      %8547 = vmatpush1.msra.mxu0 0.0
      %8548 = vmatprep.subr.mxu0 0.0
      %8549 = vmatpush1.msra.mxu0 0.0
      %8550 = vmatprep.subr.mxu0 0.0
      %8551 = vmatpush1.msra.mxu0 0.0
      %8552 = vmatprep.subr.mxu0 0.0
      %8553 = vmatpush1.msra.mxu0 0.0
      %8554 = vmatprep.subr.mxu0 0.0
      %8555 = vmatpush1.msra.mxu0 0.0
      %8556 = vmatprep.subr.mxu0 0.0
      %8557 = vmatpush1.msra.mxu0 %v8539
      %8558 = vmatprep.subr.mxu0 0.0
      %8559 = vmatpush1.msra.mxu0 %v8538
      %8560 = vmatprep.subr.mxu0 0.0
      %8561 = vmatpush1.msra.mxu0 %v8537
      %8562 = vmatprep.subr.mxu0 0.0
      %8563 = vmatpush1.msra.mxu0 %v8536
      %8564 = vmatprep.subr.mxu0 0.0
      %8565 = vmatpush1.msra.mxu0 %v8535
      %8566 = vmatprep.subr.mxu0 0.0
      %8567 = vmatpush1.msra.mxu0 %v8534
      %8568 = vmatprep.subr.mxu0 0.0
      %8569 = vmatpush1.msra.mxu0 %v8533
      %8570 = vmatprep.subr.mxu0 0.0
      %8571 = vmatpush1.msra.mxu0 %v8532
      %8572 = vmatprep.subr.mxu0 0.0
      %8573 = vmatpush2.msra.mxu0 0.0
      %8574 = vmatprep.subr.mxu0 0.0
      %8575 = vmatpush2.msra.mxu0 0.0
      %8576 = vmatprep.subr.mxu0 0.0
      %8577 = vmatpush2.msra.mxu0 0.0
      %8578 = vmatprep.subr.mxu0 0.0
      %8579 = vmatpush2.msra.mxu0 0.0
      %8580 = vmatprep.subr.mxu0 0.0
      %8581 = vmatpush2.msra.mxu0 0.0
      %8582 = vmatprep.subr.mxu0 0.0
      %8583 = vmatpush2.msra.mxu0 0.0
      %8584 = vmatprep.subr.mxu0 0.0
      %8585 = vmatpush2.msra.mxu0 0.0
      %8586 = vmatprep.subr.mxu0 0.0
      %8587 = vmatpush2.msra.mxu0 0.0
      %8588 = vmatprep.subr.mxu0 0.0
      %8589 = vmatpush2.msra.mxu0 0.0
      %8590 = vmatprep.subr.mxu0 0.0
      %8591 = vmatpush2.msra.mxu0 0.0
      %8592 = vmatprep.subr.mxu0 0.0
      %8593 = vmatpush2.msra.mxu0 0.0
      %8594 = vmatprep.subr.mxu0 0.0
      %8595 = vmatpush2.msra.mxu0 0.0
      %8596 = vmatprep.subr.mxu0 0.0
      %8597 = vmatpush2.msra.mxu0 0.0
      %8598 = vmatprep.subr.mxu0 0.0
      %8599 = vmatpush2.msra.mxu0 0.0
      %8600 = vmatprep.subr.mxu0 0.0
      %8601 = vmatpush2.msra.mxu0 0.0
      %8602 = vmatprep.subr.mxu0 0.0
      %8603 = vmatpush2.msra.mxu0 0.0
      %8604 = vmatprep.mubr.f32.mxu0 0.0
      %8605 = vmatmul.mubr.f32.gmra.mxu0 %v8280
      %v8606 = vpop.f32.mrf.mxu0
      %v8607 = vadd.f32 0.0, %v8606
      %v8608 = vpop.f32.mrf.mxu0
      %8609 = vmatprep.mubr.f32.mxu0 0.0
      %8610 = vmatmul.mubr.f32.gmra.mxu0 %v8283
      %v8611 = vpop.f32.mrf.mxu0
      %v8612 = vadd.f32 0.0, %v8611
      %v8613 = vpop.f32.mrf.mxu0
      %8614 = vdwg.mxu0
      %v8615 = vpack.c.bf16 %v8612, %v8607
      %v8616 = vld [vmem:[%s18] sm:$0x3]
      %v8618 = vsel %vm2348, %v8616, 0
      %8620 = vmatprep.subr.bf16.mxu0 0
      %8621 = vmatpush1.bf16.msra.mxu0 0
      %8622 = vmatprep.subr.bf16.mxu0 0
      %8623 = vmatpush1.bf16.msra.mxu0 0
      %8624 = vmatprep.subr.bf16.mxu0 0
      %8625 = vmatpush1.bf16.msra.mxu0 0
      %8626 = vmatprep.subr.bf16.mxu0 0
      %8627 = vmatpush1.bf16.msra.mxu0 0
      %8628 = vmatprep.subr.bf16.mxu0 0
      %8629 = vmatpush1.bf16.msra.mxu0 0
      %8630 = vmatprep.subr.bf16.mxu0 0
      %8631 = vmatpush1.bf16.msra.mxu0 0
      %8632 = vmatprep.subr.bf16.mxu0 0
      %8633 = vmatpush1.bf16.msra.mxu0 0
      %8634 = vmatprep.subr.bf16.mxu0 0
      %8635 = vmatpush1.bf16.msra.mxu0 %v8360
      %8636 = vmatprep.subr.bf16.mxu0 0
      %8637 = vmatpush2.bf16.msra.mxu0 0
      %8638 = vmatprep.subr.bf16.mxu0 0
      %8639 = vmatpush2.bf16.msra.mxu0 0
      %8640 = vmatprep.subr.bf16.mxu0 0
      %8641 = vmatpush2.bf16.msra.mxu0 0
      %8642 = vmatprep.subr.bf16.mxu0 0
      %8643 = vmatpush2.bf16.msra.mxu0 0
      %8644 = vmatprep.subr.bf16.mxu0 0
      %8645 = vmatpush2.bf16.msra.mxu0 0
      %8646 = vmatprep.subr.bf16.mxu0 0
      %8647 = vmatpush2.bf16.msra.mxu0 0
      %8648 = vmatprep.subr.bf16.mxu0 0
      %8649 = vmatpush2.bf16.msra.mxu0 0
      %8650 = vmatprep.subr.bf16.mxu0 0
      %8651 = vmatpush2.bf16.msra.mxu0 0
      %8652 = vmatprep.mubr.bf16.mxu0 0
      %8653 = vmatmul.mubr.bf16.gmra.mxu0 %v8618
      %v8654 = vpop.f32.mrf.mxu0
      %v8655 = vadd.f32 0.0, %v8654
      %v8656 = vpop.f32.mrf.mxu0
      %v8657 = vpop.f32.mrf.mxu0
      %v8658 = vpop.f32.mrf.mxu0
      %8659 = vdwg.mxu0
      %s8660 = scalar_lea.vmem %s18, 2
      %v8661 = vld [vmem:[%s8660] sm:$0x3]
      %s8662 = scalar_lea.vmem %s18, 4
      %v8663 = vld [vmem:[%s8662] sm:$0x3]
      %v8665 = vsel %vm2348, %v8663, 0
      %8667 = vmatprep.subr.bf16.mxu0 0
      %8668 = vmatpush1.bf16.msra.mxu0 0
      %8669 = vmatprep.subr.bf16.mxu0 0
      %8670 = vmatpush1.bf16.msra.mxu0 0
      %8671 = vmatprep.subr.bf16.mxu0 0
      %8672 = vmatpush1.bf16.msra.mxu0 0
      %8673 = vmatprep.subr.bf16.mxu0 0
      %8674 = vmatpush1.bf16.msra.mxu0 0
      %8675 = vmatprep.subr.bf16.mxu0 0
      %8676 = vmatpush1.bf16.msra.mxu0 0
      %8677 = vmatprep.subr.bf16.mxu0 0
      %8678 = vmatpush1.bf16.msra.mxu0 0
      %8679 = vmatprep.subr.bf16.mxu0 0
      %8680 = vmatpush1.bf16.msra.mxu0 0
      %8681 = vmatprep.subr.bf16.mxu0 0
      %8682 = vmatpush1.bf16.msra.mxu0 %v8445
      %8683 = vmatprep.subr.bf16.mxu0 0
      %8684 = vmatpush2.bf16.msra.mxu0 0
      %8685 = vmatprep.subr.bf16.mxu0 0
      %8686 = vmatpush2.bf16.msra.mxu0 0
      %8687 = vmatprep.subr.bf16.mxu0 0
      %8688 = vmatpush2.bf16.msra.mxu0 0
      %8689 = vmatprep.subr.bf16.mxu0 0
      %8690 = vmatpush2.bf16.msra.mxu0 0
      %8691 = vmatprep.subr.bf16.mxu0 0
      %8692 = vmatpush2.bf16.msra.mxu0 0
      %8693 = vmatprep.subr.bf16.mxu0 0
      %8694 = vmatpush2.bf16.msra.mxu0 0
      %8695 = vmatprep.subr.bf16.mxu0 0
      %8696 = vmatpush2.bf16.msra.mxu0 0
      %8697 = vmatprep.subr.bf16.mxu0 0
      %8698 = vmatpush2.bf16.msra.mxu0 0
      %8699 = vmatprep.mubr.bf16.mxu0 0
      %8700 = vmatmul.mubr.bf16.gmra.mxu0 %v8665
      %v8701 = vpop.f32.mrf.mxu0
      %v8702 = vadd.f32 0.0, %v8701
      %v8703 = vpop.f32.mrf.mxu0
      %v8704 = vpop.f32.mrf.mxu0
      %v8705 = vpop.f32.mrf.mxu0
      %8706 = vdwg.mxu0
      %v8708 = vsel %vm2348, %v8661, 0
      %8710 = vmatprep.subr.bf16.mxu0 0
      %8711 = vmatpush1.bf16.msra.mxu0 0
      %8712 = vmatprep.subr.bf16.mxu0 0
      %8713 = vmatpush1.bf16.msra.mxu0 0
      %8714 = vmatprep.subr.bf16.mxu0 0
      %8715 = vmatpush1.bf16.msra.mxu0 0
      %8716 = vmatprep.subr.bf16.mxu0 0
      %8717 = vmatpush1.bf16.msra.mxu0 0
      %8718 = vmatprep.subr.bf16.mxu0 0
      %8719 = vmatpush1.bf16.msra.mxu0 0
      %8720 = vmatprep.subr.bf16.mxu0 0
      %8721 = vmatpush1.bf16.msra.mxu0 0
      %8722 = vmatprep.subr.bf16.mxu0 0
      %8723 = vmatpush1.bf16.msra.mxu0 0
      %8724 = vmatprep.subr.bf16.mxu0 0
      %8725 = vmatpush1.bf16.msra.mxu0 %v8360
      %8726 = vmatprep.subr.bf16.mxu0 0
      %8727 = vmatpush2.bf16.msra.mxu0 0
      %8728 = vmatprep.subr.bf16.mxu0 0
      %8729 = vmatpush2.bf16.msra.mxu0 0
      %8730 = vmatprep.subr.bf16.mxu0 0
      %8731 = vmatpush2.bf16.msra.mxu0 0
      %8732 = vmatprep.subr.bf16.mxu0 0
      %8733 = vmatpush2.bf16.msra.mxu0 0
      %8734 = vmatprep.subr.bf16.mxu0 0
      %8735 = vmatpush2.bf16.msra.mxu0 0
      %8736 = vmatprep.subr.bf16.mxu0 0
      %8737 = vmatpush2.bf16.msra.mxu0 0
      %8738 = vmatprep.subr.bf16.mxu0 0
      %8739 = vmatpush2.bf16.msra.mxu0 0
      %8740 = vmatprep.subr.bf16.mxu0 0
      %8741 = vmatpush2.bf16.msra.mxu0 0
      %8742 = vmatprep.mubr.bf16.mxu0 0
      %8743 = vmatmul.mubr.bf16.gmra.mxu0 %v8708
      %v8744 = vpop.f32.mrf.mxu0
      %v8745 = vadd.f32 %v8702, %v8744
      %v8746 = vpop.f32.mrf.mxu0
      %v8747 = vpop.f32.mrf.mxu0
      %v8748 = vpop.f32.mrf.mxu0
      %8749 = vdwg.mxu0
      %s8750 = scalar_lea.vmem %s18, 6
      %v8751 = vld [vmem:[%s8750] sm:$0x3]
      %s8752 = scalar_lea.vmem %s18, 8
      %v8753 = vld [vmem:[%s8752] sm:$0x3]
      %v8755 = vsel %vm2348, %v8753, 0
      %8757 = vmatprep.subr.bf16.mxu0 0
      %8758 = vmatpush1.bf16.msra.mxu0 0
      %8759 = vmatprep.subr.bf16.mxu0 0
      %8760 = vmatpush1.bf16.msra.mxu0 0
      %8761 = vmatprep.subr.bf16.mxu0 0
      %8762 = vmatpush1.bf16.msra.mxu0 0
      %8763 = vmatprep.subr.bf16.mxu0 0
      %8764 = vmatpush1.bf16.msra.mxu0 0
      %8765 = vmatprep.subr.bf16.mxu0 0
      %8766 = vmatpush1.bf16.msra.mxu0 0
      %8767 = vmatprep.subr.bf16.mxu0 0
      %8768 = vmatpush1.bf16.msra.mxu0 0
      %8769 = vmatprep.subr.bf16.mxu0 0
      %8770 = vmatpush1.bf16.msra.mxu0 0
      %8771 = vmatprep.subr.bf16.mxu0 0
      %8772 = vmatpush1.bf16.msra.mxu0 %v8530
      %8773 = vmatprep.subr.bf16.mxu0 0
      %8774 = vmatpush2.bf16.msra.mxu0 0
      %8775 = vmatprep.subr.bf16.mxu0 0
      %8776 = vmatpush2.bf16.msra.mxu0 0
      %8777 = vmatprep.subr.bf16.mxu0 0
      %8778 = vmatpush2.bf16.msra.mxu0 0
      %8779 = vmatprep.subr.bf16.mxu0 0
      %8780 = vmatpush2.bf16.msra.mxu0 0
      %8781 = vmatprep.subr.bf16.mxu0 0
      %8782 = vmatpush2.bf16.msra.mxu0 0
      %8783 = vmatprep.subr.bf16.mxu0 0
      %8784 = vmatpush2.bf16.msra.mxu0 0
      %8785 = vmatprep.subr.bf16.mxu0 0
      %8786 = vmatpush2.bf16.msra.mxu0 0
      %8787 = vmatprep.subr.bf16.mxu0 0
      %8788 = vmatpush2.bf16.msra.mxu0 0
      %8789 = vmatprep.mubr.bf16.mxu0 0
      %8790 = vmatmul.mubr.bf16.gmra.mxu0 %v8755
      %v8791 = vpop.f32.mrf.mxu0
      %v8792 = vadd.f32 0.0, %v8791
      %v8793 = vpop.f32.mrf.mxu0
      %v8794 = vpop.f32.mrf.mxu0
      %v8795 = vpop.f32.mrf.mxu0
      %8796 = vdwg.mxu0
      %v8798 = vsel %vm2348, %v8751, 0
      %8800 = vmatprep.subr.bf16.mxu0 0
      %8801 = vmatpush1.bf16.msra.mxu0 0
      %8802 = vmatprep.subr.bf16.mxu0 0
      %8803 = vmatpush1.bf16.msra.mxu0 0
      %8804 = vmatprep.subr.bf16.mxu0 0
      %8805 = vmatpush1.bf16.msra.mxu0 0
      %8806 = vmatprep.subr.bf16.mxu0 0
      %8807 = vmatpush1.bf16.msra.mxu0 0
      %8808 = vmatprep.subr.bf16.mxu0 0
      %8809 = vmatpush1.bf16.msra.mxu0 0
      %8810 = vmatprep.subr.bf16.mxu0 0
      %8811 = vmatpush1.bf16.msra.mxu0 0
      %8812 = vmatprep.subr.bf16.mxu0 0
      %8813 = vmatpush1.bf16.msra.mxu0 0
      %8814 = vmatprep.subr.bf16.mxu0 0
      %8815 = vmatpush1.bf16.msra.mxu0 %v8360
      %8816 = vmatprep.subr.bf16.mxu0 0
      %8817 = vmatpush2.bf16.msra.mxu0 0
      %8818 = vmatprep.subr.bf16.mxu0 0
      %8819 = vmatpush2.bf16.msra.mxu0 0
      %8820 = vmatprep.subr.bf16.mxu0 0
      %8821 = vmatpush2.bf16.msra.mxu0 0
      %8822 = vmatprep.subr.bf16.mxu0 0
      %8823 = vmatpush2.bf16.msra.mxu0 0
      %8824 = vmatprep.subr.bf16.mxu0 0
      %8825 = vmatpush2.bf16.msra.mxu0 0
      %8826 = vmatprep.subr.bf16.mxu0 0
      %8827 = vmatpush2.bf16.msra.mxu0 0
      %8828 = vmatprep.subr.bf16.mxu0 0
      %8829 = vmatpush2.bf16.msra.mxu0 0
      %8830 = vmatprep.subr.bf16.mxu0 0
      %8831 = vmatpush2.bf16.msra.mxu0 0
      %8832 = vmatprep.mubr.bf16.mxu0 0
      %8833 = vmatmul.mubr.bf16.gmra.mxu0 %v8798
      %v8834 = vpop.f32.mrf.mxu0
      %v8835 = vadd.f32 %v8792, %v8834
      %v8836 = vpop.f32.mrf.mxu0
      %v8837 = vpop.f32.mrf.mxu0
      %v8838 = vpop.f32.mrf.mxu0
      %8839 = vdwg.mxu0
      %s8840 = scalar_lea.vmem %s18, 10
      %v8841 = vld [vmem:[%s8840] sm:$0x3]
      %s8842 = scalar_lea.vmem %s18, 12
      %v8843 = vld [vmem:[%s8842] sm:$0x3]
      %v8845 = vsel %vm2348, %v8843, 0
      %8847 = vmatprep.subr.bf16.mxu0 0
      %8848 = vmatpush1.bf16.msra.mxu0 0
      %8849 = vmatprep.subr.bf16.mxu0 0
      %8850 = vmatpush1.bf16.msra.mxu0 0
      %8851 = vmatprep.subr.bf16.mxu0 0
      %8852 = vmatpush1.bf16.msra.mxu0 0
      %8853 = vmatprep.subr.bf16.mxu0 0
      %8854 = vmatpush1.bf16.msra.mxu0 0
      %8855 = vmatprep.subr.bf16.mxu0 0
      %8856 = vmatpush1.bf16.msra.mxu0 0
      %8857 = vmatprep.subr.bf16.mxu0 0
      %8858 = vmatpush1.bf16.msra.mxu0 0
      %8859 = vmatprep.subr.bf16.mxu0 0
      %8860 = vmatpush1.bf16.msra.mxu0 0
      %8861 = vmatprep.subr.bf16.mxu0 0
      %8862 = vmatpush1.bf16.msra.mxu0 %v8445
      %8863 = vmatprep.subr.bf16.mxu0 0
      %8864 = vmatpush2.bf16.msra.mxu0 0
      %8865 = vmatprep.subr.bf16.mxu0 0
      %8866 = vmatpush2.bf16.msra.mxu0 0
      %8867 = vmatprep.subr.bf16.mxu0 0
      %8868 = vmatpush2.bf16.msra.mxu0 0
      %8869 = vmatprep.subr.bf16.mxu0 0
      %8870 = vmatpush2.bf16.msra.mxu0 0
      %8871 = vmatprep.subr.bf16.mxu0 0
      %8872 = vmatpush2.bf16.msra.mxu0 0
      %8873 = vmatprep.subr.bf16.mxu0 0
      %8874 = vmatpush2.bf16.msra.mxu0 0
      %8875 = vmatprep.subr.bf16.mxu0 0
      %8876 = vmatpush2.bf16.msra.mxu0 0
      %8877 = vmatprep.subr.bf16.mxu0 0
      %8878 = vmatpush2.bf16.msra.mxu0 0
      %8879 = vmatprep.mubr.bf16.mxu0 0
      %8880 = vmatmul.mubr.bf16.gmra.mxu0 %v8845
      %v8881 = vpop.f32.mrf.mxu0
      %v8882 = vadd.f32 0.0, %v8881
      %v8883 = vpop.f32.mrf.mxu0
      %v8884 = vpop.f32.mrf.mxu0
      %v8885 = vpop.f32.mrf.mxu0
      %8886 = vdwg.mxu0
      %v8888 = vsel %vm2348, %v8841, 0
      %8890 = vmatprep.subr.bf16.mxu0 0
      %8891 = vmatpush1.bf16.msra.mxu0 0
      %8892 = vmatprep.subr.bf16.mxu0 0
      %8893 = vmatpush1.bf16.msra.mxu0 0
      %8894 = vmatprep.subr.bf16.mxu0 0
      %8895 = vmatpush1.bf16.msra.mxu0 0
      %8896 = vmatprep.subr.bf16.mxu0 0
      %8897 = vmatpush1.bf16.msra.mxu0 0
      %8898 = vmatprep.subr.bf16.mxu0 0
      %8899 = vmatpush1.bf16.msra.mxu0 0
      %8900 = vmatprep.subr.bf16.mxu0 0
      %8901 = vmatpush1.bf16.msra.mxu0 0
      %8902 = vmatprep.subr.bf16.mxu0 0
      %8903 = vmatpush1.bf16.msra.mxu0 0
      %8904 = vmatprep.subr.bf16.mxu0 0
      %8905 = vmatpush1.bf16.msra.mxu0 %v8360
      %8906 = vmatprep.subr.bf16.mxu0 0
      %8907 = vmatpush2.bf16.msra.mxu0 0
      %8908 = vmatprep.subr.bf16.mxu0 0
      %8909 = vmatpush2.bf16.msra.mxu0 0
      %8910 = vmatprep.subr.bf16.mxu0 0
      %8911 = vmatpush2.bf16.msra.mxu0 0
      %8912 = vmatprep.subr.bf16.mxu0 0
      %8913 = vmatpush2.bf16.msra.mxu0 0
      %8914 = vmatprep.subr.bf16.mxu0 0
      %8915 = vmatpush2.bf16.msra.mxu0 0
      %8916 = vmatprep.subr.bf16.mxu0 0
      %8917 = vmatpush2.bf16.msra.mxu0 0
      %8918 = vmatprep.subr.bf16.mxu0 0
      %8919 = vmatpush2.bf16.msra.mxu0 0
      %8920 = vmatprep.subr.bf16.mxu0 0
      %8921 = vmatpush2.bf16.msra.mxu0 0
      %8922 = vmatprep.mubr.bf16.mxu0 0
      %8923 = vmatmul.mubr.bf16.gmra.mxu0 %v8888
      %v8924 = vpop.f32.mrf.mxu0
      %v8925 = vadd.f32 %v8882, %v8924
      %v8926 = vpop.f32.mrf.mxu0
      %v8927 = vpop.f32.mrf.mxu0
      %v8928 = vpop.f32.mrf.mxu0
      %8929 = vdwg.mxu0
      %s8930 = scalar_lea.vmem %s18, 14
      %v8931 = vld [vmem:[%s8930] sm:$0x3]
      %v8933 = vsel %vm2348, %v8931, 0
      %8935 = vmatprep.subr.bf16.mxu0 0
      %8936 = vmatpush1.bf16.msra.mxu0 0
      %8937 = vmatprep.subr.bf16.mxu0 0
      %8938 = vmatpush1.bf16.msra.mxu0 0
      %8939 = vmatprep.subr.bf16.mxu0 0
      %8940 = vmatpush1.bf16.msra.mxu0 0
      %8941 = vmatprep.subr.bf16.mxu0 0
      %8942 = vmatpush1.bf16.msra.mxu0 0
      %8943 = vmatprep.subr.bf16.mxu0 0
      %8944 = vmatpush1.bf16.msra.mxu0 0
      %8945 = vmatprep.subr.bf16.mxu0 0
      %8946 = vmatpush1.bf16.msra.mxu0 0
      %8947 = vmatprep.subr.bf16.mxu0 0
      %8948 = vmatpush1.bf16.msra.mxu0 0
      %8949 = vmatprep.subr.bf16.mxu0 0
      %8950 = vmatpush1.bf16.msra.mxu0 %v8530
      %8951 = vmatprep.subr.bf16.mxu0 0
      %8952 = vmatpush2.bf16.msra.mxu0 0
      %8953 = vmatprep.subr.bf16.mxu0 0
      %8954 = vmatpush2.bf16.msra.mxu0 0
      %8955 = vmatprep.subr.bf16.mxu0 0
      %8956 = vmatpush2.bf16.msra.mxu0 0
      %8957 = vmatprep.subr.bf16.mxu0 0
      %8958 = vmatpush2.bf16.msra.mxu0 0
      %8959 = vmatprep.subr.bf16.mxu0 0
      %8960 = vmatpush2.bf16.msra.mxu0 0
      %8961 = vmatprep.subr.bf16.mxu0 0
      %8962 = vmatpush2.bf16.msra.mxu0 0
      %8963 = vmatprep.subr.bf16.mxu0 0
      %8964 = vmatpush2.bf16.msra.mxu0 0
      %8965 = vmatprep.subr.bf16.mxu0 0
      %8966 = vmatpush2.bf16.msra.mxu0 0
      %8967 = vmatprep.mubr.bf16.mxu0 0
      %8968 = vmatmul.mubr.bf16.gmra.mxu0 %v8933
      %v8969 = vpop.f32.mrf.mxu0
      %v8970 = vadd.f32 0.0, %v8969
      %v8971 = vpop.f32.mrf.mxu0
      %v8972 = vpop.f32.mrf.mxu0
      %v8973 = vpop.f32.mrf.mxu0
      %8974 = vdwg.mxu0
      %v8975 = vadd.f32 %v8925, %v8970
      %s8976 = scalar_lea.vmem %s18, 16
      %v8977 = vld [vmem:[%s8976] sm:$0x3]
      %v8979 = vsel %vm2348, %v8977, 0
      %8981 = vmatprep.subr.bf16.mxu0 0
      %8982 = vmatpush1.bf16.msra.mxu0 0
      %8983 = vmatprep.subr.bf16.mxu0 0
      %8984 = vmatpush1.bf16.msra.mxu0 0
      %8985 = vmatprep.subr.bf16.mxu0 0
      %8986 = vmatpush1.bf16.msra.mxu0 0
      %8987 = vmatprep.subr.bf16.mxu0 0
      %8988 = vmatpush1.bf16.msra.mxu0 0
      %8989 = vmatprep.subr.bf16.mxu0 0
      %8990 = vmatpush1.bf16.msra.mxu0 0
      %8991 = vmatprep.subr.bf16.mxu0 0
      %8992 = vmatpush1.bf16.msra.mxu0 0
      %8993 = vmatprep.subr.bf16.mxu0 0
      %8994 = vmatpush1.bf16.msra.mxu0 0
      %8995 = vmatprep.subr.bf16.mxu0 0
      %8996 = vmatpush1.bf16.msra.mxu0 %v8615
      %8997 = vmatprep.subr.bf16.mxu0 0
      %8998 = vmatpush2.bf16.msra.mxu0 0
      %8999 = vmatprep.subr.bf16.mxu0 0
      %9000 = vmatpush2.bf16.msra.mxu0 0
      %9001 = vmatprep.subr.bf16.mxu0 0
      %9002 = vmatpush2.bf16.msra.mxu0 0
      %9003 = vmatprep.subr.bf16.mxu0 0
      %9004 = vmatpush2.bf16.msra.mxu0 0
      %9005 = vmatprep.subr.bf16.mxu0 0
      %9006 = vmatpush2.bf16.msra.mxu0 0
      %9007 = vmatprep.subr.bf16.mxu0 0
      %9008 = vmatpush2.bf16.msra.mxu0 0
      %9009 = vmatprep.subr.bf16.mxu0 0
      %9010 = vmatpush2.bf16.msra.mxu0 0
      %9011 = vmatprep.subr.bf16.mxu0 0
      %9012 = vmatpush2.bf16.msra.mxu0 0
      %9013 = vmatprep.mubr.bf16.mxu0 0
      %9014 = vmatmul.mubr.bf16.gmra.mxu0 %v8979
      %v9015 = vpop.f32.mrf.mxu0
      %v9016 = vadd.f32 0.0, %v9015
      %v9017 = vpop.f32.mrf.mxu0
      %v9018 = vpop.f32.mrf.mxu0
      %v9019 = vpop.f32.mrf.mxu0
      %9020 = vdwg.mxu0
      %v9021 = vadd.f32 %v8975, %v9016
      %v9022 = vld [vmem:[%s20] sm:$0xff]
      %v9023 = vld [vmem:[%s20 + $0x8] sm:$0xff]
      %v9024 = vld [vmem:[%s20 + $0x10] sm:$0xff]
      %v9025 = vld [vmem:[%s20 + $0x18] sm:$0xff]
      %v9026 = vld [vmem:[%s20 + $0x20] sm:$0xff]
      %v9027 = vld [vmem:[%s20 + $0x28] sm:$0xff]
      %v9028 = vld [vmem:[%s20 + $0x30] sm:$0xff]
      %v9029 = vld [vmem:[%s20 + $0x38] sm:$0xff]
      %v9030 = vld [vmem:[%s20 + $0x40] sm:$0xff]
      %v9031 = vld [vmem:[%s20 + $0x48] sm:$0xff]
      %v9032 = vld [vmem:[%s20 + $0x50] sm:$0xff]
      %v9033 = vld [vmem:[%s20 + $0x58] sm:$0xff]
      %v9034 = vld [vmem:[%s20 + $0x60] sm:$0xff]
      %v9035 = vld [vmem:[%s20 + $0x68] sm:$0xff]
      %v9036 = vld [vmem:[%s20 + $0x70] sm:$0xff]
      %v9037 = vld [vmem:[%s20 + $0x78] sm:$0xff]
      %s9038 = scalar_lea.vmem %s20, 128
      %v9039 = vld [vmem:[%s9038] sm:$0xff]
      %v9040 = vld [vmem:[%s9038 + $0x8] sm:$0xff]
      %v9041 = vld [vmem:[%s9038 + $0x10] sm:$0xff]
      %v9042 = vld [vmem:[%s9038 + $0x18] sm:$0xff]
      %v9043 = vld [vmem:[%s9038 + $0x20] sm:$0xff]
      %v9044 = vld [vmem:[%s9038 + $0x28] sm:$0xff]
      %v9045 = vld [vmem:[%s9038 + $0x30] sm:$0xff]
      %v9046 = vld [vmem:[%s9038 + $0x38] sm:$0xff]
      %v9047 = vld [vmem:[%s9038 + $0x40] sm:$0xff]
      %v9048 = vld [vmem:[%s9038 + $0x48] sm:$0xff]
      %v9049 = vld [vmem:[%s9038 + $0x50] sm:$0xff]
      %v9050 = vld [vmem:[%s9038 + $0x58] sm:$0xff]
      %v9051 = vld [vmem:[%s9038 + $0x60] sm:$0xff]
      %v9052 = vld [vmem:[%s9038 + $0x68] sm:$0xff]
      %v9053 = vld [vmem:[%s9038 + $0x70] sm:$0xff]
      %v9054 = vld [vmem:[%s9038 + $0x78] sm:$0xff]
      %v9056 = vsel %vm2161, %v8745, 0
      %9058 = vmatprep.subr.mxu0 0.0
      %9059 = vmatpush1.msra.mxu0 0.0
      %9060 = vmatprep.subr.mxu0 0.0
      %9061 = vmatpush1.msra.mxu0 0.0
      %9062 = vmatprep.subr.mxu0 0.0
      %9063 = vmatpush1.msra.mxu0 0.0
      %9064 = vmatprep.subr.mxu0 0.0
      %9065 = vmatpush1.msra.mxu0 0.0
      %9066 = vmatprep.subr.mxu0 0.0
      %9067 = vmatpush1.msra.mxu0 0.0
      %9068 = vmatprep.subr.mxu0 0.0
      %9069 = vmatpush1.msra.mxu0 0.0
      %9070 = vmatprep.subr.mxu0 0.0
      %9071 = vmatpush1.msra.mxu0 0.0
      %9072 = vmatprep.subr.mxu0 0.0
      %9073 = vmatpush1.msra.mxu0 0.0
      %9074 = vmatprep.subr.mxu0 %v9054
      %9075 = vmatpush1.msra.mxu0 %v9053
      %9076 = vmatprep.subr.mxu0 %v9052
      %9077 = vmatpush1.msra.mxu0 %v9051
      %9078 = vmatprep.subr.mxu0 %v9050
      %9079 = vmatpush1.msra.mxu0 %v9049
      %9080 = vmatprep.subr.mxu0 %v9048
      %9081 = vmatpush1.msra.mxu0 %v9047
      %9082 = vmatprep.subr.mxu0 %v9046
      %9083 = vmatpush1.msra.mxu0 %v9045
      %9084 = vmatprep.subr.mxu0 %v9044
      %9085 = vmatpush1.msra.mxu0 %v9043
      %9086 = vmatprep.subr.mxu0 %v9042
      %9087 = vmatpush1.msra.mxu0 %v9041
      %9088 = vmatprep.subr.mxu0 %v9040
      %9089 = vmatpush1.msra.mxu0 %v9039
      %9090 = vmatprep.subr.mxu0 0.0
      %9091 = vmatpush2.msra.mxu0 0.0
      %9092 = vmatprep.subr.mxu0 0.0
      %9093 = vmatpush2.msra.mxu0 0.0
      %9094 = vmatprep.subr.mxu0 0.0
      %9095 = vmatpush2.msra.mxu0 0.0
      %9096 = vmatprep.subr.mxu0 0.0
      %9097 = vmatpush2.msra.mxu0 0.0
      %9098 = vmatprep.subr.mxu0 0.0
      %9099 = vmatpush2.msra.mxu0 0.0
      %9100 = vmatprep.subr.mxu0 0.0
      %9101 = vmatpush2.msra.mxu0 0.0
      %9102 = vmatprep.subr.mxu0 0.0
      %9103 = vmatpush2.msra.mxu0 0.0
      %9104 = vmatprep.subr.mxu0 0.0
      %9105 = vmatpush2.msra.mxu0 0.0
      %9106 = vmatprep.subr.mxu0 0.0
      %9107 = vmatpush2.msra.mxu0 0.0
      %9108 = vmatprep.subr.mxu0 0.0
      %9109 = vmatpush2.msra.mxu0 0.0
      %9110 = vmatprep.subr.mxu0 0.0
      %9111 = vmatpush2.msra.mxu0 0.0
      %9112 = vmatprep.subr.mxu0 0.0
      %9113 = vmatpush2.msra.mxu0 0.0
      %9114 = vmatprep.subr.mxu0 0.0
      %9115 = vmatpush2.msra.mxu0 0.0
      %9116 = vmatprep.subr.mxu0 0.0
      %9117 = vmatpush2.msra.mxu0 0.0
      %9118 = vmatprep.subr.mxu0 0.0
      %9119 = vmatpush2.msra.mxu0 0.0
      %9120 = vmatprep.subr.mxu0 0.0
      %9121 = vmatpush2.msra.mxu0 0.0
      %9122 = vmatprep.mubr.f32.mxu0 0.0
      %9123 = vmatmul.mubr.f32.gmra.mxu0 %v9056
      %v9124 = vpop.f32.mrf.mxu0
      %v9125 = vadd.f32 0.0, %v9124
      %v9126 = vpop.f32.mrf.mxu0
      %v9127 = vadd.f32 0.0, %v9126
      %9128 = vdwg.mxu0
      %v9130 = vsel %vm2161, %v8655, 0
      %9132 = vmatprep.subr.mxu0 0.0
      %9133 = vmatpush1.msra.mxu0 0.0
      %9134 = vmatprep.subr.mxu0 0.0
      %9135 = vmatpush1.msra.mxu0 0.0
      %9136 = vmatprep.subr.mxu0 0.0
      %9137 = vmatpush1.msra.mxu0 0.0
      %9138 = vmatprep.subr.mxu0 0.0
      %9139 = vmatpush1.msra.mxu0 0.0
      %9140 = vmatprep.subr.mxu0 0.0
      %9141 = vmatpush1.msra.mxu0 0.0
      %9142 = vmatprep.subr.mxu0 0.0
      %9143 = vmatpush1.msra.mxu0 0.0
      %9144 = vmatprep.subr.mxu0 0.0
      %9145 = vmatpush1.msra.mxu0 0.0
      %9146 = vmatprep.subr.mxu0 0.0
      %9147 = vmatpush1.msra.mxu0 0.0
      %9148 = vmatprep.subr.mxu0 %v9037
      %9149 = vmatpush1.msra.mxu0 %v9036
      %9150 = vmatprep.subr.mxu0 %v9035
      %9151 = vmatpush1.msra.mxu0 %v9034
      %9152 = vmatprep.subr.mxu0 %v9033
      %9153 = vmatpush1.msra.mxu0 %v9032
      %9154 = vmatprep.subr.mxu0 %v9031
      %9155 = vmatpush1.msra.mxu0 %v9030
      %9156 = vmatprep.subr.mxu0 %v9029
      %9157 = vmatpush1.msra.mxu0 %v9028
      %9158 = vmatprep.subr.mxu0 %v9027
      %9159 = vmatpush1.msra.mxu0 %v9026
      %9160 = vmatprep.subr.mxu0 %v9025
      %9161 = vmatpush1.msra.mxu0 %v9024
      %9162 = vmatprep.subr.mxu0 %v9023
      %9163 = vmatpush1.msra.mxu0 %v9022
      %9164 = vmatprep.subr.mxu0 0.0
      %9165 = vmatpush2.msra.mxu0 0.0
      %9166 = vmatprep.subr.mxu0 0.0
      %9167 = vmatpush2.msra.mxu0 0.0
      %9168 = vmatprep.subr.mxu0 0.0
      %9169 = vmatpush2.msra.mxu0 0.0
      %9170 = vmatprep.subr.mxu0 0.0
      %9171 = vmatpush2.msra.mxu0 0.0
      %9172 = vmatprep.subr.mxu0 0.0
      %9173 = vmatpush2.msra.mxu0 0.0
      %9174 = vmatprep.subr.mxu0 0.0
      %9175 = vmatpush2.msra.mxu0 0.0
      %9176 = vmatprep.subr.mxu0 0.0
      %9177 = vmatpush2.msra.mxu0 0.0
      %9178 = vmatprep.subr.mxu0 0.0
      %9179 = vmatpush2.msra.mxu0 0.0
      %9180 = vmatprep.subr.mxu0 0.0
      %9181 = vmatpush2.msra.mxu0 0.0
      %9182 = vmatprep.subr.mxu0 0.0
      %9183 = vmatpush2.msra.mxu0 0.0
      %9184 = vmatprep.subr.mxu0 0.0
      %9185 = vmatpush2.msra.mxu0 0.0
      %9186 = vmatprep.subr.mxu0 0.0
      %9187 = vmatpush2.msra.mxu0 0.0
      %9188 = vmatprep.subr.mxu0 0.0
      %9189 = vmatpush2.msra.mxu0 0.0
      %9190 = vmatprep.subr.mxu0 0.0
      %9191 = vmatpush2.msra.mxu0 0.0
      %9192 = vmatprep.subr.mxu0 0.0
      %9193 = vmatpush2.msra.mxu0 0.0
      %9194 = vmatprep.subr.mxu0 0.0
      %9195 = vmatpush2.msra.mxu0 0.0
      %9196 = vmatprep.mubr.f32.mxu0 0.0
      %9197 = vmatmul.mubr.f32.gmra.mxu0 %v9130
      %v9198 = vpop.f32.mrf.mxu0
      %v9199 = vadd.f32 %v9125, %v9198
      %v9200 = vpop.f32.mrf.mxu0
      %v9201 = vadd.f32 %v9127, %v9200
      %9202 = vdwg.mxu0
      %s9203 = scalar_lea.vmem %s20, 256
      %v9204 = vld [vmem:[%s9203] sm:$0xff]
      %v9205 = vld [vmem:[%s9203 + $0x8] sm:$0xff]
      %v9206 = vld [vmem:[%s9203 + $0x10] sm:$0xff]
      %v9207 = vld [vmem:[%s9203 + $0x18] sm:$0xff]
      %v9208 = vld [vmem:[%s9203 + $0x20] sm:$0xff]
      %v9209 = vld [vmem:[%s9203 + $0x28] sm:$0xff]
      %v9210 = vld [vmem:[%s9203 + $0x30] sm:$0xff]
      %v9211 = vld [vmem:[%s9203 + $0x38] sm:$0xff]
      %v9212 = vld [vmem:[%s9203 + $0x40] sm:$0xff]
      %v9213 = vld [vmem:[%s9203 + $0x48] sm:$0xff]
      %v9214 = vld [vmem:[%s9203 + $0x50] sm:$0xff]
      %v9215 = vld [vmem:[%s9203 + $0x58] sm:$0xff]
      %v9216 = vld [vmem:[%s9203 + $0x60] sm:$0xff]
      %v9217 = vld [vmem:[%s9203 + $0x68] sm:$0xff]
      %v9218 = vld [vmem:[%s9203 + $0x70] sm:$0xff]
      %v9219 = vld [vmem:[%s9203 + $0x78] sm:$0xff]
      %v9221 = vsel %vm2161, %v8835, 0
      %9223 = vmatprep.subr.mxu0 0.0
      %9224 = vmatpush1.msra.mxu0 0.0
      %9225 = vmatprep.subr.mxu0 0.0
      %9226 = vmatpush1.msra.mxu0 0.0
      %9227 = vmatprep.subr.mxu0 0.0
      %9228 = vmatpush1.msra.mxu0 0.0
      %9229 = vmatprep.subr.mxu0 0.0
      %9230 = vmatpush1.msra.mxu0 0.0
      %9231 = vmatprep.subr.mxu0 0.0
      %9232 = vmatpush1.msra.mxu0 0.0
      %9233 = vmatprep.subr.mxu0 0.0
      %9234 = vmatpush1.msra.mxu0 0.0
      %9235 = vmatprep.subr.mxu0 0.0
      %9236 = vmatpush1.msra.mxu0 0.0
      %9237 = vmatprep.subr.mxu0 0.0
      %9238 = vmatpush1.msra.mxu0 0.0
      %9239 = vmatprep.subr.mxu0 %v9219
      %9240 = vmatpush1.msra.mxu0 %v9218
      %9241 = vmatprep.subr.mxu0 %v9217
      %9242 = vmatpush1.msra.mxu0 %v9216
      %9243 = vmatprep.subr.mxu0 %v9215
      %9244 = vmatpush1.msra.mxu0 %v9214
      %9245 = vmatprep.subr.mxu0 %v9213
      %9246 = vmatpush1.msra.mxu0 %v9212
      %9247 = vmatprep.subr.mxu0 %v9211
      %9248 = vmatpush1.msra.mxu0 %v9210
      %9249 = vmatprep.subr.mxu0 %v9209
      %9250 = vmatpush1.msra.mxu0 %v9208
      %9251 = vmatprep.subr.mxu0 %v9207
      %9252 = vmatpush1.msra.mxu0 %v9206
      %9253 = vmatprep.subr.mxu0 %v9205
      %9254 = vmatpush1.msra.mxu0 %v9204
      %9255 = vmatprep.subr.mxu0 0.0
      %9256 = vmatpush2.msra.mxu0 0.0
      %9257 = vmatprep.subr.mxu0 0.0
      %9258 = vmatpush2.msra.mxu0 0.0
      %9259 = vmatprep.subr.mxu0 0.0
      %9260 = vmatpush2.msra.mxu0 0.0
      %9261 = vmatprep.subr.mxu0 0.0
      %9262 = vmatpush2.msra.mxu0 0.0
      %9263 = vmatprep.subr.mxu0 0.0
      %9264 = vmatpush2.msra.mxu0 0.0
      %9265 = vmatprep.subr.mxu0 0.0
      %9266 = vmatpush2.msra.mxu0 0.0
      %9267 = vmatprep.subr.mxu0 0.0
      %9268 = vmatpush2.msra.mxu0 0.0
      %9269 = vmatprep.subr.mxu0 0.0
      %9270 = vmatpush2.msra.mxu0 0.0
      %9271 = vmatprep.subr.mxu0 0.0
      %9272 = vmatpush2.msra.mxu0 0.0
      %9273 = vmatprep.subr.mxu0 0.0
      %9274 = vmatpush2.msra.mxu0 0.0
      %9275 = vmatprep.subr.mxu0 0.0
      %9276 = vmatpush2.msra.mxu0 0.0
      %9277 = vmatprep.subr.mxu0 0.0
      %9278 = vmatpush2.msra.mxu0 0.0
      %9279 = vmatprep.subr.mxu0 0.0
      %9280 = vmatpush2.msra.mxu0 0.0
      %9281 = vmatprep.subr.mxu0 0.0
      %9282 = vmatpush2.msra.mxu0 0.0
      %9283 = vmatprep.subr.mxu0 0.0
      %9284 = vmatpush2.msra.mxu0 0.0
      %9285 = vmatprep.subr.mxu0 0.0
      %9286 = vmatpush2.msra.mxu0 0.0
      %9287 = vmatprep.mubr.f32.mxu0 0.0
      %9288 = vmatmul.mubr.f32.gmra.mxu0 %v9221
      %v9289 = vpop.f32.mrf.mxu0
      %v9290 = vadd.f32 0.0, %v9289
      %v9291 = vpop.f32.mrf.mxu0
      %v9292 = vadd.f32 0.0, %v9291
      %9293 = vdwg.mxu0
      %v9294 = vadd.f32 %v9199, %v9290
      %v9295 = vadd.f32 %v9201, %v9292
      %s9296 = scalar_lea.vmem %s20, 384
      %v9297 = vld [vmem:[%s9296] sm:$0xff]
      %v9298 = vld [vmem:[%s9296 + $0x8] sm:$0xff]
      %v9299 = vld [vmem:[%s9296 + $0x10] sm:$0xff]
      %v9300 = vld [vmem:[%s9296 + $0x18] sm:$0xff]
      %v9301 = vld [vmem:[%s9296 + $0x20] sm:$0xff]
      %v9302 = vld [vmem:[%s9296 + $0x28] sm:$0xff]
      %v9303 = vld [vmem:[%s9296 + $0x30] sm:$0xff]
      %v9304 = vld [vmem:[%s9296 + $0x38] sm:$0xff]
      %v9305 = vld [vmem:[%s9296 + $0x40] sm:$0xff]
      %v9306 = vld [vmem:[%s9296 + $0x48] sm:$0xff]
      %v9307 = vld [vmem:[%s9296 + $0x50] sm:$0xff]
      %v9308 = vld [vmem:[%s9296 + $0x58] sm:$0xff]
      %v9309 = vld [vmem:[%s9296 + $0x60] sm:$0xff]
      %v9310 = vld [vmem:[%s9296 + $0x68] sm:$0xff]
      %v9311 = vld [vmem:[%s9296 + $0x70] sm:$0xff]
      %v9312 = vld [vmem:[%s9296 + $0x78] sm:$0xff]
      %v9314 = vsel %vm2161, %v9021, 0
      %9316 = vmatprep.subr.mxu0 0.0
      %9317 = vmatpush1.msra.mxu0 0.0
      %9318 = vmatprep.subr.mxu0 0.0
      %9319 = vmatpush1.msra.mxu0 0.0
      %9320 = vmatprep.subr.mxu0 0.0
      %9321 = vmatpush1.msra.mxu0 0.0
      %9322 = vmatprep.subr.mxu0 0.0
      %9323 = vmatpush1.msra.mxu0 0.0
      %9324 = vmatprep.subr.mxu0 0.0
      %9325 = vmatpush1.msra.mxu0 0.0
      %9326 = vmatprep.subr.mxu0 0.0
      %9327 = vmatpush1.msra.mxu0 0.0
      %9328 = vmatprep.subr.mxu0 0.0
      %9329 = vmatpush1.msra.mxu0 0.0
      %9330 = vmatprep.subr.mxu0 0.0
      %9331 = vmatpush1.msra.mxu0 0.0
      %9332 = vmatprep.subr.mxu0 %v9312
      %9333 = vmatpush1.msra.mxu0 %v9311
      %9334 = vmatprep.subr.mxu0 %v9310
      %9335 = vmatpush1.msra.mxu0 %v9309
      %9336 = vmatprep.subr.mxu0 %v9308
      %9337 = vmatpush1.msra.mxu0 %v9307
      %9338 = vmatprep.subr.mxu0 %v9306
      %9339 = vmatpush1.msra.mxu0 %v9305
      %9340 = vmatprep.subr.mxu0 %v9304
      %9341 = vmatpush1.msra.mxu0 %v9303
      %9342 = vmatprep.subr.mxu0 %v9302
      %9343 = vmatpush1.msra.mxu0 %v9301
      %9344 = vmatprep.subr.mxu0 %v9300
      %9345 = vmatpush1.msra.mxu0 %v9299
      %9346 = vmatprep.subr.mxu0 %v9298
      %9347 = vmatpush1.msra.mxu0 %v9297
      %9348 = vmatprep.subr.mxu0 0.0
      %9349 = vmatpush2.msra.mxu0 0.0
      %9350 = vmatprep.subr.mxu0 0.0
      %9351 = vmatpush2.msra.mxu0 0.0
      %9352 = vmatprep.subr.mxu0 0.0
      %9353 = vmatpush2.msra.mxu0 0.0
      %9354 = vmatprep.subr.mxu0 0.0
      %9355 = vmatpush2.msra.mxu0 0.0
      %9356 = vmatprep.subr.mxu0 0.0
      %9357 = vmatpush2.msra.mxu0 0.0
      %9358 = vmatprep.subr.mxu0 0.0
      %9359 = vmatpush2.msra.mxu0 0.0
      %9360 = vmatprep.subr.mxu0 0.0
      %9361 = vmatpush2.msra.mxu0 0.0
      %9362 = vmatprep.subr.mxu0 0.0
      %9363 = vmatpush2.msra.mxu0 0.0
      %9364 = vmatprep.subr.mxu0 0.0
      %9365 = vmatpush2.msra.mxu0 0.0
      %9366 = vmatprep.subr.mxu0 0.0
      %9367 = vmatpush2.msra.mxu0 0.0
      %9368 = vmatprep.subr.mxu0 0.0
      %9369 = vmatpush2.msra.mxu0 0.0
      %9370 = vmatprep.subr.mxu0 0.0
      %9371 = vmatpush2.msra.mxu0 0.0
      %9372 = vmatprep.subr.mxu0 0.0
      %9373 = vmatpush2.msra.mxu0 0.0
      %9374 = vmatprep.subr.mxu0 0.0
      %9375 = vmatpush2.msra.mxu0 0.0
      %9376 = vmatprep.subr.mxu0 0.0
      %9377 = vmatpush2.msra.mxu0 0.0
      %9378 = vmatprep.subr.mxu0 0.0
      %9379 = vmatpush2.msra.mxu0 0.0
      %9380 = vmatprep.mubr.f32.mxu0 0.0
      %9381 = vmatmul.mubr.f32.gmra.mxu0 %v9314
      %v9382 = vpop.f32.mrf.mxu0
      %v9383 = vadd.f32 0.0, %v9382
      %v9384 = vpop.f32.mrf.mxu0
      %v9385 = vadd.f32 0.0, %v9384
      %9386 = vdwg.mxu0
      %v9387 = vadd.f32 %v9294, %v9383
      %v9388 = vadd.f32 %v9295, %v9385
      %v9389 = vld [vmem:[%s21] sm:$0x7]
      %9391 = vset.pattern.permute.xlu0 0
      %9392 = vperm.xlu0 %9391, %v9389
      %v9393 = vpop.permute.xlu0 %9392
      %v9395 = vadd.f32 %v9387, %v9393
      %v9396 = vadd.f32 %v9388, %v9393
      %v9397 = vsub.f32 0.0, %v9395
      %v9398 = vsub.f32 0.0, %v9396
      %v9399 = vmul.f32 %v9397, 1.442695
      %v9400 = vpow.pop %v9399
      %v9401 = vmul.f32 %v9398, 1.442695
      %v9402 = vpow.pop %v9401
      %v9403 = vadd.f32 %v9400, 1.0
      %v9404 = vadd.f32 %v9402, 1.0
      %v9405 = vrcp.pop %v9403
      %v9406 = vmul.f32 1.0, %v9405
      %v9407 = vrcp.pop %v9404
      %v9408 = vmul.f32 1.0, %v9407
      %v9411 = vcombine.low %v9406, %v9408
      %9413 = vst [vmem:[%s683] sm:$0x77] %v9411
      %p9414 = scmp.lt.s32.totalorder %s33, 1
      %s9415 = scalar_select %p9414, %s33, 1
      %s9416 = smul.addr %s9415, 2
      %s9417 = smul.addr %s9416, 4
      %s9418 = scalar_lea.vmem %s22, %s9417
      // Predicated region
      $region109: #{autoencoder_forward.1} parent=107 // pred_check
        %p9419 = pneg %p518
      $region110: #{autoencoder_forward.1} parent=107 // pred_check_branch
        %9421 = sbr.rel (%p9419) target = $region112
      $region111: #{autoencoder_forward.1} parent=107 // pred_region
        _
      $region112: #{autoencoder_forward.1} parent=107 // pred_fallthru
        _
    $region108: #{autoencoder_forward.1} parent=5 // pred_fallthru
      _
    %p9422 = scmp.le.s32.totalorder 2, %s28
    // Predicated region
    $region113: #{autoencoder_forward.1} parent=5 // pred_check
      %p9423 = pneg %p9422
    $region114: #{autoencoder_forward.1} parent=5 // pred_check_branch
      %9425 = sbr.rel (%p9423) target = $region116
    $region115: #{autoencoder_forward.1} parent=5 // pred_region
      %s9426 = ssub.s32 %s28, 2
      // Predicated region
      $region117: #{autoencoder_forward.1} parent=115 // pred_check
        %p9427 = pneg %p524
      $region118: #{autoencoder_forward.1} parent=115 // pred_check_branch
        %9429 = sbr.rel (%p9427) target = $region120
      $region119: #{autoencoder_forward.1} parent=115 // pred_region
        %p9430 = scmp.lt.s32.totalorder %s34, 1
        %s9431 = scalar_select %p9430, %s34, 1
        %s9432 = smul.addr %s9431, 2
        %s9433 = smul.addr %s9432, 4
        %s9434 = scalar_lea.vmem %s22, %s9433
      $region120: #{autoencoder_forward.1} parent=115 // pred_fallthru
        _
    $region116: #{autoencoder_forward.1} parent=5 // pred_fallthru
      _
  $region6: #{autoencoder_forward.1} parent=0 // loop_footer
    %s32 = sadd.s32 1, %s28
  $region7: #{autoencoder_forward.1} parent=0 // loop_footer_branch
    %27 = sbr.rel target = $region3
  $region8: #{autoencoder_forward.1} parent=0 // loop_exit
    _

</llo_original>
